<compile_context>
chip_gen: v5e
topology: v5e:2x2
jax: 0.10.0
libtpu: 0.0.40
codegen_flags: <defaults>
</compile_context>

<pallas_src>
import functools

import jax
import jax.numpy as jnp
from jax.experimental import pallas as pl
from jax.experimental.pallas import tpu as pltpu

HIDDEN = 768        # BERT hidden size
FC1_OUT = 512
NUM_CLASSES = 5
CPAD = 128          # lane-dense padded class dimension
NEG_MASK = -1e30    # class-lane mask value (safe: softmax math stays f32)


def _round_up(x, m):
    return (x + m - 1) // m * m


def _choose_batch_tile(batch, tb_max=512):
    """Batch-tile heuristic.

    * multiple of 16 rows (bf16 packed-sublane friendly),
    * up to tb_max=512 so per-grid-step overhead is amortized,
    * small enough that the batch splits into >= 2 tiles whenever it can, so
      the ("parallel",) grid axis actually shards across v7x's two TensorCores.
    """
    b16 = _round_up(max(batch, 1), 16)
    half = _round_up(pl.cdiv(b16, 2), 16)
    return max(16, min(tb_max, half))


def prepare_head_params(wp, bp, w1, b1, w2, b2):
    """One-time (model-load) weight prep — NOT on the per-call path.

    * bf16 matmul operands (halves weight DMA, 2x MXU throughput on v6e/v7x),
    * fc2 weight lane-padded 5 -> 128 with zeros,
    * fc2 bias lane-padded with -1e30 so padded class lanes are masked "for
      free" (no in-kernel iota/where); biases stay f32.
    """
    w2p = jnp.pad(w2, ((0, 0), (0, CPAD - NUM_CLASSES)))
    b2p = jnp.pad(b2, ((0, 0), (0, CPAD - NUM_CLASSES)),
                  constant_values=NEG_MASK)
    # TODO(synk): on v7x, wp/w1 could additionally be stored as fp8 (e4m3) with
    # per-output-channel scales folded into the f32 bias (bf16 x fp8 MXU);
    # int8 weight-only quant is the analogous option on v5e/v6e.
    return (wp.astype(jnp.bfloat16), bp.astype(jnp.float32),
            w1.astype(jnp.bfloat16), b1.astype(jnp.float32),
            w2p.astype(jnp.bfloat16), b2p.astype(jnp.float32))


def _head_kernel(x_ref, wp_ref, bp_ref, w1_ref, b1_ref, w2_ref, b2_ref, o_ref):
    """tanh(x@wp+bp) -> fc1 -> ReLU -> (dropout=identity) -> fc2 -> LogSoftmax."""
    # f32 tile streamed from HBM, cast to bf16 in-kernel (VPU slot is idle).
    x = x_ref[...].astype(jnp.bfloat16)                          # [TB, 768]

    # Fused pooler dense + tanh (EUP slot, otherwise idle). f32 accumulation.
    p = jnp.dot(x, wp_ref[...], preferred_element_type=jnp.float32) + bp_ref[...]
    p = jnp.tanh(p)                                              # [TB, 768] f32

    # fc1: bf16 operands, f32 accumulation.
    h = jnp.dot(p.astype(jnp.bfloat16), w1_ref[...],
                preferred_element_type=jnp.float32) + b1_ref[...]
    h = jnp.maximum(h, 0.0)                                      # ReLU
    # Dropout(0.2): identity in eval mode.
    # TODO(synk): training-mode dropout would need pltpu.prng_seed/prng_random_bits.

    # fc2 into the lane-padded (128-wide) class dimension.  The padded bias
    # already carries -1e30 in lanes >= NUM_CLASSES, so padded logits drop out
    # of the normalizer with no extra VPU work.
    logits = jnp.dot(h.astype(jnp.bfloat16), w2_ref[...],
                     preferred_element_type=jnp.float32) + b2_ref[...]

    # Numerically stable log-softmax over the class dim (kept in f32).
    m = jnp.max(logits, axis=1, keepdims=True)
    shifted = logits - m
    lse = jnp.log(jnp.sum(jnp.exp(shifted), axis=1, keepdims=True))
    o_ref[...] = (shifted - lse).astype(o_ref.dtype)


@functools.partial(jax.jit, static_argnames=("single_buffer_weights", "out_dtype"))
def bert_head_forward(pooled, wp_bf, bp, w1_bf, b1, w2_bf, b2p, *,
                      single_buffer_weights=True, out_dtype=jnp.float32):
    """Pooler dense + classification head in one Pallas kernel.

    pooled: [B, 768] f32 (masked-mean-pooled encoder features)
    wp_bf/bp/w1_bf/b1/w2_bf/b2p: outputs of prepare_head_params (load-time prep)
    returns log-probs [B, 5] (out_dtype; f32 by default)
    """
    B = pooled.shape[0]
    tb = _choose_batch_tile(B)
    Bp = _round_up(B, tb)
    if Bp != B:
        pooled = jnp.pad(pooled, ((0, Bp - B), (0, 0)))
    num_tiles = Bp // tb

    # Constant-index weight/bias blocks: single-buffer them (they are never
    # re-fetched), halving their resident VMEM footprint.
    wmode = pl.Buffered(1) if single_buffer_weights else None

    def _wspec(shape):
        if wmode is None:
            return pl.BlockSpec(shape, lambda i: (0, 0))
        return pl.BlockSpec(shape, lambda i: (0, 0), pipeline_mode=wmode)

    flops = 2 * Bp * (HIDDEN * HIDDEN + HIDDEN * FC1_OUT + FC1_OUT * CPAD)
    transcendentals = Bp * (HIDDEN + CPAD)                       # tanh + exp
    bytes_accessed = (
        2 * (HIDDEN * HIDDEN + HIDDEN * FC1_OUT + FC1_OUT * CPAD)   # bf16 weights
        + 4 * (HIDDEN + FC1_OUT + CPAD)                             # f32 biases
        + 4 * Bp * HIDDEN                                           # f32 x stream
        + jnp.dtype(out_dtype).itemsize * Bp * CPAD)                # out stream

    out_padded = pl.pallas_call(
        _head_kernel,
        out_shape=jax.ShapeDtypeStruct((Bp, CPAD), out_dtype),
        grid_spec=pl.GridSpec(
            grid=(num_tiles,),
            in_specs=[
                pl.BlockSpec((tb, HIDDEN), lambda i: (i, 0)),    # x tile (f32)
                _wspec((HIDDEN, HIDDEN)),                        # wp (resident bf16)
                _wspec((1, HIDDEN)),                             # bp (f32)
                _wspec((HIDDEN, FC1_OUT)),                       # w1 (resident bf16)
                _wspec((1, FC1_OUT)),                            # b1 (f32)
                _wspec((FC1_OUT, CPAD)),                         # w2 (resident bf16)
                _wspec((1, CPAD)),                               # b2 (mask baked in)
            ],
            out_specs=pl.BlockSpec((tb, CPAD), lambda i: (i, 0)),
        ),
        compiler_params=pltpu.CompilerParams(
            dimension_semantics=("parallel",),
            vmem_limit_bytes=48 * 1024 * 1024),   # headroom for tb=512 on v5e
        cost_estimate=pl.CostEstimate(
            flops=flops,
            transcendentals=transcendentals,
            bytes_accessed=int(bytes_accessed)),
    )(pooled, wp_bf, bp, w1_bf, b1, w2_bf, b2p)

    return out_padded[:B, :NUM_CLASSES]


def synthetic_bert_pool(sent_id, mask, emb_table):
    """Deterministic stand-in for the external BERT backbone's sequence output.

    Embedding lookup + attention-mask-weighted mean pool -> [B, 768].
    The pooler dense + tanh are fused into the Pallas kernel.
    # TODO(synk): the full multi-layer BERT encoder (external injected module)
    # is out of scope; only its pooled-feature interface [B, 768] is reproduced.
    """
    emb = emb_table[sent_id]                                 # [B, S, 768]
    m = mask.astype(jnp.float32)[..., None]                  # [B, S, 1]
    return jnp.sum(emb * m, axis=1) / jnp.maximum(jnp.sum(m, axis=1), 1.0)


if __name__ == "__main__":
    key = jax.random.PRNGKey(0)
    kE, kWp, kBp, kW1, kB1, kW2, kB2, kIds = jax.random.split(key, 8)

    B, S, VOCAB = 2, 8, 32

    # Deterministic parameter init.
    emb_table = jax.random.normal(kE, (VOCAB, HIDDEN), jnp.float32) * 0.02
    wp = jax.random.normal(kWp, (HIDDEN, HIDDEN), jnp.float32) * 0.02
    bp = jax.random.normal(kBp, (1, HIDDEN), jnp.float32) * 0.02
    w1 = jax.random.normal(kW1, (HIDDEN, FC1_OUT), jnp.float32) * 0.02
    b1 = jax.random.normal(kB1, (1, FC1_OUT), jnp.float32) * 0.02
    w2 = jax.random.normal(kW2, (FC1_OUT, NUM_CLASSES), jnp.float32) * 0.02
    b2 = jax.random.normal(kB2, (1, NUM_CLASSES), jnp.float32) * 0.02

    # Inputs: token ids + attention mask.
    sent_id = jax.random.randint(kIds, (B, S), 0, VOCAB, dtype=jnp.int32)
    mask = jnp.ones((B, S), dtype=jnp.int32)

    # Glue: synthetic BERT pooled features (pre pooler-dense).
    pooled = synthetic_bert_pool(sent_id, mask, emb_table)

    # One-time (load-time) weight prep: bf16 cast + lane pad + baked class mask.
    head_params = prepare_head_params(wp, bp, w1, b1, w2, b2)

    # Pallas kernel: pooler dense + fc1 + ReLU + fc2 + log-softmax.
    try:
        log_probs = jax.block_until_ready(
            bert_head_forward(pooled, *head_params))
    except Exception:
        # Narrow compatibility fallback: if this JAX build rejects
        # pipeline_mode=pl.Buffered(1) single-buffering of the constant weight
        # blocks, re-run with the default double-buffered specs.
        log_probs = jax.block_until_ready(
            bert_head_forward(pooled, *head_params,
                              single_buffer_weights=False))

    # Pure-JAX reference with the same bf16 operand rounding.
    def bf(x):
        return x.astype(jnp.bfloat16).astype(jnp.float32)

    cls_hs = jnp.tanh(bf(pooled) @ bf(wp) + bp)
    h = jnp.maximum(bf(cls_hs) @ bf(w1) + b1, 0.0)
    logits = bf(h) @ bf(w2) + b2
    ref = jax.nn.log_softmax(logits, axis=1)

    assert log_probs.shape == (B, NUM_CLASSES)
    assert jnp.allclose(log_probs, ref, atol=2e-3, rtol=2e-3), (
        jnp.max(jnp.abs(log_probs - ref)))
    assert bool(jnp.all(jnp.isfinite(log_probs)))

    print("KERNEL_OK")
</pallas_src>

<mosaic_0001>
module attributes {stable_mosaic.version = 11 : i64} {
  func.func @_head_kernel(%arg0: i32, %arg1: memref<16x768xf32, #tpu.memory_space<vmem>>, %arg2: memref<768x768xbf16, #tpu.memory_space<vmem>>, %arg3: memref<1x768xf32, #tpu.memory_space<vmem>>, %arg4: memref<768x512xbf16, #tpu.memory_space<vmem>>, %arg5: memref<1x512xf32, #tpu.memory_space<vmem>>, %arg6: memref<512x128xbf16, #tpu.memory_space<vmem>>, %arg7: memref<1x128xf32, #tpu.memory_space<vmem>>, %arg8: memref<16x128xf32, #tpu.memory_space<vmem>>) attributes {dimension_semantics = [#tpu.dimension_semantics<parallel>], iteration_bounds = array<i64: 1>, scalar_prefetch = 0 : i64, scratch_operands = 0 : i64, tpu.core_type = #tpu.core_type<tc>, window_params = [{transform_indices = @transform_0, window_bounds = array<i64: 16, 768>}, {pipeline_mode = #tpu.pipeline_mode<synchronous>, transform_indices = @transform_1, window_bounds = array<i64: 768, 768>}, {pipeline_mode = #tpu.pipeline_mode<synchronous>, transform_indices = @transform_2, window_bounds = array<i64: 1, 768>}, {pipeline_mode = #tpu.pipeline_mode<synchronous>, transform_indices = @transform_3, window_bounds = array<i64: 768, 512>}, {pipeline_mode = #tpu.pipeline_mode<synchronous>, transform_indices = @transform_4, window_bounds = array<i64: 1, 512>}, {pipeline_mode = #tpu.pipeline_mode<synchronous>, transform_indices = @transform_5, window_bounds = array<i64: 512, 128>}, {pipeline_mode = #tpu.pipeline_mode<synchronous>, transform_indices = @transform_6, window_bounds = array<i64: 1, 128>}, {transform_indices = @transform_7, window_bounds = array<i64: 16, 128>}]} {
    %c0 = arith.constant 0 : index
    %c0_0 = arith.constant 0 : index
    %0 = vector.load %arg1[%c0, %c0_0] : memref<16x768xf32, #tpu.memory_space<vmem>>, vector<16x768xf32>
    %1 = arith.truncf %0 : vector<16x768xf32> to vector<16x768xbf16>
    %c0_1 = arith.constant 0 : index
    %c0_2 = arith.constant 0 : index
    %2 = vector.load %arg2[%c0_1, %c0_2] : memref<768x768xbf16, #tpu.memory_space<vmem>>, vector<768x768xbf16>
    %cst = arith.constant dense<0.000000e+00> : vector<16x768xf32>
    %3 = tpu.matmul %1, %2, %cst {dimension_numbers = #tpu.dot_dimension_numbers<[1], [0], [0], [1], [0, 0, 1, 1], [], []>} : vector<16x768xbf16>, vector<768x768xbf16>, vector<16x768xf32> -> vector<16x768xf32>
    %c0_3 = arith.constant 0 : index
    %c0_4 = arith.constant 0 : index
    %4 = vector.load %arg3[%c0_3, %c0_4] : memref<1x768xf32, #tpu.memory_space<vmem>>, vector<1x768xf32>
    %5 = vector.broadcast %4 : vector<1x768xf32> to vector<16x768xf32>
    %6 = arith.addf %3, %5 : vector<16x768xf32>
    %7 = math.tanh %6 : vector<16x768xf32>
    %8 = arith.truncf %7 : vector<16x768xf32> to vector<16x768xbf16>
    %c0_5 = arith.constant 0 : index
    %c0_6 = arith.constant 0 : index
    %9 = vector.load %arg4[%c0_5, %c0_6] : memref<768x512xbf16, #tpu.memory_space<vmem>>, vector<768x512xbf16>
    %cst_7 = arith.constant dense<0.000000e+00> : vector<16x512xf32>
    %10 = tpu.matmul %8, %9, %cst_7 {dimension_numbers = #tpu.dot_dimension_numbers<[1], [0], [0], [1], [0, 0, 1, 1], [], []>} : vector<16x768xbf16>, vector<768x512xbf16>, vector<16x512xf32> -> vector<16x512xf32>
    %c0_8 = arith.constant 0 : index
    %c0_9 = arith.constant 0 : index
    %11 = vector.load %arg5[%c0_8, %c0_9] : memref<1x512xf32, #tpu.memory_space<vmem>>, vector<1x512xf32>
    %12 = vector.broadcast %11 : vector<1x512xf32> to vector<16x512xf32>
    %13 = arith.addf %10, %12 : vector<16x512xf32>
    %cst_10 = arith.constant 0.000000e+00 : f32
    %14 = vector.broadcast %cst_10 : f32 to vector<16x512xf32>
    %15 = arith.maximumf %13, %14 : vector<16x512xf32>
    %16 = arith.truncf %15 : vector<16x512xf32> to vector<16x512xbf16>
    %c0_11 = arith.constant 0 : index
    %c0_12 = arith.constant 0 : index
    %17 = vector.load %arg6[%c0_11, %c0_12] : memref<512x128xbf16, #tpu.memory_space<vmem>>, vector<512x128xbf16>
    %cst_13 = arith.constant dense<0.000000e+00> : vector<16x128xf32>
    %18 = tpu.matmul %16, %17, %cst_13 {dimension_numbers = #tpu.dot_dimension_numbers<[1], [0], [0], [1], [0, 0, 1, 1], [], []>} : vector<16x512xbf16>, vector<512x128xbf16>, vector<16x128xf32> -> vector<16x128xf32>
    %c0_14 = arith.constant 0 : index
    %c0_15 = arith.constant 0 : index
    %19 = vector.load %arg7[%c0_14, %c0_15] : memref<1x128xf32, #tpu.memory_space<vmem>>, vector<1x128xf32>
    %20 = vector.broadcast %19 : vector<1x128xf32> to vector<16x128xf32>
    %21 = arith.addf %18, %20 : vector<16x128xf32>
    %cst_16 = arith.constant dense<0xFF800000> : vector<16xf32>
    %22 = vector.multi_reduction <maximumf>, %21, %cst_16 [1] : vector<16x128xf32> to vector<16xf32>
    %23 = vector.shape_cast %22 : vector<16xf32> to vector<16x1xf32>
    %24 = vector.broadcast %23 : vector<16x1xf32> to vector<16x128xf32>
    %25 = arith.subf %21, %24 : vector<16x128xf32>
    %26 = math.exp %25 : vector<16x128xf32>
    %cst_17 = arith.constant dense<0.000000e+00> : vector<16xf32>
    %27 = vector.multi_reduction <add>, %26, %cst_17 [1] : vector<16x128xf32> to vector<16xf32>
    %28 = vector.shape_cast %27 : vector<16xf32> to vector<16x1xf32>
    %29 = math.log %28 : vector<16x1xf32>
    %30 = vector.broadcast %29 : vector<16x1xf32> to vector<16x128xf32>
    %31 = arith.subf %25, %30 : vector<16x128xf32>
    %c0_18 = arith.constant 0 : index
    %c0_19 = arith.constant 0 : index
    %32 = vector.load %arg8[%c0_18, %c0_19] : memref<16x128xf32, #tpu.memory_space<vmem>>, vector<16x128xf32>
    tpu.vector_store %arg8[%c0_18, %c0_19], %31 {strides = array<i32>} : memref<16x128xf32, #tpu.memory_space<vmem>>, vector<16x128xf32>,
    return
  }
  func.func @transform_0(%arg0: i32) -> (i32, i32) {
    %c0_i32 = arith.constant 0 : i32
    %c0_i32_0 = arith.constant 0 : i32
    return %arg0, %c0_i32 : i32, i32
  }
  func.func @transform_1(%arg0: i32) -> (i32, i32) {
    %c0_i32 = arith.constant 0 : i32
    %c0_i32_0 = arith.constant 0 : i32
    %c0_i32_1 = arith.constant 0 : i32
    return %c0_i32, %c0_i32_0 : i32, i32
  }
  func.func @transform_2(%arg0: i32) -> (i32, i32) {
    %c0_i32 = arith.constant 0 : i32
    %c0_i32_0 = arith.constant 0 : i32
    %c0_i32_1 = arith.constant 0 : i32
    return %c0_i32, %c0_i32_0 : i32, i32
  }
  func.func @transform_3(%arg0: i32) -> (i32, i32) {
    %c0_i32 = arith.constant 0 : i32
    %c0_i32_0 = arith.constant 0 : i32
    %c0_i32_1 = arith.constant 0 : i32
    return %c0_i32, %c0_i32_0 : i32, i32
  }
  func.func @transform_4(%arg0: i32) -> (i32, i32) {
    %c0_i32 = arith.constant 0 : i32
    %c0_i32_0 = arith.constant 0 : i32
    %c0_i32_1 = arith.constant 0 : i32
    return %c0_i32, %c0_i32_0 : i32, i32
  }
  func.func @transform_5(%arg0: i32) -> (i32, i32) {
    %c0_i32 = arith.constant 0 : i32
    %c0_i32_0 = arith.constant 0 : i32
    %c0_i32_1 = arith.constant 0 : i32
    return %c0_i32, %c0_i32_0 : i32, i32
  }
  func.func @transform_6(%arg0: i32) -> (i32, i32) {
    %c0_i32 = arith.constant 0 : i32
    %c0_i32_0 = arith.constant 0 : i32
    %c0_i32_1 = arith.constant 0 : i32
    return %c0_i32, %c0_i32_0 : i32, i32
  }
  func.func @transform_7(%arg0: i32) -> (i32, i32) {
    %c0_i32 = arith.constant 0 : i32
    %c0_i32_0 = arith.constant 0 : i32
    return %arg0, %c0_i32 : i32, i32
  }
}

module attributes {stable_mosaic.version = 11 : i64} {
  func.func @_head_kernel(%arg0: i32, %arg1: memref<16x768xf32, #tpu.memory_space<vmem>>, %arg2: memref<768x768xbf16, #tpu.memory_space<vmem>>, %arg3: memref<1x768xf32, #tpu.memory_space<vmem>>, %arg4: memref<768x512xbf16, #tpu.memory_space<vmem>>, %arg5: memref<1x512xf32, #tpu.memory_space<vmem>>, %arg6: memref<512x128xbf16, #tpu.memory_space<vmem>>, %arg7: memref<1x128xf32, #tpu.memory_space<vmem>>, %arg8: memref<16x128xf32, #tpu.memory_space<vmem>>) attributes {dimension_semantics = [#tpu.dimension_semantics<parallel>], iteration_bounds = array<i64: 1>, scalar_prefetch = 0 : i64, scratch_operands = 0 : i64, tpu.core_type = #tpu.core_type<tc>, window_params = [{transform_indices = @transform_0, window_bounds = array<i64: 16, 768>}, {pipeline_mode = #tpu.pipeline_mode<synchronous>, transform_indices = @transform_1, window_bounds = array<i64: 768, 768>}, {pipeline_mode = #tpu.pipeline_mode<synchronous>, transform_indices = @transform_2, window_bounds = array<i64: 1, 768>}, {pipeline_mode = #tpu.pipeline_mode<synchronous>, transform_indices = @transform_3, window_bounds = array<i64: 768, 512>}, {pipeline_mode = #tpu.pipeline_mode<synchronous>, transform_indices = @transform_4, window_bounds = array<i64: 1, 512>}, {pipeline_mode = #tpu.pipeline_mode<synchronous>, transform_indices = @transform_5, window_bounds = array<i64: 512, 128>}, {pipeline_mode = #tpu.pipeline_mode<synchronous>, transform_indices = @transform_6, window_bounds = array<i64: 1, 128>}, {transform_indices = @transform_7, window_bounds = array<i64: 16, 128>}]} {
    %c0 = arith.constant 0 : index
    %c0_0 = arith.constant 0 : index
    %0 = vector.load %arg1[%c0, %c0_0] : memref<16x768xf32, #tpu.memory_space<vmem>>, vector<16x768xf32>
    %1 = arith.truncf %0 : vector<16x768xf32> to vector<16x768xbf16>
    %c0_1 = arith.constant 0 : index
    %c0_2 = arith.constant 0 : index
    %2 = vector.load %arg2[%c0_1, %c0_2] : memref<768x768xbf16, #tpu.memory_space<vmem>>, vector<768x768xbf16>
    %cst = arith.constant dense<0.000000e+00> : vector<16x768xf32>
    %3 = tpu.matmul %1, %2, %cst {dimension_numbers = #tpu.dot_dimension_numbers<[1], [0], [0], [1], [0, 0, 1, 1], [], []>} : vector<16x768xbf16>, vector<768x768xbf16>, vector<16x768xf32> -> vector<16x768xf32>
    %c0_3 = arith.constant 0 : index
    %c0_4 = arith.constant 0 : index
    %4 = vector.load %arg3[%c0_3, %c0_4] : memref<1x768xf32, #tpu.memory_space<vmem>>, vector<1x768xf32>
    %5 = vector.broadcast %4 : vector<1x768xf32> to vector<16x768xf32>
    %6 = arith.addf %3, %5 : vector<16x768xf32>
    %7 = math.tanh %6 : vector<16x768xf32>
    %8 = arith.truncf %7 : vector<16x768xf32> to vector<16x768xbf16>
    %c0_5 = arith.constant 0 : index
    %c0_6 = arith.constant 0 : index
    %9 = vector.load %arg4[%c0_5, %c0_6] : memref<768x512xbf16, #tpu.memory_space<vmem>>, vector<768x512xbf16>
    %cst_7 = arith.constant dense<0.000000e+00> : vector<16x512xf32>
    %10 = tpu.matmul %8, %9, %cst_7 {dimension_numbers = #tpu.dot_dimension_numbers<[1], [0], [0], [1], [0, 0, 1, 1], [], []>} : vector<16x768xbf16>, vector<768x512xbf16>, vector<16x512xf32> -> vector<16x512xf32>
    %c0_8 = arith.constant 0 : index
    %c0_9 = arith.constant 0 : index
    %11 = vector.load %arg5[%c0_8, %c0_9] : memref<1x512xf32, #tpu.memory_space<vmem>>, vector<1x512xf32>
    %12 = vector.broadcast %11 : vector<1x512xf32> to vector<16x512xf32>
    %13 = arith.addf %10, %12 : vector<16x512xf32>
    %cst_10 = arith.constant 0.000000e+00 : f32
    %14 = vector.broadcast %cst_10 : f32 to vector<16x512xf32>
    %15 = arith.maximumf %13, %14 : vector<16x512xf32>
    %16 = arith.truncf %15 : vector<16x512xf32> to vector<16x512xbf16>
    %c0_11 = arith.constant 0 : index
    %c0_12 = arith.constant 0 : index
    %17 = vector.load %arg6[%c0_11, %c0_12] : memref<512x128xbf16, #tpu.memory_space<vmem>>, vector<512x128xbf16>
    %cst_13 = arith.constant dense<0.000000e+00> : vector<16x128xf32>
    %18 = tpu.matmul %16, %17, %cst_13 {dimension_numbers = #tpu.dot_dimension_numbers<[1], [0], [0], [1], [0, 0, 1, 1], [], []>} : vector<16x512xbf16>, vector<512x128xbf16>, vector<16x128xf32> -> vector<16x128xf32>
    %c0_14 = arith.constant 0 : index
    %c0_15 = arith.constant 0 : index
    %19 = vector.load %arg7[%c0_14, %c0_15] : memref<1x128xf32, #tpu.memory_space<vmem>>, vector<1x128xf32>
    %20 = vector.broadcast %19 : vector<1x128xf32> to vector<16x128xf32>
    %21 = arith.addf %18, %20 : vector<16x128xf32>
    %cst_16 = arith.constant dense<0xFF800000> : vector<16xf32>
    %22 = vector.multi_reduction <maximumf>, %21, %cst_16 [1] : vector<16x128xf32> to vector<16xf32>
    %23 = vector.shape_cast %22 : vector<16xf32> to vector<16x1xf32>
    %24 = vector.broadcast %23 : vector<16x1xf32> to vector<16x128xf32>
    %25 = arith.subf %21, %24 : vector<16x128xf32>
    %26 = math.exp %25 : vector<16x128xf32>
    %cst_17 = arith.constant dense<0.000000e+00> : vector<16xf32>
    %27 = vector.multi_reduction <add>, %26, %cst_17 [1] : vector<16x128xf32> to vector<16xf32>
    %28 = vector.shape_cast %27 : vector<16xf32> to vector<16x1xf32>
    %29 = math.log %28 : vector<16x1xf32>
    %30 = vector.broadcast %29 : vector<16x1xf32> to vector<16x128xf32>
    %31 = arith.subf %25, %30 : vector<16x128xf32>
    %c0_18 = arith.constant 0 : index
    %c0_19 = arith.constant 0 : index
    %32 = vector.load %arg8[%c0_18, %c0_19] : memref<16x128xf32, #tpu.memory_space<vmem>>, vector<16x128xf32>
    tpu.vector_store %arg8[%c0_18, %c0_19], %31 {strides = array<i32>} : memref<16x128xf32, #tpu.memory_space<vmem>>, vector<16x128xf32>,
    return
  }
  func.func @transform_0(%arg0: i32) -> (i32, i32) {
    %c0_i32 = arith.constant 0 : i32
    %c0_i32_0 = arith.constant 0 : i32
    return %arg0, %c0_i32 : i32, i32
  }
  func.func @transform_1(%arg0: i32) -> (i32, i32) {
    %c0_i32 = arith.constant 0 : i32
    %c0_i32_0 = arith.constant 0 : i32
    %c0_i32_1 = arith.constant 0 : i32
    return %c0_i32, %c0_i32_0 : i32, i32
  }
  func.func @transform_2(%arg0: i32) -> (i32, i32) {
    %c0_i32 = arith.constant 0 : i32
    %c0_i32_0 = arith.constant 0 : i32
    %c0_i32_1 = arith.constant 0 : i32
    return %c0_i32, %c0_i32_0 : i32, i32
  }
  func.func @transform_3(%arg0: i32) -> (i32, i32) {
    %c0_i32 = arith.constant 0 : i32
    %c0_i32_0 = arith.constant 0 : i32
    %c0_i32_1 = arith.constant 0 : i32
    return %c0_i32, %c0_i32_0 : i32, i32
  }
  func.func @transform_4(%arg0: i32) -> (i32, i32) {
    %c0_i32 = arith.constant 0 : i32
    %c0_i32_0 = arith.constant 0 : i32
    %c0_i32_1 = arith.constant 0 : i32
    return %c0_i32, %c0_i32_0 : i32, i32
  }
  func.func @transform_5(%arg0: i32) -> (i32, i32) {
    %c0_i32 = arith.constant 0 : i32
    %c0_i32_0 = arith.constant 0 : i32
    %c0_i32_1 = arith.constant 0 : i32
    return %c0_i32, %c0_i32_0 : i32, i32
  }
  func.func @transform_6(%arg0: i32) -> (i32, i32) {
    %c0_i32 = arith.constant 0 : i32
    %c0_i32_0 = arith.constant 0 : i32
    %c0_i32_1 = arith.constant 0 : i32
    return %c0_i32, %c0_i32_0 : i32, i32
  }
  func.func @transform_7(%arg0: i32) -> (i32, i32) {
    %c0_i32 = arith.constant 0 : i32
    %c0_i32_0 = arith.constant 0 : i32
    return %arg0, %c0_i32 : i32, i32
  }
}

</mosaic_0001>

<llo_original>
// kernel: bert_head_forward.1
$region0: #{bert_head_forward.1}
  #allocation0 [shape = 'u32[]', space=smem, size = 0x4, offset = 0x4, fixed_abs, tag = 'smem constant byte address 0x4 - core index']
  #allocation1 [shape = 'u32[72,128]{1,0:T(1,128)}', space=vmem, size = 0x9000, scoped, tag = 'internal scratch']
  %s0 = inlined_call_operand.vmem [shape: f32[16,768], index: 0, kind: input, shape index: {}]
  %s1 = inlined_call_operand.hbm [shape: bf16[768,768], index: 1, kind: input, shape index: {}]
  %s2 = inlined_call_operand.hbm [shape: f32[1,768], index: 2, kind: input, shape index: {}]
  %s3 = inlined_call_operand.hbm [shape: bf16[768,512], index: 3, kind: input, shape index: {}]
  %s4 = inlined_call_operand.hbm [shape: f32[1,512], index: 4, kind: input, shape index: {}]
  %s5 = inlined_call_operand.hbm [shape: bf16[512,128], index: 5, kind: input, shape index: {}]
  %s6 = inlined_call_operand.hbm [shape: f32[1,128], index: 6, kind: input, shape index: {}]
  %s7 = inlined_call_operand.vmem [shape: f32[16,128], index: 7, kind: output, shape index: {}]
  %s8 = sld [smem:[#allocation0]]
  $region62: #{bert_head_forward.1} parent=0
    _
  %s10 = ssub.s32 1, %s8
  %s11 = scalar_select 0, %s10, %s8
  $region1: #{bert_head_forward.1} parent=0
    #allocation2 [shape = 'u8[1179648]{0}', space=vmem, size = 0x120000, scoped, tag = 'input window, operand 1, single buffered']
    #allocation3 [shape = 's32[1]{0}', space=sflag, size = 0x4, scoped, tag = 'scoped memory for bert_head_forward.1']
    #allocation4 [shape = 'u8[3072]{0}', space=vmem, size = 0xc00, scoped, tag = 'input window, operand 2, single buffered']
    #allocation5 [shape = 's32[1]{0}', space=sflag, size = 0x4, scoped, tag = 'scoped memory for bert_head_forward.1']
    #allocation6 [shape = 'u8[786432]{0}', space=vmem, size = 0xc0000, scoped, tag = 'input window, operand 3, single buffered']
    #allocation7 [shape = 'u8[2048]{0}', space=vmem, size = 0x800, scoped, tag = 'input window, operand 4, single buffered']
    #allocation8 [shape = 's32[1]{0}', space=sflag, size = 0x4, scoped, tag = 'scoped memory for bert_head_forward.1']
    #allocation9 [shape = 'u8[131072]{0}', space=vmem, size = 0x20000, scoped, tag = 'input window, operand 5, single buffered']
    #allocation10 [shape = 'u8[512]{0}', space=vmem, size = 0x400, scoped, tag = 'input window, operand 6, single buffered']
    #allocation11 [shape = 's32[1]{0}', space=sflag, size = 0x4, scoped, tag = 'scoped memory for bert_head_forward.1']
    %12 = vsyncpa [#allocation3], 0
    %13 = vsyncpa [#allocation5], 0
    %14 = vsyncpa [#allocation8], 0
    %15 = vsyncpa [#allocation11], 0
    // Predicated region
    $region2: #{bert_head_forward.1} parent=1 // pred_check
      _
    $region3: #{bert_head_forward.1} parent=1 // pred_check_branch
      %17 = sbr.rel (0) target = $region5
    $region4: #{bert_head_forward.1} parent=1 // pred_region
      _
    $region5: #{bert_head_forward.1} parent=1 // pred_fallthru
      _
    // Predicated region
    $region6: #{bert_head_forward.1} parent=1 // pred_check
      _
    $region7: #{bert_head_forward.1} parent=1 // pred_check_branch
      %19 = sbr.rel (0) target = $region9
    $region8: #{bert_head_forward.1} parent=1 // pred_region
      %21 = vsyncadd [#allocation3], 0
      %s22 = sshll.u32 %s1, 4
      %s23 = int_to_ptr.hbm [resolvable:$true] %s22
      %s24 = sshll.u32 [#allocation2], 4
      %s25 = int_to_ptr.vmem [resolvable:$true] %s24
      %30 = dma.hbm_to_vmem [thread:$0]  %s23, 36864, %s25, [#allocation3], 384, 384, 24
    $region9: #{bert_head_forward.1} parent=1 // pred_fallthru
      _
    // Predicated region
    $region10: #{bert_head_forward.1} parent=1 // pred_check
      _
    $region11: #{bert_head_forward.1} parent=1 // pred_check_branch
      %32 = sbr.rel (0) target = $region13
    $region12: #{bert_head_forward.1} parent=1 // pred_region
      %34 = vsyncadd [#allocation5], 0
      %s36 = sshll.u32 %s2, 4
      %s37 = int_to_ptr.hbm [resolvable:$true] %s36
      %s38 = sshll.u32 [#allocation4], 4
      %s39 = int_to_ptr.vmem [resolvable:$true] %s38
      %41 = dma.hbm_to_vmem [thread:$0]  %s37, 96, %s39, [#allocation5]
    $region13: #{bert_head_forward.1} parent=1 // pred_fallthru
      _
    // Predicated region
    $region14: #{bert_head_forward.1} parent=1 // pred_check
      _
    $region15: #{bert_head_forward.1} parent=1 // pred_check_branch
      %43 = sbr.rel (0) target = $region17
    $region16: #{bert_head_forward.1} parent=1 // pred_region
      %45 = vsyncadd [#allocation5], 0
      %s46 = sshll.u32 %s3, 4
      %s47 = int_to_ptr.hbm [resolvable:$true] %s46
      %s48 = sshll.u32 [#allocation6], 4
      %s49 = int_to_ptr.vmem [resolvable:$true] %s48
      %54 = dma.hbm_to_vmem [thread:$0]  %s47, 24576, %s49, [#allocation5], 256, 256, 16
    $region17: #{bert_head_forward.1} parent=1 // pred_fallthru
      _
    // Predicated region
    $region18: #{bert_head_forward.1} parent=1 // pred_check
      _
    $region19: #{bert_head_forward.1} parent=1 // pred_check_branch
      %56 = sbr.rel (0) target = $region21
    $region20: #{bert_head_forward.1} parent=1 // pred_region
      %58 = vsyncadd [#allocation8], 0
      %s60 = sshll.u32 %s4, 4
      %s61 = int_to_ptr.hbm [resolvable:$true] %s60
      %s62 = sshll.u32 [#allocation7], 4
      %s63 = int_to_ptr.vmem [resolvable:$true] %s62
      %65 = dma.hbm_to_vmem [thread:$0]  %s61, 64, %s63, [#allocation8]
    $region21: #{bert_head_forward.1} parent=1 // pred_fallthru
      _
    // Predicated region
    $region22: #{bert_head_forward.1} parent=1 // pred_check
      _
    $region23: #{bert_head_forward.1} parent=1 // pred_check_branch
      %67 = sbr.rel (0) target = $region25
    $region24: #{bert_head_forward.1} parent=1 // pred_region
      %69 = vsyncadd [#allocation8], 0
      %s70 = sshll.u32 %s5, 4
      %s71 = int_to_ptr.hbm [resolvable:$true] %s70
      %s72 = sshll.u32 [#allocation9], 4
      %s73 = int_to_ptr.vmem [resolvable:$true] %s72
      %78 = dma.hbm_to_vmem [thread:$0]  %s71, 4096, %s73, [#allocation8], 64, 64, 4
    $region25: #{bert_head_forward.1} parent=1 // pred_fallthru
      _
    // Predicated region
    $region26: #{bert_head_forward.1} parent=1 // pred_check
      _
    $region27: #{bert_head_forward.1} parent=1 // pred_check_branch
      %80 = sbr.rel (0) target = $region29
    $region28: #{bert_head_forward.1} parent=1 // pred_region
      %82 = vsyncadd [#allocation11], 0
      %s84 = sshll.u32 %s6, 4
      %s85 = int_to_ptr.hbm [resolvable:$true] %s84
      %s86 = sshll.u32 [#allocation10], 4
      %s87 = int_to_ptr.vmem [resolvable:$true] %s86
      %89 = dma.hbm_to_vmem [thread:$0]  %s85, 16, %s87, [#allocation11]
    $region29: #{bert_head_forward.1} parent=1 // pred_fallthru
      _
    // Predicated region
    $region30: #{bert_head_forward.1} parent=1 // pred_check
      _
    $region31: #{bert_head_forward.1} parent=1 // pred_check_branch
      %91 = sbr.rel (0) target = $region33
    $region32: #{bert_head_forward.1} parent=1 // pred_region
      %93 = dma.done [#allocation3], 36864
    $region33: #{bert_head_forward.1} parent=1 // pred_fallthru
      _
    // Predicated region
    $region34: #{bert_head_forward.1} parent=1 // pred_check
      _
    $region35: #{bert_head_forward.1} parent=1 // pred_check_branch
      %95 = sbr.rel (0) target = $region37
    $region36: #{bert_head_forward.1} parent=1 // pred_region
      %97 = dma.done [#allocation5], 96
    $region37: #{bert_head_forward.1} parent=1 // pred_fallthru
      _
    // Predicated region
    $region38: #{bert_head_forward.1} parent=1 // pred_check
      _
    $region39: #{bert_head_forward.1} parent=1 // pred_check_branch
      %99 = sbr.rel (0) target = $region41
    $region40: #{bert_head_forward.1} parent=1 // pred_region
      %101 = dma.done [#allocation5], 24576
    $region41: #{bert_head_forward.1} parent=1 // pred_fallthru
      _
    // Predicated region
    $region42: #{bert_head_forward.1} parent=1 // pred_check
      _
    $region43: #{bert_head_forward.1} parent=1 // pred_check_branch
      %103 = sbr.rel (0) target = $region45
    $region44: #{bert_head_forward.1} parent=1 // pred_region
      %105 = dma.done [#allocation8], 64
    $region45: #{bert_head_forward.1} parent=1 // pred_fallthru
      _
    // Predicated region
    $region46: #{bert_head_forward.1} parent=1 // pred_check
      _
    $region47: #{bert_head_forward.1} parent=1 // pred_check_branch
      %107 = sbr.rel (0) target = $region49
    $region48: #{bert_head_forward.1} parent=1 // pred_region
      %109 = dma.done [#allocation8], 4096
    $region49: #{bert_head_forward.1} parent=1 // pred_fallthru
      _
    // Predicated region
    $region50: #{bert_head_forward.1} parent=1 // pred_check
      _
    $region51: #{bert_head_forward.1} parent=1 // pred_check_branch
      %111 = sbr.rel (0) target = $region53
    $region52: #{bert_head_forward.1} parent=1 // pred_region
      %113 = dma.done [#allocation11], 16
    $region53: #{bert_head_forward.1} parent=1 // pred_fallthru
      _
    %v114 = vld [vmem:[%s0] sm:$0xff]
    %v115 = vld [vmem:[%s0 + $0x8] sm:$0xff]
    %v116 = vld [vmem:[%s0 + $0x10] sm:$0xff]
    %v117 = vld [vmem:[%s0 + $0x18] sm:$0xff]
    %v118 = vld [vmem:[%s0 + $0x20] sm:$0xff]
    %v119 = vld [vmem:[%s0 + $0x28] sm:$0xff]
    %v120 = vld [vmem:[%s0 + $0x30] sm:$0xff]
    %v121 = vld [vmem:[%s0 + $0x38] sm:$0xff]
    %v122 = vld [vmem:[%s0 + $0x40] sm:$0xff]
    %v123 = vld [vmem:[%s0 + $0x48] sm:$0xff]
    %v124 = vld [vmem:[%s0 + $0x50] sm:$0xff]
    %v125 = vld [vmem:[%s0 + $0x58] sm:$0xff]
    %v126 = vpack.c.bf16 %v120, %v114
    %v127 = vpack.c.bf16 %v121, %v115
    %v128 = vpack.c.bf16 %v122, %v116
    %v129 = vpack.c.bf16 %v123, %v117
    %v130 = vpack.c.bf16 %v124, %v118
    %v131 = vpack.c.bf16 %v125, %v119
    %v132 = vld [vmem:[#allocation2] sm:$0xff]
    %v133 = vld [vmem:[#allocation2 + $0x8] sm:$0xff]
    %v134 = vld [vmem:[#allocation2 + $0x10] sm:$0xff]
    %v135 = vld [vmem:[#allocation2 + $0x18] sm:$0xff]
    %v136 = vld [vmem:[#allocation2 + $0x20] sm:$0xff]
    %v137 = vld [vmem:[#allocation2 + $0x28] sm:$0xff]
    %v138 = vld [vmem:[#allocation2 + $0x30] sm:$0xff]
    %v139 = vld [vmem:[#allocation2 + $0x38] sm:$0xff]
    %v140 = vld [vmem:[#allocation2 + $0x40] sm:$0xff]
    %v141 = vld [vmem:[#allocation2 + $0x48] sm:$0xff]
    %v142 = vld [vmem:[#allocation2 + $0x50] sm:$0xff]
    %v143 = vld [vmem:[#allocation2 + $0x58] sm:$0xff]
    %v144 = vld [vmem:[#allocation2 + $0x60] sm:$0xff]
    %v145 = vld [vmem:[#allocation2 + $0x68] sm:$0xff]
    %v146 = vld [vmem:[#allocation2 + $0x70] sm:$0xff]
    %v147 = vld [vmem:[#allocation2 + $0x78] sm:$0xff]
    %v148 = vld [vmem:[#allocation2 + $0x80] sm:$0xff]
    %v149 = vld [vmem:[#allocation2 + $0x88] sm:$0xff]
    %v150 = vld [vmem:[#allocation2 + $0x90] sm:$0xff]
    %v151 = vld [vmem:[#allocation2 + $0x98] sm:$0xff]
    %v152 = vld [vmem:[#allocation2 + $0xa0] sm:$0xff]
    %v153 = vld [vmem:[#allocation2 + $0xa8] sm:$0xff]
    %v154 = vld [vmem:[#allocation2 + $0xb0] sm:$0xff]
    %v155 = vld [vmem:[#allocation2 + $0xb8] sm:$0xff]
    %v156 = vld [vmem:[#allocation2 + $0xc0] sm:$0xff]
    %v157 = vld [vmem:[#allocation2 + $0xc8] sm:$0xff]
    %v158 = vld [vmem:[#allocation2 + $0xd0] sm:$0xff]
    %v159 = vld [vmem:[#allocation2 + $0xd8] sm:$0xff]
    %v160 = vld [vmem:[#allocation2 + $0xe0] sm:$0xff]
    %v161 = vld [vmem:[#allocation2 + $0xe8] sm:$0xff]
    %v162 = vld [vmem:[#allocation2 + $0xf0] sm:$0xff]
    %v163 = vld [vmem:[#allocation2 + $0xf8] sm:$0xff]
    %v164 = vld [vmem:[#allocation2 + $0x100] sm:$0xff]
    %v165 = vld [vmem:[#allocation2 + $0x108] sm:$0xff]
    %v166 = vld [vmem:[#allocation2 + $0x110] sm:$0xff]
    %v167 = vld [vmem:[#allocation2 + $0x118] sm:$0xff]
    %v168 = vld [vmem:[#allocation2 + $0x120] sm:$0xff]
    %v169 = vld [vmem:[#allocation2 + $0x128] sm:$0xff]
    %v170 = vld [vmem:[#allocation2 + $0x130] sm:$0xff]
    %v171 = vld [vmem:[#allocation2 + $0x138] sm:$0xff]
    %v172 = vld [vmem:[#allocation2 + $0x140] sm:$0xff]
    %v173 = vld [vmem:[#allocation2 + $0x148] sm:$0xff]
    %v174 = vld [vmem:[#allocation2 + $0x150] sm:$0xff]
    %v175 = vld [vmem:[#allocation2 + $0x158] sm:$0xff]
    %v176 = vld [vmem:[#allocation2 + $0x160] sm:$0xff]
    %v177 = vld [vmem:[#allocation2 + $0x168] sm:$0xff]
    %v178 = vld [vmem:[#allocation2 + $0x170] sm:$0xff]
    %v179 = vld [vmem:[#allocation2 + $0x178] sm:$0xff]
    %v180 = vld [vmem:[#allocation2 + $0x180] sm:$0xff]
    %v181 = vld [vmem:[#allocation2 + $0x188] sm:$0xff]
    %v182 = vld [vmem:[#allocation2 + $0x190] sm:$0xff]
    %v183 = vld [vmem:[#allocation2 + $0x198] sm:$0xff]
    %v184 = vld [vmem:[#allocation2 + $0x1a0] sm:$0xff]
    %v185 = vld [vmem:[#allocation2 + $0x1a8] sm:$0xff]
    %v186 = vld [vmem:[#allocation2 + $0x1b0] sm:$0xff]
    %v187 = vld [vmem:[#allocation2 + $0x1b8] sm:$0xff]
    %v188 = vld [vmem:[#allocation2 + $0x1c0] sm:$0xff]
    %v189 = vld [vmem:[#allocation2 + $0x1c8] sm:$0xff]
    %v190 = vld [vmem:[#allocation2 + $0x1d0] sm:$0xff]
    %v191 = vld [vmem:[#allocation2 + $0x1d8] sm:$0xff]
    %v192 = vld [vmem:[#allocation2 + $0x1e0] sm:$0xff]
    %v193 = vld [vmem:[#allocation2 + $0x1e8] sm:$0xff]
    %v194 = vld [vmem:[#allocation2 + $0x1f0] sm:$0xff]
    %v195 = vld [vmem:[#allocation2 + $0x1f8] sm:$0xff]
    %v196 = vld [vmem:[#allocation2 + $0x200] sm:$0xff]
    %v197 = vld [vmem:[#allocation2 + $0x208] sm:$0xff]
    %v198 = vld [vmem:[#allocation2 + $0x210] sm:$0xff]
    %v199 = vld [vmem:[#allocation2 + $0x218] sm:$0xff]
    %v200 = vld [vmem:[#allocation2 + $0x220] sm:$0xff]
    %v201 = vld [vmem:[#allocation2 + $0x228] sm:$0xff]
    %v202 = vld [vmem:[#allocation2 + $0x230] sm:$0xff]
    %v203 = vld [vmem:[#allocation2 + $0x238] sm:$0xff]
    %v204 = vld [vmem:[#allocation2 + $0x240] sm:$0xff]
    %v205 = vld [vmem:[#allocation2 + $0x248] sm:$0xff]
    %v206 = vld [vmem:[#allocation2 + $0x250] sm:$0xff]
    %v207 = vld [vmem:[#allocation2 + $0x258] sm:$0xff]
    %v208 = vld [vmem:[#allocation2 + $0x260] sm:$0xff]
    %v209 = vld [vmem:[#allocation2 + $0x268] sm:$0xff]
    %v210 = vld [vmem:[#allocation2 + $0x270] sm:$0xff]
    %v211 = vld [vmem:[#allocation2 + $0x278] sm:$0xff]
    %v212 = vld [vmem:[#allocation2 + $0x280] sm:$0xff]
    %v213 = vld [vmem:[#allocation2 + $0x288] sm:$0xff]
    %v214 = vld [vmem:[#allocation2 + $0x290] sm:$0xff]
    %v215 = vld [vmem:[#allocation2 + $0x298] sm:$0xff]
    %v216 = vld [vmem:[#allocation2 + $0x2a0] sm:$0xff]
    %v217 = vld [vmem:[#allocation2 + $0x2a8] sm:$0xff]
    %v218 = vld [vmem:[#allocation2 + $0x2b0] sm:$0xff]
    %v219 = vld [vmem:[#allocation2 + $0x2b8] sm:$0xff]
    %v220 = vld [vmem:[#allocation2 + $0x2c0] sm:$0xff]
    %v221 = vld [vmem:[#allocation2 + $0x2c8] sm:$0xff]
    %v222 = vld [vmem:[#allocation2 + $0x2d0] sm:$0xff]
    %v223 = vld [vmem:[#allocation2 + $0x2d8] sm:$0xff]
    %v224 = vld [vmem:[#allocation2 + $0x2e0] sm:$0xff]
    %v225 = vld [vmem:[#allocation2 + $0x2e8] sm:$0xff]
    %v226 = vld [vmem:[#allocation2 + $0x2f0] sm:$0xff]
    %v227 = vld [vmem:[#allocation2 + $0x2f8] sm:$0xff]
    %v228 = vld [vmem:[#allocation2 + $0x300] sm:$0xff]
    %v229 = vld [vmem:[#allocation2 + $0x308] sm:$0xff]
    %v230 = vld [vmem:[#allocation2 + $0x310] sm:$0xff]
    %v231 = vld [vmem:[#allocation2 + $0x318] sm:$0xff]
    %v232 = vld [vmem:[#allocation2 + $0x320] sm:$0xff]
    %v233 = vld [vmem:[#allocation2 + $0x328] sm:$0xff]
    %v234 = vld [vmem:[#allocation2 + $0x330] sm:$0xff]
    %v235 = vld [vmem:[#allocation2 + $0x338] sm:$0xff]
    %v236 = vld [vmem:[#allocation2 + $0x340] sm:$0xff]
    %v237 = vld [vmem:[#allocation2 + $0x348] sm:$0xff]
    %v238 = vld [vmem:[#allocation2 + $0x350] sm:$0xff]
    %v239 = vld [vmem:[#allocation2 + $0x358] sm:$0xff]
    %v240 = vld [vmem:[#allocation2 + $0x360] sm:$0xff]
    %v241 = vld [vmem:[#allocation2 + $0x368] sm:$0xff]
    %v242 = vld [vmem:[#allocation2 + $0x370] sm:$0xff]
    %v243 = vld [vmem:[#allocation2 + $0x378] sm:$0xff]
    %v244 = vld [vmem:[#allocation2 + $0x380] sm:$0xff]
    %v245 = vld [vmem:[#allocation2 + $0x388] sm:$0xff]
    %v246 = vld [vmem:[#allocation2 + $0x390] sm:$0xff]
    %v247 = vld [vmem:[#allocation2 + $0x398] sm:$0xff]
    %v248 = vld [vmem:[#allocation2 + $0x3a0] sm:$0xff]
    %v249 = vld [vmem:[#allocation2 + $0x3a8] sm:$0xff]
    %v250 = vld [vmem:[#allocation2 + $0x3b0] sm:$0xff]
    %v251 = vld [vmem:[#allocation2 + $0x3b8] sm:$0xff]
    %v252 = vld [vmem:[#allocation2 + $0x3c0] sm:$0xff]
    %v253 = vld [vmem:[#allocation2 + $0x3c8] sm:$0xff]
    %v254 = vld [vmem:[#allocation2 + $0x3d0] sm:$0xff]
    %v255 = vld [vmem:[#allocation2 + $0x3d8] sm:$0xff]
    %v256 = vld [vmem:[#allocation2 + $0x3e0] sm:$0xff]
    %v257 = vld [vmem:[#allocation2 + $0x3e8] sm:$0xff]
    %v258 = vld [vmem:[#allocation2 + $0x3f0] sm:$0xff]
    %v259 = vld [vmem:[#allocation2 + $0x3f8] sm:$0xff]
    %v260 = vld [vmem:[#allocation2 + $0x400] sm:$0xff]
    %v261 = vld [vmem:[#allocation2 + $0x408] sm:$0xff]
    %v262 = vld [vmem:[#allocation2 + $0x410] sm:$0xff]
    %v263 = vld [vmem:[#allocation2 + $0x418] sm:$0xff]
    %v264 = vld [vmem:[#allocation2 + $0x420] sm:$0xff]
    %v265 = vld [vmem:[#allocation2 + $0x428] sm:$0xff]
    %v266 = vld [vmem:[#allocation2 + $0x430] sm:$0xff]
    %v267 = vld [vmem:[#allocation2 + $0x438] sm:$0xff]
    %v268 = vld [vmem:[#allocation2 + $0x440] sm:$0xff]
    %v269 = vld [vmem:[#allocation2 + $0x448] sm:$0xff]
    %v270 = vld [vmem:[#allocation2 + $0x450] sm:$0xff]
    %v271 = vld [vmem:[#allocation2 + $0x458] sm:$0xff]
    %v272 = vld [vmem:[#allocation2 + $0x460] sm:$0xff]
    %v273 = vld [vmem:[#allocation2 + $0x468] sm:$0xff]
    %v274 = vld [vmem:[#allocation2 + $0x470] sm:$0xff]
    %v275 = vld [vmem:[#allocation2 + $0x478] sm:$0xff]
    %v276 = vld [vmem:[#allocation2 + $0x480] sm:$0xff]
    %v277 = vld [vmem:[#allocation2 + $0x488] sm:$0xff]
    %v278 = vld [vmem:[#allocation2 + $0x490] sm:$0xff]
    %v279 = vld [vmem:[#allocation2 + $0x498] sm:$0xff]
    %v280 = vld [vmem:[#allocation2 + $0x4a0] sm:$0xff]
    %v281 = vld [vmem:[#allocation2 + $0x4a8] sm:$0xff]
    %v282 = vld [vmem:[#allocation2 + $0x4b0] sm:$0xff]
    %v283 = vld [vmem:[#allocation2 + $0x4b8] sm:$0xff]
    %v284 = vld [vmem:[#allocation2 + $0x4c0] sm:$0xff]
    %v285 = vld [vmem:[#allocation2 + $0x4c8] sm:$0xff]
    %v286 = vld [vmem:[#allocation2 + $0x4d0] sm:$0xff]
    %v287 = vld [vmem:[#allocation2 + $0x4d8] sm:$0xff]
    %v288 = vld [vmem:[#allocation2 + $0x4e0] sm:$0xff]
    %v289 = vld [vmem:[#allocation2 + $0x4e8] sm:$0xff]
    %v290 = vld [vmem:[#allocation2 + $0x4f0] sm:$0xff]
    %v291 = vld [vmem:[#allocation2 + $0x4f8] sm:$0xff]
    %v292 = vld [vmem:[#allocation2 + $0x500] sm:$0xff]
    %v293 = vld [vmem:[#allocation2 + $0x508] sm:$0xff]
    %v294 = vld [vmem:[#allocation2 + $0x510] sm:$0xff]
    %v295 = vld [vmem:[#allocation2 + $0x518] sm:$0xff]
    %v296 = vld [vmem:[#allocation2 + $0x520] sm:$0xff]
    %v297 = vld [vmem:[#allocation2 + $0x528] sm:$0xff]
    %v298 = vld [vmem:[#allocation2 + $0x530] sm:$0xff]
    %v299 = vld [vmem:[#allocation2 + $0x538] sm:$0xff]
    %v300 = vld [vmem:[#allocation2 + $0x540] sm:$0xff]
    %v301 = vld [vmem:[#allocation2 + $0x548] sm:$0xff]
    %v302 = vld [vmem:[#allocation2 + $0x550] sm:$0xff]
    %v303 = vld [vmem:[#allocation2 + $0x558] sm:$0xff]
    %v304 = vld [vmem:[#allocation2 + $0x560] sm:$0xff]
    %v305 = vld [vmem:[#allocation2 + $0x568] sm:$0xff]
    %v306 = vld [vmem:[#allocation2 + $0x570] sm:$0xff]
    %v307 = vld [vmem:[#allocation2 + $0x578] sm:$0xff]
    %v308 = vld [vmem:[#allocation2 + $0x580] sm:$0xff]
    %v309 = vld [vmem:[#allocation2 + $0x588] sm:$0xff]
    %v310 = vld [vmem:[#allocation2 + $0x590] sm:$0xff]
    %v311 = vld [vmem:[#allocation2 + $0x598] sm:$0xff]
    %v312 = vld [vmem:[#allocation2 + $0x5a0] sm:$0xff]
    %v313 = vld [vmem:[#allocation2 + $0x5a8] sm:$0xff]
    %v314 = vld [vmem:[#allocation2 + $0x5b0] sm:$0xff]
    %v315 = vld [vmem:[#allocation2 + $0x5b8] sm:$0xff]
    %v316 = vld [vmem:[#allocation2 + $0x5c0] sm:$0xff]
    %v317 = vld [vmem:[#allocation2 + $0x5c8] sm:$0xff]
    %v318 = vld [vmem:[#allocation2 + $0x5d0] sm:$0xff]
    %v319 = vld [vmem:[#allocation2 + $0x5d8] sm:$0xff]
    %v320 = vld [vmem:[#allocation2 + $0x5e0] sm:$0xff]
    %v321 = vld [vmem:[#allocation2 + $0x5e8] sm:$0xff]
    %v322 = vld [vmem:[#allocation2 + $0x5f0] sm:$0xff]
    %v323 = vld [vmem:[#allocation2 + $0x5f8] sm:$0xff]
    %v324 = vld [vmem:[#allocation2 + $0x600] sm:$0xff]
    %v325 = vld [vmem:[#allocation2 + $0x608] sm:$0xff]
    %v326 = vld [vmem:[#allocation2 + $0x610] sm:$0xff]
    %v327 = vld [vmem:[#allocation2 + $0x618] sm:$0xff]
    %v328 = vld [vmem:[#allocation2 + $0x620] sm:$0xff]
    %v329 = vld [vmem:[#allocation2 + $0x628] sm:$0xff]
    %v330 = vld [vmem:[#allocation2 + $0x630] sm:$0xff]
    %v331 = vld [vmem:[#allocation2 + $0x638] sm:$0xff]
    %v332 = vld [vmem:[#allocation2 + $0x640] sm:$0xff]
    %v333 = vld [vmem:[#allocation2 + $0x648] sm:$0xff]
    %v334 = vld [vmem:[#allocation2 + $0x650] sm:$0xff]
    %v335 = vld [vmem:[#allocation2 + $0x658] sm:$0xff]
    %v336 = vld [vmem:[#allocation2 + $0x660] sm:$0xff]
    %v337 = vld [vmem:[#allocation2 + $0x668] sm:$0xff]
    %v338 = vld [vmem:[#allocation2 + $0x670] sm:$0xff]
    %v339 = vld [vmem:[#allocation2 + $0x678] sm:$0xff]
    %v340 = vld [vmem:[#allocation2 + $0x680] sm:$0xff]
    %v341 = vld [vmem:[#allocation2 + $0x688] sm:$0xff]
    %v342 = vld [vmem:[#allocation2 + $0x690] sm:$0xff]
    %v343 = vld [vmem:[#allocation2 + $0x698] sm:$0xff]
    %v344 = vld [vmem:[#allocation2 + $0x6a0] sm:$0xff]
    %v345 = vld [vmem:[#allocation2 + $0x6a8] sm:$0xff]
    %v346 = vld [vmem:[#allocation2 + $0x6b0] sm:$0xff]
    %v347 = vld [vmem:[#allocation2 + $0x6b8] sm:$0xff]
    %v348 = vld [vmem:[#allocation2 + $0x6c0] sm:$0xff]
    %v349 = vld [vmem:[#allocation2 + $0x6c8] sm:$0xff]
    %v350 = vld [vmem:[#allocation2 + $0x6d0] sm:$0xff]
    %v351 = vld [vmem:[#allocation2 + $0x6d8] sm:$0xff]
    %v352 = vld [vmem:[#allocation2 + $0x6e0] sm:$0xff]
    %v353 = vld [vmem:[#allocation2 + $0x6e8] sm:$0xff]
    %v354 = vld [vmem:[#allocation2 + $0x6f0] sm:$0xff]
    %v355 = vld [vmem:[#allocation2 + $0x6f8] sm:$0xff]
    %v356 = vld [vmem:[#allocation2 + $0x700] sm:$0xff]
    %v357 = vld [vmem:[#allocation2 + $0x708] sm:$0xff]
    %v358 = vld [vmem:[#allocation2 + $0x710] sm:$0xff]
    %v359 = vld [vmem:[#allocation2 + $0x718] sm:$0xff]
    %v360 = vld [vmem:[#allocation2 + $0x720] sm:$0xff]
    %v361 = vld [vmem:[#allocation2 + $0x728] sm:$0xff]
    %v362 = vld [vmem:[#allocation2 + $0x730] sm:$0xff]
    %v363 = vld [vmem:[#allocation2 + $0x738] sm:$0xff]
    %v364 = vld [vmem:[#allocation2 + $0x740] sm:$0xff]
    %v365 = vld [vmem:[#allocation2 + $0x748] sm:$0xff]
    %v366 = vld [vmem:[#allocation2 + $0x750] sm:$0xff]
    %v367 = vld [vmem:[#allocation2 + $0x758] sm:$0xff]
    %v368 = vld [vmem:[#allocation2 + $0x760] sm:$0xff]
    %v369 = vld [vmem:[#allocation2 + $0x768] sm:$0xff]
    %v370 = vld [vmem:[#allocation2 + $0x770] sm:$0xff]
    %v371 = vld [vmem:[#allocation2 + $0x778] sm:$0xff]
    %v372 = vld [vmem:[#allocation2 + $0x780] sm:$0xff]
    %v373 = vld [vmem:[#allocation2 + $0x788] sm:$0xff]
    %v374 = vld [vmem:[#allocation2 + $0x790] sm:$0xff]
    %v375 = vld [vmem:[#allocation2 + $0x798] sm:$0xff]
    %v376 = vld [vmem:[#allocation2 + $0x7a0] sm:$0xff]
    %v377 = vld [vmem:[#allocation2 + $0x7a8] sm:$0xff]
    %v378 = vld [vmem:[#allocation2 + $0x7b0] sm:$0xff]
    %v379 = vld [vmem:[#allocation2 + $0x7b8] sm:$0xff]
    %v380 = vld [vmem:[#allocation2 + $0x7c0] sm:$0xff]
    %v381 = vld [vmem:[#allocation2 + $0x7c8] sm:$0xff]
    %v382 = vld [vmem:[#allocation2 + $0x7d0] sm:$0xff]
    %v383 = vld [vmem:[#allocation2 + $0x7d8] sm:$0xff]
    %v384 = vld [vmem:[#allocation2 + $0x7e0] sm:$0xff]
    %v385 = vld [vmem:[#allocation2 + $0x7e8] sm:$0xff]
    %v386 = vld [vmem:[#allocation2 + $0x7f0] sm:$0xff]
    %v387 = vld [vmem:[#allocation2 + $0x7f8] sm:$0xff]
    %v388 = vld [vmem:[#allocation2 + $0x800] sm:$0xff]
    %v389 = vld [vmem:[#allocation2 + $0x808] sm:$0xff]
    %v390 = vld [vmem:[#allocation2 + $0x810] sm:$0xff]
    %v391 = vld [vmem:[#allocation2 + $0x818] sm:$0xff]
    %v392 = vld [vmem:[#allocation2 + $0x820] sm:$0xff]
    %v393 = vld [vmem:[#allocation2 + $0x828] sm:$0xff]
    %v394 = vld [vmem:[#allocation2 + $0x830] sm:$0xff]
    %v395 = vld [vmem:[#allocation2 + $0x838] sm:$0xff]
    %v396 = vld [vmem:[#allocation2 + $0x840] sm:$0xff]
    %v397 = vld [vmem:[#allocation2 + $0x848] sm:$0xff]
    %v398 = vld [vmem:[#allocation2 + $0x850] sm:$0xff]
    %v399 = vld [vmem:[#allocation2 + $0x858] sm:$0xff]
    %v400 = vld [vmem:[#allocation2 + $0x860] sm:$0xff]
    %v401 = vld [vmem:[#allocation2 + $0x868] sm:$0xff]
    %v402 = vld [vmem:[#allocation2 + $0x870] sm:$0xff]
    %v403 = vld [vmem:[#allocation2 + $0x878] sm:$0xff]
    %v404 = vld [vmem:[#allocation2 + $0x880] sm:$0xff]
    %v405 = vld [vmem:[#allocation2 + $0x888] sm:$0xff]
    %v406 = vld [vmem:[#allocation2 + $0x890] sm:$0xff]
    %v407 = vld [vmem:[#allocation2 + $0x898] sm:$0xff]
    %v408 = vld [vmem:[#allocation2 + $0x8a0] sm:$0xff]
    %v409 = vld [vmem:[#allocation2 + $0x8a8] sm:$0xff]
    %v410 = vld [vmem:[#allocation2 + $0x8b0] sm:$0xff]
    %v411 = vld [vmem:[#allocation2 + $0x8b8] sm:$0xff]
    %v412 = vld [vmem:[#allocation2 + $0x8c0] sm:$0xff]
    %v413 = vld [vmem:[#allocation2 + $0x8c8] sm:$0xff]
    %v414 = vld [vmem:[#allocation2 + $0x8d0] sm:$0xff]
    %v415 = vld [vmem:[#allocation2 + $0x8d8] sm:$0xff]
    %v416 = vld [vmem:[#allocation2 + $0x8e0] sm:$0xff]
    %v417 = vld [vmem:[#allocation2 + $0x8e8] sm:$0xff]
    %v418 = vld [vmem:[#allocation2 + $0x8f0] sm:$0xff]
    %v419 = vld [vmem:[#allocation2 + $0x8f8] sm:$0xff]
    %v420 = vld [vmem:[#allocation4] sm:$0x3f]
    %v422 = vperm.slane %v420, 0
    %v423 = vperm.slane %v420, 1
    %v424 = vperm.slane %v420, 2
    %v425 = vperm.slane %v420, 3
    %v426 = vperm.slane %v420, 4
    %v427 = vperm.slane %v420, 5
    %v722 = vunpack.c.l.b16 %v132
    %v723 = vunpack.c.h.b16 %v132
    %v724 = vunpack.c.l.b16 %v133
    %v725 = vunpack.c.h.b16 %v133
    %v726 = vunpack.c.l.b16 %v134
    %v727 = vunpack.c.h.b16 %v134
    %v728 = vunpack.c.l.b16 %v135
    %v729 = vunpack.c.h.b16 %v135
    %v730 = vunpack.c.l.b16 %v136
    %v731 = vunpack.c.h.b16 %v136
    %v732 = vunpack.c.l.b16 %v137
    %v733 = vunpack.c.h.b16 %v137
    %v734 = vunpack.c.l.b16 %v138
    %v735 = vunpack.c.h.b16 %v138
    %v736 = vunpack.c.l.b16 %v139
    %v737 = vunpack.c.h.b16 %v139
    %v738 = vunpack.c.l.b16 %v140
    %v739 = vunpack.c.h.b16 %v140
    %v740 = vunpack.c.l.b16 %v141
    %v741 = vunpack.c.h.b16 %v141
    %v742 = vunpack.c.l.b16 %v142
    %v743 = vunpack.c.h.b16 %v142
    %v744 = vunpack.c.l.b16 %v143
    %v745 = vunpack.c.h.b16 %v143
    %v746 = vunpack.c.l.b16 %v144
    %v747 = vunpack.c.h.b16 %v144
    %v748 = vunpack.c.l.b16 %v145
    %v749 = vunpack.c.h.b16 %v145
    %v750 = vunpack.c.l.b16 %v146
    %v751 = vunpack.c.h.b16 %v146
    %v752 = vunpack.c.l.b16 %v147
    %v753 = vunpack.c.h.b16 %v147
    %v754 = vunpack.c.l.b16 %v148
    %v755 = vunpack.c.h.b16 %v148
    %v756 = vunpack.c.l.b16 %v149
    %v757 = vunpack.c.h.b16 %v149
    %v758 = vunpack.c.l.b16 %v150
    %v759 = vunpack.c.h.b16 %v150
    %v760 = vunpack.c.l.b16 %v151
    %v761 = vunpack.c.h.b16 %v151
    %v762 = vunpack.c.l.b16 %v152
    %v763 = vunpack.c.h.b16 %v152
    %v764 = vunpack.c.l.b16 %v153
    %v765 = vunpack.c.h.b16 %v153
    %v766 = vunpack.c.l.b16 %v154
    %v767 = vunpack.c.h.b16 %v154
    %v768 = vunpack.c.l.b16 %v155
    %v769 = vunpack.c.h.b16 %v155
    %v770 = vunpack.c.l.b16 %v156
    %v771 = vunpack.c.h.b16 %v156
    %v772 = vunpack.c.l.b16 %v157
    %v773 = vunpack.c.h.b16 %v157
    %v774 = vunpack.c.l.b16 %v158
    %v775 = vunpack.c.h.b16 %v158
    %v776 = vunpack.c.l.b16 %v159
    %v777 = vunpack.c.h.b16 %v159
    %v778 = vunpack.c.l.b16 %v160
    %v779 = vunpack.c.h.b16 %v160
    %v780 = vunpack.c.l.b16 %v161
    %v781 = vunpack.c.h.b16 %v161
    %v782 = vunpack.c.l.b16 %v162
    %v783 = vunpack.c.h.b16 %v162
    %v784 = vunpack.c.l.b16 %v163
    %v785 = vunpack.c.h.b16 %v163
    %v786 = vunpack.c.l.b16 %v164
    %v787 = vunpack.c.h.b16 %v164
    %v788 = vunpack.c.l.b16 %v165
    %v789 = vunpack.c.h.b16 %v165
    %v790 = vunpack.c.l.b16 %v166
    %v791 = vunpack.c.h.b16 %v166
    %v792 = vunpack.c.l.b16 %v167
    %v793 = vunpack.c.h.b16 %v167
    %v794 = vunpack.c.l.b16 %v168
    %v795 = vunpack.c.h.b16 %v168
    %v796 = vunpack.c.l.b16 %v169
    %v797 = vunpack.c.h.b16 %v169
    %v798 = vunpack.c.l.b16 %v170
    %v799 = vunpack.c.h.b16 %v170
    %v800 = vunpack.c.l.b16 %v171
    %v801 = vunpack.c.h.b16 %v171
    %v802 = vunpack.c.l.b16 %v172
    %v803 = vunpack.c.h.b16 %v172
    %v804 = vunpack.c.l.b16 %v173
    %v805 = vunpack.c.h.b16 %v173
    %v806 = vunpack.c.l.b16 %v174
    %v807 = vunpack.c.h.b16 %v174
    %v808 = vunpack.c.l.b16 %v175
    %v809 = vunpack.c.h.b16 %v175
    %v810 = vunpack.c.l.b16 %v176
    %v811 = vunpack.c.h.b16 %v176
    %v812 = vunpack.c.l.b16 %v177
    %v813 = vunpack.c.h.b16 %v177
    %v814 = vunpack.c.l.b16 %v178
    %v815 = vunpack.c.h.b16 %v178
    %v816 = vunpack.c.l.b16 %v179
    %v817 = vunpack.c.h.b16 %v179
    %v818 = vunpack.c.l.b16 %v180
    %v819 = vunpack.c.h.b16 %v180
    %v820 = vunpack.c.l.b16 %v181
    %v821 = vunpack.c.h.b16 %v181
    %v822 = vunpack.c.l.b16 %v182
    %v823 = vunpack.c.h.b16 %v182
    %v824 = vunpack.c.l.b16 %v183
    %v825 = vunpack.c.h.b16 %v183
    %v826 = vunpack.c.l.b16 %v184
    %v827 = vunpack.c.h.b16 %v184
    %v828 = vunpack.c.l.b16 %v185
    %v829 = vunpack.c.h.b16 %v185
    %v830 = vunpack.c.l.b16 %v186
    %v831 = vunpack.c.h.b16 %v186
    %v832 = vunpack.c.l.b16 %v187
    %v833 = vunpack.c.h.b16 %v187
    %v834 = vunpack.c.l.b16 %v188
    %v835 = vunpack.c.h.b16 %v188
    %v836 = vunpack.c.l.b16 %v189
    %v837 = vunpack.c.h.b16 %v189
    %v838 = vunpack.c.l.b16 %v190
    %v839 = vunpack.c.h.b16 %v190
    %v840 = vunpack.c.l.b16 %v191
    %v841 = vunpack.c.h.b16 %v191
    %v842 = vunpack.c.l.b16 %v192
    %v843 = vunpack.c.h.b16 %v192
    %v844 = vunpack.c.l.b16 %v193
    %v845 = vunpack.c.h.b16 %v193
    %v846 = vunpack.c.l.b16 %v194
    %v847 = vunpack.c.h.b16 %v194
    %v848 = vunpack.c.l.b16 %v195
    %v849 = vunpack.c.h.b16 %v195
    %v850 = vunpack.c.l.b16 %v196
    %v851 = vunpack.c.h.b16 %v196
    %v852 = vunpack.c.l.b16 %v197
    %v853 = vunpack.c.h.b16 %v197
    %v854 = vunpack.c.l.b16 %v198
    %v855 = vunpack.c.h.b16 %v198
    %v856 = vunpack.c.l.b16 %v199
    %v857 = vunpack.c.h.b16 %v199
    %v858 = vunpack.c.l.b16 %v200
    %v859 = vunpack.c.h.b16 %v200
    %v860 = vunpack.c.l.b16 %v201
    %v861 = vunpack.c.h.b16 %v201
    %v862 = vunpack.c.l.b16 %v202
    %v863 = vunpack.c.h.b16 %v202
    %v864 = vunpack.c.l.b16 %v203
    %v865 = vunpack.c.h.b16 %v203
    %v866 = vunpack.c.l.b16 %v204
    %v867 = vunpack.c.h.b16 %v204
    %v868 = vunpack.c.l.b16 %v205
    %v869 = vunpack.c.h.b16 %v205
    %v870 = vunpack.c.l.b16 %v206
    %v871 = vunpack.c.h.b16 %v206
    %v872 = vunpack.c.l.b16 %v207
    %v873 = vunpack.c.h.b16 %v207
    %v874 = vunpack.c.l.b16 %v208
    %v875 = vunpack.c.h.b16 %v208
    %v876 = vunpack.c.l.b16 %v209
    %v877 = vunpack.c.h.b16 %v209
    %v878 = vunpack.c.l.b16 %v210
    %v879 = vunpack.c.h.b16 %v210
    %v880 = vunpack.c.l.b16 %v211
    %v881 = vunpack.c.h.b16 %v211
    %v882 = vunpack.c.l.b16 %v212
    %v883 = vunpack.c.h.b16 %v212
    %v884 = vunpack.c.l.b16 %v213
    %v885 = vunpack.c.h.b16 %v213
    %v886 = vunpack.c.l.b16 %v214
    %v887 = vunpack.c.h.b16 %v214
    %v888 = vunpack.c.l.b16 %v215
    %v889 = vunpack.c.h.b16 %v215
    %v890 = vunpack.c.l.b16 %v216
    %v891 = vunpack.c.h.b16 %v216
    %v892 = vunpack.c.l.b16 %v217
    %v893 = vunpack.c.h.b16 %v217
    %v894 = vunpack.c.l.b16 %v218
    %v895 = vunpack.c.h.b16 %v218
    %v896 = vunpack.c.l.b16 %v219
    %v897 = vunpack.c.h.b16 %v219
    %v898 = vunpack.c.l.b16 %v220
    %v899 = vunpack.c.h.b16 %v220
    %v900 = vunpack.c.l.b16 %v221
    %v901 = vunpack.c.h.b16 %v221
    %v902 = vunpack.c.l.b16 %v222
    %v903 = vunpack.c.h.b16 %v222
    %v904 = vunpack.c.l.b16 %v223
    %v905 = vunpack.c.h.b16 %v223
    %v906 = vunpack.c.l.b16 %v224
    %v907 = vunpack.c.h.b16 %v224
    %v908 = vunpack.c.l.b16 %v225
    %v909 = vunpack.c.h.b16 %v225
    %v910 = vunpack.c.l.b16 %v226
    %v911 = vunpack.c.h.b16 %v226
    %v912 = vunpack.c.l.b16 %v227
    %v913 = vunpack.c.h.b16 %v227
    %v914 = vunpack.c.l.b16 %v228
    %v915 = vunpack.c.h.b16 %v228
    %v916 = vunpack.c.l.b16 %v229
    %v917 = vunpack.c.h.b16 %v229
    %v918 = vunpack.c.l.b16 %v230
    %v919 = vunpack.c.h.b16 %v230
    %v920 = vunpack.c.l.b16 %v231
    %v921 = vunpack.c.h.b16 %v231
    %v922 = vunpack.c.l.b16 %v232
    %v923 = vunpack.c.h.b16 %v232
    %v924 = vunpack.c.l.b16 %v233
    %v925 = vunpack.c.h.b16 %v233
    %v926 = vunpack.c.l.b16 %v234
    %v927 = vunpack.c.h.b16 %v234
    %v928 = vunpack.c.l.b16 %v235
    %v929 = vunpack.c.h.b16 %v235
    %v930 = vunpack.c.l.b16 %v236
    %v931 = vunpack.c.h.b16 %v236
    %v932 = vunpack.c.l.b16 %v237
    %v933 = vunpack.c.h.b16 %v237
    %v934 = vunpack.c.l.b16 %v238
    %v935 = vunpack.c.h.b16 %v238
    %v936 = vunpack.c.l.b16 %v239
    %v937 = vunpack.c.h.b16 %v239
    %v938 = vunpack.c.l.b16 %v240
    %v939 = vunpack.c.h.b16 %v240
    %v940 = vunpack.c.l.b16 %v241
    %v941 = vunpack.c.h.b16 %v241
    %v942 = vunpack.c.l.b16 %v242
    %v943 = vunpack.c.h.b16 %v242
    %v944 = vunpack.c.l.b16 %v243
    %v945 = vunpack.c.h.b16 %v243
    %v946 = vunpack.c.l.b16 %v244
    %v947 = vunpack.c.h.b16 %v244
    %v948 = vunpack.c.l.b16 %v245
    %v949 = vunpack.c.h.b16 %v245
    %v950 = vunpack.c.l.b16 %v246
    %v951 = vunpack.c.h.b16 %v246
    %v952 = vunpack.c.l.b16 %v247
    %v953 = vunpack.c.h.b16 %v247
    %v954 = vunpack.c.l.b16 %v248
    %v955 = vunpack.c.h.b16 %v248
    %v956 = vunpack.c.l.b16 %v249
    %v957 = vunpack.c.h.b16 %v249
    %v958 = vunpack.c.l.b16 %v250
    %v959 = vunpack.c.h.b16 %v250
    %v960 = vunpack.c.l.b16 %v251
    %v961 = vunpack.c.h.b16 %v251
    %v962 = vunpack.c.l.b16 %v252
    %v963 = vunpack.c.h.b16 %v252
    %v964 = vunpack.c.l.b16 %v253
    %v965 = vunpack.c.h.b16 %v253
    %v966 = vunpack.c.l.b16 %v254
    %v967 = vunpack.c.h.b16 %v254
    %v968 = vunpack.c.l.b16 %v255
    %v969 = vunpack.c.h.b16 %v255
    %v970 = vunpack.c.l.b16 %v256
    %v971 = vunpack.c.h.b16 %v256
    %v972 = vunpack.c.l.b16 %v257
    %v973 = vunpack.c.h.b16 %v257
    %v974 = vunpack.c.l.b16 %v258
    %v975 = vunpack.c.h.b16 %v258
    %v976 = vunpack.c.l.b16 %v259
    %v977 = vunpack.c.h.b16 %v259
    %v978 = vunpack.c.l.b16 %v260
    %v979 = vunpack.c.h.b16 %v260
    %v980 = vunpack.c.l.b16 %v261
    %v981 = vunpack.c.h.b16 %v261
    %v982 = vunpack.c.l.b16 %v262
    %v983 = vunpack.c.h.b16 %v262
    %v984 = vunpack.c.l.b16 %v263
    %v985 = vunpack.c.h.b16 %v263
    %v986 = vunpack.c.l.b16 %v264
    %v987 = vunpack.c.h.b16 %v264
    %v988 = vunpack.c.l.b16 %v265
    %v989 = vunpack.c.h.b16 %v265
    %v990 = vunpack.c.l.b16 %v266
    %v991 = vunpack.c.h.b16 %v266
    %v992 = vunpack.c.l.b16 %v267
    %v993 = vunpack.c.h.b16 %v267
    %v994 = vunpack.c.l.b16 %v268
    %v995 = vunpack.c.h.b16 %v268
    %v996 = vunpack.c.l.b16 %v269
    %v997 = vunpack.c.h.b16 %v269
    %v998 = vunpack.c.l.b16 %v270
    %v999 = vunpack.c.h.b16 %v270
    %v1000 = vunpack.c.l.b16 %v271
    %v1001 = vunpack.c.h.b16 %v271
    %v1002 = vunpack.c.l.b16 %v272
    %v1003 = vunpack.c.h.b16 %v272
    %v1004 = vunpack.c.l.b16 %v273
    %v1005 = vunpack.c.h.b16 %v273
    %v1006 = vunpack.c.l.b16 %v274
    %v1007 = vunpack.c.h.b16 %v274
    %v1008 = vunpack.c.l.b16 %v275
    %v1009 = vunpack.c.h.b16 %v275
    %v1010 = vunpack.c.l.b16 %v276
    %v1011 = vunpack.c.h.b16 %v276
    %v1012 = vunpack.c.l.b16 %v277
    %v1013 = vunpack.c.h.b16 %v277
    %v1014 = vunpack.c.l.b16 %v278
    %v1015 = vunpack.c.h.b16 %v278
    %v1016 = vunpack.c.l.b16 %v279
    %v1017 = vunpack.c.h.b16 %v279
    %v1018 = vunpack.c.l.b16 %v280
    %v1019 = vunpack.c.h.b16 %v280
    %v1020 = vunpack.c.l.b16 %v281
    %v1021 = vunpack.c.h.b16 %v281
    %v1022 = vunpack.c.l.b16 %v282
    %v1023 = vunpack.c.h.b16 %v282
    %v1024 = vunpack.c.l.b16 %v283
    %v1025 = vunpack.c.h.b16 %v283
    %v1026 = vunpack.c.l.b16 %v284
    %v1027 = vunpack.c.h.b16 %v284
    %v1028 = vunpack.c.l.b16 %v285
    %v1029 = vunpack.c.h.b16 %v285
    %v1030 = vunpack.c.l.b16 %v286
    %v1031 = vunpack.c.h.b16 %v286
    %v1032 = vunpack.c.l.b16 %v287
    %v1033 = vunpack.c.h.b16 %v287
    %v1034 = vunpack.c.l.b16 %v288
    %v1035 = vunpack.c.h.b16 %v288
    %v1036 = vunpack.c.l.b16 %v289
    %v1037 = vunpack.c.h.b16 %v289
    %v1038 = vunpack.c.l.b16 %v290
    %v1039 = vunpack.c.h.b16 %v290
    %v1040 = vunpack.c.l.b16 %v291
    %v1041 = vunpack.c.h.b16 %v291
    %v1042 = vunpack.c.l.b16 %v292
    %v1043 = vunpack.c.h.b16 %v292
    %v1044 = vunpack.c.l.b16 %v293
    %v1045 = vunpack.c.h.b16 %v293
    %v1046 = vunpack.c.l.b16 %v294
    %v1047 = vunpack.c.h.b16 %v294
    %v1048 = vunpack.c.l.b16 %v295
    %v1049 = vunpack.c.h.b16 %v295
    %v1050 = vunpack.c.l.b16 %v296
    %v1051 = vunpack.c.h.b16 %v296
    %v1052 = vunpack.c.l.b16 %v297
    %v1053 = vunpack.c.h.b16 %v297
    %v1054 = vunpack.c.l.b16 %v298
    %v1055 = vunpack.c.h.b16 %v298
    %v1056 = vunpack.c.l.b16 %v299
    %v1057 = vunpack.c.h.b16 %v299
    %v1058 = vunpack.c.l.b16 %v300
    %v1059 = vunpack.c.h.b16 %v300
    %v1060 = vunpack.c.l.b16 %v301
    %v1061 = vunpack.c.h.b16 %v301
    %v1062 = vunpack.c.l.b16 %v302
    %v1063 = vunpack.c.h.b16 %v302
    %v1064 = vunpack.c.l.b16 %v303
    %v1065 = vunpack.c.h.b16 %v303
    %v1066 = vunpack.c.l.b16 %v304
    %v1067 = vunpack.c.h.b16 %v304
    %v1068 = vunpack.c.l.b16 %v305
    %v1069 = vunpack.c.h.b16 %v305
    %v1070 = vunpack.c.l.b16 %v306
    %v1071 = vunpack.c.h.b16 %v306
    %v1072 = vunpack.c.l.b16 %v307
    %v1073 = vunpack.c.h.b16 %v307
    %v1074 = vunpack.c.l.b16 %v308
    %v1075 = vunpack.c.h.b16 %v308
    %v1076 = vunpack.c.l.b16 %v309
    %v1077 = vunpack.c.h.b16 %v309
    %v1078 = vunpack.c.l.b16 %v310
    %v1079 = vunpack.c.h.b16 %v310
    %v1080 = vunpack.c.l.b16 %v311
    %v1081 = vunpack.c.h.b16 %v311
    %v1082 = vunpack.c.l.b16 %v312
    %v1083 = vunpack.c.h.b16 %v312
    %v1084 = vunpack.c.l.b16 %v313
    %v1085 = vunpack.c.h.b16 %v313
    %v1086 = vunpack.c.l.b16 %v314
    %v1087 = vunpack.c.h.b16 %v314
    %v1088 = vunpack.c.l.b16 %v315
    %v1089 = vunpack.c.h.b16 %v315
    %v1090 = vunpack.c.l.b16 %v316
    %v1091 = vunpack.c.h.b16 %v316
    %v1092 = vunpack.c.l.b16 %v317
    %v1093 = vunpack.c.h.b16 %v317
    %v1094 = vunpack.c.l.b16 %v318
    %v1095 = vunpack.c.h.b16 %v318
    %v1096 = vunpack.c.l.b16 %v319
    %v1097 = vunpack.c.h.b16 %v319
    %v1098 = vunpack.c.l.b16 %v320
    %v1099 = vunpack.c.h.b16 %v320
    %v1100 = vunpack.c.l.b16 %v321
    %v1101 = vunpack.c.h.b16 %v321
    %v1102 = vunpack.c.l.b16 %v322
    %v1103 = vunpack.c.h.b16 %v322
    %v1104 = vunpack.c.l.b16 %v323
    %v1105 = vunpack.c.h.b16 %v323
    %v1106 = vunpack.c.l.b16 %v324
    %v1107 = vunpack.c.h.b16 %v324
    %v1108 = vunpack.c.l.b16 %v325
    %v1109 = vunpack.c.h.b16 %v325
    %v1110 = vunpack.c.l.b16 %v326
    %v1111 = vunpack.c.h.b16 %v326
    %v1112 = vunpack.c.l.b16 %v327
    %v1113 = vunpack.c.h.b16 %v327
    %v1114 = vunpack.c.l.b16 %v328
    %v1115 = vunpack.c.h.b16 %v328
    %v1116 = vunpack.c.l.b16 %v329
    %v1117 = vunpack.c.h.b16 %v329
    %v1118 = vunpack.c.l.b16 %v330
    %v1119 = vunpack.c.h.b16 %v330
    %v1120 = vunpack.c.l.b16 %v331
    %v1121 = vunpack.c.h.b16 %v331
    %v1122 = vunpack.c.l.b16 %v332
    %v1123 = vunpack.c.h.b16 %v332
    %v1124 = vunpack.c.l.b16 %v333
    %v1125 = vunpack.c.h.b16 %v333
    %v1126 = vunpack.c.l.b16 %v334
    %v1127 = vunpack.c.h.b16 %v334
    %v1128 = vunpack.c.l.b16 %v335
    %v1129 = vunpack.c.h.b16 %v335
    %v1130 = vunpack.c.l.b16 %v336
    %v1131 = vunpack.c.h.b16 %v336
    %v1132 = vunpack.c.l.b16 %v337
    %v1133 = vunpack.c.h.b16 %v337
    %v1134 = vunpack.c.l.b16 %v338
    %v1135 = vunpack.c.h.b16 %v338
    %v1136 = vunpack.c.l.b16 %v339
    %v1137 = vunpack.c.h.b16 %v339
    %v1138 = vunpack.c.l.b16 %v340
    %v1139 = vunpack.c.h.b16 %v340
    %v1140 = vunpack.c.l.b16 %v341
    %v1141 = vunpack.c.h.b16 %v341
    %v1142 = vunpack.c.l.b16 %v342
    %v1143 = vunpack.c.h.b16 %v342
    %v1144 = vunpack.c.l.b16 %v343
    %v1145 = vunpack.c.h.b16 %v343
    %v1146 = vunpack.c.l.b16 %v344
    %v1147 = vunpack.c.h.b16 %v344
    %v1148 = vunpack.c.l.b16 %v345
    %v1149 = vunpack.c.h.b16 %v345
    %v1150 = vunpack.c.l.b16 %v346
    %v1151 = vunpack.c.h.b16 %v346
    %v1152 = vunpack.c.l.b16 %v347
    %v1153 = vunpack.c.h.b16 %v347
    %v1154 = vunpack.c.l.b16 %v348
    %v1155 = vunpack.c.h.b16 %v348
    %v1156 = vunpack.c.l.b16 %v349
    %v1157 = vunpack.c.h.b16 %v349
    %v1158 = vunpack.c.l.b16 %v350
    %v1159 = vunpack.c.h.b16 %v350
    %v1160 = vunpack.c.l.b16 %v351
    %v1161 = vunpack.c.h.b16 %v351
    %v1162 = vunpack.c.l.b16 %v352
    %v1163 = vunpack.c.h.b16 %v352
    %v1164 = vunpack.c.l.b16 %v353
    %v1165 = vunpack.c.h.b16 %v353
    %v1166 = vunpack.c.l.b16 %v354
    %v1167 = vunpack.c.h.b16 %v354
    %v1168 = vunpack.c.l.b16 %v355
    %v1169 = vunpack.c.h.b16 %v355
    %v1170 = vunpack.c.l.b16 %v356
    %v1171 = vunpack.c.h.b16 %v356
    %v1172 = vunpack.c.l.b16 %v357
    %v1173 = vunpack.c.h.b16 %v357
    %v1174 = vunpack.c.l.b16 %v358
    %v1175 = vunpack.c.h.b16 %v358
    %v1176 = vunpack.c.l.b16 %v359
    %v1177 = vunpack.c.h.b16 %v359
    %v1178 = vunpack.c.l.b16 %v360
    %v1179 = vunpack.c.h.b16 %v360
    %v1180 = vunpack.c.l.b16 %v361
    %v1181 = vunpack.c.h.b16 %v361
    %v1182 = vunpack.c.l.b16 %v362
    %v1183 = vunpack.c.h.b16 %v362
    %v1184 = vunpack.c.l.b16 %v363
    %v1185 = vunpack.c.h.b16 %v363
    %v1186 = vunpack.c.l.b16 %v364
    %v1187 = vunpack.c.h.b16 %v364
    %v1188 = vunpack.c.l.b16 %v365
    %v1189 = vunpack.c.h.b16 %v365
    %v1190 = vunpack.c.l.b16 %v366
    %v1191 = vunpack.c.h.b16 %v366
    %v1192 = vunpack.c.l.b16 %v367
    %v1193 = vunpack.c.h.b16 %v367
    %v1194 = vunpack.c.l.b16 %v368
    %v1195 = vunpack.c.h.b16 %v368
    %v1196 = vunpack.c.l.b16 %v369
    %v1197 = vunpack.c.h.b16 %v369
    %v1198 = vunpack.c.l.b16 %v370
    %v1199 = vunpack.c.h.b16 %v370
    %v1200 = vunpack.c.l.b16 %v371
    %v1201 = vunpack.c.h.b16 %v371
    %v1202 = vunpack.c.l.b16 %v372
    %v1203 = vunpack.c.h.b16 %v372
    %v1204 = vunpack.c.l.b16 %v373
    %v1205 = vunpack.c.h.b16 %v373
    %v1206 = vunpack.c.l.b16 %v374
    %v1207 = vunpack.c.h.b16 %v374
    %v1208 = vunpack.c.l.b16 %v375
    %v1209 = vunpack.c.h.b16 %v375
    %v1210 = vunpack.c.l.b16 %v376
    %v1211 = vunpack.c.h.b16 %v376
    %v1212 = vunpack.c.l.b16 %v377
    %v1213 = vunpack.c.h.b16 %v377
    %v1214 = vunpack.c.l.b16 %v378
    %v1215 = vunpack.c.h.b16 %v378
    %v1216 = vunpack.c.l.b16 %v379
    %v1217 = vunpack.c.h.b16 %v379
    %v1218 = vunpack.c.l.b16 %v380
    %v1219 = vunpack.c.h.b16 %v380
    %v1220 = vunpack.c.l.b16 %v381
    %v1221 = vunpack.c.h.b16 %v381
    %v1222 = vunpack.c.l.b16 %v382
    %v1223 = vunpack.c.h.b16 %v382
    %v1224 = vunpack.c.l.b16 %v383
    %v1225 = vunpack.c.h.b16 %v383
    %v1226 = vunpack.c.l.b16 %v384
    %v1227 = vunpack.c.h.b16 %v384
    %v1228 = vunpack.c.l.b16 %v385
    %v1229 = vunpack.c.h.b16 %v385
    %v1230 = vunpack.c.l.b16 %v386
    %v1231 = vunpack.c.h.b16 %v386
    %v1232 = vunpack.c.l.b16 %v387
    %v1233 = vunpack.c.h.b16 %v387
    %v1234 = vunpack.c.l.b16 %v388
    %v1235 = vunpack.c.h.b16 %v388
    %v1236 = vunpack.c.l.b16 %v389
    %v1237 = vunpack.c.h.b16 %v389
    %v1238 = vunpack.c.l.b16 %v390
    %v1239 = vunpack.c.h.b16 %v390
    %v1240 = vunpack.c.l.b16 %v391
    %v1241 = vunpack.c.h.b16 %v391
    %v1242 = vunpack.c.l.b16 %v392
    %v1243 = vunpack.c.h.b16 %v392
    %v1244 = vunpack.c.l.b16 %v393
    %v1245 = vunpack.c.h.b16 %v393
    %v1246 = vunpack.c.l.b16 %v394
    %v1247 = vunpack.c.h.b16 %v394
    %v1248 = vunpack.c.l.b16 %v395
    %v1249 = vunpack.c.h.b16 %v395
    %v1250 = vunpack.c.l.b16 %v396
    %v1251 = vunpack.c.h.b16 %v396
    %v1252 = vunpack.c.l.b16 %v397
    %v1253 = vunpack.c.h.b16 %v397
    %v1254 = vunpack.c.l.b16 %v398
    %v1255 = vunpack.c.h.b16 %v398
    %v1256 = vunpack.c.l.b16 %v399
    %v1257 = vunpack.c.h.b16 %v399
    %v1258 = vunpack.c.l.b16 %v400
    %v1259 = vunpack.c.h.b16 %v400
    %v1260 = vunpack.c.l.b16 %v401
    %v1261 = vunpack.c.h.b16 %v401
    %v1262 = vunpack.c.l.b16 %v402
    %v1263 = vunpack.c.h.b16 %v402
    %v1264 = vunpack.c.l.b16 %v403
    %v1265 = vunpack.c.h.b16 %v403
    %v1266 = vunpack.c.l.b16 %v404
    %v1267 = vunpack.c.h.b16 %v404
    %v1268 = vunpack.c.l.b16 %v405
    %v1269 = vunpack.c.h.b16 %v405
    %v1270 = vunpack.c.l.b16 %v406
    %v1271 = vunpack.c.h.b16 %v406
    %v1272 = vunpack.c.l.b16 %v407
    %v1273 = vunpack.c.h.b16 %v407
    %v1274 = vunpack.c.l.b16 %v408
    %v1275 = vunpack.c.h.b16 %v408
    %v1276 = vunpack.c.l.b16 %v409
    %v1277 = vunpack.c.h.b16 %v409
    %v1278 = vunpack.c.l.b16 %v410
    %v1279 = vunpack.c.h.b16 %v410
    %v1280 = vunpack.c.l.b16 %v411
    %v1281 = vunpack.c.h.b16 %v411
    %v1282 = vunpack.c.l.b16 %v412
    %v1283 = vunpack.c.h.b16 %v412
    %v1284 = vunpack.c.l.b16 %v413
    %v1285 = vunpack.c.h.b16 %v413
    %v1286 = vunpack.c.l.b16 %v414
    %v1287 = vunpack.c.h.b16 %v414
    %v1288 = vunpack.c.l.b16 %v415
    %v1289 = vunpack.c.h.b16 %v415
    %v1290 = vunpack.c.l.b16 %v416
    %v1291 = vunpack.c.h.b16 %v416
    %v1292 = vunpack.c.l.b16 %v417
    %v1293 = vunpack.c.h.b16 %v417
    %v1294 = vunpack.c.l.b16 %v418
    %v1295 = vunpack.c.h.b16 %v418
    %v1296 = vunpack.c.l.b16 %v419
    %v1297 = vunpack.c.h.b16 %v419
    %v1298 = vpack.c.b16 %v728, %v722
    %v1299 = vpack.c.b16 %v729, %v723
    %v1300 = vpack.c.b16 %v730, %v724
    %v1301 = vpack.c.b16 %v731, %v725
    %v1302 = vpack.c.b16 %v732, %v726
    %v1303 = vpack.c.b16 %v733, %v727
    %v1304 = vpack.c.b16 %v740, %v734
    %v1305 = vpack.c.b16 %v741, %v735
    %v1306 = vpack.c.b16 %v742, %v736
    %v1307 = vpack.c.b16 %v743, %v737
    %v1308 = vpack.c.b16 %v744, %v738
    %v1309 = vpack.c.b16 %v745, %v739
    %v1310 = vpack.c.b16 %v752, %v746
    %v1311 = vpack.c.b16 %v753, %v747
    %v1312 = vpack.c.b16 %v754, %v748
    %v1313 = vpack.c.b16 %v755, %v749
    %v1314 = vpack.c.b16 %v756, %v750
    %v1315 = vpack.c.b16 %v757, %v751
    %v1316 = vpack.c.b16 %v764, %v758
    %v1317 = vpack.c.b16 %v765, %v759
    %v1318 = vpack.c.b16 %v766, %v760
    %v1319 = vpack.c.b16 %v767, %v761
    %v1320 = vpack.c.b16 %v768, %v762
    %v1321 = vpack.c.b16 %v769, %v763
    %v1322 = vpack.c.b16 %v776, %v770
    %v1323 = vpack.c.b16 %v777, %v771
    %v1324 = vpack.c.b16 %v778, %v772
    %v1325 = vpack.c.b16 %v779, %v773
    %v1326 = vpack.c.b16 %v780, %v774
    %v1327 = vpack.c.b16 %v781, %v775
    %v1328 = vpack.c.b16 %v788, %v782
    %v1329 = vpack.c.b16 %v789, %v783
    %v1330 = vpack.c.b16 %v790, %v784
    %v1331 = vpack.c.b16 %v791, %v785
    %v1332 = vpack.c.b16 %v792, %v786
    %v1333 = vpack.c.b16 %v793, %v787
    %v1334 = vpack.c.b16 %v800, %v794
    %v1335 = vpack.c.b16 %v801, %v795
    %v1336 = vpack.c.b16 %v802, %v796
    %v1337 = vpack.c.b16 %v803, %v797
    %v1338 = vpack.c.b16 %v804, %v798
    %v1339 = vpack.c.b16 %v805, %v799
    %v1340 = vpack.c.b16 %v812, %v806
    %v1341 = vpack.c.b16 %v813, %v807
    %v1342 = vpack.c.b16 %v814, %v808
    %v1343 = vpack.c.b16 %v815, %v809
    %v1344 = vpack.c.b16 %v816, %v810
    %v1345 = vpack.c.b16 %v817, %v811
    %v1346 = vpack.c.b16 %v824, %v818
    %v1347 = vpack.c.b16 %v825, %v819
    %v1348 = vpack.c.b16 %v826, %v820
    %v1349 = vpack.c.b16 %v827, %v821
    %v1350 = vpack.c.b16 %v828, %v822
    %v1351 = vpack.c.b16 %v829, %v823
    %v1352 = vpack.c.b16 %v836, %v830
    %v1353 = vpack.c.b16 %v837, %v831
    %v1354 = vpack.c.b16 %v838, %v832
    %v1355 = vpack.c.b16 %v839, %v833
    %v1356 = vpack.c.b16 %v840, %v834
    %v1357 = vpack.c.b16 %v841, %v835
    %v1358 = vpack.c.b16 %v848, %v842
    %v1359 = vpack.c.b16 %v849, %v843
    %v1360 = vpack.c.b16 %v850, %v844
    %v1361 = vpack.c.b16 %v851, %v845
    %v1362 = vpack.c.b16 %v852, %v846
    %v1363 = vpack.c.b16 %v853, %v847
    %v1364 = vpack.c.b16 %v860, %v854
    %v1365 = vpack.c.b16 %v861, %v855
    %v1366 = vpack.c.b16 %v862, %v856
    %v1367 = vpack.c.b16 %v863, %v857
    %v1368 = vpack.c.b16 %v864, %v858
    %v1369 = vpack.c.b16 %v865, %v859
    %v1370 = vpack.c.b16 %v872, %v866
    %v1371 = vpack.c.b16 %v873, %v867
    %v1372 = vpack.c.b16 %v874, %v868
    %v1373 = vpack.c.b16 %v875, %v869
    %v1374 = vpack.c.b16 %v876, %v870
    %v1375 = vpack.c.b16 %v877, %v871
    %v1376 = vpack.c.b16 %v884, %v878
    %v1377 = vpack.c.b16 %v885, %v879
    %v1378 = vpack.c.b16 %v886, %v880
    %v1379 = vpack.c.b16 %v887, %v881
    %v1380 = vpack.c.b16 %v888, %v882
    %v1381 = vpack.c.b16 %v889, %v883
    %v1382 = vpack.c.b16 %v896, %v890
    %v1383 = vpack.c.b16 %v897, %v891
    %v1384 = vpack.c.b16 %v898, %v892
    %v1385 = vpack.c.b16 %v899, %v893
    %v1386 = vpack.c.b16 %v900, %v894
    %v1387 = vpack.c.b16 %v901, %v895
    %v1388 = vpack.c.b16 %v908, %v902
    %v1389 = vpack.c.b16 %v909, %v903
    %v1390 = vpack.c.b16 %v910, %v904
    %v1391 = vpack.c.b16 %v911, %v905
    %v1392 = vpack.c.b16 %v912, %v906
    %v1393 = vpack.c.b16 %v913, %v907
    %v1394 = vpack.c.b16 %v920, %v914
    %v1395 = vpack.c.b16 %v921, %v915
    %v1396 = vpack.c.b16 %v922, %v916
    %v1397 = vpack.c.b16 %v923, %v917
    %v1398 = vpack.c.b16 %v924, %v918
    %v1399 = vpack.c.b16 %v925, %v919
    %v1400 = vpack.c.b16 %v932, %v926
    %v1401 = vpack.c.b16 %v933, %v927
    %v1402 = vpack.c.b16 %v934, %v928
    %v1403 = vpack.c.b16 %v935, %v929
    %v1404 = vpack.c.b16 %v936, %v930
    %v1405 = vpack.c.b16 %v937, %v931
    %v1406 = vpack.c.b16 %v944, %v938
    %v1407 = vpack.c.b16 %v945, %v939
    %v1408 = vpack.c.b16 %v946, %v940
    %v1409 = vpack.c.b16 %v947, %v941
    %v1410 = vpack.c.b16 %v948, %v942
    %v1411 = vpack.c.b16 %v949, %v943
    %v1412 = vpack.c.b16 %v956, %v950
    %v1413 = vpack.c.b16 %v957, %v951
    %v1414 = vpack.c.b16 %v958, %v952
    %v1415 = vpack.c.b16 %v959, %v953
    %v1416 = vpack.c.b16 %v960, %v954
    %v1417 = vpack.c.b16 %v961, %v955
    %v1418 = vpack.c.b16 %v968, %v962
    %v1419 = vpack.c.b16 %v969, %v963
    %v1420 = vpack.c.b16 %v970, %v964
    %v1421 = vpack.c.b16 %v971, %v965
    %v1422 = vpack.c.b16 %v972, %v966
    %v1423 = vpack.c.b16 %v973, %v967
    %v1424 = vpack.c.b16 %v980, %v974
    %v1425 = vpack.c.b16 %v981, %v975
    %v1426 = vpack.c.b16 %v982, %v976
    %v1427 = vpack.c.b16 %v983, %v977
    %v1428 = vpack.c.b16 %v984, %v978
    %v1429 = vpack.c.b16 %v985, %v979
    %v1430 = vpack.c.b16 %v992, %v986
    %v1431 = vpack.c.b16 %v993, %v987
    %v1432 = vpack.c.b16 %v994, %v988
    %v1433 = vpack.c.b16 %v995, %v989
    %v1434 = vpack.c.b16 %v996, %v990
    %v1435 = vpack.c.b16 %v997, %v991
    %v1436 = vpack.c.b16 %v1004, %v998
    %v1437 = vpack.c.b16 %v1005, %v999
    %v1438 = vpack.c.b16 %v1006, %v1000
    %v1439 = vpack.c.b16 %v1007, %v1001
    %v1440 = vpack.c.b16 %v1008, %v1002
    %v1441 = vpack.c.b16 %v1009, %v1003
    %v1442 = vpack.c.b16 %v1016, %v1010
    %v1443 = vpack.c.b16 %v1017, %v1011
    %v1444 = vpack.c.b16 %v1018, %v1012
    %v1445 = vpack.c.b16 %v1019, %v1013
    %v1446 = vpack.c.b16 %v1020, %v1014
    %v1447 = vpack.c.b16 %v1021, %v1015
    %v1448 = vpack.c.b16 %v1028, %v1022
    %v1449 = vpack.c.b16 %v1029, %v1023
    %v1450 = vpack.c.b16 %v1030, %v1024
    %v1451 = vpack.c.b16 %v1031, %v1025
    %v1452 = vpack.c.b16 %v1032, %v1026
    %v1453 = vpack.c.b16 %v1033, %v1027
    %v1454 = vpack.c.b16 %v1040, %v1034
    %v1455 = vpack.c.b16 %v1041, %v1035
    %v1456 = vpack.c.b16 %v1042, %v1036
    %v1457 = vpack.c.b16 %v1043, %v1037
    %v1458 = vpack.c.b16 %v1044, %v1038
    %v1459 = vpack.c.b16 %v1045, %v1039
    %v1460 = vpack.c.b16 %v1052, %v1046
    %v1461 = vpack.c.b16 %v1053, %v1047
    %v1462 = vpack.c.b16 %v1054, %v1048
    %v1463 = vpack.c.b16 %v1055, %v1049
    %v1464 = vpack.c.b16 %v1056, %v1050
    %v1465 = vpack.c.b16 %v1057, %v1051
    %v1466 = vpack.c.b16 %v1064, %v1058
    %v1467 = vpack.c.b16 %v1065, %v1059
    %v1468 = vpack.c.b16 %v1066, %v1060
    %v1469 = vpack.c.b16 %v1067, %v1061
    %v1470 = vpack.c.b16 %v1068, %v1062
    %v1471 = vpack.c.b16 %v1069, %v1063
    %v1472 = vpack.c.b16 %v1076, %v1070
    %v1473 = vpack.c.b16 %v1077, %v1071
    %v1474 = vpack.c.b16 %v1078, %v1072
    %v1475 = vpack.c.b16 %v1079, %v1073
    %v1476 = vpack.c.b16 %v1080, %v1074
    %v1477 = vpack.c.b16 %v1081, %v1075
    %v1478 = vpack.c.b16 %v1088, %v1082
    %v1479 = vpack.c.b16 %v1089, %v1083
    %v1480 = vpack.c.b16 %v1090, %v1084
    %v1481 = vpack.c.b16 %v1091, %v1085
    %v1482 = vpack.c.b16 %v1092, %v1086
    %v1483 = vpack.c.b16 %v1093, %v1087
    %v1484 = vpack.c.b16 %v1100, %v1094
    %v1485 = vpack.c.b16 %v1101, %v1095
    %v1486 = vpack.c.b16 %v1102, %v1096
    %v1487 = vpack.c.b16 %v1103, %v1097
    %v1488 = vpack.c.b16 %v1104, %v1098
    %v1489 = vpack.c.b16 %v1105, %v1099
    %v1490 = vpack.c.b16 %v1112, %v1106
    %v1491 = vpack.c.b16 %v1113, %v1107
    %v1492 = vpack.c.b16 %v1114, %v1108
    %v1493 = vpack.c.b16 %v1115, %v1109
    %v1494 = vpack.c.b16 %v1116, %v1110
    %v1495 = vpack.c.b16 %v1117, %v1111
    %v1496 = vpack.c.b16 %v1124, %v1118
    %v1497 = vpack.c.b16 %v1125, %v1119
    %v1498 = vpack.c.b16 %v1126, %v1120
    %v1499 = vpack.c.b16 %v1127, %v1121
    %v1500 = vpack.c.b16 %v1128, %v1122
    %v1501 = vpack.c.b16 %v1129, %v1123
    %v1502 = vpack.c.b16 %v1136, %v1130
    %v1503 = vpack.c.b16 %v1137, %v1131
    %v1504 = vpack.c.b16 %v1138, %v1132
    %v1505 = vpack.c.b16 %v1139, %v1133
    %v1506 = vpack.c.b16 %v1140, %v1134
    %v1507 = vpack.c.b16 %v1141, %v1135
    %v1508 = vpack.c.b16 %v1148, %v1142
    %v1509 = vpack.c.b16 %v1149, %v1143
    %v1510 = vpack.c.b16 %v1150, %v1144
    %v1511 = vpack.c.b16 %v1151, %v1145
    %v1512 = vpack.c.b16 %v1152, %v1146
    %v1513 = vpack.c.b16 %v1153, %v1147
    %v1514 = vpack.c.b16 %v1160, %v1154
    %v1515 = vpack.c.b16 %v1161, %v1155
    %v1516 = vpack.c.b16 %v1162, %v1156
    %v1517 = vpack.c.b16 %v1163, %v1157
    %v1518 = vpack.c.b16 %v1164, %v1158
    %v1519 = vpack.c.b16 %v1165, %v1159
    %v1520 = vpack.c.b16 %v1172, %v1166
    %v1521 = vpack.c.b16 %v1173, %v1167
    %v1522 = vpack.c.b16 %v1174, %v1168
    %v1523 = vpack.c.b16 %v1175, %v1169
    %v1524 = vpack.c.b16 %v1176, %v1170
    %v1525 = vpack.c.b16 %v1177, %v1171
    %v1526 = vpack.c.b16 %v1184, %v1178
    %v1527 = vpack.c.b16 %v1185, %v1179
    %v1528 = vpack.c.b16 %v1186, %v1180
    %v1529 = vpack.c.b16 %v1187, %v1181
    %v1530 = vpack.c.b16 %v1188, %v1182
    %v1531 = vpack.c.b16 %v1189, %v1183
    %v1532 = vpack.c.b16 %v1196, %v1190
    %v1533 = vpack.c.b16 %v1197, %v1191
    %v1534 = vpack.c.b16 %v1198, %v1192
    %v1535 = vpack.c.b16 %v1199, %v1193
    %v1536 = vpack.c.b16 %v1200, %v1194
    %v1537 = vpack.c.b16 %v1201, %v1195
    %v1538 = vpack.c.b16 %v1208, %v1202
    %v1539 = vpack.c.b16 %v1209, %v1203
    %v1540 = vpack.c.b16 %v1210, %v1204
    %v1541 = vpack.c.b16 %v1211, %v1205
    %v1542 = vpack.c.b16 %v1212, %v1206
    %v1543 = vpack.c.b16 %v1213, %v1207
    %v1544 = vpack.c.b16 %v1220, %v1214
    %v1545 = vpack.c.b16 %v1221, %v1215
    %v1546 = vpack.c.b16 %v1222, %v1216
    %v1547 = vpack.c.b16 %v1223, %v1217
    %v1548 = vpack.c.b16 %v1224, %v1218
    %v1549 = vpack.c.b16 %v1225, %v1219
    %v1550 = vpack.c.b16 %v1232, %v1226
    %v1551 = vpack.c.b16 %v1233, %v1227
    %v1552 = vpack.c.b16 %v1234, %v1228
    %v1553 = vpack.c.b16 %v1235, %v1229
    %v1554 = vpack.c.b16 %v1236, %v1230
    %v1555 = vpack.c.b16 %v1237, %v1231
    %v1556 = vpack.c.b16 %v1244, %v1238
    %v1557 = vpack.c.b16 %v1245, %v1239
    %v1558 = vpack.c.b16 %v1246, %v1240
    %v1559 = vpack.c.b16 %v1247, %v1241
    %v1560 = vpack.c.b16 %v1248, %v1242
    %v1561 = vpack.c.b16 %v1249, %v1243
    %v1562 = vpack.c.b16 %v1256, %v1250
    %v1563 = vpack.c.b16 %v1257, %v1251
    %v1564 = vpack.c.b16 %v1258, %v1252
    %v1565 = vpack.c.b16 %v1259, %v1253
    %v1566 = vpack.c.b16 %v1260, %v1254
    %v1567 = vpack.c.b16 %v1261, %v1255
    %v1568 = vpack.c.b16 %v1268, %v1262
    %v1569 = vpack.c.b16 %v1269, %v1263
    %v1570 = vpack.c.b16 %v1270, %v1264
    %v1571 = vpack.c.b16 %v1271, %v1265
    %v1572 = vpack.c.b16 %v1272, %v1266
    %v1573 = vpack.c.b16 %v1273, %v1267
    %v1574 = vpack.c.b16 %v1280, %v1274
    %v1575 = vpack.c.b16 %v1281, %v1275
    %v1576 = vpack.c.b16 %v1282, %v1276
    %v1577 = vpack.c.b16 %v1283, %v1277
    %v1578 = vpack.c.b16 %v1284, %v1278
    %v1579 = vpack.c.b16 %v1285, %v1279
    %v1580 = vpack.c.b16 %v1292, %v1286
    %v1581 = vpack.c.b16 %v1293, %v1287
    %v1582 = vpack.c.b16 %v1294, %v1288
    %v1583 = vpack.c.b16 %v1295, %v1289
    %v1584 = vpack.c.b16 %v1296, %v1290
    %v1585 = vpack.c.b16 %v1297, %v1291
    %1874 = vmatpush.bf16.msra.mxu0 %v1340
    %1875 = vmatpush.bf16.msra.mxu0 %v1334
    %1876 = vmatpush.bf16.msra.mxu0 %v1328
    %1877 = vmatpush.bf16.msra.mxu0 %v1322
    %1878 = vmatpush.bf16.msra.mxu0 %v1316
    %1879 = vmatpush.bf16.msra.mxu0 %v1310
    %1880 = vmatpush.bf16.msra.mxu0 %v1304
    %1881 = vmatpush.bf16.msra.mxu0 %v1298
    %1882 = vmatmul.bf16.gmra.mxu0 %v126
    %v1883 = vpop.f32.mrf.mxu0
    %v1884 = vadd.f32 %v422, %v1883
    %v1885 = vpop.f32.mrf.mxu0
    %v1886 = vadd.f32 %v422, %v1885
    %1887 = vdwg.mxu0
    %1888 = vmatpush.bf16.msra.mxu0 %v1388
    %1889 = vmatpush.bf16.msra.mxu0 %v1382
    %1890 = vmatpush.bf16.msra.mxu0 %v1376
    %1891 = vmatpush.bf16.msra.mxu0 %v1370
    %1892 = vmatpush.bf16.msra.mxu0 %v1364
    %1893 = vmatpush.bf16.msra.mxu0 %v1358
    %1894 = vmatpush.bf16.msra.mxu0 %v1352
    %1895 = vmatpush.bf16.msra.mxu0 %v1346
    %1896 = vmatmul.bf16.gmra.mxu0 %v127
    %v1897 = vpop.f32.mrf.mxu0
    %v1898 = vadd.f32 %v1884, %v1897
    %v1899 = vpop.f32.mrf.mxu0
    %v1900 = vadd.f32 %v1886, %v1899
    %1901 = vdwg.mxu0
    %1902 = vmatpush.bf16.msra.mxu0 %v1436
    %1903 = vmatpush.bf16.msra.mxu0 %v1430
    %1904 = vmatpush.bf16.msra.mxu0 %v1424
    %1905 = vmatpush.bf16.msra.mxu0 %v1418
    %1906 = vmatpush.bf16.msra.mxu0 %v1412
    %1907 = vmatpush.bf16.msra.mxu0 %v1406
    %1908 = vmatpush.bf16.msra.mxu0 %v1400
    %1909 = vmatpush.bf16.msra.mxu0 %v1394
    %1910 = vmatmul.bf16.gmra.mxu0 %v128
    %v1911 = vpop.f32.mrf.mxu0
    %v1912 = vadd.f32 %v1898, %v1911
    %v1913 = vpop.f32.mrf.mxu0
    %v1914 = vadd.f32 %v1900, %v1913
    %1915 = vdwg.mxu0
    %1916 = vmatpush.bf16.msra.mxu0 %v1484
    %1917 = vmatpush.bf16.msra.mxu0 %v1478
    %1918 = vmatpush.bf16.msra.mxu0 %v1472
    %1919 = vmatpush.bf16.msra.mxu0 %v1466
    %1920 = vmatpush.bf16.msra.mxu0 %v1460
    %1921 = vmatpush.bf16.msra.mxu0 %v1454
    %1922 = vmatpush.bf16.msra.mxu0 %v1448
    %1923 = vmatpush.bf16.msra.mxu0 %v1442
    %1924 = vmatmul.bf16.gmra.mxu0 %v129
    %v1925 = vpop.f32.mrf.mxu0
    %v1926 = vadd.f32 %v1912, %v1925
    %v1927 = vpop.f32.mrf.mxu0
    %v1928 = vadd.f32 %v1914, %v1927
    %1929 = vdwg.mxu0
    %1930 = vmatpush.bf16.msra.mxu0 %v1532
    %1931 = vmatpush.bf16.msra.mxu0 %v1526
    %1932 = vmatpush.bf16.msra.mxu0 %v1520
    %1933 = vmatpush.bf16.msra.mxu0 %v1514
    %1934 = vmatpush.bf16.msra.mxu0 %v1508
    %1935 = vmatpush.bf16.msra.mxu0 %v1502
    %1936 = vmatpush.bf16.msra.mxu0 %v1496
    %1937 = vmatpush.bf16.msra.mxu0 %v1490
    %1938 = vmatmul.bf16.gmra.mxu0 %v130
    %v1939 = vpop.f32.mrf.mxu0
    %v1940 = vadd.f32 %v1926, %v1939
    %v1941 = vpop.f32.mrf.mxu0
    %v1942 = vadd.f32 %v1928, %v1941
    %1943 = vdwg.mxu0
    %1944 = vmatpush.bf16.msra.mxu0 %v1580
    %1945 = vmatpush.bf16.msra.mxu0 %v1574
    %1946 = vmatpush.bf16.msra.mxu0 %v1568
    %1947 = vmatpush.bf16.msra.mxu0 %v1562
    %1948 = vmatpush.bf16.msra.mxu0 %v1556
    %1949 = vmatpush.bf16.msra.mxu0 %v1550
    %1950 = vmatpush.bf16.msra.mxu0 %v1544
    %1951 = vmatpush.bf16.msra.mxu0 %v1538
    %1952 = vmatmul.bf16.gmra.mxu0 %v131
    %v1953 = vpop.f32.mrf.mxu0
    %v1954 = vadd.f32 %v1940, %v1953
    %v1955 = vpop.f32.mrf.mxu0
    %v1956 = vadd.f32 %v1942, %v1955
    %1957 = vdwg.mxu0
    %1958 = vmatpush.bf16.msra.mxu0 %v1341
    %1959 = vmatpush.bf16.msra.mxu0 %v1335
    %1960 = vmatpush.bf16.msra.mxu0 %v1329
    %1961 = vmatpush.bf16.msra.mxu0 %v1323
    %1962 = vmatpush.bf16.msra.mxu0 %v1317
    %1963 = vmatpush.bf16.msra.mxu0 %v1311
    %1964 = vmatpush.bf16.msra.mxu0 %v1305
    %1965 = vmatpush.bf16.msra.mxu0 %v1299
    %1966 = vmatmul.bf16.gmra.mxu0 %v126
    %v1967 = vpop.f32.mrf.mxu0
    %v1968 = vadd.f32 %v423, %v1967
    %v1969 = vpop.f32.mrf.mxu0
    %v1970 = vadd.f32 %v423, %v1969
    %1971 = vdwg.mxu0
    %1972 = vmatpush.bf16.msra.mxu0 %v1389
    %1973 = vmatpush.bf16.msra.mxu0 %v1383
    %1974 = vmatpush.bf16.msra.mxu0 %v1377
    %1975 = vmatpush.bf16.msra.mxu0 %v1371
    %1976 = vmatpush.bf16.msra.mxu0 %v1365
    %1977 = vmatpush.bf16.msra.mxu0 %v1359
    %1978 = vmatpush.bf16.msra.mxu0 %v1353
    %1979 = vmatpush.bf16.msra.mxu0 %v1347
    %1980 = vmatmul.bf16.gmra.mxu0 %v127
    %v1981 = vpop.f32.mrf.mxu0
    %v1982 = vadd.f32 %v1968, %v1981
    %v1983 = vpop.f32.mrf.mxu0
    %v1984 = vadd.f32 %v1970, %v1983
    %1985 = vdwg.mxu0
    %1986 = vmatpush.bf16.msra.mxu0 %v1437
    %1987 = vmatpush.bf16.msra.mxu0 %v1431
    %1988 = vmatpush.bf16.msra.mxu0 %v1425
    %1989 = vmatpush.bf16.msra.mxu0 %v1419
    %1990 = vmatpush.bf16.msra.mxu0 %v1413
    %1991 = vmatpush.bf16.msra.mxu0 %v1407
    %1992 = vmatpush.bf16.msra.mxu0 %v1401
    %1993 = vmatpush.bf16.msra.mxu0 %v1395
    %1994 = vmatmul.bf16.gmra.mxu0 %v128
    %v1995 = vpop.f32.mrf.mxu0
    %v1996 = vadd.f32 %v1982, %v1995
    %v1997 = vpop.f32.mrf.mxu0
    %v1998 = vadd.f32 %v1984, %v1997
    %1999 = vdwg.mxu0
    %2000 = vmatpush.bf16.msra.mxu0 %v1485
    %2001 = vmatpush.bf16.msra.mxu0 %v1479
    %2002 = vmatpush.bf16.msra.mxu0 %v1473
    %2003 = vmatpush.bf16.msra.mxu0 %v1467
    %2004 = vmatpush.bf16.msra.mxu0 %v1461
    %2005 = vmatpush.bf16.msra.mxu0 %v1455
    %2006 = vmatpush.bf16.msra.mxu0 %v1449
    %2007 = vmatpush.bf16.msra.mxu0 %v1443
    %2008 = vmatmul.bf16.gmra.mxu0 %v129
    %v2009 = vpop.f32.mrf.mxu0
    %v2010 = vadd.f32 %v1996, %v2009
    %v2011 = vpop.f32.mrf.mxu0
    %v2012 = vadd.f32 %v1998, %v2011
    %2013 = vdwg.mxu0
    %2014 = vmatpush.bf16.msra.mxu0 %v1533
    %2015 = vmatpush.bf16.msra.mxu0 %v1527
    %2016 = vmatpush.bf16.msra.mxu0 %v1521
    %2017 = vmatpush.bf16.msra.mxu0 %v1515
    %2018 = vmatpush.bf16.msra.mxu0 %v1509
    %2019 = vmatpush.bf16.msra.mxu0 %v1503
    %2020 = vmatpush.bf16.msra.mxu0 %v1497
    %2021 = vmatpush.bf16.msra.mxu0 %v1491
    %2022 = vmatmul.bf16.gmra.mxu0 %v130
    %v2023 = vpop.f32.mrf.mxu0
    %v2024 = vadd.f32 %v2010, %v2023
    %v2025 = vpop.f32.mrf.mxu0
    %v2026 = vadd.f32 %v2012, %v2025
    %2027 = vdwg.mxu0
    %2028 = vmatpush.bf16.msra.mxu0 %v1581
    %2029 = vmatpush.bf16.msra.mxu0 %v1575
    %2030 = vmatpush.bf16.msra.mxu0 %v1569
    %2031 = vmatpush.bf16.msra.mxu0 %v1563
    %2032 = vmatpush.bf16.msra.mxu0 %v1557
    %2033 = vmatpush.bf16.msra.mxu0 %v1551
    %2034 = vmatpush.bf16.msra.mxu0 %v1545
    %2035 = vmatpush.bf16.msra.mxu0 %v1539
    %2036 = vmatmul.bf16.gmra.mxu0 %v131
    %v2037 = vpop.f32.mrf.mxu0
    %v2038 = vadd.f32 %v2024, %v2037
    %v2039 = vpop.f32.mrf.mxu0
    %v2040 = vadd.f32 %v2026, %v2039
    %2041 = vdwg.mxu0
    %2042 = vmatpush.bf16.msra.mxu0 %v1342
    %2043 = vmatpush.bf16.msra.mxu0 %v1336
    %2044 = vmatpush.bf16.msra.mxu0 %v1330
    %2045 = vmatpush.bf16.msra.mxu0 %v1324
    %2046 = vmatpush.bf16.msra.mxu0 %v1318
    %2047 = vmatpush.bf16.msra.mxu0 %v1312
    %2048 = vmatpush.bf16.msra.mxu0 %v1306
    %2049 = vmatpush.bf16.msra.mxu0 %v1300
    %2050 = vmatmul.bf16.gmra.mxu0 %v126
    %v2051 = vpop.f32.mrf.mxu0
    %v2052 = vadd.f32 %v424, %v2051
    %v2053 = vpop.f32.mrf.mxu0
    %v2054 = vadd.f32 %v424, %v2053
    %2055 = vdwg.mxu0
    %2056 = vmatpush.bf16.msra.mxu0 %v1390
    %2057 = vmatpush.bf16.msra.mxu0 %v1384
    %2058 = vmatpush.bf16.msra.mxu0 %v1378
    %2059 = vmatpush.bf16.msra.mxu0 %v1372
    %2060 = vmatpush.bf16.msra.mxu0 %v1366
    %2061 = vmatpush.bf16.msra.mxu0 %v1360
    %2062 = vmatpush.bf16.msra.mxu0 %v1354
    %2063 = vmatpush.bf16.msra.mxu0 %v1348
    %2064 = vmatmul.bf16.gmra.mxu0 %v127
    %v2065 = vpop.f32.mrf.mxu0
    %v2066 = vadd.f32 %v2052, %v2065
    %v2067 = vpop.f32.mrf.mxu0
    %v2068 = vadd.f32 %v2054, %v2067
    %2069 = vdwg.mxu0
    %2070 = vmatpush.bf16.msra.mxu0 %v1438
    %2071 = vmatpush.bf16.msra.mxu0 %v1432
    %2072 = vmatpush.bf16.msra.mxu0 %v1426
    %2073 = vmatpush.bf16.msra.mxu0 %v1420
    %2074 = vmatpush.bf16.msra.mxu0 %v1414
    %2075 = vmatpush.bf16.msra.mxu0 %v1408
    %2076 = vmatpush.bf16.msra.mxu0 %v1402
    %2077 = vmatpush.bf16.msra.mxu0 %v1396
    %2078 = vmatmul.bf16.gmra.mxu0 %v128
    %v2079 = vpop.f32.mrf.mxu0
    %v2080 = vadd.f32 %v2066, %v2079
    %v2081 = vpop.f32.mrf.mxu0
    %v2082 = vadd.f32 %v2068, %v2081
    %2083 = vdwg.mxu0
    %2084 = vmatpush.bf16.msra.mxu0 %v1486
    %2085 = vmatpush.bf16.msra.mxu0 %v1480
    %2086 = vmatpush.bf16.msra.mxu0 %v1474
    %2087 = vmatpush.bf16.msra.mxu0 %v1468
    %2088 = vmatpush.bf16.msra.mxu0 %v1462
    %2089 = vmatpush.bf16.msra.mxu0 %v1456
    %2090 = vmatpush.bf16.msra.mxu0 %v1450
    %2091 = vmatpush.bf16.msra.mxu0 %v1444
    %2092 = vmatmul.bf16.gmra.mxu0 %v129
    %v2093 = vpop.f32.mrf.mxu0
    %v2094 = vadd.f32 %v2080, %v2093
    %v2095 = vpop.f32.mrf.mxu0
    %v2096 = vadd.f32 %v2082, %v2095
    %2097 = vdwg.mxu0
    %2098 = vmatpush.bf16.msra.mxu0 %v1534
    %2099 = vmatpush.bf16.msra.mxu0 %v1528
    %2100 = vmatpush.bf16.msra.mxu0 %v1522
    %2101 = vmatpush.bf16.msra.mxu0 %v1516
    %2102 = vmatpush.bf16.msra.mxu0 %v1510
    %2103 = vmatpush.bf16.msra.mxu0 %v1504
    %2104 = vmatpush.bf16.msra.mxu0 %v1498
    %2105 = vmatpush.bf16.msra.mxu0 %v1492
    %2106 = vmatmul.bf16.gmra.mxu0 %v130
    %v2107 = vpop.f32.mrf.mxu0
    %v2108 = vadd.f32 %v2094, %v2107
    %v2109 = vpop.f32.mrf.mxu0
    %v2110 = vadd.f32 %v2096, %v2109
    %2111 = vdwg.mxu0
    %2112 = vmatpush.bf16.msra.mxu0 %v1582
    %2113 = vmatpush.bf16.msra.mxu0 %v1576
    %2114 = vmatpush.bf16.msra.mxu0 %v1570
    %2115 = vmatpush.bf16.msra.mxu0 %v1564
    %2116 = vmatpush.bf16.msra.mxu0 %v1558
    %2117 = vmatpush.bf16.msra.mxu0 %v1552
    %2118 = vmatpush.bf16.msra.mxu0 %v1546
    %2119 = vmatpush.bf16.msra.mxu0 %v1540
    %2120 = vmatmul.bf16.gmra.mxu0 %v131
    %v2121 = vpop.f32.mrf.mxu0
    %v2122 = vadd.f32 %v2108, %v2121
    %v2123 = vpop.f32.mrf.mxu0
    %v2124 = vadd.f32 %v2110, %v2123
    %2125 = vdwg.mxu0
    %2126 = vmatpush.bf16.msra.mxu0 %v1343
    %2127 = vmatpush.bf16.msra.mxu0 %v1337
    %2128 = vmatpush.bf16.msra.mxu0 %v1331
    %2129 = vmatpush.bf16.msra.mxu0 %v1325
    %2130 = vmatpush.bf16.msra.mxu0 %v1319
    %2131 = vmatpush.bf16.msra.mxu0 %v1313
    %2132 = vmatpush.bf16.msra.mxu0 %v1307
    %2133 = vmatpush.bf16.msra.mxu0 %v1301
    %2134 = vmatmul.bf16.gmra.mxu0 %v126
    %v2135 = vpop.f32.mrf.mxu0
    %v2136 = vadd.f32 %v425, %v2135
    %v2137 = vpop.f32.mrf.mxu0
    %v2138 = vadd.f32 %v425, %v2137
    %2139 = vdwg.mxu0
    %2140 = vmatpush.bf16.msra.mxu0 %v1391
    %2141 = vmatpush.bf16.msra.mxu0 %v1385
    %2142 = vmatpush.bf16.msra.mxu0 %v1379
    %2143 = vmatpush.bf16.msra.mxu0 %v1373
    %2144 = vmatpush.bf16.msra.mxu0 %v1367
    %2145 = vmatpush.bf16.msra.mxu0 %v1361
    %2146 = vmatpush.bf16.msra.mxu0 %v1355
    %2147 = vmatpush.bf16.msra.mxu0 %v1349
    %2148 = vmatmul.bf16.gmra.mxu0 %v127
    %v2149 = vpop.f32.mrf.mxu0
    %v2150 = vadd.f32 %v2136, %v2149
    %v2151 = vpop.f32.mrf.mxu0
    %v2152 = vadd.f32 %v2138, %v2151
    %2153 = vdwg.mxu0
    %2154 = vmatpush.bf16.msra.mxu0 %v1439
    %2155 = vmatpush.bf16.msra.mxu0 %v1433
    %2156 = vmatpush.bf16.msra.mxu0 %v1427
    %2157 = vmatpush.bf16.msra.mxu0 %v1421
    %2158 = vmatpush.bf16.msra.mxu0 %v1415
    %2159 = vmatpush.bf16.msra.mxu0 %v1409
    %2160 = vmatpush.bf16.msra.mxu0 %v1403
    %2161 = vmatpush.bf16.msra.mxu0 %v1397
    %2162 = vmatmul.bf16.gmra.mxu0 %v128
    %v2163 = vpop.f32.mrf.mxu0
    %v2164 = vadd.f32 %v2150, %v2163
    %v2165 = vpop.f32.mrf.mxu0
    %v2166 = vadd.f32 %v2152, %v2165
    %2167 = vdwg.mxu0
    %2168 = vmatpush.bf16.msra.mxu0 %v1487
    %2169 = vmatpush.bf16.msra.mxu0 %v1481
    %2170 = vmatpush.bf16.msra.mxu0 %v1475
    %2171 = vmatpush.bf16.msra.mxu0 %v1469
    %2172 = vmatpush.bf16.msra.mxu0 %v1463
    %2173 = vmatpush.bf16.msra.mxu0 %v1457
    %2174 = vmatpush.bf16.msra.mxu0 %v1451
    %2175 = vmatpush.bf16.msra.mxu0 %v1445
    %2176 = vmatmul.bf16.gmra.mxu0 %v129
    %v2177 = vpop.f32.mrf.mxu0
    %v2178 = vadd.f32 %v2164, %v2177
    %v2179 = vpop.f32.mrf.mxu0
    %v2180 = vadd.f32 %v2166, %v2179
    %2181 = vdwg.mxu0
    %2182 = vmatpush.bf16.msra.mxu0 %v1535
    %2183 = vmatpush.bf16.msra.mxu0 %v1529
    %2184 = vmatpush.bf16.msra.mxu0 %v1523
    %2185 = vmatpush.bf16.msra.mxu0 %v1517
    %2186 = vmatpush.bf16.msra.mxu0 %v1511
    %2187 = vmatpush.bf16.msra.mxu0 %v1505
    %2188 = vmatpush.bf16.msra.mxu0 %v1499
    %2189 = vmatpush.bf16.msra.mxu0 %v1493
    %2190 = vmatmul.bf16.gmra.mxu0 %v130
    %v2191 = vpop.f32.mrf.mxu0
    %v2192 = vadd.f32 %v2178, %v2191
    %v2193 = vpop.f32.mrf.mxu0
    %v2194 = vadd.f32 %v2180, %v2193
    %2195 = vdwg.mxu0
    %2196 = vmatpush.bf16.msra.mxu0 %v1583
    %2197 = vmatpush.bf16.msra.mxu0 %v1577
    %2198 = vmatpush.bf16.msra.mxu0 %v1571
    %2199 = vmatpush.bf16.msra.mxu0 %v1565
    %2200 = vmatpush.bf16.msra.mxu0 %v1559
    %2201 = vmatpush.bf16.msra.mxu0 %v1553
    %2202 = vmatpush.bf16.msra.mxu0 %v1547
    %2203 = vmatpush.bf16.msra.mxu0 %v1541
    %2204 = vmatmul.bf16.gmra.mxu0 %v131
    %v2205 = vpop.f32.mrf.mxu0
    %v2206 = vadd.f32 %v2192, %v2205
    %v2207 = vpop.f32.mrf.mxu0
    %v2208 = vadd.f32 %v2194, %v2207
    %2209 = vdwg.mxu0
    %2210 = vmatpush.bf16.msra.mxu0 %v1344
    %2211 = vmatpush.bf16.msra.mxu0 %v1338
    %2212 = vmatpush.bf16.msra.mxu0 %v1332
    %2213 = vmatpush.bf16.msra.mxu0 %v1326
    %2214 = vmatpush.bf16.msra.mxu0 %v1320
    %2215 = vmatpush.bf16.msra.mxu0 %v1314
    %2216 = vmatpush.bf16.msra.mxu0 %v1308
    %2217 = vmatpush.bf16.msra.mxu0 %v1302
    %2218 = vmatmul.bf16.gmra.mxu0 %v126
    %v2219 = vpop.f32.mrf.mxu0
    %v2220 = vadd.f32 %v426, %v2219
    %v2221 = vpop.f32.mrf.mxu0
    %v2222 = vadd.f32 %v426, %v2221
    %2223 = vdwg.mxu0
    %2224 = vmatpush.bf16.msra.mxu0 %v1392
    %2225 = vmatpush.bf16.msra.mxu0 %v1386
    %2226 = vmatpush.bf16.msra.mxu0 %v1380
    %2227 = vmatpush.bf16.msra.mxu0 %v1374
    %2228 = vmatpush.bf16.msra.mxu0 %v1368
    %2229 = vmatpush.bf16.msra.mxu0 %v1362
    %2230 = vmatpush.bf16.msra.mxu0 %v1356
    %2231 = vmatpush.bf16.msra.mxu0 %v1350
    %2232 = vmatmul.bf16.gmra.mxu0 %v127
    %v2233 = vpop.f32.mrf.mxu0
    %v2234 = vadd.f32 %v2220, %v2233
    %v2235 = vpop.f32.mrf.mxu0
    %v2236 = vadd.f32 %v2222, %v2235
    %2237 = vdwg.mxu0
    %2238 = vmatpush.bf16.msra.mxu0 %v1440
    %2239 = vmatpush.bf16.msra.mxu0 %v1434
    %2240 = vmatpush.bf16.msra.mxu0 %v1428
    %2241 = vmatpush.bf16.msra.mxu0 %v1422
    %2242 = vmatpush.bf16.msra.mxu0 %v1416
    %2243 = vmatpush.bf16.msra.mxu0 %v1410
    %2244 = vmatpush.bf16.msra.mxu0 %v1404
    %2245 = vmatpush.bf16.msra.mxu0 %v1398
    %2246 = vmatmul.bf16.gmra.mxu0 %v128
    %v2247 = vpop.f32.mrf.mxu0
    %v2248 = vadd.f32 %v2234, %v2247
    %v2249 = vpop.f32.mrf.mxu0
    %v2250 = vadd.f32 %v2236, %v2249
    %2251 = vdwg.mxu0
    %2252 = vmatpush.bf16.msra.mxu0 %v1488
    %2253 = vmatpush.bf16.msra.mxu0 %v1482
    %2254 = vmatpush.bf16.msra.mxu0 %v1476
    %2255 = vmatpush.bf16.msra.mxu0 %v1470
    %2256 = vmatpush.bf16.msra.mxu0 %v1464
    %2257 = vmatpush.bf16.msra.mxu0 %v1458
    %2258 = vmatpush.bf16.msra.mxu0 %v1452
    %2259 = vmatpush.bf16.msra.mxu0 %v1446
    %2260 = vmatmul.bf16.gmra.mxu0 %v129
    %v2261 = vpop.f32.mrf.mxu0
    %v2262 = vadd.f32 %v2248, %v2261
    %v2263 = vpop.f32.mrf.mxu0
    %v2264 = vadd.f32 %v2250, %v2263
    %2265 = vdwg.mxu0
    %2266 = vmatpush.bf16.msra.mxu0 %v1536
    %2267 = vmatpush.bf16.msra.mxu0 %v1530
    %2268 = vmatpush.bf16.msra.mxu0 %v1524
    %2269 = vmatpush.bf16.msra.mxu0 %v1518
    %2270 = vmatpush.bf16.msra.mxu0 %v1512
    %2271 = vmatpush.bf16.msra.mxu0 %v1506
    %2272 = vmatpush.bf16.msra.mxu0 %v1500
    %2273 = vmatpush.bf16.msra.mxu0 %v1494
    %2274 = vmatmul.bf16.gmra.mxu0 %v130
    %v2275 = vpop.f32.mrf.mxu0
    %v2276 = vadd.f32 %v2262, %v2275
    %v2277 = vpop.f32.mrf.mxu0
    %v2278 = vadd.f32 %v2264, %v2277
    %2279 = vdwg.mxu0
    %2280 = vmatpush.bf16.msra.mxu0 %v1584
    %2281 = vmatpush.bf16.msra.mxu0 %v1578
    %2282 = vmatpush.bf16.msra.mxu0 %v1572
    %2283 = vmatpush.bf16.msra.mxu0 %v1566
    %2284 = vmatpush.bf16.msra.mxu0 %v1560
    %2285 = vmatpush.bf16.msra.mxu0 %v1554
    %2286 = vmatpush.bf16.msra.mxu0 %v1548
    %2287 = vmatpush.bf16.msra.mxu0 %v1542
    %2288 = vmatmul.bf16.gmra.mxu0 %v131
    %v2289 = vpop.f32.mrf.mxu0
    %v2290 = vadd.f32 %v2276, %v2289
    %v2291 = vpop.f32.mrf.mxu0
    %v2292 = vadd.f32 %v2278, %v2291
    %2293 = vdwg.mxu0
    %2294 = vmatpush.bf16.msra.mxu0 %v1345
    %2295 = vmatpush.bf16.msra.mxu0 %v1339
    %2296 = vmatpush.bf16.msra.mxu0 %v1333
    %2297 = vmatpush.bf16.msra.mxu0 %v1327
    %2298 = vmatpush.bf16.msra.mxu0 %v1321
    %2299 = vmatpush.bf16.msra.mxu0 %v1315
    %2300 = vmatpush.bf16.msra.mxu0 %v1309
    %2301 = vmatpush.bf16.msra.mxu0 %v1303
    %2302 = vmatmul.bf16.gmra.mxu0 %v126
    %v2303 = vpop.f32.mrf.mxu0
    %v2304 = vadd.f32 %v427, %v2303
    %v2305 = vpop.f32.mrf.mxu0
    %v2306 = vadd.f32 %v427, %v2305
    %2307 = vdwg.mxu0
    %2308 = vmatpush.bf16.msra.mxu0 %v1393
    %2309 = vmatpush.bf16.msra.mxu0 %v1387
    %2310 = vmatpush.bf16.msra.mxu0 %v1381
    %2311 = vmatpush.bf16.msra.mxu0 %v1375
    %2312 = vmatpush.bf16.msra.mxu0 %v1369
    %2313 = vmatpush.bf16.msra.mxu0 %v1363
    %2314 = vmatpush.bf16.msra.mxu0 %v1357
    %2315 = vmatpush.bf16.msra.mxu0 %v1351
    %2316 = vmatmul.bf16.gmra.mxu0 %v127
    %v2317 = vpop.f32.mrf.mxu0
    %v2318 = vadd.f32 %v2304, %v2317
    %v2319 = vpop.f32.mrf.mxu0
    %v2320 = vadd.f32 %v2306, %v2319
    %2321 = vdwg.mxu0
    %2322 = vmatpush.bf16.msra.mxu0 %v1441
    %2323 = vmatpush.bf16.msra.mxu0 %v1435
    %2324 = vmatpush.bf16.msra.mxu0 %v1429
    %2325 = vmatpush.bf16.msra.mxu0 %v1423
    %2326 = vmatpush.bf16.msra.mxu0 %v1417
    %2327 = vmatpush.bf16.msra.mxu0 %v1411
    %2328 = vmatpush.bf16.msra.mxu0 %v1405
    %2329 = vmatpush.bf16.msra.mxu0 %v1399
    %2330 = vmatmul.bf16.gmra.mxu0 %v128
    %v2331 = vpop.f32.mrf.mxu0
    %v2332 = vadd.f32 %v2318, %v2331
    %v2333 = vpop.f32.mrf.mxu0
    %v2334 = vadd.f32 %v2320, %v2333
    %2335 = vdwg.mxu0
    %2336 = vmatpush.bf16.msra.mxu0 %v1489
    %2337 = vmatpush.bf16.msra.mxu0 %v1483
    %2338 = vmatpush.bf16.msra.mxu0 %v1477
    %2339 = vmatpush.bf16.msra.mxu0 %v1471
    %2340 = vmatpush.bf16.msra.mxu0 %v1465
    %2341 = vmatpush.bf16.msra.mxu0 %v1459
    %2342 = vmatpush.bf16.msra.mxu0 %v1453
    %2343 = vmatpush.bf16.msra.mxu0 %v1447
    %2344 = vmatmul.bf16.gmra.mxu0 %v129
    %v2345 = vpop.f32.mrf.mxu0
    %v2346 = vadd.f32 %v2332, %v2345
    %v2347 = vpop.f32.mrf.mxu0
    %v2348 = vadd.f32 %v2334, %v2347
    %2349 = vdwg.mxu0
    %2350 = vmatpush.bf16.msra.mxu0 %v1537
    %2351 = vmatpush.bf16.msra.mxu0 %v1531
    %2352 = vmatpush.bf16.msra.mxu0 %v1525
    %2353 = vmatpush.bf16.msra.mxu0 %v1519
    %2354 = vmatpush.bf16.msra.mxu0 %v1513
    %2355 = vmatpush.bf16.msra.mxu0 %v1507
    %2356 = vmatpush.bf16.msra.mxu0 %v1501
    %2357 = vmatpush.bf16.msra.mxu0 %v1495
    %2358 = vmatmul.bf16.gmra.mxu0 %v130
    %v2359 = vpop.f32.mrf.mxu0
    %v2360 = vadd.f32 %v2346, %v2359
    %v2361 = vpop.f32.mrf.mxu0
    %v2362 = vadd.f32 %v2348, %v2361
    %2363 = vdwg.mxu0
    %2364 = vmatpush.bf16.msra.mxu0 %v1585
    %2365 = vmatpush.bf16.msra.mxu0 %v1579
    %2366 = vmatpush.bf16.msra.mxu0 %v1573
    %2367 = vmatpush.bf16.msra.mxu0 %v1567
    %2368 = vmatpush.bf16.msra.mxu0 %v1561
    %2369 = vmatpush.bf16.msra.mxu0 %v1555
    %2370 = vmatpush.bf16.msra.mxu0 %v1549
    %2371 = vmatpush.bf16.msra.mxu0 %v1543
    %2372 = vmatmul.bf16.gmra.mxu0 %v131
    %v2373 = vpop.f32.mrf.mxu0
    %v2374 = vadd.f32 %v2360, %v2373
    %v2375 = vpop.f32.mrf.mxu0
    %v2376 = vadd.f32 %v2362, %v2375
    %2377 = vdwg.mxu0
    %v2378 = vtanh.pop %v1954
    %v2379 = vtanh.pop %v2038
    %v2380 = vtanh.pop %v2122
    %v2381 = vtanh.pop %v2206
    %v2382 = vtanh.pop %v2290
    %v2383 = vtanh.pop %v2374
    %v2384 = vtanh.pop %v1956
    %v2385 = vtanh.pop %v2040
    %v2386 = vtanh.pop %v2124
    %v2387 = vtanh.pop %v2208
    %v2388 = vtanh.pop %v2292
    %v2389 = vtanh.pop %v2376
    %v2390 = vpack.c.bf16 %v2384, %v2378
    %v2391 = vpack.c.bf16 %v2385, %v2379
    %v2392 = vpack.c.bf16 %v2386, %v2380
    %v2393 = vpack.c.bf16 %v2387, %v2381
    %v2394 = vpack.c.bf16 %v2388, %v2382
    %v2395 = vpack.c.bf16 %v2389, %v2383
    %v2396 = vld [vmem:[#allocation6] sm:$0xff]
    %v2397 = vld [vmem:[#allocation6 + $0x8] sm:$0xff]
    %v2398 = vld [vmem:[#allocation6 + $0x10] sm:$0xff]
    %v2399 = vld [vmem:[#allocation6 + $0x18] sm:$0xff]
    %v2400 = vld [vmem:[#allocation6 + $0x20] sm:$0xff]
    %v2401 = vld [vmem:[#allocation6 + $0x28] sm:$0xff]
    %v2402 = vld [vmem:[#allocation6 + $0x30] sm:$0xff]
    %v2403 = vld [vmem:[#allocation6 + $0x38] sm:$0xff]
    %v2404 = vld [vmem:[#allocation6 + $0x40] sm:$0xff]
    %v2405 = vld [vmem:[#allocation6 + $0x48] sm:$0xff]
    %v2406 = vld [vmem:[#allocation6 + $0x50] sm:$0xff]
    %v2407 = vld [vmem:[#allocation6 + $0x58] sm:$0xff]
    %v2408 = vld [vmem:[#allocation6 + $0x60] sm:$0xff]
    %v2409 = vld [vmem:[#allocation6 + $0x68] sm:$0xff]
    %v2410 = vld [vmem:[#allocation6 + $0x70] sm:$0xff]
    %v2411 = vld [vmem:[#allocation6 + $0x78] sm:$0xff]
    %v2412 = vld [vmem:[#allocation6 + $0x80] sm:$0xff]
    %v2413 = vld [vmem:[#allocation6 + $0x88] sm:$0xff]
    %v2414 = vld [vmem:[#allocation6 + $0x90] sm:$0xff]
    %v2415 = vld [vmem:[#allocation6 + $0x98] sm:$0xff]
    %v2416 = vld [vmem:[#allocation6 + $0xa0] sm:$0xff]
    %v2417 = vld [vmem:[#allocation6 + $0xa8] sm:$0xff]
    %v2418 = vld [vmem:[#allocation6 + $0xb0] sm:$0xff]
    %v2419 = vld [vmem:[#allocation6 + $0xb8] sm:$0xff]
    %v2420 = vld [vmem:[#allocation6 + $0xc0] sm:$0xff]
    %v2421 = vld [vmem:[#allocation6 + $0xc8] sm:$0xff]
    %v2422 = vld [vmem:[#allocation6 + $0xd0] sm:$0xff]
    %v2423 = vld [vmem:[#allocation6 + $0xd8] sm:$0xff]
    %v2424 = vld [vmem:[#allocation6 + $0xe0] sm:$0xff]
    %v2425 = vld [vmem:[#allocation6 + $0xe8] sm:$0xff]
    %v2426 = vld [vmem:[#allocation6 + $0xf0] sm:$0xff]
    %v2427 = vld [vmem:[#allocation6 + $0xf8] sm:$0xff]
    %v2428 = vld [vmem:[#allocation6 + $0x100] sm:$0xff]
    %v2429 = vld [vmem:[#allocation6 + $0x108] sm:$0xff]
    %v2430 = vld [vmem:[#allocation6 + $0x110] sm:$0xff]
    %v2431 = vld [vmem:[#allocation6 + $0x118] sm:$0xff]
    %v2432 = vld [vmem:[#allocation6 + $0x120] sm:$0xff]
    %v2433 = vld [vmem:[#allocation6 + $0x128] sm:$0xff]
    %v2434 = vld [vmem:[#allocation6 + $0x130] sm:$0xff]
    %v2435 = vld [vmem:[#allocation6 + $0x138] sm:$0xff]
    %v2436 = vld [vmem:[#allocation6 + $0x140] sm:$0xff]
    %v2437 = vld [vmem:[#allocation6 + $0x148] sm:$0xff]
    %v2438 = vld [vmem:[#allocation6 + $0x150] sm:$0xff]
    %v2439 = vld [vmem:[#allocation6 + $0x158] sm:$0xff]
    %v2440 = vld [vmem:[#allocation6 + $0x160] sm:$0xff]
    %v2441 = vld [vmem:[#allocation6 + $0x168] sm:$0xff]
    %v2442 = vld [vmem:[#allocation6 + $0x170] sm:$0xff]
    %v2443 = vld [vmem:[#allocation6 + $0x178] sm:$0xff]
    %v2444 = vld [vmem:[#allocation6 + $0x180] sm:$0xff]
    %v2445 = vld [vmem:[#allocation6 + $0x188] sm:$0xff]
    %v2446 = vld [vmem:[#allocation6 + $0x190] sm:$0xff]
    %v2447 = vld [vmem:[#allocation6 + $0x198] sm:$0xff]
    %v2448 = vld [vmem:[#allocation6 + $0x1a0] sm:$0xff]
    %v2449 = vld [vmem:[#allocation6 + $0x1a8] sm:$0xff]
    %v2450 = vld [vmem:[#allocation6 + $0x1b0] sm:$0xff]
    %v2451 = vld [vmem:[#allocation6 + $0x1b8] sm:$0xff]
    %v2452 = vld [vmem:[#allocation6 + $0x1c0] sm:$0xff]
    %v2453 = vld [vmem:[#allocation6 + $0x1c8] sm:$0xff]
    %v2454 = vld [vmem:[#allocation6 + $0x1d0] sm:$0xff]
    %v2455 = vld [vmem:[#allocation6 + $0x1d8] sm:$0xff]
    %v2456 = vld [vmem:[#allocation6 + $0x1e0] sm:$0xff]
    %v2457 = vld [vmem:[#allocation6 + $0x1e8] sm:$0xff]
    %v2458 = vld [vmem:[#allocation6 + $0x1f0] sm:$0xff]
    %v2459 = vld [vmem:[#allocation6 + $0x1f8] sm:$0xff]
    %v2460 = vld [vmem:[#allocation6 + $0x200] sm:$0xff]
    %v2461 = vld [vmem:[#allocation6 + $0x208] sm:$0xff]
    %v2462 = vld [vmem:[#allocation6 + $0x210] sm:$0xff]
    %v2463 = vld [vmem:[#allocation6 + $0x218] sm:$0xff]
    %v2464 = vld [vmem:[#allocation6 + $0x220] sm:$0xff]
    %v2465 = vld [vmem:[#allocation6 + $0x228] sm:$0xff]
    %v2466 = vld [vmem:[#allocation6 + $0x230] sm:$0xff]
    %v2467 = vld [vmem:[#allocation6 + $0x238] sm:$0xff]
    %v2468 = vld [vmem:[#allocation6 + $0x240] sm:$0xff]
    %v2469 = vld [vmem:[#allocation6 + $0x248] sm:$0xff]
    %v2470 = vld [vmem:[#allocation6 + $0x250] sm:$0xff]
    %v2471 = vld [vmem:[#allocation6 + $0x258] sm:$0xff]
    %v2472 = vld [vmem:[#allocation6 + $0x260] sm:$0xff]
    %v2473 = vld [vmem:[#allocation6 + $0x268] sm:$0xff]
    %v2474 = vld [vmem:[#allocation6 + $0x270] sm:$0xff]
    %v2475 = vld [vmem:[#allocation6 + $0x278] sm:$0xff]
    %v2476 = vld [vmem:[#allocation6 + $0x280] sm:$0xff]
    %v2477 = vld [vmem:[#allocation6 + $0x288] sm:$0xff]
    %v2478 = vld [vmem:[#allocation6 + $0x290] sm:$0xff]
    %v2479 = vld [vmem:[#allocation6 + $0x298] sm:$0xff]
    %v2480 = vld [vmem:[#allocation6 + $0x2a0] sm:$0xff]
    %v2481 = vld [vmem:[#allocation6 + $0x2a8] sm:$0xff]
    %v2482 = vld [vmem:[#allocation6 + $0x2b0] sm:$0xff]
    %v2483 = vld [vmem:[#allocation6 + $0x2b8] sm:$0xff]
    %v2484 = vld [vmem:[#allocation6 + $0x2c0] sm:$0xff]
    %v2485 = vld [vmem:[#allocation6 + $0x2c8] sm:$0xff]
    %v2486 = vld [vmem:[#allocation6 + $0x2d0] sm:$0xff]
    %v2487 = vld [vmem:[#allocation6 + $0x2d8] sm:$0xff]
    %v2488 = vld [vmem:[#allocation6 + $0x2e0] sm:$0xff]
    %v2489 = vld [vmem:[#allocation6 + $0x2e8] sm:$0xff]
    %v2490 = vld [vmem:[#allocation6 + $0x2f0] sm:$0xff]
    %v2491 = vld [vmem:[#allocation6 + $0x2f8] sm:$0xff]
    %v2492 = vld [vmem:[#allocation6 + $0x300] sm:$0xff]
    %v2493 = vld [vmem:[#allocation6 + $0x308] sm:$0xff]
    %v2494 = vld [vmem:[#allocation6 + $0x310] sm:$0xff]
    %v2495 = vld [vmem:[#allocation6 + $0x318] sm:$0xff]
    %v2496 = vld [vmem:[#allocation6 + $0x320] sm:$0xff]
    %v2497 = vld [vmem:[#allocation6 + $0x328] sm:$0xff]
    %v2498 = vld [vmem:[#allocation6 + $0x330] sm:$0xff]
    %v2499 = vld [vmem:[#allocation6 + $0x338] sm:$0xff]
    %v2500 = vld [vmem:[#allocation6 + $0x340] sm:$0xff]
    %v2501 = vld [vmem:[#allocation6 + $0x348] sm:$0xff]
    %v2502 = vld [vmem:[#allocation6 + $0x350] sm:$0xff]
    %v2503 = vld [vmem:[#allocation6 + $0x358] sm:$0xff]
    %v2504 = vld [vmem:[#allocation6 + $0x360] sm:$0xff]
    %v2505 = vld [vmem:[#allocation6 + $0x368] sm:$0xff]
    %v2506 = vld [vmem:[#allocation6 + $0x370] sm:$0xff]
    %v2507 = vld [vmem:[#allocation6 + $0x378] sm:$0xff]
    %v2508 = vld [vmem:[#allocation6 + $0x380] sm:$0xff]
    %v2509 = vld [vmem:[#allocation6 + $0x388] sm:$0xff]
    %v2510 = vld [vmem:[#allocation6 + $0x390] sm:$0xff]
    %v2511 = vld [vmem:[#allocation6 + $0x398] sm:$0xff]
    %v2512 = vld [vmem:[#allocation6 + $0x3a0] sm:$0xff]
    %v2513 = vld [vmem:[#allocation6 + $0x3a8] sm:$0xff]
    %v2514 = vld [vmem:[#allocation6 + $0x3b0] sm:$0xff]
    %v2515 = vld [vmem:[#allocation6 + $0x3b8] sm:$0xff]
    %v2516 = vld [vmem:[#allocation6 + $0x3c0] sm:$0xff]
    %v2517 = vld [vmem:[#allocation6 + $0x3c8] sm:$0xff]
    %v2518 = vld [vmem:[#allocation6 + $0x3d0] sm:$0xff]
    %v2519 = vld [vmem:[#allocation6 + $0x3d8] sm:$0xff]
    %v2520 = vld [vmem:[#allocation6 + $0x3e0] sm:$0xff]
    %v2521 = vld [vmem:[#allocation6 + $0x3e8] sm:$0xff]
    %v2522 = vld [vmem:[#allocation6 + $0x3f0] sm:$0xff]
    %v2523 = vld [vmem:[#allocation6 + $0x3f8] sm:$0xff]
    %v2524 = vld [vmem:[#allocation6 + $0x400] sm:$0xff]
    %v2525 = vld [vmem:[#allocation6 + $0x408] sm:$0xff]
    %v2526 = vld [vmem:[#allocation6 + $0x410] sm:$0xff]
    %v2527 = vld [vmem:[#allocation6 + $0x418] sm:$0xff]
    %v2528 = vld [vmem:[#allocation6 + $0x420] sm:$0xff]
    %v2529 = vld [vmem:[#allocation6 + $0x428] sm:$0xff]
    %v2530 = vld [vmem:[#allocation6 + $0x430] sm:$0xff]
    %v2531 = vld [vmem:[#allocation6 + $0x438] sm:$0xff]
    %v2532 = vld [vmem:[#allocation6 + $0x440] sm:$0xff]
    %v2533 = vld [vmem:[#allocation6 + $0x448] sm:$0xff]
    %v2534 = vld [vmem:[#allocation6 + $0x450] sm:$0xff]
    %v2535 = vld [vmem:[#allocation6 + $0x458] sm:$0xff]
    %v2536 = vld [vmem:[#allocation6 + $0x460] sm:$0xff]
    %v2537 = vld [vmem:[#allocation6 + $0x468] sm:$0xff]
    %v2538 = vld [vmem:[#allocation6 + $0x470] sm:$0xff]
    %v2539 = vld [vmem:[#allocation6 + $0x478] sm:$0xff]
    %v2540 = vld [vmem:[#allocation6 + $0x480] sm:$0xff]
    %v2541 = vld [vmem:[#allocation6 + $0x488] sm:$0xff]
    %v2542 = vld [vmem:[#allocation6 + $0x490] sm:$0xff]
    %v2543 = vld [vmem:[#allocation6 + $0x498] sm:$0xff]
    %v2544 = vld [vmem:[#allocation6 + $0x4a0] sm:$0xff]
    %v2545 = vld [vmem:[#allocation6 + $0x4a8] sm:$0xff]
    %v2546 = vld [vmem:[#allocation6 + $0x4b0] sm:$0xff]
    %v2547 = vld [vmem:[#allocation6 + $0x4b8] sm:$0xff]
    %v2548 = vld [vmem:[#allocation6 + $0x4c0] sm:$0xff]
    %v2549 = vld [vmem:[#allocation6 + $0x4c8] sm:$0xff]
    %v2550 = vld [vmem:[#allocation6 + $0x4d0] sm:$0xff]
    %v2551 = vld [vmem:[#allocation6 + $0x4d8] sm:$0xff]
    %v2552 = vld [vmem:[#allocation6 + $0x4e0] sm:$0xff]
    %v2553 = vld [vmem:[#allocation6 + $0x4e8] sm:$0xff]
    %v2554 = vld [vmem:[#allocation6 + $0x4f0] sm:$0xff]
    %v2555 = vld [vmem:[#allocation6 + $0x4f8] sm:$0xff]
    %v2556 = vld [vmem:[#allocation6 + $0x500] sm:$0xff]
    %v2557 = vld [vmem:[#allocation6 + $0x508] sm:$0xff]
    %v2558 = vld [vmem:[#allocation6 + $0x510] sm:$0xff]
    %v2559 = vld [vmem:[#allocation6 + $0x518] sm:$0xff]
    %v2560 = vld [vmem:[#allocation6 + $0x520] sm:$0xff]
    %v2561 = vld [vmem:[#allocation6 + $0x528] sm:$0xff]
    %v2562 = vld [vmem:[#allocation6 + $0x530] sm:$0xff]
    %v2563 = vld [vmem:[#allocation6 + $0x538] sm:$0xff]
    %v2564 = vld [vmem:[#allocation6 + $0x540] sm:$0xff]
    %v2565 = vld [vmem:[#allocation6 + $0x548] sm:$0xff]
    %v2566 = vld [vmem:[#allocation6 + $0x550] sm:$0xff]
    %v2567 = vld [vmem:[#allocation6 + $0x558] sm:$0xff]
    %v2568 = vld [vmem:[#allocation6 + $0x560] sm:$0xff]
    %v2569 = vld [vmem:[#allocation6 + $0x568] sm:$0xff]
    %v2570 = vld [vmem:[#allocation6 + $0x570] sm:$0xff]
    %v2571 = vld [vmem:[#allocation6 + $0x578] sm:$0xff]
    %v2572 = vld [vmem:[#allocation6 + $0x580] sm:$0xff]
    %v2573 = vld [vmem:[#allocation6 + $0x588] sm:$0xff]
    %v2574 = vld [vmem:[#allocation6 + $0x590] sm:$0xff]
    %v2575 = vld [vmem:[#allocation6 + $0x598] sm:$0xff]
    %v2576 = vld [vmem:[#allocation6 + $0x5a0] sm:$0xff]
    %v2577 = vld [vmem:[#allocation6 + $0x5a8] sm:$0xff]
    %v2578 = vld [vmem:[#allocation6 + $0x5b0] sm:$0xff]
    %v2579 = vld [vmem:[#allocation6 + $0x5b8] sm:$0xff]
    %v2580 = vld [vmem:[#allocation6 + $0x5c0] sm:$0xff]
    %v2581 = vld [vmem:[#allocation6 + $0x5c8] sm:$0xff]
    %v2582 = vld [vmem:[#allocation6 + $0x5d0] sm:$0xff]
    %v2583 = vld [vmem:[#allocation6 + $0x5d8] sm:$0xff]
    %v2584 = vld [vmem:[#allocation6 + $0x5e0] sm:$0xff]
    %v2585 = vld [vmem:[#allocation6 + $0x5e8] sm:$0xff]
    %v2586 = vld [vmem:[#allocation6 + $0x5f0] sm:$0xff]
    %v2587 = vld [vmem:[#allocation6 + $0x5f8] sm:$0xff]
    %v2588 = vld [vmem:[#allocation7] sm:$0xf]
    %v2590 = vperm.slane %v2588, 0
    %v2591 = vperm.slane %v2588, 1
    %v2592 = vperm.slane %v2588, 2
    %v2593 = vperm.slane %v2588, 3
    %v2790 = vunpack.c.l.b16 %v2396
    %v2791 = vunpack.c.h.b16 %v2396
    %v2792 = vunpack.c.l.b16 %v2397
    %v2793 = vunpack.c.h.b16 %v2397
    %v2794 = vunpack.c.l.b16 %v2398
    %v2795 = vunpack.c.h.b16 %v2398
    %v2796 = vunpack.c.l.b16 %v2399
    %v2797 = vunpack.c.h.b16 %v2399
    %v2798 = vunpack.c.l.b16 %v2400
    %v2799 = vunpack.c.h.b16 %v2400
    %v2800 = vunpack.c.l.b16 %v2401
    %v2801 = vunpack.c.h.b16 %v2401
    %v2802 = vunpack.c.l.b16 %v2402
    %v2803 = vunpack.c.h.b16 %v2402
    %v2804 = vunpack.c.l.b16 %v2403
    %v2805 = vunpack.c.h.b16 %v2403
    %v2806 = vunpack.c.l.b16 %v2404
    %v2807 = vunpack.c.h.b16 %v2404
    %v2808 = vunpack.c.l.b16 %v2405
    %v2809 = vunpack.c.h.b16 %v2405
    %v2810 = vunpack.c.l.b16 %v2406
    %v2811 = vunpack.c.h.b16 %v2406
    %v2812 = vunpack.c.l.b16 %v2407
    %v2813 = vunpack.c.h.b16 %v2407
    %v2814 = vunpack.c.l.b16 %v2408
    %v2815 = vunpack.c.h.b16 %v2408
    %v2816 = vunpack.c.l.b16 %v2409
    %v2817 = vunpack.c.h.b16 %v2409
    %v2818 = vunpack.c.l.b16 %v2410
    %v2819 = vunpack.c.h.b16 %v2410
    %v2820 = vunpack.c.l.b16 %v2411
    %v2821 = vunpack.c.h.b16 %v2411
    %v2822 = vunpack.c.l.b16 %v2412
    %v2823 = vunpack.c.h.b16 %v2412
    %v2824 = vunpack.c.l.b16 %v2413
    %v2825 = vunpack.c.h.b16 %v2413
    %v2826 = vunpack.c.l.b16 %v2414
    %v2827 = vunpack.c.h.b16 %v2414
    %v2828 = vunpack.c.l.b16 %v2415
    %v2829 = vunpack.c.h.b16 %v2415
    %v2830 = vunpack.c.l.b16 %v2416
    %v2831 = vunpack.c.h.b16 %v2416
    %v2832 = vunpack.c.l.b16 %v2417
    %v2833 = vunpack.c.h.b16 %v2417
    %v2834 = vunpack.c.l.b16 %v2418
    %v2835 = vunpack.c.h.b16 %v2418
    %v2836 = vunpack.c.l.b16 %v2419
    %v2837 = vunpack.c.h.b16 %v2419
    %v2838 = vunpack.c.l.b16 %v2420
    %v2839 = vunpack.c.h.b16 %v2420
    %v2840 = vunpack.c.l.b16 %v2421
    %v2841 = vunpack.c.h.b16 %v2421
    %v2842 = vunpack.c.l.b16 %v2422
    %v2843 = vunpack.c.h.b16 %v2422
    %v2844 = vunpack.c.l.b16 %v2423
    %v2845 = vunpack.c.h.b16 %v2423
    %v2846 = vunpack.c.l.b16 %v2424
    %v2847 = vunpack.c.h.b16 %v2424
    %v2848 = vunpack.c.l.b16 %v2425
    %v2849 = vunpack.c.h.b16 %v2425
    %v2850 = vunpack.c.l.b16 %v2426
    %v2851 = vunpack.c.h.b16 %v2426
    %v2852 = vunpack.c.l.b16 %v2427
    %v2853 = vunpack.c.h.b16 %v2427
    %v2854 = vunpack.c.l.b16 %v2428
    %v2855 = vunpack.c.h.b16 %v2428
    %v2856 = vunpack.c.l.b16 %v2429
    %v2857 = vunpack.c.h.b16 %v2429
    %v2858 = vunpack.c.l.b16 %v2430
    %v2859 = vunpack.c.h.b16 %v2430
    %v2860 = vunpack.c.l.b16 %v2431
    %v2861 = vunpack.c.h.b16 %v2431
    %v2862 = vunpack.c.l.b16 %v2432
    %v2863 = vunpack.c.h.b16 %v2432
    %v2864 = vunpack.c.l.b16 %v2433
    %v2865 = vunpack.c.h.b16 %v2433
    %v2866 = vunpack.c.l.b16 %v2434
    %v2867 = vunpack.c.h.b16 %v2434
    %v2868 = vunpack.c.l.b16 %v2435
    %v2869 = vunpack.c.h.b16 %v2435
    %v2870 = vunpack.c.l.b16 %v2436
    %v2871 = vunpack.c.h.b16 %v2436
    %v2872 = vunpack.c.l.b16 %v2437
    %v2873 = vunpack.c.h.b16 %v2437
    %v2874 = vunpack.c.l.b16 %v2438
    %v2875 = vunpack.c.h.b16 %v2438
    %v2876 = vunpack.c.l.b16 %v2439
    %v2877 = vunpack.c.h.b16 %v2439
    %v2878 = vunpack.c.l.b16 %v2440
    %v2879 = vunpack.c.h.b16 %v2440
    %v2880 = vunpack.c.l.b16 %v2441
    %v2881 = vunpack.c.h.b16 %v2441
    %v2882 = vunpack.c.l.b16 %v2442
    %v2883 = vunpack.c.h.b16 %v2442
    %v2884 = vunpack.c.l.b16 %v2443
    %v2885 = vunpack.c.h.b16 %v2443
    %v2886 = vunpack.c.l.b16 %v2444
    %v2887 = vunpack.c.h.b16 %v2444
    %v2888 = vunpack.c.l.b16 %v2445
    %v2889 = vunpack.c.h.b16 %v2445
    %v2890 = vunpack.c.l.b16 %v2446
    %v2891 = vunpack.c.h.b16 %v2446
    %v2892 = vunpack.c.l.b16 %v2447
    %v2893 = vunpack.c.h.b16 %v2447
    %v2894 = vunpack.c.l.b16 %v2448
    %v2895 = vunpack.c.h.b16 %v2448
    %v2896 = vunpack.c.l.b16 %v2449
    %v2897 = vunpack.c.h.b16 %v2449
    %v2898 = vunpack.c.l.b16 %v2450
    %v2899 = vunpack.c.h.b16 %v2450
    %v2900 = vunpack.c.l.b16 %v2451
    %v2901 = vunpack.c.h.b16 %v2451
    %v2902 = vunpack.c.l.b16 %v2452
    %v2903 = vunpack.c.h.b16 %v2452
    %v2904 = vunpack.c.l.b16 %v2453
    %v2905 = vunpack.c.h.b16 %v2453
    %v2906 = vunpack.c.l.b16 %v2454
    %v2907 = vunpack.c.h.b16 %v2454
    %v2908 = vunpack.c.l.b16 %v2455
    %v2909 = vunpack.c.h.b16 %v2455
    %v2910 = vunpack.c.l.b16 %v2456
    %v2911 = vunpack.c.h.b16 %v2456
    %v2912 = vunpack.c.l.b16 %v2457
    %v2913 = vunpack.c.h.b16 %v2457
    %v2914 = vunpack.c.l.b16 %v2458
    %v2915 = vunpack.c.h.b16 %v2458
    %v2916 = vunpack.c.l.b16 %v2459
    %v2917 = vunpack.c.h.b16 %v2459
    %v2918 = vunpack.c.l.b16 %v2460
    %v2919 = vunpack.c.h.b16 %v2460
    %v2920 = vunpack.c.l.b16 %v2461
    %v2921 = vunpack.c.h.b16 %v2461
    %v2922 = vunpack.c.l.b16 %v2462
    %v2923 = vunpack.c.h.b16 %v2462
    %v2924 = vunpack.c.l.b16 %v2463
    %v2925 = vunpack.c.h.b16 %v2463
    %v2926 = vunpack.c.l.b16 %v2464
    %v2927 = vunpack.c.h.b16 %v2464
    %v2928 = vunpack.c.l.b16 %v2465
    %v2929 = vunpack.c.h.b16 %v2465
    %v2930 = vunpack.c.l.b16 %v2466
    %v2931 = vunpack.c.h.b16 %v2466
    %v2932 = vunpack.c.l.b16 %v2467
    %v2933 = vunpack.c.h.b16 %v2467
    %v2934 = vunpack.c.l.b16 %v2468
    %v2935 = vunpack.c.h.b16 %v2468
    %v2936 = vunpack.c.l.b16 %v2469
    %v2937 = vunpack.c.h.b16 %v2469
    %v2938 = vunpack.c.l.b16 %v2470
    %v2939 = vunpack.c.h.b16 %v2470
    %v2940 = vunpack.c.l.b16 %v2471
    %v2941 = vunpack.c.h.b16 %v2471
    %v2942 = vunpack.c.l.b16 %v2472
    %v2943 = vunpack.c.h.b16 %v2472
    %v2944 = vunpack.c.l.b16 %v2473
    %v2945 = vunpack.c.h.b16 %v2473
    %v2946 = vunpack.c.l.b16 %v2474
    %v2947 = vunpack.c.h.b16 %v2474
    %v2948 = vunpack.c.l.b16 %v2475
    %v2949 = vunpack.c.h.b16 %v2475
    %v2950 = vunpack.c.l.b16 %v2476
    %v2951 = vunpack.c.h.b16 %v2476
    %v2952 = vunpack.c.l.b16 %v2477
    %v2953 = vunpack.c.h.b16 %v2477
    %v2954 = vunpack.c.l.b16 %v2478
    %v2955 = vunpack.c.h.b16 %v2478
    %v2956 = vunpack.c.l.b16 %v2479
    %v2957 = vunpack.c.h.b16 %v2479
    %v2958 = vunpack.c.l.b16 %v2480
    %v2959 = vunpack.c.h.b16 %v2480
    %v2960 = vunpack.c.l.b16 %v2481
    %v2961 = vunpack.c.h.b16 %v2481
    %v2962 = vunpack.c.l.b16 %v2482
    %v2963 = vunpack.c.h.b16 %v2482
    %v2964 = vunpack.c.l.b16 %v2483
    %v2965 = vunpack.c.h.b16 %v2483
    %v2966 = vunpack.c.l.b16 %v2484
    %v2967 = vunpack.c.h.b16 %v2484
    %v2968 = vunpack.c.l.b16 %v2485
    %v2969 = vunpack.c.h.b16 %v2485
    %v2970 = vunpack.c.l.b16 %v2486
    %v2971 = vunpack.c.h.b16 %v2486
    %v2972 = vunpack.c.l.b16 %v2487
    %v2973 = vunpack.c.h.b16 %v2487
    %v2974 = vunpack.c.l.b16 %v2488
    %v2975 = vunpack.c.h.b16 %v2488
    %v2976 = vunpack.c.l.b16 %v2489
    %v2977 = vunpack.c.h.b16 %v2489
    %v2978 = vunpack.c.l.b16 %v2490
    %v2979 = vunpack.c.h.b16 %v2490
    %v2980 = vunpack.c.l.b16 %v2491
    %v2981 = vunpack.c.h.b16 %v2491
    %v2982 = vunpack.c.l.b16 %v2492
    %v2983 = vunpack.c.h.b16 %v2492
    %v2984 = vunpack.c.l.b16 %v2493
    %v2985 = vunpack.c.h.b16 %v2493
    %v2986 = vunpack.c.l.b16 %v2494
    %v2987 = vunpack.c.h.b16 %v2494
    %v2988 = vunpack.c.l.b16 %v2495
    %v2989 = vunpack.c.h.b16 %v2495
    %v2990 = vunpack.c.l.b16 %v2496
    %v2991 = vunpack.c.h.b16 %v2496
    %v2992 = vunpack.c.l.b16 %v2497
    %v2993 = vunpack.c.h.b16 %v2497
    %v2994 = vunpack.c.l.b16 %v2498
    %v2995 = vunpack.c.h.b16 %v2498
    %v2996 = vunpack.c.l.b16 %v2499
    %v2997 = vunpack.c.h.b16 %v2499
    %v2998 = vunpack.c.l.b16 %v2500
    %v2999 = vunpack.c.h.b16 %v2500
    %v3000 = vunpack.c.l.b16 %v2501
    %v3001 = vunpack.c.h.b16 %v2501
    %v3002 = vunpack.c.l.b16 %v2502
    %v3003 = vunpack.c.h.b16 %v2502
    %v3004 = vunpack.c.l.b16 %v2503
    %v3005 = vunpack.c.h.b16 %v2503
    %v3006 = vunpack.c.l.b16 %v2504
    %v3007 = vunpack.c.h.b16 %v2504
    %v3008 = vunpack.c.l.b16 %v2505
    %v3009 = vunpack.c.h.b16 %v2505
    %v3010 = vunpack.c.l.b16 %v2506
    %v3011 = vunpack.c.h.b16 %v2506
    %v3012 = vunpack.c.l.b16 %v2507
    %v3013 = vunpack.c.h.b16 %v2507
    %v3014 = vunpack.c.l.b16 %v2508
    %v3015 = vunpack.c.h.b16 %v2508
    %v3016 = vunpack.c.l.b16 %v2509
    %v3017 = vunpack.c.h.b16 %v2509
    %v3018 = vunpack.c.l.b16 %v2510
    %v3019 = vunpack.c.h.b16 %v2510
    %v3020 = vunpack.c.l.b16 %v2511
    %v3021 = vunpack.c.h.b16 %v2511
    %v3022 = vunpack.c.l.b16 %v2512
    %v3023 = vunpack.c.h.b16 %v2512
    %v3024 = vunpack.c.l.b16 %v2513
    %v3025 = vunpack.c.h.b16 %v2513
    %v3026 = vunpack.c.l.b16 %v2514
    %v3027 = vunpack.c.h.b16 %v2514
    %v3028 = vunpack.c.l.b16 %v2515
    %v3029 = vunpack.c.h.b16 %v2515
    %v3030 = vunpack.c.l.b16 %v2516
    %v3031 = vunpack.c.h.b16 %v2516
    %v3032 = vunpack.c.l.b16 %v2517
    %v3033 = vunpack.c.h.b16 %v2517
    %v3034 = vunpack.c.l.b16 %v2518
    %v3035 = vunpack.c.h.b16 %v2518
    %v3036 = vunpack.c.l.b16 %v2519
    %v3037 = vunpack.c.h.b16 %v2519
    %v3038 = vunpack.c.l.b16 %v2520
    %v3039 = vunpack.c.h.b16 %v2520
    %v3040 = vunpack.c.l.b16 %v2521
    %v3041 = vunpack.c.h.b16 %v2521
    %v3042 = vunpack.c.l.b16 %v2522
    %v3043 = vunpack.c.h.b16 %v2522
    %v3044 = vunpack.c.l.b16 %v2523
    %v3045 = vunpack.c.h.b16 %v2523
    %v3046 = vunpack.c.l.b16 %v2524
    %v3047 = vunpack.c.h.b16 %v2524
    %v3048 = vunpack.c.l.b16 %v2525
    %v3049 = vunpack.c.h.b16 %v2525
    %v3050 = vunpack.c.l.b16 %v2526
    %v3051 = vunpack.c.h.b16 %v2526
    %v3052 = vunpack.c.l.b16 %v2527
    %v3053 = vunpack.c.h.b16 %v2527
    %v3054 = vunpack.c.l.b16 %v2528
    %v3055 = vunpack.c.h.b16 %v2528
    %v3056 = vunpack.c.l.b16 %v2529
    %v3057 = vunpack.c.h.b16 %v2529
    %v3058 = vunpack.c.l.b16 %v2530
    %v3059 = vunpack.c.h.b16 %v2530
    %v3060 = vunpack.c.l.b16 %v2531
    %v3061 = vunpack.c.h.b16 %v2531
    %v3062 = vunpack.c.l.b16 %v2532
    %v3063 = vunpack.c.h.b16 %v2532
    %v3064 = vunpack.c.l.b16 %v2533
    %v3065 = vunpack.c.h.b16 %v2533
    %v3066 = vunpack.c.l.b16 %v2534
    %v3067 = vunpack.c.h.b16 %v2534
    %v3068 = vunpack.c.l.b16 %v2535
    %v3069 = vunpack.c.h.b16 %v2535
    %v3070 = vunpack.c.l.b16 %v2536
    %v3071 = vunpack.c.h.b16 %v2536
    %v3072 = vunpack.c.l.b16 %v2537
    %v3073 = vunpack.c.h.b16 %v2537
    %v3074 = vunpack.c.l.b16 %v2538
    %v3075 = vunpack.c.h.b16 %v2538
    %v3076 = vunpack.c.l.b16 %v2539
    %v3077 = vunpack.c.h.b16 %v2539
    %v3078 = vunpack.c.l.b16 %v2540
    %v3079 = vunpack.c.h.b16 %v2540
    %v3080 = vunpack.c.l.b16 %v2541
    %v3081 = vunpack.c.h.b16 %v2541
    %v3082 = vunpack.c.l.b16 %v2542
    %v3083 = vunpack.c.h.b16 %v2542
    %v3084 = vunpack.c.l.b16 %v2543
    %v3085 = vunpack.c.h.b16 %v2543
    %v3086 = vunpack.c.l.b16 %v2544
    %v3087 = vunpack.c.h.b16 %v2544
    %v3088 = vunpack.c.l.b16 %v2545
    %v3089 = vunpack.c.h.b16 %v2545
    %v3090 = vunpack.c.l.b16 %v2546
    %v3091 = vunpack.c.h.b16 %v2546
    %v3092 = vunpack.c.l.b16 %v2547
    %v3093 = vunpack.c.h.b16 %v2547
    %v3094 = vunpack.c.l.b16 %v2548
    %v3095 = vunpack.c.h.b16 %v2548
    %v3096 = vunpack.c.l.b16 %v2549
    %v3097 = vunpack.c.h.b16 %v2549
    %v3098 = vunpack.c.l.b16 %v2550
    %v3099 = vunpack.c.h.b16 %v2550
    %v3100 = vunpack.c.l.b16 %v2551
    %v3101 = vunpack.c.h.b16 %v2551
    %v3102 = vunpack.c.l.b16 %v2552
    %v3103 = vunpack.c.h.b16 %v2552
    %v3104 = vunpack.c.l.b16 %v2553
    %v3105 = vunpack.c.h.b16 %v2553
    %v3106 = vunpack.c.l.b16 %v2554
    %v3107 = vunpack.c.h.b16 %v2554
    %v3108 = vunpack.c.l.b16 %v2555
    %v3109 = vunpack.c.h.b16 %v2555
    %v3110 = vunpack.c.l.b16 %v2556
    %v3111 = vunpack.c.h.b16 %v2556
    %v3112 = vunpack.c.l.b16 %v2557
    %v3113 = vunpack.c.h.b16 %v2557
    %v3114 = vunpack.c.l.b16 %v2558
    %v3115 = vunpack.c.h.b16 %v2558
    %v3116 = vunpack.c.l.b16 %v2559
    %v3117 = vunpack.c.h.b16 %v2559
    %v3118 = vunpack.c.l.b16 %v2560
    %v3119 = vunpack.c.h.b16 %v2560
    %v3120 = vunpack.c.l.b16 %v2561
    %v3121 = vunpack.c.h.b16 %v2561
    %v3122 = vunpack.c.l.b16 %v2562
    %v3123 = vunpack.c.h.b16 %v2562
    %v3124 = vunpack.c.l.b16 %v2563
    %v3125 = vunpack.c.h.b16 %v2563
    %v3126 = vunpack.c.l.b16 %v2564
    %v3127 = vunpack.c.h.b16 %v2564
    %v3128 = vunpack.c.l.b16 %v2565
    %v3129 = vunpack.c.h.b16 %v2565
    %v3130 = vunpack.c.l.b16 %v2566
    %v3131 = vunpack.c.h.b16 %v2566
    %v3132 = vunpack.c.l.b16 %v2567
    %v3133 = vunpack.c.h.b16 %v2567
    %v3134 = vunpack.c.l.b16 %v2568
    %v3135 = vunpack.c.h.b16 %v2568
    %v3136 = vunpack.c.l.b16 %v2569
    %v3137 = vunpack.c.h.b16 %v2569
    %v3138 = vunpack.c.l.b16 %v2570
    %v3139 = vunpack.c.h.b16 %v2570
    %v3140 = vunpack.c.l.b16 %v2571
    %v3141 = vunpack.c.h.b16 %v2571
    %v3142 = vunpack.c.l.b16 %v2572
    %v3143 = vunpack.c.h.b16 %v2572
    %v3144 = vunpack.c.l.b16 %v2573
    %v3145 = vunpack.c.h.b16 %v2573
    %v3146 = vunpack.c.l.b16 %v2574
    %v3147 = vunpack.c.h.b16 %v2574
    %v3148 = vunpack.c.l.b16 %v2575
    %v3149 = vunpack.c.h.b16 %v2575
    %v3150 = vunpack.c.l.b16 %v2576
    %v3151 = vunpack.c.h.b16 %v2576
    %v3152 = vunpack.c.l.b16 %v2577
    %v3153 = vunpack.c.h.b16 %v2577
    %v3154 = vunpack.c.l.b16 %v2578
    %v3155 = vunpack.c.h.b16 %v2578
    %v3156 = vunpack.c.l.b16 %v2579
    %v3157 = vunpack.c.h.b16 %v2579
    %v3158 = vunpack.c.l.b16 %v2580
    %v3159 = vunpack.c.h.b16 %v2580
    %v3160 = vunpack.c.l.b16 %v2581
    %v3161 = vunpack.c.h.b16 %v2581
    %v3162 = vunpack.c.l.b16 %v2582
    %v3163 = vunpack.c.h.b16 %v2582
    %v3164 = vunpack.c.l.b16 %v2583
    %v3165 = vunpack.c.h.b16 %v2583
    %v3166 = vunpack.c.l.b16 %v2584
    %v3167 = vunpack.c.h.b16 %v2584
    %v3168 = vunpack.c.l.b16 %v2585
    %v3169 = vunpack.c.h.b16 %v2585
    %v3170 = vunpack.c.l.b16 %v2586
    %v3171 = vunpack.c.h.b16 %v2586
    %v3172 = vunpack.c.l.b16 %v2587
    %v3173 = vunpack.c.h.b16 %v2587
    %v3174 = vpack.c.b16 %v2794, %v2790
    %v3175 = vpack.c.b16 %v2795, %v2791
    %v3176 = vpack.c.b16 %v2796, %v2792
    %v3177 = vpack.c.b16 %v2797, %v2793
    %v3178 = vpack.c.b16 %v2802, %v2798
    %v3179 = vpack.c.b16 %v2803, %v2799
    %v3180 = vpack.c.b16 %v2804, %v2800
    %v3181 = vpack.c.b16 %v2805, %v2801
    %v3182 = vpack.c.b16 %v2810, %v2806
    %v3183 = vpack.c.b16 %v2811, %v2807
    %v3184 = vpack.c.b16 %v2812, %v2808
    %v3185 = vpack.c.b16 %v2813, %v2809
    %v3186 = vpack.c.b16 %v2818, %v2814
    %v3187 = vpack.c.b16 %v2819, %v2815
    %v3188 = vpack.c.b16 %v2820, %v2816
    %v3189 = vpack.c.b16 %v2821, %v2817
    %v3190 = vpack.c.b16 %v2826, %v2822
    %v3191 = vpack.c.b16 %v2827, %v2823
    %v3192 = vpack.c.b16 %v2828, %v2824
    %v3193 = vpack.c.b16 %v2829, %v2825
    %v3194 = vpack.c.b16 %v2834, %v2830
    %v3195 = vpack.c.b16 %v2835, %v2831
    %v3196 = vpack.c.b16 %v2836, %v2832
    %v3197 = vpack.c.b16 %v2837, %v2833
    %v3198 = vpack.c.b16 %v2842, %v2838
    %v3199 = vpack.c.b16 %v2843, %v2839
    %v3200 = vpack.c.b16 %v2844, %v2840
    %v3201 = vpack.c.b16 %v2845, %v2841
    %v3202 = vpack.c.b16 %v2850, %v2846
    %v3203 = vpack.c.b16 %v2851, %v2847
    %v3204 = vpack.c.b16 %v2852, %v2848
    %v3205 = vpack.c.b16 %v2853, %v2849
    %v3206 = vpack.c.b16 %v2858, %v2854
    %v3207 = vpack.c.b16 %v2859, %v2855
    %v3208 = vpack.c.b16 %v2860, %v2856
    %v3209 = vpack.c.b16 %v2861, %v2857
    %v3210 = vpack.c.b16 %v2866, %v2862
    %v3211 = vpack.c.b16 %v2867, %v2863
    %v3212 = vpack.c.b16 %v2868, %v2864
    %v3213 = vpack.c.b16 %v2869, %v2865
    %v3214 = vpack.c.b16 %v2874, %v2870
    %v3215 = vpack.c.b16 %v2875, %v2871
    %v3216 = vpack.c.b16 %v2876, %v2872
    %v3217 = vpack.c.b16 %v2877, %v2873
    %v3218 = vpack.c.b16 %v2882, %v2878
    %v3219 = vpack.c.b16 %v2883, %v2879
    %v3220 = vpack.c.b16 %v2884, %v2880
    %v3221 = vpack.c.b16 %v2885, %v2881
    %v3222 = vpack.c.b16 %v2890, %v2886
    %v3223 = vpack.c.b16 %v2891, %v2887
    %v3224 = vpack.c.b16 %v2892, %v2888
    %v3225 = vpack.c.b16 %v2893, %v2889
    %v3226 = vpack.c.b16 %v2898, %v2894
    %v3227 = vpack.c.b16 %v2899, %v2895
    %v3228 = vpack.c.b16 %v2900, %v2896
    %v3229 = vpack.c.b16 %v2901, %v2897
    %v3230 = vpack.c.b16 %v2906, %v2902
    %v3231 = vpack.c.b16 %v2907, %v2903
    %v3232 = vpack.c.b16 %v2908, %v2904
    %v3233 = vpack.c.b16 %v2909, %v2905
    %v3234 = vpack.c.b16 %v2914, %v2910
    %v3235 = vpack.c.b16 %v2915, %v2911
    %v3236 = vpack.c.b16 %v2916, %v2912
    %v3237 = vpack.c.b16 %v2917, %v2913
    %v3238 = vpack.c.b16 %v2922, %v2918
    %v3239 = vpack.c.b16 %v2923, %v2919
    %v3240 = vpack.c.b16 %v2924, %v2920
    %v3241 = vpack.c.b16 %v2925, %v2921
    %v3242 = vpack.c.b16 %v2930, %v2926
    %v3243 = vpack.c.b16 %v2931, %v2927
    %v3244 = vpack.c.b16 %v2932, %v2928
    %v3245 = vpack.c.b16 %v2933, %v2929
    %v3246 = vpack.c.b16 %v2938, %v2934
    %v3247 = vpack.c.b16 %v2939, %v2935
    %v3248 = vpack.c.b16 %v2940, %v2936
    %v3249 = vpack.c.b16 %v2941, %v2937
    %v3250 = vpack.c.b16 %v2946, %v2942
    %v3251 = vpack.c.b16 %v2947, %v2943
    %v3252 = vpack.c.b16 %v2948, %v2944
    %v3253 = vpack.c.b16 %v2949, %v2945
    %v3254 = vpack.c.b16 %v2954, %v2950
    %v3255 = vpack.c.b16 %v2955, %v2951
    %v3256 = vpack.c.b16 %v2956, %v2952
    %v3257 = vpack.c.b16 %v2957, %v2953
    %v3258 = vpack.c.b16 %v2962, %v2958
    %v3259 = vpack.c.b16 %v2963, %v2959
    %v3260 = vpack.c.b16 %v2964, %v2960
    %v3261 = vpack.c.b16 %v2965, %v2961
    %v3262 = vpack.c.b16 %v2970, %v2966
    %v3263 = vpack.c.b16 %v2971, %v2967
    %v3264 = vpack.c.b16 %v2972, %v2968
    %v3265 = vpack.c.b16 %v2973, %v2969
    %v3266 = vpack.c.b16 %v2978, %v2974
    %v3267 = vpack.c.b16 %v2979, %v2975
    %v3268 = vpack.c.b16 %v2980, %v2976
    %v3269 = vpack.c.b16 %v2981, %v2977
    %v3270 = vpack.c.b16 %v2986, %v2982
    %v3271 = vpack.c.b16 %v2987, %v2983
    %v3272 = vpack.c.b16 %v2988, %v2984
    %v3273 = vpack.c.b16 %v2989, %v2985
    %v3274 = vpack.c.b16 %v2994, %v2990
    %v3275 = vpack.c.b16 %v2995, %v2991
    %v3276 = vpack.c.b16 %v2996, %v2992
    %v3277 = vpack.c.b16 %v2997, %v2993
    %v3278 = vpack.c.b16 %v3002, %v2998
    %v3279 = vpack.c.b16 %v3003, %v2999
    %v3280 = vpack.c.b16 %v3004, %v3000
    %v3281 = vpack.c.b16 %v3005, %v3001
    %v3282 = vpack.c.b16 %v3010, %v3006
    %v3283 = vpack.c.b16 %v3011, %v3007
    %v3284 = vpack.c.b16 %v3012, %v3008
    %v3285 = vpack.c.b16 %v3013, %v3009
    %v3286 = vpack.c.b16 %v3018, %v3014
    %v3287 = vpack.c.b16 %v3019, %v3015
    %v3288 = vpack.c.b16 %v3020, %v3016
    %v3289 = vpack.c.b16 %v3021, %v3017
    %v3290 = vpack.c.b16 %v3026, %v3022
    %v3291 = vpack.c.b16 %v3027, %v3023
    %v3292 = vpack.c.b16 %v3028, %v3024
    %v3293 = vpack.c.b16 %v3029, %v3025
    %v3294 = vpack.c.b16 %v3034, %v3030
    %v3295 = vpack.c.b16 %v3035, %v3031
    %v3296 = vpack.c.b16 %v3036, %v3032
    %v3297 = vpack.c.b16 %v3037, %v3033
    %v3298 = vpack.c.b16 %v3042, %v3038
    %v3299 = vpack.c.b16 %v3043, %v3039
    %v3300 = vpack.c.b16 %v3044, %v3040
    %v3301 = vpack.c.b16 %v3045, %v3041
    %v3302 = vpack.c.b16 %v3050, %v3046
    %v3303 = vpack.c.b16 %v3051, %v3047
    %v3304 = vpack.c.b16 %v3052, %v3048
    %v3305 = vpack.c.b16 %v3053, %v3049
    %v3306 = vpack.c.b16 %v3058, %v3054
    %v3307 = vpack.c.b16 %v3059, %v3055
    %v3308 = vpack.c.b16 %v3060, %v3056
    %v3309 = vpack.c.b16 %v3061, %v3057
    %v3310 = vpack.c.b16 %v3066, %v3062
    %v3311 = vpack.c.b16 %v3067, %v3063
    %v3312 = vpack.c.b16 %v3068, %v3064
    %v3313 = vpack.c.b16 %v3069, %v3065
    %v3314 = vpack.c.b16 %v3074, %v3070
    %v3315 = vpack.c.b16 %v3075, %v3071
    %v3316 = vpack.c.b16 %v3076, %v3072
    %v3317 = vpack.c.b16 %v3077, %v3073
    %v3318 = vpack.c.b16 %v3082, %v3078
    %v3319 = vpack.c.b16 %v3083, %v3079
    %v3320 = vpack.c.b16 %v3084, %v3080
    %v3321 = vpack.c.b16 %v3085, %v3081
    %v3322 = vpack.c.b16 %v3090, %v3086
    %v3323 = vpack.c.b16 %v3091, %v3087
    %v3324 = vpack.c.b16 %v3092, %v3088
    %v3325 = vpack.c.b16 %v3093, %v3089
    %v3326 = vpack.c.b16 %v3098, %v3094
    %v3327 = vpack.c.b16 %v3099, %v3095
    %v3328 = vpack.c.b16 %v3100, %v3096
    %v3329 = vpack.c.b16 %v3101, %v3097
    %v3330 = vpack.c.b16 %v3106, %v3102
    %v3331 = vpack.c.b16 %v3107, %v3103
    %v3332 = vpack.c.b16 %v3108, %v3104
    %v3333 = vpack.c.b16 %v3109, %v3105
    %v3334 = vpack.c.b16 %v3114, %v3110
    %v3335 = vpack.c.b16 %v3115, %v3111
    %v3336 = vpack.c.b16 %v3116, %v3112
    %v3337 = vpack.c.b16 %v3117, %v3113
    %v3338 = vpack.c.b16 %v3122, %v3118
    %v3339 = vpack.c.b16 %v3123, %v3119
    %v3340 = vpack.c.b16 %v3124, %v3120
    %v3341 = vpack.c.b16 %v3125, %v3121
    %v3342 = vpack.c.b16 %v3130, %v3126
    %v3343 = vpack.c.b16 %v3131, %v3127
    %v3344 = vpack.c.b16 %v3132, %v3128
    %v3345 = vpack.c.b16 %v3133, %v3129
    %v3346 = vpack.c.b16 %v3138, %v3134
    %v3347 = vpack.c.b16 %v3139, %v3135
    %v3348 = vpack.c.b16 %v3140, %v3136
    %v3349 = vpack.c.b16 %v3141, %v3137
    %v3350 = vpack.c.b16 %v3146, %v3142
    %v3351 = vpack.c.b16 %v3147, %v3143
    %v3352 = vpack.c.b16 %v3148, %v3144
    %v3353 = vpack.c.b16 %v3149, %v3145
    %v3354 = vpack.c.b16 %v3154, %v3150
    %v3355 = vpack.c.b16 %v3155, %v3151
    %v3356 = vpack.c.b16 %v3156, %v3152
    %v3357 = vpack.c.b16 %v3157, %v3153
    %v3358 = vpack.c.b16 %v3162, %v3158
    %v3359 = vpack.c.b16 %v3163, %v3159
    %v3360 = vpack.c.b16 %v3164, %v3160
    %v3361 = vpack.c.b16 %v3165, %v3161
    %v3362 = vpack.c.b16 %v3170, %v3166
    %v3363 = vpack.c.b16 %v3171, %v3167
    %v3364 = vpack.c.b16 %v3172, %v3168
    %v3365 = vpack.c.b16 %v3173, %v3169
    %3558 = vmatpush.bf16.msra.mxu0 %v3202
    %3559 = vmatpush.bf16.msra.mxu0 %v3198
    %3560 = vmatpush.bf16.msra.mxu0 %v3194
    %3561 = vmatpush.bf16.msra.mxu0 %v3190
    %3562 = vmatpush.bf16.msra.mxu0 %v3186
    %3563 = vmatpush.bf16.msra.mxu0 %v3182
    %3564 = vmatpush.bf16.msra.mxu0 %v3178
    %3565 = vmatpush.bf16.msra.mxu0 %v3174
    %3566 = vmatmul.bf16.gmra.mxu0 %v2390
    %v3567 = vpop.f32.mrf.mxu0
    %v3568 = vadd.f32 %v2590, %v3567
    %v3569 = vpop.f32.mrf.mxu0
    %v3570 = vadd.f32 %v2590, %v3569
    %3571 = vdwg.mxu0
    %3572 = vmatpush.bf16.msra.mxu0 %v3234
    %3573 = vmatpush.bf16.msra.mxu0 %v3230
    %3574 = vmatpush.bf16.msra.mxu0 %v3226
    %3575 = vmatpush.bf16.msra.mxu0 %v3222
    %3576 = vmatpush.bf16.msra.mxu0 %v3218
    %3577 = vmatpush.bf16.msra.mxu0 %v3214
    %3578 = vmatpush.bf16.msra.mxu0 %v3210
    %3579 = vmatpush.bf16.msra.mxu0 %v3206
    %3580 = vmatmul.bf16.gmra.mxu0 %v2391
    %v3581 = vpop.f32.mrf.mxu0
    %v3582 = vadd.f32 %v3568, %v3581
    %v3583 = vpop.f32.mrf.mxu0
    %v3584 = vadd.f32 %v3570, %v3583
    %3585 = vdwg.mxu0
    %3586 = vmatpush.bf16.msra.mxu0 %v3266
    %3587 = vmatpush.bf16.msra.mxu0 %v3262
    %3588 = vmatpush.bf16.msra.mxu0 %v3258
    %3589 = vmatpush.bf16.msra.mxu0 %v3254
    %3590 = vmatpush.bf16.msra.mxu0 %v3250
    %3591 = vmatpush.bf16.msra.mxu0 %v3246
    %3592 = vmatpush.bf16.msra.mxu0 %v3242
    %3593 = vmatpush.bf16.msra.mxu0 %v3238
    %3594 = vmatmul.bf16.gmra.mxu0 %v2392
    %v3595 = vpop.f32.mrf.mxu0
    %v3596 = vadd.f32 %v3582, %v3595
    %v3597 = vpop.f32.mrf.mxu0
    %v3598 = vadd.f32 %v3584, %v3597
    %3599 = vdwg.mxu0
    %3600 = vmatpush.bf16.msra.mxu0 %v3298
    %3601 = vmatpush.bf16.msra.mxu0 %v3294
    %3602 = vmatpush.bf16.msra.mxu0 %v3290
    %3603 = vmatpush.bf16.msra.mxu0 %v3286
    %3604 = vmatpush.bf16.msra.mxu0 %v3282
    %3605 = vmatpush.bf16.msra.mxu0 %v3278
    %3606 = vmatpush.bf16.msra.mxu0 %v3274
    %3607 = vmatpush.bf16.msra.mxu0 %v3270
    %3608 = vmatmul.bf16.gmra.mxu0 %v2393
    %v3609 = vpop.f32.mrf.mxu0
    %v3610 = vadd.f32 %v3596, %v3609
    %v3611 = vpop.f32.mrf.mxu0
    %v3612 = vadd.f32 %v3598, %v3611
    %3613 = vdwg.mxu0
    %3614 = vmatpush.bf16.msra.mxu0 %v3330
    %3615 = vmatpush.bf16.msra.mxu0 %v3326
    %3616 = vmatpush.bf16.msra.mxu0 %v3322
    %3617 = vmatpush.bf16.msra.mxu0 %v3318
    %3618 = vmatpush.bf16.msra.mxu0 %v3314
    %3619 = vmatpush.bf16.msra.mxu0 %v3310
    %3620 = vmatpush.bf16.msra.mxu0 %v3306
    %3621 = vmatpush.bf16.msra.mxu0 %v3302
    %3622 = vmatmul.bf16.gmra.mxu0 %v2394
    %v3623 = vpop.f32.mrf.mxu0
    %v3624 = vadd.f32 %v3610, %v3623
    %v3625 = vpop.f32.mrf.mxu0
    %v3626 = vadd.f32 %v3612, %v3625
    %3627 = vdwg.mxu0
    %3628 = vmatpush.bf16.msra.mxu0 %v3362
    %3629 = vmatpush.bf16.msra.mxu0 %v3358
    %3630 = vmatpush.bf16.msra.mxu0 %v3354
    %3631 = vmatpush.bf16.msra.mxu0 %v3350
    %3632 = vmatpush.bf16.msra.mxu0 %v3346
    %3633 = vmatpush.bf16.msra.mxu0 %v3342
    %3634 = vmatpush.bf16.msra.mxu0 %v3338
    %3635 = vmatpush.bf16.msra.mxu0 %v3334
    %3636 = vmatmul.bf16.gmra.mxu0 %v2395
    %v3637 = vpop.f32.mrf.mxu0
    %v3638 = vadd.f32 %v3624, %v3637
    %v3639 = vpop.f32.mrf.mxu0
    %v3640 = vadd.f32 %v3626, %v3639
    %3641 = vdwg.mxu0
    %3642 = vmatpush.bf16.msra.mxu0 %v3203
    %3643 = vmatpush.bf16.msra.mxu0 %v3199
    %3644 = vmatpush.bf16.msra.mxu0 %v3195
    %3645 = vmatpush.bf16.msra.mxu0 %v3191
    %3646 = vmatpush.bf16.msra.mxu0 %v3187
    %3647 = vmatpush.bf16.msra.mxu0 %v3183
    %3648 = vmatpush.bf16.msra.mxu0 %v3179
    %3649 = vmatpush.bf16.msra.mxu0 %v3175
    %3650 = vmatmul.bf16.gmra.mxu0 %v2390
    %v3651 = vpop.f32.mrf.mxu0
    %v3652 = vadd.f32 %v2591, %v3651
    %v3653 = vpop.f32.mrf.mxu0
    %v3654 = vadd.f32 %v2591, %v3653
    %3655 = vdwg.mxu0
    %3656 = vmatpush.bf16.msra.mxu0 %v3235
    %3657 = vmatpush.bf16.msra.mxu0 %v3231
    %3658 = vmatpush.bf16.msra.mxu0 %v3227
    %3659 = vmatpush.bf16.msra.mxu0 %v3223
    %3660 = vmatpush.bf16.msra.mxu0 %v3219
    %3661 = vmatpush.bf16.msra.mxu0 %v3215
    %3662 = vmatpush.bf16.msra.mxu0 %v3211
    %3663 = vmatpush.bf16.msra.mxu0 %v3207
    %3664 = vmatmul.bf16.gmra.mxu0 %v2391
    %v3665 = vpop.f32.mrf.mxu0
    %v3666 = vadd.f32 %v3652, %v3665
    %v3667 = vpop.f32.mrf.mxu0
    %v3668 = vadd.f32 %v3654, %v3667
    %3669 = vdwg.mxu0
    %3670 = vmatpush.bf16.msra.mxu0 %v3267
    %3671 = vmatpush.bf16.msra.mxu0 %v3263
    %3672 = vmatpush.bf16.msra.mxu0 %v3259
    %3673 = vmatpush.bf16.msra.mxu0 %v3255
    %3674 = vmatpush.bf16.msra.mxu0 %v3251
    %3675 = vmatpush.bf16.msra.mxu0 %v3247
    %3676 = vmatpush.bf16.msra.mxu0 %v3243
    %3677 = vmatpush.bf16.msra.mxu0 %v3239
    %3678 = vmatmul.bf16.gmra.mxu0 %v2392
    %v3679 = vpop.f32.mrf.mxu0
    %v3680 = vadd.f32 %v3666, %v3679
    %v3681 = vpop.f32.mrf.mxu0
    %v3682 = vadd.f32 %v3668, %v3681
    %3683 = vdwg.mxu0
    %3684 = vmatpush.bf16.msra.mxu0 %v3299
    %3685 = vmatpush.bf16.msra.mxu0 %v3295
    %3686 = vmatpush.bf16.msra.mxu0 %v3291
    %3687 = vmatpush.bf16.msra.mxu0 %v3287
    %3688 = vmatpush.bf16.msra.mxu0 %v3283
    %3689 = vmatpush.bf16.msra.mxu0 %v3279
    %3690 = vmatpush.bf16.msra.mxu0 %v3275
    %3691 = vmatpush.bf16.msra.mxu0 %v3271
    %3692 = vmatmul.bf16.gmra.mxu0 %v2393
    %v3693 = vpop.f32.mrf.mxu0
    %v3694 = vadd.f32 %v3680, %v3693
    %v3695 = vpop.f32.mrf.mxu0
    %v3696 = vadd.f32 %v3682, %v3695
    %3697 = vdwg.mxu0
    %3698 = vmatpush.bf16.msra.mxu0 %v3331
    %3699 = vmatpush.bf16.msra.mxu0 %v3327
    %3700 = vmatpush.bf16.msra.mxu0 %v3323
    %3701 = vmatpush.bf16.msra.mxu0 %v3319
    %3702 = vmatpush.bf16.msra.mxu0 %v3315
    %3703 = vmatpush.bf16.msra.mxu0 %v3311
    %3704 = vmatpush.bf16.msra.mxu0 %v3307
    %3705 = vmatpush.bf16.msra.mxu0 %v3303
    %3706 = vmatmul.bf16.gmra.mxu0 %v2394
    %v3707 = vpop.f32.mrf.mxu0
    %v3708 = vadd.f32 %v3694, %v3707
    %v3709 = vpop.f32.mrf.mxu0
    %v3710 = vadd.f32 %v3696, %v3709
    %3711 = vdwg.mxu0
    %3712 = vmatpush.bf16.msra.mxu0 %v3363
    %3713 = vmatpush.bf16.msra.mxu0 %v3359
    %3714 = vmatpush.bf16.msra.mxu0 %v3355
    %3715 = vmatpush.bf16.msra.mxu0 %v3351
    %3716 = vmatpush.bf16.msra.mxu0 %v3347
    %3717 = vmatpush.bf16.msra.mxu0 %v3343
    %3718 = vmatpush.bf16.msra.mxu0 %v3339
    %3719 = vmatpush.bf16.msra.mxu0 %v3335
    %3720 = vmatmul.bf16.gmra.mxu0 %v2395
    %v3721 = vpop.f32.mrf.mxu0
    %v3722 = vadd.f32 %v3708, %v3721
    %v3723 = vpop.f32.mrf.mxu0
    %v3724 = vadd.f32 %v3710, %v3723
    %3725 = vdwg.mxu0
    %3726 = vmatpush.bf16.msra.mxu0 %v3204
    %3727 = vmatpush.bf16.msra.mxu0 %v3200
    %3728 = vmatpush.bf16.msra.mxu0 %v3196
    %3729 = vmatpush.bf16.msra.mxu0 %v3192
    %3730 = vmatpush.bf16.msra.mxu0 %v3188
    %3731 = vmatpush.bf16.msra.mxu0 %v3184
    %3732 = vmatpush.bf16.msra.mxu0 %v3180
    %3733 = vmatpush.bf16.msra.mxu0 %v3176
    %3734 = vmatmul.bf16.gmra.mxu0 %v2390
    %v3735 = vpop.f32.mrf.mxu0
    %v3736 = vadd.f32 %v2592, %v3735
    %v3737 = vpop.f32.mrf.mxu0
    %v3738 = vadd.f32 %v2592, %v3737
    %3739 = vdwg.mxu0
    %3740 = vmatpush.bf16.msra.mxu0 %v3236
    %3741 = vmatpush.bf16.msra.mxu0 %v3232
    %3742 = vmatpush.bf16.msra.mxu0 %v3228
    %3743 = vmatpush.bf16.msra.mxu0 %v3224
    %3744 = vmatpush.bf16.msra.mxu0 %v3220
    %3745 = vmatpush.bf16.msra.mxu0 %v3216
    %3746 = vmatpush.bf16.msra.mxu0 %v3212
    %3747 = vmatpush.bf16.msra.mxu0 %v3208
    %3748 = vmatmul.bf16.gmra.mxu0 %v2391
    %v3749 = vpop.f32.mrf.mxu0
    %v3750 = vadd.f32 %v3736, %v3749
    %v3751 = vpop.f32.mrf.mxu0
    %v3752 = vadd.f32 %v3738, %v3751
    %3753 = vdwg.mxu0
    %3754 = vmatpush.bf16.msra.mxu0 %v3268
    %3755 = vmatpush.bf16.msra.mxu0 %v3264
    %3756 = vmatpush.bf16.msra.mxu0 %v3260
    %3757 = vmatpush.bf16.msra.mxu0 %v3256
    %3758 = vmatpush.bf16.msra.mxu0 %v3252
    %3759 = vmatpush.bf16.msra.mxu0 %v3248
    %3760 = vmatpush.bf16.msra.mxu0 %v3244
    %3761 = vmatpush.bf16.msra.mxu0 %v3240
    %3762 = vmatmul.bf16.gmra.mxu0 %v2392
    %v3763 = vpop.f32.mrf.mxu0
    %v3764 = vadd.f32 %v3750, %v3763
    %v3765 = vpop.f32.mrf.mxu0
    %v3766 = vadd.f32 %v3752, %v3765
    %3767 = vdwg.mxu0
    %3768 = vmatpush.bf16.msra.mxu0 %v3300
    %3769 = vmatpush.bf16.msra.mxu0 %v3296
    %3770 = vmatpush.bf16.msra.mxu0 %v3292
    %3771 = vmatpush.bf16.msra.mxu0 %v3288
    %3772 = vmatpush.bf16.msra.mxu0 %v3284
    %3773 = vmatpush.bf16.msra.mxu0 %v3280
    %3774 = vmatpush.bf16.msra.mxu0 %v3276
    %3775 = vmatpush.bf16.msra.mxu0 %v3272
    %3776 = vmatmul.bf16.gmra.mxu0 %v2393
    %v3777 = vpop.f32.mrf.mxu0
    %v3778 = vadd.f32 %v3764, %v3777
    %v3779 = vpop.f32.mrf.mxu0
    %v3780 = vadd.f32 %v3766, %v3779
    %3781 = vdwg.mxu0
    %3782 = vmatpush.bf16.msra.mxu0 %v3332
    %3783 = vmatpush.bf16.msra.mxu0 %v3328
    %3784 = vmatpush.bf16.msra.mxu0 %v3324
    %3785 = vmatpush.bf16.msra.mxu0 %v3320
    %3786 = vmatpush.bf16.msra.mxu0 %v3316
    %3787 = vmatpush.bf16.msra.mxu0 %v3312
    %3788 = vmatpush.bf16.msra.mxu0 %v3308
    %3789 = vmatpush.bf16.msra.mxu0 %v3304
    %3790 = vmatmul.bf16.gmra.mxu0 %v2394
    %v3791 = vpop.f32.mrf.mxu0
    %v3792 = vadd.f32 %v3778, %v3791
    %v3793 = vpop.f32.mrf.mxu0
    %v3794 = vadd.f32 %v3780, %v3793
    %3795 = vdwg.mxu0
    %3796 = vmatpush.bf16.msra.mxu0 %v3364
    %3797 = vmatpush.bf16.msra.mxu0 %v3360
    %3798 = vmatpush.bf16.msra.mxu0 %v3356
    %3799 = vmatpush.bf16.msra.mxu0 %v3352
    %3800 = vmatpush.bf16.msra.mxu0 %v3348
    %3801 = vmatpush.bf16.msra.mxu0 %v3344
    %3802 = vmatpush.bf16.msra.mxu0 %v3340
    %3803 = vmatpush.bf16.msra.mxu0 %v3336
    %3804 = vmatmul.bf16.gmra.mxu0 %v2395
    %v3805 = vpop.f32.mrf.mxu0
    %v3806 = vadd.f32 %v3792, %v3805
    %v3807 = vpop.f32.mrf.mxu0
    %v3808 = vadd.f32 %v3794, %v3807
    %3809 = vdwg.mxu0
    %3810 = vmatpush.bf16.msra.mxu0 %v3205
    %3811 = vmatpush.bf16.msra.mxu0 %v3201
    %3812 = vmatpush.bf16.msra.mxu0 %v3197
    %3813 = vmatpush.bf16.msra.mxu0 %v3193
    %3814 = vmatpush.bf16.msra.mxu0 %v3189
    %3815 = vmatpush.bf16.msra.mxu0 %v3185
    %3816 = vmatpush.bf16.msra.mxu0 %v3181
    %3817 = vmatpush.bf16.msra.mxu0 %v3177
    %3818 = vmatmul.bf16.gmra.mxu0 %v2390
    %v3819 = vpop.f32.mrf.mxu0
    %v3820 = vadd.f32 %v2593, %v3819
    %v3821 = vpop.f32.mrf.mxu0
    %v3822 = vadd.f32 %v2593, %v3821
    %3823 = vdwg.mxu0
    %3824 = vmatpush.bf16.msra.mxu0 %v3237
    %3825 = vmatpush.bf16.msra.mxu0 %v3233
    %3826 = vmatpush.bf16.msra.mxu0 %v3229
    %3827 = vmatpush.bf16.msra.mxu0 %v3225
    %3828 = vmatpush.bf16.msra.mxu0 %v3221
    %3829 = vmatpush.bf16.msra.mxu0 %v3217
    %3830 = vmatpush.bf16.msra.mxu0 %v3213
    %3831 = vmatpush.bf16.msra.mxu0 %v3209
    %3832 = vmatmul.bf16.gmra.mxu0 %v2391
    %v3833 = vpop.f32.mrf.mxu0
    %v3834 = vadd.f32 %v3820, %v3833
    %v3835 = vpop.f32.mrf.mxu0
    %v3836 = vadd.f32 %v3822, %v3835
    %3837 = vdwg.mxu0
    %3838 = vmatpush.bf16.msra.mxu0 %v3269
    %3839 = vmatpush.bf16.msra.mxu0 %v3265
    %3840 = vmatpush.bf16.msra.mxu0 %v3261
    %3841 = vmatpush.bf16.msra.mxu0 %v3257
    %3842 = vmatpush.bf16.msra.mxu0 %v3253
    %3843 = vmatpush.bf16.msra.mxu0 %v3249
    %3844 = vmatpush.bf16.msra.mxu0 %v3245
    %3845 = vmatpush.bf16.msra.mxu0 %v3241
    %3846 = vmatmul.bf16.gmra.mxu0 %v2392
    %v3847 = vpop.f32.mrf.mxu0
    %v3848 = vadd.f32 %v3834, %v3847
    %v3849 = vpop.f32.mrf.mxu0
    %v3850 = vadd.f32 %v3836, %v3849
    %3851 = vdwg.mxu0
    %3852 = vmatpush.bf16.msra.mxu0 %v3301
    %3853 = vmatpush.bf16.msra.mxu0 %v3297
    %3854 = vmatpush.bf16.msra.mxu0 %v3293
    %3855 = vmatpush.bf16.msra.mxu0 %v3289
    %3856 = vmatpush.bf16.msra.mxu0 %v3285
    %3857 = vmatpush.bf16.msra.mxu0 %v3281
    %3858 = vmatpush.bf16.msra.mxu0 %v3277
    %3859 = vmatpush.bf16.msra.mxu0 %v3273
    %3860 = vmatmul.bf16.gmra.mxu0 %v2393
    %v3861 = vpop.f32.mrf.mxu0
    %v3862 = vadd.f32 %v3848, %v3861
    %v3863 = vpop.f32.mrf.mxu0
    %v3864 = vadd.f32 %v3850, %v3863
    %3865 = vdwg.mxu0
    %3866 = vmatpush.bf16.msra.mxu0 %v3333
    %3867 = vmatpush.bf16.msra.mxu0 %v3329
    %3868 = vmatpush.bf16.msra.mxu0 %v3325
    %3869 = vmatpush.bf16.msra.mxu0 %v3321
    %3870 = vmatpush.bf16.msra.mxu0 %v3317
    %3871 = vmatpush.bf16.msra.mxu0 %v3313
    %3872 = vmatpush.bf16.msra.mxu0 %v3309
    %3873 = vmatpush.bf16.msra.mxu0 %v3305
    %3874 = vmatmul.bf16.gmra.mxu0 %v2394
    %v3875 = vpop.f32.mrf.mxu0
    %v3876 = vadd.f32 %v3862, %v3875
    %v3877 = vpop.f32.mrf.mxu0
    %v3878 = vadd.f32 %v3864, %v3877
    %3879 = vdwg.mxu0
    %3880 = vmatpush.bf16.msra.mxu0 %v3365
    %3881 = vmatpush.bf16.msra.mxu0 %v3361
    %3882 = vmatpush.bf16.msra.mxu0 %v3357
    %3883 = vmatpush.bf16.msra.mxu0 %v3353
    %3884 = vmatpush.bf16.msra.mxu0 %v3349
    %3885 = vmatpush.bf16.msra.mxu0 %v3345
    %3886 = vmatpush.bf16.msra.mxu0 %v3341
    %3887 = vmatpush.bf16.msra.mxu0 %v3337
    %3888 = vmatmul.bf16.gmra.mxu0 %v2395
    %v3889 = vpop.f32.mrf.mxu0
    %v3890 = vadd.f32 %v3876, %v3889
    %v3891 = vpop.f32.mrf.mxu0
    %v3892 = vadd.f32 %v3878, %v3891
    %3893 = vdwg.mxu0
    %v3894 = vmax.f32 %v3638, 0.0
    %v3895 = vmax.f32 %v3722, 0.0
    %v3896 = vmax.f32 %v3806, 0.0
    %v3897 = vmax.f32 %v3890, 0.0
    %v3898 = vmax.f32 %v3640, 0.0
    %v3899 = vmax.f32 %v3724, 0.0
    %v3900 = vmax.f32 %v3808, 0.0
    %v3901 = vmax.f32 %v3892, 0.0
    %v3902 = vpack.c.bf16 %v3898, %v3894
    %v3903 = vpack.c.bf16 %v3899, %v3895
    %v3904 = vpack.c.bf16 %v3900, %v3896
    %v3905 = vpack.c.bf16 %v3901, %v3897
    %v3906 = vld [vmem:[#allocation9] sm:$0xf]
    %v3907 = vld [vmem:[#allocation9 + $0x4] sm:$0xf]
    %v3908 = vld [vmem:[#allocation9 + $0x8] sm:$0xf]
    %v3909 = vld [vmem:[#allocation9 + $0xc] sm:$0xf]
    %v3910 = vld [vmem:[#allocation9 + $0x10] sm:$0xf]
    %v3911 = vld [vmem:[#allocation9 + $0x14] sm:$0xf]
    %v3912 = vld [vmem:[#allocation9 + $0x18] sm:$0xf]
    %v3913 = vld [vmem:[#allocation9 + $0x1c] sm:$0xf]
    %v3914 = vld [vmem:[#allocation9 + $0x20] sm:$0xf]
    %v3915 = vld [vmem:[#allocation9 + $0x24] sm:$0xf]
    %v3916 = vld [vmem:[#allocation9 + $0x28] sm:$0xf]
    %v3917 = vld [vmem:[#allocation9 + $0x2c] sm:$0xf]
    %v3918 = vld [vmem:[#allocation9 + $0x30] sm:$0xf]
    %v3919 = vld [vmem:[#allocation9 + $0x34] sm:$0xf]
    %v3920 = vld [vmem:[#allocation9 + $0x38] sm:$0xf]
    %v3921 = vld [vmem:[#allocation9 + $0x3c] sm:$0xf]
    %v3922 = vld [vmem:[#allocation9 + $0x40] sm:$0xf]
    %v3923 = vld [vmem:[#allocation9 + $0x44] sm:$0xf]
    %v3924 = vld [vmem:[#allocation9 + $0x48] sm:$0xf]
    %v3925 = vld [vmem:[#allocation9 + $0x4c] sm:$0xf]
    %v3926 = vld [vmem:[#allocation9 + $0x50] sm:$0xf]
    %v3927 = vld [vmem:[#allocation9 + $0x54] sm:$0xf]
    %v3928 = vld [vmem:[#allocation9 + $0x58] sm:$0xf]
    %v3929 = vld [vmem:[#allocation9 + $0x5c] sm:$0xf]
    %v3930 = vld [vmem:[#allocation9 + $0x60] sm:$0xf]
    %v3931 = vld [vmem:[#allocation9 + $0x64] sm:$0xf]
    %v3932 = vld [vmem:[#allocation9 + $0x68] sm:$0xf]
    %v3933 = vld [vmem:[#allocation9 + $0x6c] sm:$0xf]
    %v3934 = vld [vmem:[#allocation9 + $0x70] sm:$0xf]
    %v3935 = vld [vmem:[#allocation9 + $0x74] sm:$0xf]
    %v3936 = vld [vmem:[#allocation9 + $0x78] sm:$0xf]
    %v3937 = vld [vmem:[#allocation9 + $0x7c] sm:$0xf]
    %v3938 = vld [vmem:[#allocation9 + $0x80] sm:$0xf]
    %v3939 = vld [vmem:[#allocation9 + $0x84] sm:$0xf]
    %v3940 = vld [vmem:[#allocation9 + $0x88] sm:$0xf]
    %v3941 = vld [vmem:[#allocation9 + $0x8c] sm:$0xf]
    %v3942 = vld [vmem:[#allocation9 + $0x90] sm:$0xf]
    %v3943 = vld [vmem:[#allocation9 + $0x94] sm:$0xf]
    %v3944 = vld [vmem:[#allocation9 + $0x98] sm:$0xf]
    %v3945 = vld [vmem:[#allocation9 + $0x9c] sm:$0xf]
    %v3946 = vld [vmem:[#allocation9 + $0xa0] sm:$0xf]
    %v3947 = vld [vmem:[#allocation9 + $0xa4] sm:$0xf]
    %v3948 = vld [vmem:[#allocation9 + $0xa8] sm:$0xf]
    %v3949 = vld [vmem:[#allocation9 + $0xac] sm:$0xf]
    %v3950 = vld [vmem:[#allocation9 + $0xb0] sm:$0xf]
    %v3951 = vld [vmem:[#allocation9 + $0xb4] sm:$0xf]
    %v3952 = vld [vmem:[#allocation9 + $0xb8] sm:$0xf]
    %v3953 = vld [vmem:[#allocation9 + $0xbc] sm:$0xf]
    %v3954 = vld [vmem:[#allocation9 + $0xc0] sm:$0xf]
    %v3955 = vld [vmem:[#allocation9 + $0xc4] sm:$0xf]
    %v3956 = vld [vmem:[#allocation9 + $0xc8] sm:$0xf]
    %v3957 = vld [vmem:[#allocation9 + $0xcc] sm:$0xf]
    %v3958 = vld [vmem:[#allocation9 + $0xd0] sm:$0xf]
    %v3959 = vld [vmem:[#allocation9 + $0xd4] sm:$0xf]
    %v3960 = vld [vmem:[#allocation9 + $0xd8] sm:$0xf]
    %v3961 = vld [vmem:[#allocation9 + $0xdc] sm:$0xf]
    %v3962 = vld [vmem:[#allocation9 + $0xe0] sm:$0xf]
    %v3963 = vld [vmem:[#allocation9 + $0xe4] sm:$0xf]
    %v3964 = vld [vmem:[#allocation9 + $0xe8] sm:$0xf]
    %v3965 = vld [vmem:[#allocation9 + $0xec] sm:$0xf]
    %v3966 = vld [vmem:[#allocation9 + $0xf0] sm:$0xf]
    %v3967 = vld [vmem:[#allocation9 + $0xf4] sm:$0xf]
    %v3968 = vld [vmem:[#allocation9 + $0xf8] sm:$0xf]
    %v3969 = vld [vmem:[#allocation9 + $0xfc] sm:$0xf]
    %v3970 = vld [vmem:[#allocation10] sm:$0x1]
    %v3972 = vperm.slane %v3970, 0
    %v4038 = vunpack.c.l.b16 %v3906
    %v4039 = vunpack.c.l.b16 %v3907
    %v4040 = vunpack.c.l.b16 %v3908
    %v4041 = vunpack.c.l.b16 %v3909
    %v4042 = vunpack.c.l.b16 %v3910
    %v4043 = vunpack.c.l.b16 %v3911
    %v4044 = vunpack.c.l.b16 %v3912
    %v4045 = vunpack.c.l.b16 %v3913
    %v4046 = vunpack.c.l.b16 %v3914
    %v4047 = vunpack.c.l.b16 %v3915
    %v4048 = vunpack.c.l.b16 %v3916
    %v4049 = vunpack.c.l.b16 %v3917
    %v4050 = vunpack.c.l.b16 %v3918
    %v4051 = vunpack.c.l.b16 %v3919
    %v4052 = vunpack.c.l.b16 %v3920
    %v4053 = vunpack.c.l.b16 %v3921
    %v4054 = vunpack.c.l.b16 %v3922
    %v4055 = vunpack.c.l.b16 %v3923
    %v4056 = vunpack.c.l.b16 %v3924
    %v4057 = vunpack.c.l.b16 %v3925
    %v4058 = vunpack.c.l.b16 %v3926
    %v4059 = vunpack.c.l.b16 %v3927
    %v4060 = vunpack.c.l.b16 %v3928
    %v4061 = vunpack.c.l.b16 %v3929
    %v4062 = vunpack.c.l.b16 %v3930
    %v4063 = vunpack.c.l.b16 %v3931
    %v4064 = vunpack.c.l.b16 %v3932
    %v4065 = vunpack.c.l.b16 %v3933
    %v4066 = vunpack.c.l.b16 %v3934
    %v4067 = vunpack.c.l.b16 %v3935
    %v4068 = vunpack.c.l.b16 %v3936
    %v4069 = vunpack.c.l.b16 %v3937
    %v4070 = vunpack.c.l.b16 %v3938
    %v4071 = vunpack.c.l.b16 %v3939
    %v4072 = vunpack.c.l.b16 %v3940
    %v4073 = vunpack.c.l.b16 %v3941
    %v4074 = vunpack.c.l.b16 %v3942
    %v4075 = vunpack.c.l.b16 %v3943
    %v4076 = vunpack.c.l.b16 %v3944
    %v4077 = vunpack.c.l.b16 %v3945
    %v4078 = vunpack.c.l.b16 %v3946
    %v4079 = vunpack.c.l.b16 %v3947
    %v4080 = vunpack.c.l.b16 %v3948
    %v4081 = vunpack.c.l.b16 %v3949
    %v4082 = vunpack.c.l.b16 %v3950
    %v4083 = vunpack.c.l.b16 %v3951
    %v4084 = vunpack.c.l.b16 %v3952
    %v4085 = vunpack.c.l.b16 %v3953
    %v4086 = vunpack.c.l.b16 %v3954
    %v4087 = vunpack.c.l.b16 %v3955
    %v4088 = vunpack.c.l.b16 %v3956
    %v4089 = vunpack.c.l.b16 %v3957
    %v4090 = vunpack.c.l.b16 %v3958
    %v4091 = vunpack.c.l.b16 %v3959
    %v4092 = vunpack.c.l.b16 %v3960
    %v4093 = vunpack.c.l.b16 %v3961
    %v4094 = vunpack.c.l.b16 %v3962
    %v4095 = vunpack.c.l.b16 %v3963
    %v4096 = vunpack.c.l.b16 %v3964
    %v4097 = vunpack.c.l.b16 %v3965
    %v4098 = vunpack.c.l.b16 %v3966
    %v4099 = vunpack.c.l.b16 %v3967
    %v4100 = vunpack.c.l.b16 %v3968
    %v4101 = vunpack.c.l.b16 %v3969
    %v4102 = vpack.c.b16 %v4039, %v4038
    %v4103 = vpack.c.b16 %v4041, %v4040
    %v4104 = vpack.c.b16 %v4043, %v4042
    %v4105 = vpack.c.b16 %v4045, %v4044
    %v4106 = vpack.c.b16 %v4047, %v4046
    %v4107 = vpack.c.b16 %v4049, %v4048
    %v4108 = vpack.c.b16 %v4051, %v4050
    %v4109 = vpack.c.b16 %v4053, %v4052
    %v4110 = vpack.c.b16 %v4055, %v4054
    %v4111 = vpack.c.b16 %v4057, %v4056
    %v4112 = vpack.c.b16 %v4059, %v4058
    %v4113 = vpack.c.b16 %v4061, %v4060
    %v4114 = vpack.c.b16 %v4063, %v4062
    %v4115 = vpack.c.b16 %v4065, %v4064
    %v4116 = vpack.c.b16 %v4067, %v4066
    %v4117 = vpack.c.b16 %v4069, %v4068
    %v4118 = vpack.c.b16 %v4071, %v4070
    %v4119 = vpack.c.b16 %v4073, %v4072
    %v4120 = vpack.c.b16 %v4075, %v4074
    %v4121 = vpack.c.b16 %v4077, %v4076
    %v4122 = vpack.c.b16 %v4079, %v4078
    %v4123 = vpack.c.b16 %v4081, %v4080
    %v4124 = vpack.c.b16 %v4083, %v4082
    %v4125 = vpack.c.b16 %v4085, %v4084
    %v4126 = vpack.c.b16 %v4087, %v4086
    %v4127 = vpack.c.b16 %v4089, %v4088
    %v4128 = vpack.c.b16 %v4091, %v4090
    %v4129 = vpack.c.b16 %v4093, %v4092
    %v4130 = vpack.c.b16 %v4095, %v4094
    %v4131 = vpack.c.b16 %v4097, %v4096
    %v4132 = vpack.c.b16 %v4099, %v4098
    %v4133 = vpack.c.b16 %v4101, %v4100
    %4166 = vmatpush.bf16.msra.mxu0 %v4109
    %4167 = vmatpush.bf16.msra.mxu0 %v4108
    %4168 = vmatpush.bf16.msra.mxu0 %v4107
    %4169 = vmatpush.bf16.msra.mxu0 %v4106
    %4170 = vmatpush.bf16.msra.mxu0 %v4105
    %4171 = vmatpush.bf16.msra.mxu0 %v4104
    %4172 = vmatpush.bf16.msra.mxu0 %v4103
    %4173 = vmatpush.bf16.msra.mxu0 %v4102
    %4174 = vmatmul.bf16.gmra.mxu0 %v3902
    %v4175 = vpop.f32.mrf.mxu0
    %v4176 = vadd.f32 %v3972, %v4175
    %v4177 = vpop.f32.mrf.mxu0
    %v4178 = vadd.f32 %v3972, %v4177
    %4179 = vdwg.mxu0
    %4180 = vmatpush.bf16.msra.mxu0 %v4117
    %4181 = vmatpush.bf16.msra.mxu0 %v4116
    %4182 = vmatpush.bf16.msra.mxu0 %v4115
    %4183 = vmatpush.bf16.msra.mxu0 %v4114
    %4184 = vmatpush.bf16.msra.mxu0 %v4113
    %4185 = vmatpush.bf16.msra.mxu0 %v4112
    %4186 = vmatpush.bf16.msra.mxu0 %v4111
    %4187 = vmatpush.bf16.msra.mxu0 %v4110
    %4188 = vmatmul.bf16.gmra.mxu0 %v3903
    %v4189 = vpop.f32.mrf.mxu0
    %v4190 = vadd.f32 %v4176, %v4189
    %v4191 = vpop.f32.mrf.mxu0
    %v4192 = vadd.f32 %v4178, %v4191
    %4193 = vdwg.mxu0
    %4194 = vmatpush.bf16.msra.mxu0 %v4125
    %4195 = vmatpush.bf16.msra.mxu0 %v4124
    %4196 = vmatpush.bf16.msra.mxu0 %v4123
    %4197 = vmatpush.bf16.msra.mxu0 %v4122
    %4198 = vmatpush.bf16.msra.mxu0 %v4121
    %4199 = vmatpush.bf16.msra.mxu0 %v4120
    %4200 = vmatpush.bf16.msra.mxu0 %v4119
    %4201 = vmatpush.bf16.msra.mxu0 %v4118
    %4202 = vmatmul.bf16.gmra.mxu0 %v3904
    %v4203 = vpop.f32.mrf.mxu0
    %v4204 = vadd.f32 %v4190, %v4203
    %v4205 = vpop.f32.mrf.mxu0
    %v4206 = vadd.f32 %v4192, %v4205
    %4207 = vdwg.mxu0
    %4208 = vmatpush.bf16.msra.mxu0 %v4133
    %4209 = vmatpush.bf16.msra.mxu0 %v4132
    %4210 = vmatpush.bf16.msra.mxu0 %v4131
    %4211 = vmatpush.bf16.msra.mxu0 %v4130
    %4212 = vmatpush.bf16.msra.mxu0 %v4129
    %4213 = vmatpush.bf16.msra.mxu0 %v4128
    %4214 = vmatpush.bf16.msra.mxu0 %v4127
    %4215 = vmatpush.bf16.msra.mxu0 %v4126
    %4216 = vmatmul.bf16.gmra.mxu0 %v3905
    %v4217 = vpop.f32.mrf.mxu0
    %v4218 = vadd.f32 %v4204, %v4217
    %v4219 = vpop.f32.mrf.mxu0
    %v4220 = vadd.f32 %v4206, %v4219
    %4221 = vdwg.mxu0
    %4222 = vmax.xlane.f32.xlu0 %v4218
    %v4223 = vpop.xlane.xlu0 %4222
    %4224 = vmax.xlane.f32.xlu0 %v4220
    %v4225 = vpop.xlane.xlu0 %4224
    %v4226 = vsub.f32 %v4218, %v4223
    %v4227 = vsub.f32 %v4220, %v4225
    %v4228 = vmul.f32 %v4226, 1.442695
    %v4229 = vpow.pop %v4228
    %v4230 = vmul.f32 %v4227, 1.442695
    %v4231 = vpow.pop %v4230
    %4232 = vadd.xlane.f32.xlu0 %v4229
    %v4233 = vpop.xlane.xlu0 %4232
    %4234 = vadd.xlane.f32.xlu0 %v4231
    %v4235 = vpop.xlane.xlu0 %4234
    %v4236 = vlog2.pop %v4233
    %v4237 = vmul.f32 %v4236, 0.6931472
    %v4238 = vlog2.pop %v4235
    %v4239 = vmul.f32 %v4238, 0.6931472
    %v4240 = vsub.f32 %v4226, %v4237
    %v4241 = vsub.f32 %v4227, %v4239
    %4242 = vst [vmem:[%s7] sm:$0xff] %v4240
    %4243 = vst [vmem:[%s7 + $0x8] sm:$0xff] %v4241
    // Predicated region
    $region54: #{bert_head_forward.1} parent=1 // pred_check
      _
    $region55: #{bert_head_forward.1} parent=1 // pred_check_branch
      %4245 = sbr.rel (0) target = $region57
    $region56: #{bert_head_forward.1} parent=1 // pred_region
      _
    $region57: #{bert_head_forward.1} parent=1 // pred_fallthru
      _
    // Predicated region
    $region58: #{bert_head_forward.1} parent=1 // pred_check
      _
    $region59: #{bert_head_forward.1} parent=1 // pred_check_branch
      %4247 = sbr.rel (0) target = $region61
    $region60: #{bert_head_forward.1} parent=1 // pred_region
      _
    $region61: #{bert_head_forward.1} parent=1 // pred_fallthru
      _
    %4248 = vsyncpa [#allocation3], 1
    %4249 = vsyncpa [#allocation5], 1
    %4250 = vsyncpa [#allocation8], 1
    %4251 = vsyncpa [#allocation11], 1

// kernel: bert_head_forward.1
$region0: #{bert_head_forward.1}
  #allocation0 [shape = 'u32[]', space=smem, size = 0x4, offset = 0x4, fixed_abs, tag = 'smem constant byte address 0x4 - core index']
  #allocation1 [shape = 'u32[72,128]{1,0:T(1,128)}', space=vmem, size = 0x9000, scoped, tag = 'internal scratch']
  %s0 = inlined_call_operand.vmem [shape: f32[16,768], index: 0, kind: input, shape index: {}]
  %s1 = inlined_call_operand.hbm [shape: bf16[768,768], index: 1, kind: input, shape index: {}]
  %s2 = inlined_call_operand.hbm [shape: f32[1,768], index: 2, kind: input, shape index: {}]
  %s3 = inlined_call_operand.hbm [shape: bf16[768,512], index: 3, kind: input, shape index: {}]
  %s4 = inlined_call_operand.hbm [shape: f32[1,512], index: 4, kind: input, shape index: {}]
  %s5 = inlined_call_operand.hbm [shape: bf16[512,128], index: 5, kind: input, shape index: {}]
  %s6 = inlined_call_operand.hbm [shape: f32[1,128], index: 6, kind: input, shape index: {}]
  %s7 = inlined_call_operand.vmem [shape: f32[16,128], index: 7, kind: output, shape index: {}]
  %s8 = sld [smem:[#allocation0]]
  $region62: #{bert_head_forward.1} parent=0
    _
  %s10 = ssub.s32 1, %s8
  %s11 = scalar_select 0, %s10, %s8
  $region1: #{bert_head_forward.1} parent=0
    #allocation2 [shape = 'u8[1179648]{0}', space=vmem, size = 0x120000, scoped, tag = 'input window, operand 1, single buffered']
    #allocation3 [shape = 's32[1]{0}', space=sflag, size = 0x4, scoped, tag = 'scoped memory for bert_head_forward.1']
    #allocation4 [shape = 'u8[3072]{0}', space=vmem, size = 0xc00, scoped, tag = 'input window, operand 2, single buffered']
    #allocation5 [shape = 's32[1]{0}', space=sflag, size = 0x4, scoped, tag = 'scoped memory for bert_head_forward.1']
    #allocation6 [shape = 'u8[786432]{0}', space=vmem, size = 0xc0000, scoped, tag = 'input window, operand 3, single buffered']
    #allocation7 [shape = 'u8[2048]{0}', space=vmem, size = 0x800, scoped, tag = 'input window, operand 4, single buffered']
    #allocation8 [shape = 's32[1]{0}', space=sflag, size = 0x4, scoped, tag = 'scoped memory for bert_head_forward.1']
    #allocation9 [shape = 'u8[131072]{0}', space=vmem, size = 0x20000, scoped, tag = 'input window, operand 5, single buffered']
    #allocation10 [shape = 'u8[512]{0}', space=vmem, size = 0x400, scoped, tag = 'input window, operand 6, single buffered']
    #allocation11 [shape = 's32[1]{0}', space=sflag, size = 0x4, scoped, tag = 'scoped memory for bert_head_forward.1']
    %12 = vsyncpa [#allocation3], 0
    %13 = vsyncpa [#allocation5], 0
    %14 = vsyncpa [#allocation8], 0
    %15 = vsyncpa [#allocation11], 0
    // Predicated region
    $region2: #{bert_head_forward.1} parent=1 // pred_check
      _
    $region3: #{bert_head_forward.1} parent=1 // pred_check_branch
      %17 = sbr.rel (0) target = $region5
    $region4: #{bert_head_forward.1} parent=1 // pred_region
      _
    $region5: #{bert_head_forward.1} parent=1 // pred_fallthru
      _
    // Predicated region
    $region6: #{bert_head_forward.1} parent=1 // pred_check
      _
    $region7: #{bert_head_forward.1} parent=1 // pred_check_branch
      %19 = sbr.rel (0) target = $region9
    $region8: #{bert_head_forward.1} parent=1 // pred_region
      %21 = vsyncadd [#allocation3], 0
      %s22 = sshll.u32 %s1, 4
      %s23 = int_to_ptr.hbm [resolvable:$true] %s22
      %s24 = sshll.u32 [#allocation2], 4
      %s25 = int_to_ptr.vmem [resolvable:$true] %s24
      %30 = dma.hbm_to_vmem [thread:$0]  %s23, 36864, %s25, [#allocation3], 384, 384, 24
    $region9: #{bert_head_forward.1} parent=1 // pred_fallthru
      _
    // Predicated region
    $region10: #{bert_head_forward.1} parent=1 // pred_check
      _
    $region11: #{bert_head_forward.1} parent=1 // pred_check_branch
      %32 = sbr.rel (0) target = $region13
    $region12: #{bert_head_forward.1} parent=1 // pred_region
      %34 = vsyncadd [#allocation5], 0
      %s36 = sshll.u32 %s2, 4
      %s37 = int_to_ptr.hbm [resolvable:$true] %s36
      %s38 = sshll.u32 [#allocation4], 4
      %s39 = int_to_ptr.vmem [resolvable:$true] %s38
      %41 = dma.hbm_to_vmem [thread:$0]  %s37, 96, %s39, [#allocation5]
    $region13: #{bert_head_forward.1} parent=1 // pred_fallthru
      _
    // Predicated region
    $region14: #{bert_head_forward.1} parent=1 // pred_check
      _
    $region15: #{bert_head_forward.1} parent=1 // pred_check_branch
      %43 = sbr.rel (0) target = $region17
    $region16: #{bert_head_forward.1} parent=1 // pred_region
      %45 = vsyncadd [#allocation5], 0
      %s46 = sshll.u32 %s3, 4
      %s47 = int_to_ptr.hbm [resolvable:$true] %s46
      %s48 = sshll.u32 [#allocation6], 4
      %s49 = int_to_ptr.vmem [resolvable:$true] %s48
      %54 = dma.hbm_to_vmem [thread:$0]  %s47, 24576, %s49, [#allocation5], 256, 256, 16
    $region17: #{bert_head_forward.1} parent=1 // pred_fallthru
      _
    // Predicated region
    $region18: #{bert_head_forward.1} parent=1 // pred_check
      _
    $region19: #{bert_head_forward.1} parent=1 // pred_check_branch
      %56 = sbr.rel (0) target = $region21
    $region20: #{bert_head_forward.1} parent=1 // pred_region
      %58 = vsyncadd [#allocation8], 0
      %s60 = sshll.u32 %s4, 4
      %s61 = int_to_ptr.hbm [resolvable:$true] %s60
      %s62 = sshll.u32 [#allocation7], 4
      %s63 = int_to_ptr.vmem [resolvable:$true] %s62
      %65 = dma.hbm_to_vmem [thread:$0]  %s61, 64, %s63, [#allocation8]
    $region21: #{bert_head_forward.1} parent=1 // pred_fallthru
      _
    // Predicated region
    $region22: #{bert_head_forward.1} parent=1 // pred_check
      _
    $region23: #{bert_head_forward.1} parent=1 // pred_check_branch
      %67 = sbr.rel (0) target = $region25
    $region24: #{bert_head_forward.1} parent=1 // pred_region
      %69 = vsyncadd [#allocation8], 0
      %s70 = sshll.u32 %s5, 4
      %s71 = int_to_ptr.hbm [resolvable:$true] %s70
      %s72 = sshll.u32 [#allocation9], 4
      %s73 = int_to_ptr.vmem [resolvable:$true] %s72
      %78 = dma.hbm_to_vmem [thread:$0]  %s71, 4096, %s73, [#allocation8], 64, 64, 4
    $region25: #{bert_head_forward.1} parent=1 // pred_fallthru
      _
    // Predicated region
    $region26: #{bert_head_forward.1} parent=1 // pred_check
      _
    $region27: #{bert_head_forward.1} parent=1 // pred_check_branch
      %80 = sbr.rel (0) target = $region29
    $region28: #{bert_head_forward.1} parent=1 // pred_region
      %82 = vsyncadd [#allocation11], 0
      %s84 = sshll.u32 %s6, 4
      %s85 = int_to_ptr.hbm [resolvable:$true] %s84
      %s86 = sshll.u32 [#allocation10], 4
      %s87 = int_to_ptr.vmem [resolvable:$true] %s86
      %89 = dma.hbm_to_vmem [thread:$0]  %s85, 16, %s87, [#allocation11]
    $region29: #{bert_head_forward.1} parent=1 // pred_fallthru
      _
    // Predicated region
    $region30: #{bert_head_forward.1} parent=1 // pred_check
      _
    $region31: #{bert_head_forward.1} parent=1 // pred_check_branch
      %91 = sbr.rel (0) target = $region33
    $region32: #{bert_head_forward.1} parent=1 // pred_region
      %93 = dma.done [#allocation3], 36864
    $region33: #{bert_head_forward.1} parent=1 // pred_fallthru
      _
    // Predicated region
    $region34: #{bert_head_forward.1} parent=1 // pred_check
      _
    $region35: #{bert_head_forward.1} parent=1 // pred_check_branch
      %95 = sbr.rel (0) target = $region37
    $region36: #{bert_head_forward.1} parent=1 // pred_region
      %97 = dma.done [#allocation5], 96
    $region37: #{bert_head_forward.1} parent=1 // pred_fallthru
      _
    // Predicated region
    $region38: #{bert_head_forward.1} parent=1 // pred_check
      _
    $region39: #{bert_head_forward.1} parent=1 // pred_check_branch
      %99 = sbr.rel (0) target = $region41
    $region40: #{bert_head_forward.1} parent=1 // pred_region
      %101 = dma.done [#allocation5], 24576
    $region41: #{bert_head_forward.1} parent=1 // pred_fallthru
      _
    // Predicated region
    $region42: #{bert_head_forward.1} parent=1 // pred_check
      _
    $region43: #{bert_head_forward.1} parent=1 // pred_check_branch
      %103 = sbr.rel (0) target = $region45
    $region44: #{bert_head_forward.1} parent=1 // pred_region
      %105 = dma.done [#allocation8], 64
    $region45: #{bert_head_forward.1} parent=1 // pred_fallthru
      _
    // Predicated region
    $region46: #{bert_head_forward.1} parent=1 // pred_check
      _
    $region47: #{bert_head_forward.1} parent=1 // pred_check_branch
      %107 = sbr.rel (0) target = $region49
    $region48: #{bert_head_forward.1} parent=1 // pred_region
      %109 = dma.done [#allocation8], 4096
    $region49: #{bert_head_forward.1} parent=1 // pred_fallthru
      _
    // Predicated region
    $region50: #{bert_head_forward.1} parent=1 // pred_check
      _
    $region51: #{bert_head_forward.1} parent=1 // pred_check_branch
      %111 = sbr.rel (0) target = $region53
    $region52: #{bert_head_forward.1} parent=1 // pred_region
      %113 = dma.done [#allocation11], 16
    $region53: #{bert_head_forward.1} parent=1 // pred_fallthru
      _
    %v114 = vld [vmem:[%s0] sm:$0xff]
    %v115 = vld [vmem:[%s0 + $0x8] sm:$0xff]
    %v116 = vld [vmem:[%s0 + $0x10] sm:$0xff]
    %v117 = vld [vmem:[%s0 + $0x18] sm:$0xff]
    %v118 = vld [vmem:[%s0 + $0x20] sm:$0xff]
    %v119 = vld [vmem:[%s0 + $0x28] sm:$0xff]
    %v120 = vld [vmem:[%s0 + $0x30] sm:$0xff]
    %v121 = vld [vmem:[%s0 + $0x38] sm:$0xff]
    %v122 = vld [vmem:[%s0 + $0x40] sm:$0xff]
    %v123 = vld [vmem:[%s0 + $0x48] sm:$0xff]
    %v124 = vld [vmem:[%s0 + $0x50] sm:$0xff]
    %v125 = vld [vmem:[%s0 + $0x58] sm:$0xff]
    %v126 = vpack.c.bf16 %v120, %v114
    %v127 = vpack.c.bf16 %v121, %v115
    %v128 = vpack.c.bf16 %v122, %v116
    %v129 = vpack.c.bf16 %v123, %v117
    %v130 = vpack.c.bf16 %v124, %v118
    %v131 = vpack.c.bf16 %v125, %v119
    %v132 = vld [vmem:[#allocation2] sm:$0xff]
    %v133 = vld [vmem:[#allocation2 + $0x8] sm:$0xff]
    %v134 = vld [vmem:[#allocation2 + $0x10] sm:$0xff]
    %v135 = vld [vmem:[#allocation2 + $0x18] sm:$0xff]
    %v136 = vld [vmem:[#allocation2 + $0x20] sm:$0xff]
    %v137 = vld [vmem:[#allocation2 + $0x28] sm:$0xff]
    %v138 = vld [vmem:[#allocation2 + $0x30] sm:$0xff]
    %v139 = vld [vmem:[#allocation2 + $0x38] sm:$0xff]
    %v140 = vld [vmem:[#allocation2 + $0x40] sm:$0xff]
    %v141 = vld [vmem:[#allocation2 + $0x48] sm:$0xff]
    %v142 = vld [vmem:[#allocation2 + $0x50] sm:$0xff]
    %v143 = vld [vmem:[#allocation2 + $0x58] sm:$0xff]
    %v144 = vld [vmem:[#allocation2 + $0x60] sm:$0xff]
    %v145 = vld [vmem:[#allocation2 + $0x68] sm:$0xff]
    %v146 = vld [vmem:[#allocation2 + $0x70] sm:$0xff]
    %v147 = vld [vmem:[#allocation2 + $0x78] sm:$0xff]
    %v148 = vld [vmem:[#allocation2 + $0x80] sm:$0xff]
    %v149 = vld [vmem:[#allocation2 + $0x88] sm:$0xff]
    %v150 = vld [vmem:[#allocation2 + $0x90] sm:$0xff]
    %v151 = vld [vmem:[#allocation2 + $0x98] sm:$0xff]
    %v152 = vld [vmem:[#allocation2 + $0xa0] sm:$0xff]
    %v153 = vld [vmem:[#allocation2 + $0xa8] sm:$0xff]
    %v154 = vld [vmem:[#allocation2 + $0xb0] sm:$0xff]
    %v155 = vld [vmem:[#allocation2 + $0xb8] sm:$0xff]
    %v156 = vld [vmem:[#allocation2 + $0xc0] sm:$0xff]
    %v157 = vld [vmem:[#allocation2 + $0xc8] sm:$0xff]
    %v158 = vld [vmem:[#allocation2 + $0xd0] sm:$0xff]
    %v159 = vld [vmem:[#allocation2 + $0xd8] sm:$0xff]
    %v160 = vld [vmem:[#allocation2 + $0xe0] sm:$0xff]
    %v161 = vld [vmem:[#allocation2 + $0xe8] sm:$0xff]
    %v162 = vld [vmem:[#allocation2 + $0xf0] sm:$0xff]
    %v163 = vld [vmem:[#allocation2 + $0xf8] sm:$0xff]
    %v164 = vld [vmem:[#allocation2 + $0x100] sm:$0xff]
    %v165 = vld [vmem:[#allocation2 + $0x108] sm:$0xff]
    %v166 = vld [vmem:[#allocation2 + $0x110] sm:$0xff]
    %v167 = vld [vmem:[#allocation2 + $0x118] sm:$0xff]
    %v168 = vld [vmem:[#allocation2 + $0x120] sm:$0xff]
    %v169 = vld [vmem:[#allocation2 + $0x128] sm:$0xff]
    %v170 = vld [vmem:[#allocation2 + $0x130] sm:$0xff]
    %v171 = vld [vmem:[#allocation2 + $0x138] sm:$0xff]
    %v172 = vld [vmem:[#allocation2 + $0x140] sm:$0xff]
    %v173 = vld [vmem:[#allocation2 + $0x148] sm:$0xff]
    %v174 = vld [vmem:[#allocation2 + $0x150] sm:$0xff]
    %v175 = vld [vmem:[#allocation2 + $0x158] sm:$0xff]
    %v176 = vld [vmem:[#allocation2 + $0x160] sm:$0xff]
    %v177 = vld [vmem:[#allocation2 + $0x168] sm:$0xff]
    %v178 = vld [vmem:[#allocation2 + $0x170] sm:$0xff]
    %v179 = vld [vmem:[#allocation2 + $0x178] sm:$0xff]
    %v180 = vld [vmem:[#allocation2 + $0x180] sm:$0xff]
    %v181 = vld [vmem:[#allocation2 + $0x188] sm:$0xff]
    %v182 = vld [vmem:[#allocation2 + $0x190] sm:$0xff]
    %v183 = vld [vmem:[#allocation2 + $0x198] sm:$0xff]
    %v184 = vld [vmem:[#allocation2 + $0x1a0] sm:$0xff]
    %v185 = vld [vmem:[#allocation2 + $0x1a8] sm:$0xff]
    %v186 = vld [vmem:[#allocation2 + $0x1b0] sm:$0xff]
    %v187 = vld [vmem:[#allocation2 + $0x1b8] sm:$0xff]
    %v188 = vld [vmem:[#allocation2 + $0x1c0] sm:$0xff]
    %v189 = vld [vmem:[#allocation2 + $0x1c8] sm:$0xff]
    %v190 = vld [vmem:[#allocation2 + $0x1d0] sm:$0xff]
    %v191 = vld [vmem:[#allocation2 + $0x1d8] sm:$0xff]
    %v192 = vld [vmem:[#allocation2 + $0x1e0] sm:$0xff]
    %v193 = vld [vmem:[#allocation2 + $0x1e8] sm:$0xff]
    %v194 = vld [vmem:[#allocation2 + $0x1f0] sm:$0xff]
    %v195 = vld [vmem:[#allocation2 + $0x1f8] sm:$0xff]
    %v196 = vld [vmem:[#allocation2 + $0x200] sm:$0xff]
    %v197 = vld [vmem:[#allocation2 + $0x208] sm:$0xff]
    %v198 = vld [vmem:[#allocation2 + $0x210] sm:$0xff]
    %v199 = vld [vmem:[#allocation2 + $0x218] sm:$0xff]
    %v200 = vld [vmem:[#allocation2 + $0x220] sm:$0xff]
    %v201 = vld [vmem:[#allocation2 + $0x228] sm:$0xff]
    %v202 = vld [vmem:[#allocation2 + $0x230] sm:$0xff]
    %v203 = vld [vmem:[#allocation2 + $0x238] sm:$0xff]
    %v204 = vld [vmem:[#allocation2 + $0x240] sm:$0xff]
    %v205 = vld [vmem:[#allocation2 + $0x248] sm:$0xff]
    %v206 = vld [vmem:[#allocation2 + $0x250] sm:$0xff]
    %v207 = vld [vmem:[#allocation2 + $0x258] sm:$0xff]
    %v208 = vld [vmem:[#allocation2 + $0x260] sm:$0xff]
    %v209 = vld [vmem:[#allocation2 + $0x268] sm:$0xff]
    %v210 = vld [vmem:[#allocation2 + $0x270] sm:$0xff]
    %v211 = vld [vmem:[#allocation2 + $0x278] sm:$0xff]
    %v212 = vld [vmem:[#allocation2 + $0x280] sm:$0xff]
    %v213 = vld [vmem:[#allocation2 + $0x288] sm:$0xff]
    %v214 = vld [vmem:[#allocation2 + $0x290] sm:$0xff]
    %v215 = vld [vmem:[#allocation2 + $0x298] sm:$0xff]
    %v216 = vld [vmem:[#allocation2 + $0x2a0] sm:$0xff]
    %v217 = vld [vmem:[#allocation2 + $0x2a8] sm:$0xff]
    %v218 = vld [vmem:[#allocation2 + $0x2b0] sm:$0xff]
    %v219 = vld [vmem:[#allocation2 + $0x2b8] sm:$0xff]
    %v220 = vld [vmem:[#allocation2 + $0x2c0] sm:$0xff]
    %v221 = vld [vmem:[#allocation2 + $0x2c8] sm:$0xff]
    %v222 = vld [vmem:[#allocation2 + $0x2d0] sm:$0xff]
    %v223 = vld [vmem:[#allocation2 + $0x2d8] sm:$0xff]
    %v224 = vld [vmem:[#allocation2 + $0x2e0] sm:$0xff]
    %v225 = vld [vmem:[#allocation2 + $0x2e8] sm:$0xff]
    %v226 = vld [vmem:[#allocation2 + $0x2f0] sm:$0xff]
    %v227 = vld [vmem:[#allocation2 + $0x2f8] sm:$0xff]
    %v228 = vld [vmem:[#allocation2 + $0x300] sm:$0xff]
    %v229 = vld [vmem:[#allocation2 + $0x308] sm:$0xff]
    %v230 = vld [vmem:[#allocation2 + $0x310] sm:$0xff]
    %v231 = vld [vmem:[#allocation2 + $0x318] sm:$0xff]
    %v232 = vld [vmem:[#allocation2 + $0x320] sm:$0xff]
    %v233 = vld [vmem:[#allocation2 + $0x328] sm:$0xff]
    %v234 = vld [vmem:[#allocation2 + $0x330] sm:$0xff]
    %v235 = vld [vmem:[#allocation2 + $0x338] sm:$0xff]
    %v236 = vld [vmem:[#allocation2 + $0x340] sm:$0xff]
    %v237 = vld [vmem:[#allocation2 + $0x348] sm:$0xff]
    %v238 = vld [vmem:[#allocation2 + $0x350] sm:$0xff]
    %v239 = vld [vmem:[#allocation2 + $0x358] sm:$0xff]
    %v240 = vld [vmem:[#allocation2 + $0x360] sm:$0xff]
    %v241 = vld [vmem:[#allocation2 + $0x368] sm:$0xff]
    %v242 = vld [vmem:[#allocation2 + $0x370] sm:$0xff]
    %v243 = vld [vmem:[#allocation2 + $0x378] sm:$0xff]
    %v244 = vld [vmem:[#allocation2 + $0x380] sm:$0xff]
    %v245 = vld [vmem:[#allocation2 + $0x388] sm:$0xff]
    %v246 = vld [vmem:[#allocation2 + $0x390] sm:$0xff]
    %v247 = vld [vmem:[#allocation2 + $0x398] sm:$0xff]
    %v248 = vld [vmem:[#allocation2 + $0x3a0] sm:$0xff]
    %v249 = vld [vmem:[#allocation2 + $0x3a8] sm:$0xff]
    %v250 = vld [vmem:[#allocation2 + $0x3b0] sm:$0xff]
    %v251 = vld [vmem:[#allocation2 + $0x3b8] sm:$0xff]
    %v252 = vld [vmem:[#allocation2 + $0x3c0] sm:$0xff]
    %v253 = vld [vmem:[#allocation2 + $0x3c8] sm:$0xff]
    %v254 = vld [vmem:[#allocation2 + $0x3d0] sm:$0xff]
    %v255 = vld [vmem:[#allocation2 + $0x3d8] sm:$0xff]
    %v256 = vld [vmem:[#allocation2 + $0x3e0] sm:$0xff]
    %v257 = vld [vmem:[#allocation2 + $0x3e8] sm:$0xff]
    %v258 = vld [vmem:[#allocation2 + $0x3f0] sm:$0xff]
    %v259 = vld [vmem:[#allocation2 + $0x3f8] sm:$0xff]
    %v260 = vld [vmem:[#allocation2 + $0x400] sm:$0xff]
    %v261 = vld [vmem:[#allocation2 + $0x408] sm:$0xff]
    %v262 = vld [vmem:[#allocation2 + $0x410] sm:$0xff]
    %v263 = vld [vmem:[#allocation2 + $0x418] sm:$0xff]
    %v264 = vld [vmem:[#allocation2 + $0x420] sm:$0xff]
    %v265 = vld [vmem:[#allocation2 + $0x428] sm:$0xff]
    %v266 = vld [vmem:[#allocation2 + $0x430] sm:$0xff]
    %v267 = vld [vmem:[#allocation2 + $0x438] sm:$0xff]
    %v268 = vld [vmem:[#allocation2 + $0x440] sm:$0xff]
    %v269 = vld [vmem:[#allocation2 + $0x448] sm:$0xff]
    %v270 = vld [vmem:[#allocation2 + $0x450] sm:$0xff]
    %v271 = vld [vmem:[#allocation2 + $0x458] sm:$0xff]
    %v272 = vld [vmem:[#allocation2 + $0x460] sm:$0xff]
    %v273 = vld [vmem:[#allocation2 + $0x468] sm:$0xff]
    %v274 = vld [vmem:[#allocation2 + $0x470] sm:$0xff]
    %v275 = vld [vmem:[#allocation2 + $0x478] sm:$0xff]
    %v276 = vld [vmem:[#allocation2 + $0x480] sm:$0xff]
    %v277 = vld [vmem:[#allocation2 + $0x488] sm:$0xff]
    %v278 = vld [vmem:[#allocation2 + $0x490] sm:$0xff]
    %v279 = vld [vmem:[#allocation2 + $0x498] sm:$0xff]
    %v280 = vld [vmem:[#allocation2 + $0x4a0] sm:$0xff]
    %v281 = vld [vmem:[#allocation2 + $0x4a8] sm:$0xff]
    %v282 = vld [vmem:[#allocation2 + $0x4b0] sm:$0xff]
    %v283 = vld [vmem:[#allocation2 + $0x4b8] sm:$0xff]
    %v284 = vld [vmem:[#allocation2 + $0x4c0] sm:$0xff]
    %v285 = vld [vmem:[#allocation2 + $0x4c8] sm:$0xff]
    %v286 = vld [vmem:[#allocation2 + $0x4d0] sm:$0xff]
    %v287 = vld [vmem:[#allocation2 + $0x4d8] sm:$0xff]
    %v288 = vld [vmem:[#allocation2 + $0x4e0] sm:$0xff]
    %v289 = vld [vmem:[#allocation2 + $0x4e8] sm:$0xff]
    %v290 = vld [vmem:[#allocation2 + $0x4f0] sm:$0xff]
    %v291 = vld [vmem:[#allocation2 + $0x4f8] sm:$0xff]
    %v292 = vld [vmem:[#allocation2 + $0x500] sm:$0xff]
    %v293 = vld [vmem:[#allocation2 + $0x508] sm:$0xff]
    %v294 = vld [vmem:[#allocation2 + $0x510] sm:$0xff]
    %v295 = vld [vmem:[#allocation2 + $0x518] sm:$0xff]
    %v296 = vld [vmem:[#allocation2 + $0x520] sm:$0xff]
    %v297 = vld [vmem:[#allocation2 + $0x528] sm:$0xff]
    %v298 = vld [vmem:[#allocation2 + $0x530] sm:$0xff]
    %v299 = vld [vmem:[#allocation2 + $0x538] sm:$0xff]
    %v300 = vld [vmem:[#allocation2 + $0x540] sm:$0xff]
    %v301 = vld [vmem:[#allocation2 + $0x548] sm:$0xff]
    %v302 = vld [vmem:[#allocation2 + $0x550] sm:$0xff]
    %v303 = vld [vmem:[#allocation2 + $0x558] sm:$0xff]
    %v304 = vld [vmem:[#allocation2 + $0x560] sm:$0xff]
    %v305 = vld [vmem:[#allocation2 + $0x568] sm:$0xff]
    %v306 = vld [vmem:[#allocation2 + $0x570] sm:$0xff]
    %v307 = vld [vmem:[#allocation2 + $0x578] sm:$0xff]
    %v308 = vld [vmem:[#allocation2 + $0x580] sm:$0xff]
    %v309 = vld [vmem:[#allocation2 + $0x588] sm:$0xff]
    %v310 = vld [vmem:[#allocation2 + $0x590] sm:$0xff]
    %v311 = vld [vmem:[#allocation2 + $0x598] sm:$0xff]
    %v312 = vld [vmem:[#allocation2 + $0x5a0] sm:$0xff]
    %v313 = vld [vmem:[#allocation2 + $0x5a8] sm:$0xff]
    %v314 = vld [vmem:[#allocation2 + $0x5b0] sm:$0xff]
    %v315 = vld [vmem:[#allocation2 + $0x5b8] sm:$0xff]
    %v316 = vld [vmem:[#allocation2 + $0x5c0] sm:$0xff]
    %v317 = vld [vmem:[#allocation2 + $0x5c8] sm:$0xff]
    %v318 = vld [vmem:[#allocation2 + $0x5d0] sm:$0xff]
    %v319 = vld [vmem:[#allocation2 + $0x5d8] sm:$0xff]
    %v320 = vld [vmem:[#allocation2 + $0x5e0] sm:$0xff]
    %v321 = vld [vmem:[#allocation2 + $0x5e8] sm:$0xff]
    %v322 = vld [vmem:[#allocation2 + $0x5f0] sm:$0xff]
    %v323 = vld [vmem:[#allocation2 + $0x5f8] sm:$0xff]
    %v324 = vld [vmem:[#allocation2 + $0x600] sm:$0xff]
    %v325 = vld [vmem:[#allocation2 + $0x608] sm:$0xff]
    %v326 = vld [vmem:[#allocation2 + $0x610] sm:$0xff]
    %v327 = vld [vmem:[#allocation2 + $0x618] sm:$0xff]
    %v328 = vld [vmem:[#allocation2 + $0x620] sm:$0xff]
    %v329 = vld [vmem:[#allocation2 + $0x628] sm:$0xff]
    %v330 = vld [vmem:[#allocation2 + $0x630] sm:$0xff]
    %v331 = vld [vmem:[#allocation2 + $0x638] sm:$0xff]
    %v332 = vld [vmem:[#allocation2 + $0x640] sm:$0xff]
    %v333 = vld [vmem:[#allocation2 + $0x648] sm:$0xff]
    %v334 = vld [vmem:[#allocation2 + $0x650] sm:$0xff]
    %v335 = vld [vmem:[#allocation2 + $0x658] sm:$0xff]
    %v336 = vld [vmem:[#allocation2 + $0x660] sm:$0xff]
    %v337 = vld [vmem:[#allocation2 + $0x668] sm:$0xff]
    %v338 = vld [vmem:[#allocation2 + $0x670] sm:$0xff]
    %v339 = vld [vmem:[#allocation2 + $0x678] sm:$0xff]
    %v340 = vld [vmem:[#allocation2 + $0x680] sm:$0xff]
    %v341 = vld [vmem:[#allocation2 + $0x688] sm:$0xff]
    %v342 = vld [vmem:[#allocation2 + $0x690] sm:$0xff]
    %v343 = vld [vmem:[#allocation2 + $0x698] sm:$0xff]
    %v344 = vld [vmem:[#allocation2 + $0x6a0] sm:$0xff]
    %v345 = vld [vmem:[#allocation2 + $0x6a8] sm:$0xff]
    %v346 = vld [vmem:[#allocation2 + $0x6b0] sm:$0xff]
    %v347 = vld [vmem:[#allocation2 + $0x6b8] sm:$0xff]
    %v348 = vld [vmem:[#allocation2 + $0x6c0] sm:$0xff]
    %v349 = vld [vmem:[#allocation2 + $0x6c8] sm:$0xff]
    %v350 = vld [vmem:[#allocation2 + $0x6d0] sm:$0xff]
    %v351 = vld [vmem:[#allocation2 + $0x6d8] sm:$0xff]
    %v352 = vld [vmem:[#allocation2 + $0x6e0] sm:$0xff]
    %v353 = vld [vmem:[#allocation2 + $0x6e8] sm:$0xff]
    %v354 = vld [vmem:[#allocation2 + $0x6f0] sm:$0xff]
    %v355 = vld [vmem:[#allocation2 + $0x6f8] sm:$0xff]
    %v356 = vld [vmem:[#allocation2 + $0x700] sm:$0xff]
    %v357 = vld [vmem:[#allocation2 + $0x708] sm:$0xff]
    %v358 = vld [vmem:[#allocation2 + $0x710] sm:$0xff]
    %v359 = vld [vmem:[#allocation2 + $0x718] sm:$0xff]
    %v360 = vld [vmem:[#allocation2 + $0x720] sm:$0xff]
    %v361 = vld [vmem:[#allocation2 + $0x728] sm:$0xff]
    %v362 = vld [vmem:[#allocation2 + $0x730] sm:$0xff]
    %v363 = vld [vmem:[#allocation2 + $0x738] sm:$0xff]
    %v364 = vld [vmem:[#allocation2 + $0x740] sm:$0xff]
    %v365 = vld [vmem:[#allocation2 + $0x748] sm:$0xff]
    %v366 = vld [vmem:[#allocation2 + $0x750] sm:$0xff]
    %v367 = vld [vmem:[#allocation2 + $0x758] sm:$0xff]
    %v368 = vld [vmem:[#allocation2 + $0x760] sm:$0xff]
    %v369 = vld [vmem:[#allocation2 + $0x768] sm:$0xff]
    %v370 = vld [vmem:[#allocation2 + $0x770] sm:$0xff]
    %v371 = vld [vmem:[#allocation2 + $0x778] sm:$0xff]
    %v372 = vld [vmem:[#allocation2 + $0x780] sm:$0xff]
    %v373 = vld [vmem:[#allocation2 + $0x788] sm:$0xff]
    %v374 = vld [vmem:[#allocation2 + $0x790] sm:$0xff]
    %v375 = vld [vmem:[#allocation2 + $0x798] sm:$0xff]
    %v376 = vld [vmem:[#allocation2 + $0x7a0] sm:$0xff]
    %v377 = vld [vmem:[#allocation2 + $0x7a8] sm:$0xff]
    %v378 = vld [vmem:[#allocation2 + $0x7b0] sm:$0xff]
    %v379 = vld [vmem:[#allocation2 + $0x7b8] sm:$0xff]
    %v380 = vld [vmem:[#allocation2 + $0x7c0] sm:$0xff]
    %v381 = vld [vmem:[#allocation2 + $0x7c8] sm:$0xff]
    %v382 = vld [vmem:[#allocation2 + $0x7d0] sm:$0xff]
    %v383 = vld [vmem:[#allocation2 + $0x7d8] sm:$0xff]
    %v384 = vld [vmem:[#allocation2 + $0x7e0] sm:$0xff]
    %v385 = vld [vmem:[#allocation2 + $0x7e8] sm:$0xff]
    %v386 = vld [vmem:[#allocation2 + $0x7f0] sm:$0xff]
    %v387 = vld [vmem:[#allocation2 + $0x7f8] sm:$0xff]
    %v388 = vld [vmem:[#allocation2 + $0x800] sm:$0xff]
    %v389 = vld [vmem:[#allocation2 + $0x808] sm:$0xff]
    %v390 = vld [vmem:[#allocation2 + $0x810] sm:$0xff]
    %v391 = vld [vmem:[#allocation2 + $0x818] sm:$0xff]
    %v392 = vld [vmem:[#allocation2 + $0x820] sm:$0xff]
    %v393 = vld [vmem:[#allocation2 + $0x828] sm:$0xff]
    %v394 = vld [vmem:[#allocation2 + $0x830] sm:$0xff]
    %v395 = vld [vmem:[#allocation2 + $0x838] sm:$0xff]
    %v396 = vld [vmem:[#allocation2 + $0x840] sm:$0xff]
    %v397 = vld [vmem:[#allocation2 + $0x848] sm:$0xff]
    %v398 = vld [vmem:[#allocation2 + $0x850] sm:$0xff]
    %v399 = vld [vmem:[#allocation2 + $0x858] sm:$0xff]
    %v400 = vld [vmem:[#allocation2 + $0x860] sm:$0xff]
    %v401 = vld [vmem:[#allocation2 + $0x868] sm:$0xff]
    %v402 = vld [vmem:[#allocation2 + $0x870] sm:$0xff]
    %v403 = vld [vmem:[#allocation2 + $0x878] sm:$0xff]
    %v404 = vld [vmem:[#allocation2 + $0x880] sm:$0xff]
    %v405 = vld [vmem:[#allocation2 + $0x888] sm:$0xff]
    %v406 = vld [vmem:[#allocation2 + $0x890] sm:$0xff]
    %v407 = vld [vmem:[#allocation2 + $0x898] sm:$0xff]
    %v408 = vld [vmem:[#allocation2 + $0x8a0] sm:$0xff]
    %v409 = vld [vmem:[#allocation2 + $0x8a8] sm:$0xff]
    %v410 = vld [vmem:[#allocation2 + $0x8b0] sm:$0xff]
    %v411 = vld [vmem:[#allocation2 + $0x8b8] sm:$0xff]
    %v412 = vld [vmem:[#allocation2 + $0x8c0] sm:$0xff]
    %v413 = vld [vmem:[#allocation2 + $0x8c8] sm:$0xff]
    %v414 = vld [vmem:[#allocation2 + $0x8d0] sm:$0xff]
    %v415 = vld [vmem:[#allocation2 + $0x8d8] sm:$0xff]
    %v416 = vld [vmem:[#allocation2 + $0x8e0] sm:$0xff]
    %v417 = vld [vmem:[#allocation2 + $0x8e8] sm:$0xff]
    %v418 = vld [vmem:[#allocation2 + $0x8f0] sm:$0xff]
    %v419 = vld [vmem:[#allocation2 + $0x8f8] sm:$0xff]
    %v420 = vld [vmem:[#allocation4] sm:$0x3f]
    %v422 = vperm.slane %v420, 0
    %v423 = vperm.slane %v420, 1
    %v424 = vperm.slane %v420, 2
    %v425 = vperm.slane %v420, 3
    %v426 = vperm.slane %v420, 4
    %v427 = vperm.slane %v420, 5
    %v722 = vunpack.c.l.b16 %v132
    %v723 = vunpack.c.h.b16 %v132
    %v724 = vunpack.c.l.b16 %v133
    %v725 = vunpack.c.h.b16 %v133
    %v726 = vunpack.c.l.b16 %v134
    %v727 = vunpack.c.h.b16 %v134
    %v728 = vunpack.c.l.b16 %v135
    %v729 = vunpack.c.h.b16 %v135
    %v730 = vunpack.c.l.b16 %v136
    %v731 = vunpack.c.h.b16 %v136
    %v732 = vunpack.c.l.b16 %v137
    %v733 = vunpack.c.h.b16 %v137
    %v734 = vunpack.c.l.b16 %v138
    %v735 = vunpack.c.h.b16 %v138
    %v736 = vunpack.c.l.b16 %v139
    %v737 = vunpack.c.h.b16 %v139
    %v738 = vunpack.c.l.b16 %v140
    %v739 = vunpack.c.h.b16 %v140
    %v740 = vunpack.c.l.b16 %v141
    %v741 = vunpack.c.h.b16 %v141
    %v742 = vunpack.c.l.b16 %v142
    %v743 = vunpack.c.h.b16 %v142
    %v744 = vunpack.c.l.b16 %v143
    %v745 = vunpack.c.h.b16 %v143
    %v746 = vunpack.c.l.b16 %v144
    %v747 = vunpack.c.h.b16 %v144
    %v748 = vunpack.c.l.b16 %v145
    %v749 = vunpack.c.h.b16 %v145
    %v750 = vunpack.c.l.b16 %v146
    %v751 = vunpack.c.h.b16 %v146
    %v752 = vunpack.c.l.b16 %v147
    %v753 = vunpack.c.h.b16 %v147
    %v754 = vunpack.c.l.b16 %v148
    %v755 = vunpack.c.h.b16 %v148
    %v756 = vunpack.c.l.b16 %v149
    %v757 = vunpack.c.h.b16 %v149
    %v758 = vunpack.c.l.b16 %v150
    %v759 = vunpack.c.h.b16 %v150
    %v760 = vunpack.c.l.b16 %v151
    %v761 = vunpack.c.h.b16 %v151
    %v762 = vunpack.c.l.b16 %v152
    %v763 = vunpack.c.h.b16 %v152
    %v764 = vunpack.c.l.b16 %v153
    %v765 = vunpack.c.h.b16 %v153
    %v766 = vunpack.c.l.b16 %v154
    %v767 = vunpack.c.h.b16 %v154
    %v768 = vunpack.c.l.b16 %v155
    %v769 = vunpack.c.h.b16 %v155
    %v770 = vunpack.c.l.b16 %v156
    %v771 = vunpack.c.h.b16 %v156
    %v772 = vunpack.c.l.b16 %v157
    %v773 = vunpack.c.h.b16 %v157
    %v774 = vunpack.c.l.b16 %v158
    %v775 = vunpack.c.h.b16 %v158
    %v776 = vunpack.c.l.b16 %v159
    %v777 = vunpack.c.h.b16 %v159
    %v778 = vunpack.c.l.b16 %v160
    %v779 = vunpack.c.h.b16 %v160
    %v780 = vunpack.c.l.b16 %v161
    %v781 = vunpack.c.h.b16 %v161
    %v782 = vunpack.c.l.b16 %v162
    %v783 = vunpack.c.h.b16 %v162
    %v784 = vunpack.c.l.b16 %v163
    %v785 = vunpack.c.h.b16 %v163
    %v786 = vunpack.c.l.b16 %v164
    %v787 = vunpack.c.h.b16 %v164
    %v788 = vunpack.c.l.b16 %v165
    %v789 = vunpack.c.h.b16 %v165
    %v790 = vunpack.c.l.b16 %v166
    %v791 = vunpack.c.h.b16 %v166
    %v792 = vunpack.c.l.b16 %v167
    %v793 = vunpack.c.h.b16 %v167
    %v794 = vunpack.c.l.b16 %v168
    %v795 = vunpack.c.h.b16 %v168
    %v796 = vunpack.c.l.b16 %v169
    %v797 = vunpack.c.h.b16 %v169
    %v798 = vunpack.c.l.b16 %v170
    %v799 = vunpack.c.h.b16 %v170
    %v800 = vunpack.c.l.b16 %v171
    %v801 = vunpack.c.h.b16 %v171
    %v802 = vunpack.c.l.b16 %v172
    %v803 = vunpack.c.h.b16 %v172
    %v804 = vunpack.c.l.b16 %v173
    %v805 = vunpack.c.h.b16 %v173
    %v806 = vunpack.c.l.b16 %v174
    %v807 = vunpack.c.h.b16 %v174
    %v808 = vunpack.c.l.b16 %v175
    %v809 = vunpack.c.h.b16 %v175
    %v810 = vunpack.c.l.b16 %v176
    %v811 = vunpack.c.h.b16 %v176
    %v812 = vunpack.c.l.b16 %v177
    %v813 = vunpack.c.h.b16 %v177
    %v814 = vunpack.c.l.b16 %v178
    %v815 = vunpack.c.h.b16 %v178
    %v816 = vunpack.c.l.b16 %v179
    %v817 = vunpack.c.h.b16 %v179
    %v818 = vunpack.c.l.b16 %v180
    %v819 = vunpack.c.h.b16 %v180
    %v820 = vunpack.c.l.b16 %v181
    %v821 = vunpack.c.h.b16 %v181
    %v822 = vunpack.c.l.b16 %v182
    %v823 = vunpack.c.h.b16 %v182
    %v824 = vunpack.c.l.b16 %v183
    %v825 = vunpack.c.h.b16 %v183
    %v826 = vunpack.c.l.b16 %v184
    %v827 = vunpack.c.h.b16 %v184
    %v828 = vunpack.c.l.b16 %v185
    %v829 = vunpack.c.h.b16 %v185
    %v830 = vunpack.c.l.b16 %v186
    %v831 = vunpack.c.h.b16 %v186
    %v832 = vunpack.c.l.b16 %v187
    %v833 = vunpack.c.h.b16 %v187
    %v834 = vunpack.c.l.b16 %v188
    %v835 = vunpack.c.h.b16 %v188
    %v836 = vunpack.c.l.b16 %v189
    %v837 = vunpack.c.h.b16 %v189
    %v838 = vunpack.c.l.b16 %v190
    %v839 = vunpack.c.h.b16 %v190
    %v840 = vunpack.c.l.b16 %v191
    %v841 = vunpack.c.h.b16 %v191
    %v842 = vunpack.c.l.b16 %v192
    %v843 = vunpack.c.h.b16 %v192
    %v844 = vunpack.c.l.b16 %v193
    %v845 = vunpack.c.h.b16 %v193
    %v846 = vunpack.c.l.b16 %v194
    %v847 = vunpack.c.h.b16 %v194
    %v848 = vunpack.c.l.b16 %v195
    %v849 = vunpack.c.h.b16 %v195
    %v850 = vunpack.c.l.b16 %v196
    %v851 = vunpack.c.h.b16 %v196
    %v852 = vunpack.c.l.b16 %v197
    %v853 = vunpack.c.h.b16 %v197
    %v854 = vunpack.c.l.b16 %v198
    %v855 = vunpack.c.h.b16 %v198
    %v856 = vunpack.c.l.b16 %v199
    %v857 = vunpack.c.h.b16 %v199
    %v858 = vunpack.c.l.b16 %v200
    %v859 = vunpack.c.h.b16 %v200
    %v860 = vunpack.c.l.b16 %v201
    %v861 = vunpack.c.h.b16 %v201
    %v862 = vunpack.c.l.b16 %v202
    %v863 = vunpack.c.h.b16 %v202
    %v864 = vunpack.c.l.b16 %v203
    %v865 = vunpack.c.h.b16 %v203
    %v866 = vunpack.c.l.b16 %v204
    %v867 = vunpack.c.h.b16 %v204
    %v868 = vunpack.c.l.b16 %v205
    %v869 = vunpack.c.h.b16 %v205
    %v870 = vunpack.c.l.b16 %v206
    %v871 = vunpack.c.h.b16 %v206
    %v872 = vunpack.c.l.b16 %v207
    %v873 = vunpack.c.h.b16 %v207
    %v874 = vunpack.c.l.b16 %v208
    %v875 = vunpack.c.h.b16 %v208
    %v876 = vunpack.c.l.b16 %v209
    %v877 = vunpack.c.h.b16 %v209
    %v878 = vunpack.c.l.b16 %v210
    %v879 = vunpack.c.h.b16 %v210
    %v880 = vunpack.c.l.b16 %v211
    %v881 = vunpack.c.h.b16 %v211
    %v882 = vunpack.c.l.b16 %v212
    %v883 = vunpack.c.h.b16 %v212
    %v884 = vunpack.c.l.b16 %v213
    %v885 = vunpack.c.h.b16 %v213
    %v886 = vunpack.c.l.b16 %v214
    %v887 = vunpack.c.h.b16 %v214
    %v888 = vunpack.c.l.b16 %v215
    %v889 = vunpack.c.h.b16 %v215
    %v890 = vunpack.c.l.b16 %v216
    %v891 = vunpack.c.h.b16 %v216
    %v892 = vunpack.c.l.b16 %v217
    %v893 = vunpack.c.h.b16 %v217
    %v894 = vunpack.c.l.b16 %v218
    %v895 = vunpack.c.h.b16 %v218
    %v896 = vunpack.c.l.b16 %v219
    %v897 = vunpack.c.h.b16 %v219
    %v898 = vunpack.c.l.b16 %v220
    %v899 = vunpack.c.h.b16 %v220
    %v900 = vunpack.c.l.b16 %v221
    %v901 = vunpack.c.h.b16 %v221
    %v902 = vunpack.c.l.b16 %v222
    %v903 = vunpack.c.h.b16 %v222
    %v904 = vunpack.c.l.b16 %v223
    %v905 = vunpack.c.h.b16 %v223
    %v906 = vunpack.c.l.b16 %v224
    %v907 = vunpack.c.h.b16 %v224
    %v908 = vunpack.c.l.b16 %v225
    %v909 = vunpack.c.h.b16 %v225
    %v910 = vunpack.c.l.b16 %v226
    %v911 = vunpack.c.h.b16 %v226
    %v912 = vunpack.c.l.b16 %v227
    %v913 = vunpack.c.h.b16 %v227
    %v914 = vunpack.c.l.b16 %v228
    %v915 = vunpack.c.h.b16 %v228
    %v916 = vunpack.c.l.b16 %v229
    %v917 = vunpack.c.h.b16 %v229
    %v918 = vunpack.c.l.b16 %v230
    %v919 = vunpack.c.h.b16 %v230
    %v920 = vunpack.c.l.b16 %v231
    %v921 = vunpack.c.h.b16 %v231
    %v922 = vunpack.c.l.b16 %v232
    %v923 = vunpack.c.h.b16 %v232
    %v924 = vunpack.c.l.b16 %v233
    %v925 = vunpack.c.h.b16 %v233
    %v926 = vunpack.c.l.b16 %v234
    %v927 = vunpack.c.h.b16 %v234
    %v928 = vunpack.c.l.b16 %v235
    %v929 = vunpack.c.h.b16 %v235
    %v930 = vunpack.c.l.b16 %v236
    %v931 = vunpack.c.h.b16 %v236
    %v932 = vunpack.c.l.b16 %v237
    %v933 = vunpack.c.h.b16 %v237
    %v934 = vunpack.c.l.b16 %v238
    %v935 = vunpack.c.h.b16 %v238
    %v936 = vunpack.c.l.b16 %v239
    %v937 = vunpack.c.h.b16 %v239
    %v938 = vunpack.c.l.b16 %v240
    %v939 = vunpack.c.h.b16 %v240
    %v940 = vunpack.c.l.b16 %v241
    %v941 = vunpack.c.h.b16 %v241
    %v942 = vunpack.c.l.b16 %v242
    %v943 = vunpack.c.h.b16 %v242
    %v944 = vunpack.c.l.b16 %v243
    %v945 = vunpack.c.h.b16 %v243
    %v946 = vunpack.c.l.b16 %v244
    %v947 = vunpack.c.h.b16 %v244
    %v948 = vunpack.c.l.b16 %v245
    %v949 = vunpack.c.h.b16 %v245
    %v950 = vunpack.c.l.b16 %v246
    %v951 = vunpack.c.h.b16 %v246
    %v952 = vunpack.c.l.b16 %v247
    %v953 = vunpack.c.h.b16 %v247
    %v954 = vunpack.c.l.b16 %v248
    %v955 = vunpack.c.h.b16 %v248
    %v956 = vunpack.c.l.b16 %v249
    %v957 = vunpack.c.h.b16 %v249
    %v958 = vunpack.c.l.b16 %v250
    %v959 = vunpack.c.h.b16 %v250
    %v960 = vunpack.c.l.b16 %v251
    %v961 = vunpack.c.h.b16 %v251
    %v962 = vunpack.c.l.b16 %v252
    %v963 = vunpack.c.h.b16 %v252
    %v964 = vunpack.c.l.b16 %v253
    %v965 = vunpack.c.h.b16 %v253
    %v966 = vunpack.c.l.b16 %v254
    %v967 = vunpack.c.h.b16 %v254
    %v968 = vunpack.c.l.b16 %v255
    %v969 = vunpack.c.h.b16 %v255
    %v970 = vunpack.c.l.b16 %v256
    %v971 = vunpack.c.h.b16 %v256
    %v972 = vunpack.c.l.b16 %v257
    %v973 = vunpack.c.h.b16 %v257
    %v974 = vunpack.c.l.b16 %v258
    %v975 = vunpack.c.h.b16 %v258
    %v976 = vunpack.c.l.b16 %v259
    %v977 = vunpack.c.h.b16 %v259
    %v978 = vunpack.c.l.b16 %v260
    %v979 = vunpack.c.h.b16 %v260
    %v980 = vunpack.c.l.b16 %v261
    %v981 = vunpack.c.h.b16 %v261
    %v982 = vunpack.c.l.b16 %v262
    %v983 = vunpack.c.h.b16 %v262
    %v984 = vunpack.c.l.b16 %v263
    %v985 = vunpack.c.h.b16 %v263
    %v986 = vunpack.c.l.b16 %v264
    %v987 = vunpack.c.h.b16 %v264
    %v988 = vunpack.c.l.b16 %v265
    %v989 = vunpack.c.h.b16 %v265
    %v990 = vunpack.c.l.b16 %v266
    %v991 = vunpack.c.h.b16 %v266
    %v992 = vunpack.c.l.b16 %v267
    %v993 = vunpack.c.h.b16 %v267
    %v994 = vunpack.c.l.b16 %v268
    %v995 = vunpack.c.h.b16 %v268
    %v996 = vunpack.c.l.b16 %v269
    %v997 = vunpack.c.h.b16 %v269
    %v998 = vunpack.c.l.b16 %v270
    %v999 = vunpack.c.h.b16 %v270
    %v1000 = vunpack.c.l.b16 %v271
    %v1001 = vunpack.c.h.b16 %v271
    %v1002 = vunpack.c.l.b16 %v272
    %v1003 = vunpack.c.h.b16 %v272
    %v1004 = vunpack.c.l.b16 %v273
    %v1005 = vunpack.c.h.b16 %v273
    %v1006 = vunpack.c.l.b16 %v274
    %v1007 = vunpack.c.h.b16 %v274
    %v1008 = vunpack.c.l.b16 %v275
    %v1009 = vunpack.c.h.b16 %v275
    %v1010 = vunpack.c.l.b16 %v276
    %v1011 = vunpack.c.h.b16 %v276
    %v1012 = vunpack.c.l.b16 %v277
    %v1013 = vunpack.c.h.b16 %v277
    %v1014 = vunpack.c.l.b16 %v278
    %v1015 = vunpack.c.h.b16 %v278
    %v1016 = vunpack.c.l.b16 %v279
    %v1017 = vunpack.c.h.b16 %v279
    %v1018 = vunpack.c.l.b16 %v280
    %v1019 = vunpack.c.h.b16 %v280
    %v1020 = vunpack.c.l.b16 %v281
    %v1021 = vunpack.c.h.b16 %v281
    %v1022 = vunpack.c.l.b16 %v282
    %v1023 = vunpack.c.h.b16 %v282
    %v1024 = vunpack.c.l.b16 %v283
    %v1025 = vunpack.c.h.b16 %v283
    %v1026 = vunpack.c.l.b16 %v284
    %v1027 = vunpack.c.h.b16 %v284
    %v1028 = vunpack.c.l.b16 %v285
    %v1029 = vunpack.c.h.b16 %v285
    %v1030 = vunpack.c.l.b16 %v286
    %v1031 = vunpack.c.h.b16 %v286
    %v1032 = vunpack.c.l.b16 %v287
    %v1033 = vunpack.c.h.b16 %v287
    %v1034 = vunpack.c.l.b16 %v288
    %v1035 = vunpack.c.h.b16 %v288
    %v1036 = vunpack.c.l.b16 %v289
    %v1037 = vunpack.c.h.b16 %v289
    %v1038 = vunpack.c.l.b16 %v290
    %v1039 = vunpack.c.h.b16 %v290
    %v1040 = vunpack.c.l.b16 %v291
    %v1041 = vunpack.c.h.b16 %v291
    %v1042 = vunpack.c.l.b16 %v292
    %v1043 = vunpack.c.h.b16 %v292
    %v1044 = vunpack.c.l.b16 %v293
    %v1045 = vunpack.c.h.b16 %v293
    %v1046 = vunpack.c.l.b16 %v294
    %v1047 = vunpack.c.h.b16 %v294
    %v1048 = vunpack.c.l.b16 %v295
    %v1049 = vunpack.c.h.b16 %v295
    %v1050 = vunpack.c.l.b16 %v296
    %v1051 = vunpack.c.h.b16 %v296
    %v1052 = vunpack.c.l.b16 %v297
    %v1053 = vunpack.c.h.b16 %v297
    %v1054 = vunpack.c.l.b16 %v298
    %v1055 = vunpack.c.h.b16 %v298
    %v1056 = vunpack.c.l.b16 %v299
    %v1057 = vunpack.c.h.b16 %v299
    %v1058 = vunpack.c.l.b16 %v300
    %v1059 = vunpack.c.h.b16 %v300
    %v1060 = vunpack.c.l.b16 %v301
    %v1061 = vunpack.c.h.b16 %v301
    %v1062 = vunpack.c.l.b16 %v302
    %v1063 = vunpack.c.h.b16 %v302
    %v1064 = vunpack.c.l.b16 %v303
    %v1065 = vunpack.c.h.b16 %v303
    %v1066 = vunpack.c.l.b16 %v304
    %v1067 = vunpack.c.h.b16 %v304
    %v1068 = vunpack.c.l.b16 %v305
    %v1069 = vunpack.c.h.b16 %v305
    %v1070 = vunpack.c.l.b16 %v306
    %v1071 = vunpack.c.h.b16 %v306
    %v1072 = vunpack.c.l.b16 %v307
    %v1073 = vunpack.c.h.b16 %v307
    %v1074 = vunpack.c.l.b16 %v308
    %v1075 = vunpack.c.h.b16 %v308
    %v1076 = vunpack.c.l.b16 %v309
    %v1077 = vunpack.c.h.b16 %v309
    %v1078 = vunpack.c.l.b16 %v310
    %v1079 = vunpack.c.h.b16 %v310
    %v1080 = vunpack.c.l.b16 %v311
    %v1081 = vunpack.c.h.b16 %v311
    %v1082 = vunpack.c.l.b16 %v312
    %v1083 = vunpack.c.h.b16 %v312
    %v1084 = vunpack.c.l.b16 %v313
    %v1085 = vunpack.c.h.b16 %v313
    %v1086 = vunpack.c.l.b16 %v314
    %v1087 = vunpack.c.h.b16 %v314
    %v1088 = vunpack.c.l.b16 %v315
    %v1089 = vunpack.c.h.b16 %v315
    %v1090 = vunpack.c.l.b16 %v316
    %v1091 = vunpack.c.h.b16 %v316
    %v1092 = vunpack.c.l.b16 %v317
    %v1093 = vunpack.c.h.b16 %v317
    %v1094 = vunpack.c.l.b16 %v318
    %v1095 = vunpack.c.h.b16 %v318
    %v1096 = vunpack.c.l.b16 %v319
    %v1097 = vunpack.c.h.b16 %v319
    %v1098 = vunpack.c.l.b16 %v320
    %v1099 = vunpack.c.h.b16 %v320
    %v1100 = vunpack.c.l.b16 %v321
    %v1101 = vunpack.c.h.b16 %v321
    %v1102 = vunpack.c.l.b16 %v322
    %v1103 = vunpack.c.h.b16 %v322
    %v1104 = vunpack.c.l.b16 %v323
    %v1105 = vunpack.c.h.b16 %v323
    %v1106 = vunpack.c.l.b16 %v324
    %v1107 = vunpack.c.h.b16 %v324
    %v1108 = vunpack.c.l.b16 %v325
    %v1109 = vunpack.c.h.b16 %v325
    %v1110 = vunpack.c.l.b16 %v326
    %v1111 = vunpack.c.h.b16 %v326
    %v1112 = vunpack.c.l.b16 %v327
    %v1113 = vunpack.c.h.b16 %v327
    %v1114 = vunpack.c.l.b16 %v328
    %v1115 = vunpack.c.h.b16 %v328
    %v1116 = vunpack.c.l.b16 %v329
    %v1117 = vunpack.c.h.b16 %v329
    %v1118 = vunpack.c.l.b16 %v330
    %v1119 = vunpack.c.h.b16 %v330
    %v1120 = vunpack.c.l.b16 %v331
    %v1121 = vunpack.c.h.b16 %v331
    %v1122 = vunpack.c.l.b16 %v332
    %v1123 = vunpack.c.h.b16 %v332
    %v1124 = vunpack.c.l.b16 %v333
    %v1125 = vunpack.c.h.b16 %v333
    %v1126 = vunpack.c.l.b16 %v334
    %v1127 = vunpack.c.h.b16 %v334
    %v1128 = vunpack.c.l.b16 %v335
    %v1129 = vunpack.c.h.b16 %v335
    %v1130 = vunpack.c.l.b16 %v336
    %v1131 = vunpack.c.h.b16 %v336
    %v1132 = vunpack.c.l.b16 %v337
    %v1133 = vunpack.c.h.b16 %v337
    %v1134 = vunpack.c.l.b16 %v338
    %v1135 = vunpack.c.h.b16 %v338
    %v1136 = vunpack.c.l.b16 %v339
    %v1137 = vunpack.c.h.b16 %v339
    %v1138 = vunpack.c.l.b16 %v340
    %v1139 = vunpack.c.h.b16 %v340
    %v1140 = vunpack.c.l.b16 %v341
    %v1141 = vunpack.c.h.b16 %v341
    %v1142 = vunpack.c.l.b16 %v342
    %v1143 = vunpack.c.h.b16 %v342
    %v1144 = vunpack.c.l.b16 %v343
    %v1145 = vunpack.c.h.b16 %v343
    %v1146 = vunpack.c.l.b16 %v344
    %v1147 = vunpack.c.h.b16 %v344
    %v1148 = vunpack.c.l.b16 %v345
    %v1149 = vunpack.c.h.b16 %v345
    %v1150 = vunpack.c.l.b16 %v346
    %v1151 = vunpack.c.h.b16 %v346
    %v1152 = vunpack.c.l.b16 %v347
    %v1153 = vunpack.c.h.b16 %v347
    %v1154 = vunpack.c.l.b16 %v348
    %v1155 = vunpack.c.h.b16 %v348
    %v1156 = vunpack.c.l.b16 %v349
    %v1157 = vunpack.c.h.b16 %v349
    %v1158 = vunpack.c.l.b16 %v350
    %v1159 = vunpack.c.h.b16 %v350
    %v1160 = vunpack.c.l.b16 %v351
    %v1161 = vunpack.c.h.b16 %v351
    %v1162 = vunpack.c.l.b16 %v352
    %v1163 = vunpack.c.h.b16 %v352
    %v1164 = vunpack.c.l.b16 %v353
    %v1165 = vunpack.c.h.b16 %v353
    %v1166 = vunpack.c.l.b16 %v354
    %v1167 = vunpack.c.h.b16 %v354
    %v1168 = vunpack.c.l.b16 %v355
    %v1169 = vunpack.c.h.b16 %v355
    %v1170 = vunpack.c.l.b16 %v356
    %v1171 = vunpack.c.h.b16 %v356
    %v1172 = vunpack.c.l.b16 %v357
    %v1173 = vunpack.c.h.b16 %v357
    %v1174 = vunpack.c.l.b16 %v358
    %v1175 = vunpack.c.h.b16 %v358
    %v1176 = vunpack.c.l.b16 %v359
    %v1177 = vunpack.c.h.b16 %v359
    %v1178 = vunpack.c.l.b16 %v360
    %v1179 = vunpack.c.h.b16 %v360
    %v1180 = vunpack.c.l.b16 %v361
    %v1181 = vunpack.c.h.b16 %v361
    %v1182 = vunpack.c.l.b16 %v362
    %v1183 = vunpack.c.h.b16 %v362
    %v1184 = vunpack.c.l.b16 %v363
    %v1185 = vunpack.c.h.b16 %v363
    %v1186 = vunpack.c.l.b16 %v364
    %v1187 = vunpack.c.h.b16 %v364
    %v1188 = vunpack.c.l.b16 %v365
    %v1189 = vunpack.c.h.b16 %v365
    %v1190 = vunpack.c.l.b16 %v366
    %v1191 = vunpack.c.h.b16 %v366
    %v1192 = vunpack.c.l.b16 %v367
    %v1193 = vunpack.c.h.b16 %v367
    %v1194 = vunpack.c.l.b16 %v368
    %v1195 = vunpack.c.h.b16 %v368
    %v1196 = vunpack.c.l.b16 %v369
    %v1197 = vunpack.c.h.b16 %v369
    %v1198 = vunpack.c.l.b16 %v370
    %v1199 = vunpack.c.h.b16 %v370
    %v1200 = vunpack.c.l.b16 %v371
    %v1201 = vunpack.c.h.b16 %v371
    %v1202 = vunpack.c.l.b16 %v372
    %v1203 = vunpack.c.h.b16 %v372
    %v1204 = vunpack.c.l.b16 %v373
    %v1205 = vunpack.c.h.b16 %v373
    %v1206 = vunpack.c.l.b16 %v374
    %v1207 = vunpack.c.h.b16 %v374
    %v1208 = vunpack.c.l.b16 %v375
    %v1209 = vunpack.c.h.b16 %v375
    %v1210 = vunpack.c.l.b16 %v376
    %v1211 = vunpack.c.h.b16 %v376
    %v1212 = vunpack.c.l.b16 %v377
    %v1213 = vunpack.c.h.b16 %v377
    %v1214 = vunpack.c.l.b16 %v378
    %v1215 = vunpack.c.h.b16 %v378
    %v1216 = vunpack.c.l.b16 %v379
    %v1217 = vunpack.c.h.b16 %v379
    %v1218 = vunpack.c.l.b16 %v380
    %v1219 = vunpack.c.h.b16 %v380
    %v1220 = vunpack.c.l.b16 %v381
    %v1221 = vunpack.c.h.b16 %v381
    %v1222 = vunpack.c.l.b16 %v382
    %v1223 = vunpack.c.h.b16 %v382
    %v1224 = vunpack.c.l.b16 %v383
    %v1225 = vunpack.c.h.b16 %v383
    %v1226 = vunpack.c.l.b16 %v384
    %v1227 = vunpack.c.h.b16 %v384
    %v1228 = vunpack.c.l.b16 %v385
    %v1229 = vunpack.c.h.b16 %v385
    %v1230 = vunpack.c.l.b16 %v386
    %v1231 = vunpack.c.h.b16 %v386
    %v1232 = vunpack.c.l.b16 %v387
    %v1233 = vunpack.c.h.b16 %v387
    %v1234 = vunpack.c.l.b16 %v388
    %v1235 = vunpack.c.h.b16 %v388
    %v1236 = vunpack.c.l.b16 %v389
    %v1237 = vunpack.c.h.b16 %v389
    %v1238 = vunpack.c.l.b16 %v390
    %v1239 = vunpack.c.h.b16 %v390
    %v1240 = vunpack.c.l.b16 %v391
    %v1241 = vunpack.c.h.b16 %v391
    %v1242 = vunpack.c.l.b16 %v392
    %v1243 = vunpack.c.h.b16 %v392
    %v1244 = vunpack.c.l.b16 %v393
    %v1245 = vunpack.c.h.b16 %v393
    %v1246 = vunpack.c.l.b16 %v394
    %v1247 = vunpack.c.h.b16 %v394
    %v1248 = vunpack.c.l.b16 %v395
    %v1249 = vunpack.c.h.b16 %v395
    %v1250 = vunpack.c.l.b16 %v396
    %v1251 = vunpack.c.h.b16 %v396
    %v1252 = vunpack.c.l.b16 %v397
    %v1253 = vunpack.c.h.b16 %v397
    %v1254 = vunpack.c.l.b16 %v398
    %v1255 = vunpack.c.h.b16 %v398
    %v1256 = vunpack.c.l.b16 %v399
    %v1257 = vunpack.c.h.b16 %v399
    %v1258 = vunpack.c.l.b16 %v400
    %v1259 = vunpack.c.h.b16 %v400
    %v1260 = vunpack.c.l.b16 %v401
    %v1261 = vunpack.c.h.b16 %v401
    %v1262 = vunpack.c.l.b16 %v402
    %v1263 = vunpack.c.h.b16 %v402
    %v1264 = vunpack.c.l.b16 %v403
    %v1265 = vunpack.c.h.b16 %v403
    %v1266 = vunpack.c.l.b16 %v404
    %v1267 = vunpack.c.h.b16 %v404
    %v1268 = vunpack.c.l.b16 %v405
    %v1269 = vunpack.c.h.b16 %v405
    %v1270 = vunpack.c.l.b16 %v406
    %v1271 = vunpack.c.h.b16 %v406
    %v1272 = vunpack.c.l.b16 %v407
    %v1273 = vunpack.c.h.b16 %v407
    %v1274 = vunpack.c.l.b16 %v408
    %v1275 = vunpack.c.h.b16 %v408
    %v1276 = vunpack.c.l.b16 %v409
    %v1277 = vunpack.c.h.b16 %v409
    %v1278 = vunpack.c.l.b16 %v410
    %v1279 = vunpack.c.h.b16 %v410
    %v1280 = vunpack.c.l.b16 %v411
    %v1281 = vunpack.c.h.b16 %v411
    %v1282 = vunpack.c.l.b16 %v412
    %v1283 = vunpack.c.h.b16 %v412
    %v1284 = vunpack.c.l.b16 %v413
    %v1285 = vunpack.c.h.b16 %v413
    %v1286 = vunpack.c.l.b16 %v414
    %v1287 = vunpack.c.h.b16 %v414
    %v1288 = vunpack.c.l.b16 %v415
    %v1289 = vunpack.c.h.b16 %v415
    %v1290 = vunpack.c.l.b16 %v416
    %v1291 = vunpack.c.h.b16 %v416
    %v1292 = vunpack.c.l.b16 %v417
    %v1293 = vunpack.c.h.b16 %v417
    %v1294 = vunpack.c.l.b16 %v418
    %v1295 = vunpack.c.h.b16 %v418
    %v1296 = vunpack.c.l.b16 %v419
    %v1297 = vunpack.c.h.b16 %v419
    %v1298 = vpack.c.b16 %v728, %v722
    %v1299 = vpack.c.b16 %v729, %v723
    %v1300 = vpack.c.b16 %v730, %v724
    %v1301 = vpack.c.b16 %v731, %v725
    %v1302 = vpack.c.b16 %v732, %v726
    %v1303 = vpack.c.b16 %v733, %v727
    %v1304 = vpack.c.b16 %v740, %v734
    %v1305 = vpack.c.b16 %v741, %v735
    %v1306 = vpack.c.b16 %v742, %v736
    %v1307 = vpack.c.b16 %v743, %v737
    %v1308 = vpack.c.b16 %v744, %v738
    %v1309 = vpack.c.b16 %v745, %v739
    %v1310 = vpack.c.b16 %v752, %v746
    %v1311 = vpack.c.b16 %v753, %v747
    %v1312 = vpack.c.b16 %v754, %v748
    %v1313 = vpack.c.b16 %v755, %v749
    %v1314 = vpack.c.b16 %v756, %v750
    %v1315 = vpack.c.b16 %v757, %v751
    %v1316 = vpack.c.b16 %v764, %v758
    %v1317 = vpack.c.b16 %v765, %v759
    %v1318 = vpack.c.b16 %v766, %v760
    %v1319 = vpack.c.b16 %v767, %v761
    %v1320 = vpack.c.b16 %v768, %v762
    %v1321 = vpack.c.b16 %v769, %v763
    %v1322 = vpack.c.b16 %v776, %v770
    %v1323 = vpack.c.b16 %v777, %v771
    %v1324 = vpack.c.b16 %v778, %v772
    %v1325 = vpack.c.b16 %v779, %v773
    %v1326 = vpack.c.b16 %v780, %v774
    %v1327 = vpack.c.b16 %v781, %v775
    %v1328 = vpack.c.b16 %v788, %v782
    %v1329 = vpack.c.b16 %v789, %v783
    %v1330 = vpack.c.b16 %v790, %v784
    %v1331 = vpack.c.b16 %v791, %v785
    %v1332 = vpack.c.b16 %v792, %v786
    %v1333 = vpack.c.b16 %v793, %v787
    %v1334 = vpack.c.b16 %v800, %v794
    %v1335 = vpack.c.b16 %v801, %v795
    %v1336 = vpack.c.b16 %v802, %v796
    %v1337 = vpack.c.b16 %v803, %v797
    %v1338 = vpack.c.b16 %v804, %v798
    %v1339 = vpack.c.b16 %v805, %v799
    %v1340 = vpack.c.b16 %v812, %v806
    %v1341 = vpack.c.b16 %v813, %v807
    %v1342 = vpack.c.b16 %v814, %v808
    %v1343 = vpack.c.b16 %v815, %v809
    %v1344 = vpack.c.b16 %v816, %v810
    %v1345 = vpack.c.b16 %v817, %v811
    %v1346 = vpack.c.b16 %v824, %v818
    %v1347 = vpack.c.b16 %v825, %v819
    %v1348 = vpack.c.b16 %v826, %v820
    %v1349 = vpack.c.b16 %v827, %v821
    %v1350 = vpack.c.b16 %v828, %v822
    %v1351 = vpack.c.b16 %v829, %v823
    %v1352 = vpack.c.b16 %v836, %v830
    %v1353 = vpack.c.b16 %v837, %v831
    %v1354 = vpack.c.b16 %v838, %v832
    %v1355 = vpack.c.b16 %v839, %v833
    %v1356 = vpack.c.b16 %v840, %v834
    %v1357 = vpack.c.b16 %v841, %v835
    %v1358 = vpack.c.b16 %v848, %v842
    %v1359 = vpack.c.b16 %v849, %v843
    %v1360 = vpack.c.b16 %v850, %v844
    %v1361 = vpack.c.b16 %v851, %v845
    %v1362 = vpack.c.b16 %v852, %v846
    %v1363 = vpack.c.b16 %v853, %v847
    %v1364 = vpack.c.b16 %v860, %v854
    %v1365 = vpack.c.b16 %v861, %v855
    %v1366 = vpack.c.b16 %v862, %v856
    %v1367 = vpack.c.b16 %v863, %v857
    %v1368 = vpack.c.b16 %v864, %v858
    %v1369 = vpack.c.b16 %v865, %v859
    %v1370 = vpack.c.b16 %v872, %v866
    %v1371 = vpack.c.b16 %v873, %v867
    %v1372 = vpack.c.b16 %v874, %v868
    %v1373 = vpack.c.b16 %v875, %v869
    %v1374 = vpack.c.b16 %v876, %v870
    %v1375 = vpack.c.b16 %v877, %v871
    %v1376 = vpack.c.b16 %v884, %v878
    %v1377 = vpack.c.b16 %v885, %v879
    %v1378 = vpack.c.b16 %v886, %v880
    %v1379 = vpack.c.b16 %v887, %v881
    %v1380 = vpack.c.b16 %v888, %v882
    %v1381 = vpack.c.b16 %v889, %v883
    %v1382 = vpack.c.b16 %v896, %v890
    %v1383 = vpack.c.b16 %v897, %v891
    %v1384 = vpack.c.b16 %v898, %v892
    %v1385 = vpack.c.b16 %v899, %v893
    %v1386 = vpack.c.b16 %v900, %v894
    %v1387 = vpack.c.b16 %v901, %v895
    %v1388 = vpack.c.b16 %v908, %v902
    %v1389 = vpack.c.b16 %v909, %v903
    %v1390 = vpack.c.b16 %v910, %v904
    %v1391 = vpack.c.b16 %v911, %v905
    %v1392 = vpack.c.b16 %v912, %v906
    %v1393 = vpack.c.b16 %v913, %v907
    %v1394 = vpack.c.b16 %v920, %v914
    %v1395 = vpack.c.b16 %v921, %v915
    %v1396 = vpack.c.b16 %v922, %v916
    %v1397 = vpack.c.b16 %v923, %v917
    %v1398 = vpack.c.b16 %v924, %v918
    %v1399 = vpack.c.b16 %v925, %v919
    %v1400 = vpack.c.b16 %v932, %v926
    %v1401 = vpack.c.b16 %v933, %v927
    %v1402 = vpack.c.b16 %v934, %v928
    %v1403 = vpack.c.b16 %v935, %v929
    %v1404 = vpack.c.b16 %v936, %v930
    %v1405 = vpack.c.b16 %v937, %v931
    %v1406 = vpack.c.b16 %v944, %v938
    %v1407 = vpack.c.b16 %v945, %v939
    %v1408 = vpack.c.b16 %v946, %v940
    %v1409 = vpack.c.b16 %v947, %v941
    %v1410 = vpack.c.b16 %v948, %v942
    %v1411 = vpack.c.b16 %v949, %v943
    %v1412 = vpack.c.b16 %v956, %v950
    %v1413 = vpack.c.b16 %v957, %v951
    %v1414 = vpack.c.b16 %v958, %v952
    %v1415 = vpack.c.b16 %v959, %v953
    %v1416 = vpack.c.b16 %v960, %v954
    %v1417 = vpack.c.b16 %v961, %v955
    %v1418 = vpack.c.b16 %v968, %v962
    %v1419 = vpack.c.b16 %v969, %v963
    %v1420 = vpack.c.b16 %v970, %v964
    %v1421 = vpack.c.b16 %v971, %v965
    %v1422 = vpack.c.b16 %v972, %v966
    %v1423 = vpack.c.b16 %v973, %v967
    %v1424 = vpack.c.b16 %v980, %v974
    %v1425 = vpack.c.b16 %v981, %v975
    %v1426 = vpack.c.b16 %v982, %v976
    %v1427 = vpack.c.b16 %v983, %v977
    %v1428 = vpack.c.b16 %v984, %v978
    %v1429 = vpack.c.b16 %v985, %v979
    %v1430 = vpack.c.b16 %v992, %v986
    %v1431 = vpack.c.b16 %v993, %v987
    %v1432 = vpack.c.b16 %v994, %v988
    %v1433 = vpack.c.b16 %v995, %v989
    %v1434 = vpack.c.b16 %v996, %v990
    %v1435 = vpack.c.b16 %v997, %v991
    %v1436 = vpack.c.b16 %v1004, %v998
    %v1437 = vpack.c.b16 %v1005, %v999
    %v1438 = vpack.c.b16 %v1006, %v1000
    %v1439 = vpack.c.b16 %v1007, %v1001
    %v1440 = vpack.c.b16 %v1008, %v1002
    %v1441 = vpack.c.b16 %v1009, %v1003
    %v1442 = vpack.c.b16 %v1016, %v1010
    %v1443 = vpack.c.b16 %v1017, %v1011
    %v1444 = vpack.c.b16 %v1018, %v1012
    %v1445 = vpack.c.b16 %v1019, %v1013
    %v1446 = vpack.c.b16 %v1020, %v1014
    %v1447 = vpack.c.b16 %v1021, %v1015
    %v1448 = vpack.c.b16 %v1028, %v1022
    %v1449 = vpack.c.b16 %v1029, %v1023
    %v1450 = vpack.c.b16 %v1030, %v1024
    %v1451 = vpack.c.b16 %v1031, %v1025
    %v1452 = vpack.c.b16 %v1032, %v1026
    %v1453 = vpack.c.b16 %v1033, %v1027
    %v1454 = vpack.c.b16 %v1040, %v1034
    %v1455 = vpack.c.b16 %v1041, %v1035
    %v1456 = vpack.c.b16 %v1042, %v1036
    %v1457 = vpack.c.b16 %v1043, %v1037
    %v1458 = vpack.c.b16 %v1044, %v1038
    %v1459 = vpack.c.b16 %v1045, %v1039
    %v1460 = vpack.c.b16 %v1052, %v1046
    %v1461 = vpack.c.b16 %v1053, %v1047
    %v1462 = vpack.c.b16 %v1054, %v1048
    %v1463 = vpack.c.b16 %v1055, %v1049
    %v1464 = vpack.c.b16 %v1056, %v1050
    %v1465 = vpack.c.b16 %v1057, %v1051
    %v1466 = vpack.c.b16 %v1064, %v1058
    %v1467 = vpack.c.b16 %v1065, %v1059
    %v1468 = vpack.c.b16 %v1066, %v1060
    %v1469 = vpack.c.b16 %v1067, %v1061
    %v1470 = vpack.c.b16 %v1068, %v1062
    %v1471 = vpack.c.b16 %v1069, %v1063
    %v1472 = vpack.c.b16 %v1076, %v1070
    %v1473 = vpack.c.b16 %v1077, %v1071
    %v1474 = vpack.c.b16 %v1078, %v1072
    %v1475 = vpack.c.b16 %v1079, %v1073
    %v1476 = vpack.c.b16 %v1080, %v1074
    %v1477 = vpack.c.b16 %v1081, %v1075
    %v1478 = vpack.c.b16 %v1088, %v1082
    %v1479 = vpack.c.b16 %v1089, %v1083
    %v1480 = vpack.c.b16 %v1090, %v1084
    %v1481 = vpack.c.b16 %v1091, %v1085
    %v1482 = vpack.c.b16 %v1092, %v1086
    %v1483 = vpack.c.b16 %v1093, %v1087
    %v1484 = vpack.c.b16 %v1100, %v1094
    %v1485 = vpack.c.b16 %v1101, %v1095
    %v1486 = vpack.c.b16 %v1102, %v1096
    %v1487 = vpack.c.b16 %v1103, %v1097
    %v1488 = vpack.c.b16 %v1104, %v1098
    %v1489 = vpack.c.b16 %v1105, %v1099
    %v1490 = vpack.c.b16 %v1112, %v1106
    %v1491 = vpack.c.b16 %v1113, %v1107
    %v1492 = vpack.c.b16 %v1114, %v1108
    %v1493 = vpack.c.b16 %v1115, %v1109
    %v1494 = vpack.c.b16 %v1116, %v1110
    %v1495 = vpack.c.b16 %v1117, %v1111
    %v1496 = vpack.c.b16 %v1124, %v1118
    %v1497 = vpack.c.b16 %v1125, %v1119
    %v1498 = vpack.c.b16 %v1126, %v1120
    %v1499 = vpack.c.b16 %v1127, %v1121
    %v1500 = vpack.c.b16 %v1128, %v1122
    %v1501 = vpack.c.b16 %v1129, %v1123
    %v1502 = vpack.c.b16 %v1136, %v1130
    %v1503 = vpack.c.b16 %v1137, %v1131
    %v1504 = vpack.c.b16 %v1138, %v1132
    %v1505 = vpack.c.b16 %v1139, %v1133
    %v1506 = vpack.c.b16 %v1140, %v1134
    %v1507 = vpack.c.b16 %v1141, %v1135
    %v1508 = vpack.c.b16 %v1148, %v1142
    %v1509 = vpack.c.b16 %v1149, %v1143
    %v1510 = vpack.c.b16 %v1150, %v1144
    %v1511 = vpack.c.b16 %v1151, %v1145
    %v1512 = vpack.c.b16 %v1152, %v1146
    %v1513 = vpack.c.b16 %v1153, %v1147
    %v1514 = vpack.c.b16 %v1160, %v1154
    %v1515 = vpack.c.b16 %v1161, %v1155
    %v1516 = vpack.c.b16 %v1162, %v1156
    %v1517 = vpack.c.b16 %v1163, %v1157
    %v1518 = vpack.c.b16 %v1164, %v1158
    %v1519 = vpack.c.b16 %v1165, %v1159
    %v1520 = vpack.c.b16 %v1172, %v1166
    %v1521 = vpack.c.b16 %v1173, %v1167
    %v1522 = vpack.c.b16 %v1174, %v1168
    %v1523 = vpack.c.b16 %v1175, %v1169
    %v1524 = vpack.c.b16 %v1176, %v1170
    %v1525 = vpack.c.b16 %v1177, %v1171
    %v1526 = vpack.c.b16 %v1184, %v1178
    %v1527 = vpack.c.b16 %v1185, %v1179
    %v1528 = vpack.c.b16 %v1186, %v1180
    %v1529 = vpack.c.b16 %v1187, %v1181
    %v1530 = vpack.c.b16 %v1188, %v1182
    %v1531 = vpack.c.b16 %v1189, %v1183
    %v1532 = vpack.c.b16 %v1196, %v1190
    %v1533 = vpack.c.b16 %v1197, %v1191
    %v1534 = vpack.c.b16 %v1198, %v1192
    %v1535 = vpack.c.b16 %v1199, %v1193
    %v1536 = vpack.c.b16 %v1200, %v1194
    %v1537 = vpack.c.b16 %v1201, %v1195
    %v1538 = vpack.c.b16 %v1208, %v1202
    %v1539 = vpack.c.b16 %v1209, %v1203
    %v1540 = vpack.c.b16 %v1210, %v1204
    %v1541 = vpack.c.b16 %v1211, %v1205
    %v1542 = vpack.c.b16 %v1212, %v1206
    %v1543 = vpack.c.b16 %v1213, %v1207
    %v1544 = vpack.c.b16 %v1220, %v1214
    %v1545 = vpack.c.b16 %v1221, %v1215
    %v1546 = vpack.c.b16 %v1222, %v1216
    %v1547 = vpack.c.b16 %v1223, %v1217
    %v1548 = vpack.c.b16 %v1224, %v1218
    %v1549 = vpack.c.b16 %v1225, %v1219
    %v1550 = vpack.c.b16 %v1232, %v1226
    %v1551 = vpack.c.b16 %v1233, %v1227
    %v1552 = vpack.c.b16 %v1234, %v1228
    %v1553 = vpack.c.b16 %v1235, %v1229
    %v1554 = vpack.c.b16 %v1236, %v1230
    %v1555 = vpack.c.b16 %v1237, %v1231
    %v1556 = vpack.c.b16 %v1244, %v1238
    %v1557 = vpack.c.b16 %v1245, %v1239
    %v1558 = vpack.c.b16 %v1246, %v1240
    %v1559 = vpack.c.b16 %v1247, %v1241
    %v1560 = vpack.c.b16 %v1248, %v1242
    %v1561 = vpack.c.b16 %v1249, %v1243
    %v1562 = vpack.c.b16 %v1256, %v1250
    %v1563 = vpack.c.b16 %v1257, %v1251
    %v1564 = vpack.c.b16 %v1258, %v1252
    %v1565 = vpack.c.b16 %v1259, %v1253
    %v1566 = vpack.c.b16 %v1260, %v1254
    %v1567 = vpack.c.b16 %v1261, %v1255
    %v1568 = vpack.c.b16 %v1268, %v1262
    %v1569 = vpack.c.b16 %v1269, %v1263
    %v1570 = vpack.c.b16 %v1270, %v1264
    %v1571 = vpack.c.b16 %v1271, %v1265
    %v1572 = vpack.c.b16 %v1272, %v1266
    %v1573 = vpack.c.b16 %v1273, %v1267
    %v1574 = vpack.c.b16 %v1280, %v1274
    %v1575 = vpack.c.b16 %v1281, %v1275
    %v1576 = vpack.c.b16 %v1282, %v1276
    %v1577 = vpack.c.b16 %v1283, %v1277
    %v1578 = vpack.c.b16 %v1284, %v1278
    %v1579 = vpack.c.b16 %v1285, %v1279
    %v1580 = vpack.c.b16 %v1292, %v1286
    %v1581 = vpack.c.b16 %v1293, %v1287
    %v1582 = vpack.c.b16 %v1294, %v1288
    %v1583 = vpack.c.b16 %v1295, %v1289
    %v1584 = vpack.c.b16 %v1296, %v1290
    %v1585 = vpack.c.b16 %v1297, %v1291
    %1874 = vmatpush.bf16.msra.mxu0 %v1340
    %1875 = vmatpush.bf16.msra.mxu0 %v1334
    %1876 = vmatpush.bf16.msra.mxu0 %v1328
    %1877 = vmatpush.bf16.msra.mxu0 %v1322
    %1878 = vmatpush.bf16.msra.mxu0 %v1316
    %1879 = vmatpush.bf16.msra.mxu0 %v1310
    %1880 = vmatpush.bf16.msra.mxu0 %v1304
    %1881 = vmatpush.bf16.msra.mxu0 %v1298
    %1882 = vmatmul.bf16.gmra.mxu0 %v126
    %v1883 = vpop.f32.mrf.mxu0
    %v1884 = vadd.f32 %v422, %v1883
    %v1885 = vpop.f32.mrf.mxu0
    %v1886 = vadd.f32 %v422, %v1885
    %1887 = vdwg.mxu0
    %1888 = vmatpush.bf16.msra.mxu0 %v1388
    %1889 = vmatpush.bf16.msra.mxu0 %v1382
    %1890 = vmatpush.bf16.msra.mxu0 %v1376
    %1891 = vmatpush.bf16.msra.mxu0 %v1370
    %1892 = vmatpush.bf16.msra.mxu0 %v1364
    %1893 = vmatpush.bf16.msra.mxu0 %v1358
    %1894 = vmatpush.bf16.msra.mxu0 %v1352
    %1895 = vmatpush.bf16.msra.mxu0 %v1346
    %1896 = vmatmul.bf16.gmra.mxu0 %v127
    %v1897 = vpop.f32.mrf.mxu0
    %v1898 = vadd.f32 %v1884, %v1897
    %v1899 = vpop.f32.mrf.mxu0
    %v1900 = vadd.f32 %v1886, %v1899
    %1901 = vdwg.mxu0
    %1902 = vmatpush.bf16.msra.mxu0 %v1436
    %1903 = vmatpush.bf16.msra.mxu0 %v1430
    %1904 = vmatpush.bf16.msra.mxu0 %v1424
    %1905 = vmatpush.bf16.msra.mxu0 %v1418
    %1906 = vmatpush.bf16.msra.mxu0 %v1412
    %1907 = vmatpush.bf16.msra.mxu0 %v1406
    %1908 = vmatpush.bf16.msra.mxu0 %v1400
    %1909 = vmatpush.bf16.msra.mxu0 %v1394
    %1910 = vmatmul.bf16.gmra.mxu0 %v128
    %v1911 = vpop.f32.mrf.mxu0
    %v1912 = vadd.f32 %v1898, %v1911
    %v1913 = vpop.f32.mrf.mxu0
    %v1914 = vadd.f32 %v1900, %v1913
    %1915 = vdwg.mxu0
    %1916 = vmatpush.bf16.msra.mxu0 %v1484
    %1917 = vmatpush.bf16.msra.mxu0 %v1478
    %1918 = vmatpush.bf16.msra.mxu0 %v1472
    %1919 = vmatpush.bf16.msra.mxu0 %v1466
    %1920 = vmatpush.bf16.msra.mxu0 %v1460
    %1921 = vmatpush.bf16.msra.mxu0 %v1454
    %1922 = vmatpush.bf16.msra.mxu0 %v1448
    %1923 = vmatpush.bf16.msra.mxu0 %v1442
    %1924 = vmatmul.bf16.gmra.mxu0 %v129
    %v1925 = vpop.f32.mrf.mxu0
    %v1926 = vadd.f32 %v1912, %v1925
    %v1927 = vpop.f32.mrf.mxu0
    %v1928 = vadd.f32 %v1914, %v1927
    %1929 = vdwg.mxu0
    %1930 = vmatpush.bf16.msra.mxu0 %v1532
    %1931 = vmatpush.bf16.msra.mxu0 %v1526
    %1932 = vmatpush.bf16.msra.mxu0 %v1520
    %1933 = vmatpush.bf16.msra.mxu0 %v1514
    %1934 = vmatpush.bf16.msra.mxu0 %v1508
    %1935 = vmatpush.bf16.msra.mxu0 %v1502
    %1936 = vmatpush.bf16.msra.mxu0 %v1496
    %1937 = vmatpush.bf16.msra.mxu0 %v1490
    %1938 = vmatmul.bf16.gmra.mxu0 %v130
    %v1939 = vpop.f32.mrf.mxu0
    %v1940 = vadd.f32 %v1926, %v1939
    %v1941 = vpop.f32.mrf.mxu0
    %v1942 = vadd.f32 %v1928, %v1941
    %1943 = vdwg.mxu0
    %1944 = vmatpush.bf16.msra.mxu0 %v1580
    %1945 = vmatpush.bf16.msra.mxu0 %v1574
    %1946 = vmatpush.bf16.msra.mxu0 %v1568
    %1947 = vmatpush.bf16.msra.mxu0 %v1562
    %1948 = vmatpush.bf16.msra.mxu0 %v1556
    %1949 = vmatpush.bf16.msra.mxu0 %v1550
    %1950 = vmatpush.bf16.msra.mxu0 %v1544
    %1951 = vmatpush.bf16.msra.mxu0 %v1538
    %1952 = vmatmul.bf16.gmra.mxu0 %v131
    %v1953 = vpop.f32.mrf.mxu0
    %v1954 = vadd.f32 %v1940, %v1953
    %v1955 = vpop.f32.mrf.mxu0
    %v1956 = vadd.f32 %v1942, %v1955
    %1957 = vdwg.mxu0
    %1958 = vmatpush.bf16.msra.mxu0 %v1341
    %1959 = vmatpush.bf16.msra.mxu0 %v1335
    %1960 = vmatpush.bf16.msra.mxu0 %v1329
    %1961 = vmatpush.bf16.msra.mxu0 %v1323
    %1962 = vmatpush.bf16.msra.mxu0 %v1317
    %1963 = vmatpush.bf16.msra.mxu0 %v1311
    %1964 = vmatpush.bf16.msra.mxu0 %v1305
    %1965 = vmatpush.bf16.msra.mxu0 %v1299
    %1966 = vmatmul.bf16.gmra.mxu0 %v126
    %v1967 = vpop.f32.mrf.mxu0
    %v1968 = vadd.f32 %v423, %v1967
    %v1969 = vpop.f32.mrf.mxu0
    %v1970 = vadd.f32 %v423, %v1969
    %1971 = vdwg.mxu0
    %1972 = vmatpush.bf16.msra.mxu0 %v1389
    %1973 = vmatpush.bf16.msra.mxu0 %v1383
    %1974 = vmatpush.bf16.msra.mxu0 %v1377
    %1975 = vmatpush.bf16.msra.mxu0 %v1371
    %1976 = vmatpush.bf16.msra.mxu0 %v1365
    %1977 = vmatpush.bf16.msra.mxu0 %v1359
    %1978 = vmatpush.bf16.msra.mxu0 %v1353
    %1979 = vmatpush.bf16.msra.mxu0 %v1347
    %1980 = vmatmul.bf16.gmra.mxu0 %v127
    %v1981 = vpop.f32.mrf.mxu0
    %v1982 = vadd.f32 %v1968, %v1981
    %v1983 = vpop.f32.mrf.mxu0
    %v1984 = vadd.f32 %v1970, %v1983
    %1985 = vdwg.mxu0
    %1986 = vmatpush.bf16.msra.mxu0 %v1437
    %1987 = vmatpush.bf16.msra.mxu0 %v1431
    %1988 = vmatpush.bf16.msra.mxu0 %v1425
    %1989 = vmatpush.bf16.msra.mxu0 %v1419
    %1990 = vmatpush.bf16.msra.mxu0 %v1413
    %1991 = vmatpush.bf16.msra.mxu0 %v1407
    %1992 = vmatpush.bf16.msra.mxu0 %v1401
    %1993 = vmatpush.bf16.msra.mxu0 %v1395
    %1994 = vmatmul.bf16.gmra.mxu0 %v128
    %v1995 = vpop.f32.mrf.mxu0
    %v1996 = vadd.f32 %v1982, %v1995
    %v1997 = vpop.f32.mrf.mxu0
    %v1998 = vadd.f32 %v1984, %v1997
    %1999 = vdwg.mxu0
    %2000 = vmatpush.bf16.msra.mxu0 %v1485
    %2001 = vmatpush.bf16.msra.mxu0 %v1479
    %2002 = vmatpush.bf16.msra.mxu0 %v1473
    %2003 = vmatpush.bf16.msra.mxu0 %v1467
    %2004 = vmatpush.bf16.msra.mxu0 %v1461
    %2005 = vmatpush.bf16.msra.mxu0 %v1455
    %2006 = vmatpush.bf16.msra.mxu0 %v1449
    %2007 = vmatpush.bf16.msra.mxu0 %v1443
    %2008 = vmatmul.bf16.gmra.mxu0 %v129
    %v2009 = vpop.f32.mrf.mxu0
    %v2010 = vadd.f32 %v1996, %v2009
    %v2011 = vpop.f32.mrf.mxu0
    %v2012 = vadd.f32 %v1998, %v2011
    %2013 = vdwg.mxu0
    %2014 = vmatpush.bf16.msra.mxu0 %v1533
    %2015 = vmatpush.bf16.msra.mxu0 %v1527
    %2016 = vmatpush.bf16.msra.mxu0 %v1521
    %2017 = vmatpush.bf16.msra.mxu0 %v1515
    %2018 = vmatpush.bf16.msra.mxu0 %v1509
    %2019 = vmatpush.bf16.msra.mxu0 %v1503
    %2020 = vmatpush.bf16.msra.mxu0 %v1497
    %2021 = vmatpush.bf16.msra.mxu0 %v1491
    %2022 = vmatmul.bf16.gmra.mxu0 %v130
    %v2023 = vpop.f32.mrf.mxu0
    %v2024 = vadd.f32 %v2010, %v2023
    %v2025 = vpop.f32.mrf.mxu0
    %v2026 = vadd.f32 %v2012, %v2025
    %2027 = vdwg.mxu0
    %2028 = vmatpush.bf16.msra.mxu0 %v1581
    %2029 = vmatpush.bf16.msra.mxu0 %v1575
    %2030 = vmatpush.bf16.msra.mxu0 %v1569
    %2031 = vmatpush.bf16.msra.mxu0 %v1563
    %2032 = vmatpush.bf16.msra.mxu0 %v1557
    %2033 = vmatpush.bf16.msra.mxu0 %v1551
    %2034 = vmatpush.bf16.msra.mxu0 %v1545
    %2035 = vmatpush.bf16.msra.mxu0 %v1539
    %2036 = vmatmul.bf16.gmra.mxu0 %v131
    %v2037 = vpop.f32.mrf.mxu0
    %v2038 = vadd.f32 %v2024, %v2037
    %v2039 = vpop.f32.mrf.mxu0
    %v2040 = vadd.f32 %v2026, %v2039
    %2041 = vdwg.mxu0
    %2042 = vmatpush.bf16.msra.mxu0 %v1342
    %2043 = vmatpush.bf16.msra.mxu0 %v1336
    %2044 = vmatpush.bf16.msra.mxu0 %v1330
    %2045 = vmatpush.bf16.msra.mxu0 %v1324
    %2046 = vmatpush.bf16.msra.mxu0 %v1318
    %2047 = vmatpush.bf16.msra.mxu0 %v1312
    %2048 = vmatpush.bf16.msra.mxu0 %v1306
    %2049 = vmatpush.bf16.msra.mxu0 %v1300
    %2050 = vmatmul.bf16.gmra.mxu0 %v126
    %v2051 = vpop.f32.mrf.mxu0
    %v2052 = vadd.f32 %v424, %v2051
    %v2053 = vpop.f32.mrf.mxu0
    %v2054 = vadd.f32 %v424, %v2053
    %2055 = vdwg.mxu0
    %2056 = vmatpush.bf16.msra.mxu0 %v1390
    %2057 = vmatpush.bf16.msra.mxu0 %v1384
    %2058 = vmatpush.bf16.msra.mxu0 %v1378
    %2059 = vmatpush.bf16.msra.mxu0 %v1372
    %2060 = vmatpush.bf16.msra.mxu0 %v1366
    %2061 = vmatpush.bf16.msra.mxu0 %v1360
    %2062 = vmatpush.bf16.msra.mxu0 %v1354
    %2063 = vmatpush.bf16.msra.mxu0 %v1348
    %2064 = vmatmul.bf16.gmra.mxu0 %v127
    %v2065 = vpop.f32.mrf.mxu0
    %v2066 = vadd.f32 %v2052, %v2065
    %v2067 = vpop.f32.mrf.mxu0
    %v2068 = vadd.f32 %v2054, %v2067
    %2069 = vdwg.mxu0
    %2070 = vmatpush.bf16.msra.mxu0 %v1438
    %2071 = vmatpush.bf16.msra.mxu0 %v1432
    %2072 = vmatpush.bf16.msra.mxu0 %v1426
    %2073 = vmatpush.bf16.msra.mxu0 %v1420
    %2074 = vmatpush.bf16.msra.mxu0 %v1414
    %2075 = vmatpush.bf16.msra.mxu0 %v1408
    %2076 = vmatpush.bf16.msra.mxu0 %v1402
    %2077 = vmatpush.bf16.msra.mxu0 %v1396
    %2078 = vmatmul.bf16.gmra.mxu0 %v128
    %v2079 = vpop.f32.mrf.mxu0
    %v2080 = vadd.f32 %v2066, %v2079
    %v2081 = vpop.f32.mrf.mxu0
    %v2082 = vadd.f32 %v2068, %v2081
    %2083 = vdwg.mxu0
    %2084 = vmatpush.bf16.msra.mxu0 %v1486
    %2085 = vmatpush.bf16.msra.mxu0 %v1480
    %2086 = vmatpush.bf16.msra.mxu0 %v1474
    %2087 = vmatpush.bf16.msra.mxu0 %v1468
    %2088 = vmatpush.bf16.msra.mxu0 %v1462
    %2089 = vmatpush.bf16.msra.mxu0 %v1456
    %2090 = vmatpush.bf16.msra.mxu0 %v1450
    %2091 = vmatpush.bf16.msra.mxu0 %v1444
    %2092 = vmatmul.bf16.gmra.mxu0 %v129
    %v2093 = vpop.f32.mrf.mxu0
    %v2094 = vadd.f32 %v2080, %v2093
    %v2095 = vpop.f32.mrf.mxu0
    %v2096 = vadd.f32 %v2082, %v2095
    %2097 = vdwg.mxu0
    %2098 = vmatpush.bf16.msra.mxu0 %v1534
    %2099 = vmatpush.bf16.msra.mxu0 %v1528
    %2100 = vmatpush.bf16.msra.mxu0 %v1522
    %2101 = vmatpush.bf16.msra.mxu0 %v1516
    %2102 = vmatpush.bf16.msra.mxu0 %v1510
    %2103 = vmatpush.bf16.msra.mxu0 %v1504
    %2104 = vmatpush.bf16.msra.mxu0 %v1498
    %2105 = vmatpush.bf16.msra.mxu0 %v1492
    %2106 = vmatmul.bf16.gmra.mxu0 %v130
    %v2107 = vpop.f32.mrf.mxu0
    %v2108 = vadd.f32 %v2094, %v2107
    %v2109 = vpop.f32.mrf.mxu0
    %v2110 = vadd.f32 %v2096, %v2109
    %2111 = vdwg.mxu0
    %2112 = vmatpush.bf16.msra.mxu0 %v1582
    %2113 = vmatpush.bf16.msra.mxu0 %v1576
    %2114 = vmatpush.bf16.msra.mxu0 %v1570
    %2115 = vmatpush.bf16.msra.mxu0 %v1564
    %2116 = vmatpush.bf16.msra.mxu0 %v1558
    %2117 = vmatpush.bf16.msra.mxu0 %v1552
    %2118 = vmatpush.bf16.msra.mxu0 %v1546
    %2119 = vmatpush.bf16.msra.mxu0 %v1540
    %2120 = vmatmul.bf16.gmra.mxu0 %v131
    %v2121 = vpop.f32.mrf.mxu0
    %v2122 = vadd.f32 %v2108, %v2121
    %v2123 = vpop.f32.mrf.mxu0
    %v2124 = vadd.f32 %v2110, %v2123
    %2125 = vdwg.mxu0
    %2126 = vmatpush.bf16.msra.mxu0 %v1343
    %2127 = vmatpush.bf16.msra.mxu0 %v1337
    %2128 = vmatpush.bf16.msra.mxu0 %v1331
    %2129 = vmatpush.bf16.msra.mxu0 %v1325
    %2130 = vmatpush.bf16.msra.mxu0 %v1319
    %2131 = vmatpush.bf16.msra.mxu0 %v1313
    %2132 = vmatpush.bf16.msra.mxu0 %v1307
    %2133 = vmatpush.bf16.msra.mxu0 %v1301
    %2134 = vmatmul.bf16.gmra.mxu0 %v126
    %v2135 = vpop.f32.mrf.mxu0
    %v2136 = vadd.f32 %v425, %v2135
    %v2137 = vpop.f32.mrf.mxu0
    %v2138 = vadd.f32 %v425, %v2137
    %2139 = vdwg.mxu0
    %2140 = vmatpush.bf16.msra.mxu0 %v1391
    %2141 = vmatpush.bf16.msra.mxu0 %v1385
    %2142 = vmatpush.bf16.msra.mxu0 %v1379
    %2143 = vmatpush.bf16.msra.mxu0 %v1373
    %2144 = vmatpush.bf16.msra.mxu0 %v1367
    %2145 = vmatpush.bf16.msra.mxu0 %v1361
    %2146 = vmatpush.bf16.msra.mxu0 %v1355
    %2147 = vmatpush.bf16.msra.mxu0 %v1349
    %2148 = vmatmul.bf16.gmra.mxu0 %v127
    %v2149 = vpop.f32.mrf.mxu0
    %v2150 = vadd.f32 %v2136, %v2149
    %v2151 = vpop.f32.mrf.mxu0
    %v2152 = vadd.f32 %v2138, %v2151
    %2153 = vdwg.mxu0
    %2154 = vmatpush.bf16.msra.mxu0 %v1439
    %2155 = vmatpush.bf16.msra.mxu0 %v1433
    %2156 = vmatpush.bf16.msra.mxu0 %v1427
    %2157 = vmatpush.bf16.msra.mxu0 %v1421
    %2158 = vmatpush.bf16.msra.mxu0 %v1415
    %2159 = vmatpush.bf16.msra.mxu0 %v1409
    %2160 = vmatpush.bf16.msra.mxu0 %v1403
    %2161 = vmatpush.bf16.msra.mxu0 %v1397
    %2162 = vmatmul.bf16.gmra.mxu0 %v128
    %v2163 = vpop.f32.mrf.mxu0
    %v2164 = vadd.f32 %v2150, %v2163
    %v2165 = vpop.f32.mrf.mxu0
    %v2166 = vadd.f32 %v2152, %v2165
    %2167 = vdwg.mxu0
    %2168 = vmatpush.bf16.msra.mxu0 %v1487
    %2169 = vmatpush.bf16.msra.mxu0 %v1481
    %2170 = vmatpush.bf16.msra.mxu0 %v1475
    %2171 = vmatpush.bf16.msra.mxu0 %v1469
    %2172 = vmatpush.bf16.msra.mxu0 %v1463
    %2173 = vmatpush.bf16.msra.mxu0 %v1457
    %2174 = vmatpush.bf16.msra.mxu0 %v1451
    %2175 = vmatpush.bf16.msra.mxu0 %v1445
    %2176 = vmatmul.bf16.gmra.mxu0 %v129
    %v2177 = vpop.f32.mrf.mxu0
    %v2178 = vadd.f32 %v2164, %v2177
    %v2179 = vpop.f32.mrf.mxu0
    %v2180 = vadd.f32 %v2166, %v2179
    %2181 = vdwg.mxu0
    %2182 = vmatpush.bf16.msra.mxu0 %v1535
    %2183 = vmatpush.bf16.msra.mxu0 %v1529
    %2184 = vmatpush.bf16.msra.mxu0 %v1523
    %2185 = vmatpush.bf16.msra.mxu0 %v1517
    %2186 = vmatpush.bf16.msra.mxu0 %v1511
    %2187 = vmatpush.bf16.msra.mxu0 %v1505
    %2188 = vmatpush.bf16.msra.mxu0 %v1499
    %2189 = vmatpush.bf16.msra.mxu0 %v1493
    %2190 = vmatmul.bf16.gmra.mxu0 %v130
    %v2191 = vpop.f32.mrf.mxu0
    %v2192 = vadd.f32 %v2178, %v2191
    %v2193 = vpop.f32.mrf.mxu0
    %v2194 = vadd.f32 %v2180, %v2193
    %2195 = vdwg.mxu0
    %2196 = vmatpush.bf16.msra.mxu0 %v1583
    %2197 = vmatpush.bf16.msra.mxu0 %v1577
    %2198 = vmatpush.bf16.msra.mxu0 %v1571
    %2199 = vmatpush.bf16.msra.mxu0 %v1565
    %2200 = vmatpush.bf16.msra.mxu0 %v1559
    %2201 = vmatpush.bf16.msra.mxu0 %v1553
    %2202 = vmatpush.bf16.msra.mxu0 %v1547
    %2203 = vmatpush.bf16.msra.mxu0 %v1541
    %2204 = vmatmul.bf16.gmra.mxu0 %v131
    %v2205 = vpop.f32.mrf.mxu0
    %v2206 = vadd.f32 %v2192, %v2205
    %v2207 = vpop.f32.mrf.mxu0
    %v2208 = vadd.f32 %v2194, %v2207
    %2209 = vdwg.mxu0
    %2210 = vmatpush.bf16.msra.mxu0 %v1344
    %2211 = vmatpush.bf16.msra.mxu0 %v1338
    %2212 = vmatpush.bf16.msra.mxu0 %v1332
    %2213 = vmatpush.bf16.msra.mxu0 %v1326
    %2214 = vmatpush.bf16.msra.mxu0 %v1320
    %2215 = vmatpush.bf16.msra.mxu0 %v1314
    %2216 = vmatpush.bf16.msra.mxu0 %v1308
    %2217 = vmatpush.bf16.msra.mxu0 %v1302
    %2218 = vmatmul.bf16.gmra.mxu0 %v126
    %v2219 = vpop.f32.mrf.mxu0
    %v2220 = vadd.f32 %v426, %v2219
    %v2221 = vpop.f32.mrf.mxu0
    %v2222 = vadd.f32 %v426, %v2221
    %2223 = vdwg.mxu0
    %2224 = vmatpush.bf16.msra.mxu0 %v1392
    %2225 = vmatpush.bf16.msra.mxu0 %v1386
    %2226 = vmatpush.bf16.msra.mxu0 %v1380
    %2227 = vmatpush.bf16.msra.mxu0 %v1374
    %2228 = vmatpush.bf16.msra.mxu0 %v1368
    %2229 = vmatpush.bf16.msra.mxu0 %v1362
    %2230 = vmatpush.bf16.msra.mxu0 %v1356
    %2231 = vmatpush.bf16.msra.mxu0 %v1350
    %2232 = vmatmul.bf16.gmra.mxu0 %v127
    %v2233 = vpop.f32.mrf.mxu0
    %v2234 = vadd.f32 %v2220, %v2233
    %v2235 = vpop.f32.mrf.mxu0
    %v2236 = vadd.f32 %v2222, %v2235
    %2237 = vdwg.mxu0
    %2238 = vmatpush.bf16.msra.mxu0 %v1440
    %2239 = vmatpush.bf16.msra.mxu0 %v1434
    %2240 = vmatpush.bf16.msra.mxu0 %v1428
    %2241 = vmatpush.bf16.msra.mxu0 %v1422
    %2242 = vmatpush.bf16.msra.mxu0 %v1416
    %2243 = vmatpush.bf16.msra.mxu0 %v1410
    %2244 = vmatpush.bf16.msra.mxu0 %v1404
    %2245 = vmatpush.bf16.msra.mxu0 %v1398
    %2246 = vmatmul.bf16.gmra.mxu0 %v128
    %v2247 = vpop.f32.mrf.mxu0
    %v2248 = vadd.f32 %v2234, %v2247
    %v2249 = vpop.f32.mrf.mxu0
    %v2250 = vadd.f32 %v2236, %v2249
    %2251 = vdwg.mxu0
    %2252 = vmatpush.bf16.msra.mxu0 %v1488
    %2253 = vmatpush.bf16.msra.mxu0 %v1482
    %2254 = vmatpush.bf16.msra.mxu0 %v1476
    %2255 = vmatpush.bf16.msra.mxu0 %v1470
    %2256 = vmatpush.bf16.msra.mxu0 %v1464
    %2257 = vmatpush.bf16.msra.mxu0 %v1458
    %2258 = vmatpush.bf16.msra.mxu0 %v1452
    %2259 = vmatpush.bf16.msra.mxu0 %v1446
    %2260 = vmatmul.bf16.gmra.mxu0 %v129
    %v2261 = vpop.f32.mrf.mxu0
    %v2262 = vadd.f32 %v2248, %v2261
    %v2263 = vpop.f32.mrf.mxu0
    %v2264 = vadd.f32 %v2250, %v2263
    %2265 = vdwg.mxu0
    %2266 = vmatpush.bf16.msra.mxu0 %v1536
    %2267 = vmatpush.bf16.msra.mxu0 %v1530
    %2268 = vmatpush.bf16.msra.mxu0 %v1524
    %2269 = vmatpush.bf16.msra.mxu0 %v1518
    %2270 = vmatpush.bf16.msra.mxu0 %v1512
    %2271 = vmatpush.bf16.msra.mxu0 %v1506
    %2272 = vmatpush.bf16.msra.mxu0 %v1500
    %2273 = vmatpush.bf16.msra.mxu0 %v1494
    %2274 = vmatmul.bf16.gmra.mxu0 %v130
    %v2275 = vpop.f32.mrf.mxu0
    %v2276 = vadd.f32 %v2262, %v2275
    %v2277 = vpop.f32.mrf.mxu0
    %v2278 = vadd.f32 %v2264, %v2277
    %2279 = vdwg.mxu0
    %2280 = vmatpush.bf16.msra.mxu0 %v1584
    %2281 = vmatpush.bf16.msra.mxu0 %v1578
    %2282 = vmatpush.bf16.msra.mxu0 %v1572
    %2283 = vmatpush.bf16.msra.mxu0 %v1566
    %2284 = vmatpush.bf16.msra.mxu0 %v1560
    %2285 = vmatpush.bf16.msra.mxu0 %v1554
    %2286 = vmatpush.bf16.msra.mxu0 %v1548
    %2287 = vmatpush.bf16.msra.mxu0 %v1542
    %2288 = vmatmul.bf16.gmra.mxu0 %v131
    %v2289 = vpop.f32.mrf.mxu0
    %v2290 = vadd.f32 %v2276, %v2289
    %v2291 = vpop.f32.mrf.mxu0
    %v2292 = vadd.f32 %v2278, %v2291
    %2293 = vdwg.mxu0
    %2294 = vmatpush.bf16.msra.mxu0 %v1345
    %2295 = vmatpush.bf16.msra.mxu0 %v1339
    %2296 = vmatpush.bf16.msra.mxu0 %v1333
    %2297 = vmatpush.bf16.msra.mxu0 %v1327
    %2298 = vmatpush.bf16.msra.mxu0 %v1321
    %2299 = vmatpush.bf16.msra.mxu0 %v1315
    %2300 = vmatpush.bf16.msra.mxu0 %v1309
    %2301 = vmatpush.bf16.msra.mxu0 %v1303
    %2302 = vmatmul.bf16.gmra.mxu0 %v126
    %v2303 = vpop.f32.mrf.mxu0
    %v2304 = vadd.f32 %v427, %v2303
    %v2305 = vpop.f32.mrf.mxu0
    %v2306 = vadd.f32 %v427, %v2305
    %2307 = vdwg.mxu0
    %2308 = vmatpush.bf16.msra.mxu0 %v1393
    %2309 = vmatpush.bf16.msra.mxu0 %v1387
    %2310 = vmatpush.bf16.msra.mxu0 %v1381
    %2311 = vmatpush.bf16.msra.mxu0 %v1375
    %2312 = vmatpush.bf16.msra.mxu0 %v1369
    %2313 = vmatpush.bf16.msra.mxu0 %v1363
    %2314 = vmatpush.bf16.msra.mxu0 %v1357
    %2315 = vmatpush.bf16.msra.mxu0 %v1351
    %2316 = vmatmul.bf16.gmra.mxu0 %v127
    %v2317 = vpop.f32.mrf.mxu0
    %v2318 = vadd.f32 %v2304, %v2317
    %v2319 = vpop.f32.mrf.mxu0
    %v2320 = vadd.f32 %v2306, %v2319
    %2321 = vdwg.mxu0
    %2322 = vmatpush.bf16.msra.mxu0 %v1441
    %2323 = vmatpush.bf16.msra.mxu0 %v1435
    %2324 = vmatpush.bf16.msra.mxu0 %v1429
    %2325 = vmatpush.bf16.msra.mxu0 %v1423
    %2326 = vmatpush.bf16.msra.mxu0 %v1417
    %2327 = vmatpush.bf16.msra.mxu0 %v1411
    %2328 = vmatpush.bf16.msra.mxu0 %v1405
    %2329 = vmatpush.bf16.msra.mxu0 %v1399
    %2330 = vmatmul.bf16.gmra.mxu0 %v128
    %v2331 = vpop.f32.mrf.mxu0
    %v2332 = vadd.f32 %v2318, %v2331
    %v2333 = vpop.f32.mrf.mxu0
    %v2334 = vadd.f32 %v2320, %v2333
    %2335 = vdwg.mxu0
    %2336 = vmatpush.bf16.msra.mxu0 %v1489
    %2337 = vmatpush.bf16.msra.mxu0 %v1483
    %2338 = vmatpush.bf16.msra.mxu0 %v1477
    %2339 = vmatpush.bf16.msra.mxu0 %v1471
    %2340 = vmatpush.bf16.msra.mxu0 %v1465
    %2341 = vmatpush.bf16.msra.mxu0 %v1459
    %2342 = vmatpush.bf16.msra.mxu0 %v1453
    %2343 = vmatpush.bf16.msra.mxu0 %v1447
    %2344 = vmatmul.bf16.gmra.mxu0 %v129
    %v2345 = vpop.f32.mrf.mxu0
    %v2346 = vadd.f32 %v2332, %v2345
    %v2347 = vpop.f32.mrf.mxu0
    %v2348 = vadd.f32 %v2334, %v2347
    %2349 = vdwg.mxu0
    %2350 = vmatpush.bf16.msra.mxu0 %v1537
    %2351 = vmatpush.bf16.msra.mxu0 %v1531
    %2352 = vmatpush.bf16.msra.mxu0 %v1525
    %2353 = vmatpush.bf16.msra.mxu0 %v1519
    %2354 = vmatpush.bf16.msra.mxu0 %v1513
    %2355 = vmatpush.bf16.msra.mxu0 %v1507
    %2356 = vmatpush.bf16.msra.mxu0 %v1501
    %2357 = vmatpush.bf16.msra.mxu0 %v1495
    %2358 = vmatmul.bf16.gmra.mxu0 %v130
    %v2359 = vpop.f32.mrf.mxu0
    %v2360 = vadd.f32 %v2346, %v2359
    %v2361 = vpop.f32.mrf.mxu0
    %v2362 = vadd.f32 %v2348, %v2361
    %2363 = vdwg.mxu0
    %2364 = vmatpush.bf16.msra.mxu0 %v1585
    %2365 = vmatpush.bf16.msra.mxu0 %v1579
    %2366 = vmatpush.bf16.msra.mxu0 %v1573
    %2367 = vmatpush.bf16.msra.mxu0 %v1567
    %2368 = vmatpush.bf16.msra.mxu0 %v1561
    %2369 = vmatpush.bf16.msra.mxu0 %v1555
    %2370 = vmatpush.bf16.msra.mxu0 %v1549
    %2371 = vmatpush.bf16.msra.mxu0 %v1543
    %2372 = vmatmul.bf16.gmra.mxu0 %v131
    %v2373 = vpop.f32.mrf.mxu0
    %v2374 = vadd.f32 %v2360, %v2373
    %v2375 = vpop.f32.mrf.mxu0
    %v2376 = vadd.f32 %v2362, %v2375
    %2377 = vdwg.mxu0
    %v2378 = vtanh.pop %v1954
    %v2379 = vtanh.pop %v2038
    %v2380 = vtanh.pop %v2122
    %v2381 = vtanh.pop %v2206
    %v2382 = vtanh.pop %v2290
    %v2383 = vtanh.pop %v2374
    %v2384 = vtanh.pop %v1956
    %v2385 = vtanh.pop %v2040
    %v2386 = vtanh.pop %v2124
    %v2387 = vtanh.pop %v2208
    %v2388 = vtanh.pop %v2292
    %v2389 = vtanh.pop %v2376
    %v2390 = vpack.c.bf16 %v2384, %v2378
    %v2391 = vpack.c.bf16 %v2385, %v2379
    %v2392 = vpack.c.bf16 %v2386, %v2380
    %v2393 = vpack.c.bf16 %v2387, %v2381
    %v2394 = vpack.c.bf16 %v2388, %v2382
    %v2395 = vpack.c.bf16 %v2389, %v2383
    %v2396 = vld [vmem:[#allocation6] sm:$0xff]
    %v2397 = vld [vmem:[#allocation6 + $0x8] sm:$0xff]
    %v2398 = vld [vmem:[#allocation6 + $0x10] sm:$0xff]
    %v2399 = vld [vmem:[#allocation6 + $0x18] sm:$0xff]
    %v2400 = vld [vmem:[#allocation6 + $0x20] sm:$0xff]
    %v2401 = vld [vmem:[#allocation6 + $0x28] sm:$0xff]
    %v2402 = vld [vmem:[#allocation6 + $0x30] sm:$0xff]
    %v2403 = vld [vmem:[#allocation6 + $0x38] sm:$0xff]
    %v2404 = vld [vmem:[#allocation6 + $0x40] sm:$0xff]
    %v2405 = vld [vmem:[#allocation6 + $0x48] sm:$0xff]
    %v2406 = vld [vmem:[#allocation6 + $0x50] sm:$0xff]
    %v2407 = vld [vmem:[#allocation6 + $0x58] sm:$0xff]
    %v2408 = vld [vmem:[#allocation6 + $0x60] sm:$0xff]
    %v2409 = vld [vmem:[#allocation6 + $0x68] sm:$0xff]
    %v2410 = vld [vmem:[#allocation6 + $0x70] sm:$0xff]
    %v2411 = vld [vmem:[#allocation6 + $0x78] sm:$0xff]
    %v2412 = vld [vmem:[#allocation6 + $0x80] sm:$0xff]
    %v2413 = vld [vmem:[#allocation6 + $0x88] sm:$0xff]
    %v2414 = vld [vmem:[#allocation6 + $0x90] sm:$0xff]
    %v2415 = vld [vmem:[#allocation6 + $0x98] sm:$0xff]
    %v2416 = vld [vmem:[#allocation6 + $0xa0] sm:$0xff]
    %v2417 = vld [vmem:[#allocation6 + $0xa8] sm:$0xff]
    %v2418 = vld [vmem:[#allocation6 + $0xb0] sm:$0xff]
    %v2419 = vld [vmem:[#allocation6 + $0xb8] sm:$0xff]
    %v2420 = vld [vmem:[#allocation6 + $0xc0] sm:$0xff]
    %v2421 = vld [vmem:[#allocation6 + $0xc8] sm:$0xff]
    %v2422 = vld [vmem:[#allocation6 + $0xd0] sm:$0xff]
    %v2423 = vld [vmem:[#allocation6 + $0xd8] sm:$0xff]
    %v2424 = vld [vmem:[#allocation6 + $0xe0] sm:$0xff]
    %v2425 = vld [vmem:[#allocation6 + $0xe8] sm:$0xff]
    %v2426 = vld [vmem:[#allocation6 + $0xf0] sm:$0xff]
    %v2427 = vld [vmem:[#allocation6 + $0xf8] sm:$0xff]
    %v2428 = vld [vmem:[#allocation6 + $0x100] sm:$0xff]
    %v2429 = vld [vmem:[#allocation6 + $0x108] sm:$0xff]
    %v2430 = vld [vmem:[#allocation6 + $0x110] sm:$0xff]
    %v2431 = vld [vmem:[#allocation6 + $0x118] sm:$0xff]
    %v2432 = vld [vmem:[#allocation6 + $0x120] sm:$0xff]
    %v2433 = vld [vmem:[#allocation6 + $0x128] sm:$0xff]
    %v2434 = vld [vmem:[#allocation6 + $0x130] sm:$0xff]
    %v2435 = vld [vmem:[#allocation6 + $0x138] sm:$0xff]
    %v2436 = vld [vmem:[#allocation6 + $0x140] sm:$0xff]
    %v2437 = vld [vmem:[#allocation6 + $0x148] sm:$0xff]
    %v2438 = vld [vmem:[#allocation6 + $0x150] sm:$0xff]
    %v2439 = vld [vmem:[#allocation6 + $0x158] sm:$0xff]
    %v2440 = vld [vmem:[#allocation6 + $0x160] sm:$0xff]
    %v2441 = vld [vmem:[#allocation6 + $0x168] sm:$0xff]
    %v2442 = vld [vmem:[#allocation6 + $0x170] sm:$0xff]
    %v2443 = vld [vmem:[#allocation6 + $0x178] sm:$0xff]
    %v2444 = vld [vmem:[#allocation6 + $0x180] sm:$0xff]
    %v2445 = vld [vmem:[#allocation6 + $0x188] sm:$0xff]
    %v2446 = vld [vmem:[#allocation6 + $0x190] sm:$0xff]
    %v2447 = vld [vmem:[#allocation6 + $0x198] sm:$0xff]
    %v2448 = vld [vmem:[#allocation6 + $0x1a0] sm:$0xff]
    %v2449 = vld [vmem:[#allocation6 + $0x1a8] sm:$0xff]
    %v2450 = vld [vmem:[#allocation6 + $0x1b0] sm:$0xff]
    %v2451 = vld [vmem:[#allocation6 + $0x1b8] sm:$0xff]
    %v2452 = vld [vmem:[#allocation6 + $0x1c0] sm:$0xff]
    %v2453 = vld [vmem:[#allocation6 + $0x1c8] sm:$0xff]
    %v2454 = vld [vmem:[#allocation6 + $0x1d0] sm:$0xff]
    %v2455 = vld [vmem:[#allocation6 + $0x1d8] sm:$0xff]
    %v2456 = vld [vmem:[#allocation6 + $0x1e0] sm:$0xff]
    %v2457 = vld [vmem:[#allocation6 + $0x1e8] sm:$0xff]
    %v2458 = vld [vmem:[#allocation6 + $0x1f0] sm:$0xff]
    %v2459 = vld [vmem:[#allocation6 + $0x1f8] sm:$0xff]
    %v2460 = vld [vmem:[#allocation6 + $0x200] sm:$0xff]
    %v2461 = vld [vmem:[#allocation6 + $0x208] sm:$0xff]
    %v2462 = vld [vmem:[#allocation6 + $0x210] sm:$0xff]
    %v2463 = vld [vmem:[#allocation6 + $0x218] sm:$0xff]
    %v2464 = vld [vmem:[#allocation6 + $0x220] sm:$0xff]
    %v2465 = vld [vmem:[#allocation6 + $0x228] sm:$0xff]
    %v2466 = vld [vmem:[#allocation6 + $0x230] sm:$0xff]
    %v2467 = vld [vmem:[#allocation6 + $0x238] sm:$0xff]
    %v2468 = vld [vmem:[#allocation6 + $0x240] sm:$0xff]
    %v2469 = vld [vmem:[#allocation6 + $0x248] sm:$0xff]
    %v2470 = vld [vmem:[#allocation6 + $0x250] sm:$0xff]
    %v2471 = vld [vmem:[#allocation6 + $0x258] sm:$0xff]
    %v2472 = vld [vmem:[#allocation6 + $0x260] sm:$0xff]
    %v2473 = vld [vmem:[#allocation6 + $0x268] sm:$0xff]
    %v2474 = vld [vmem:[#allocation6 + $0x270] sm:$0xff]
    %v2475 = vld [vmem:[#allocation6 + $0x278] sm:$0xff]
    %v2476 = vld [vmem:[#allocation6 + $0x280] sm:$0xff]
    %v2477 = vld [vmem:[#allocation6 + $0x288] sm:$0xff]
    %v2478 = vld [vmem:[#allocation6 + $0x290] sm:$0xff]
    %v2479 = vld [vmem:[#allocation6 + $0x298] sm:$0xff]
    %v2480 = vld [vmem:[#allocation6 + $0x2a0] sm:$0xff]
    %v2481 = vld [vmem:[#allocation6 + $0x2a8] sm:$0xff]
    %v2482 = vld [vmem:[#allocation6 + $0x2b0] sm:$0xff]
    %v2483 = vld [vmem:[#allocation6 + $0x2b8] sm:$0xff]
    %v2484 = vld [vmem:[#allocation6 + $0x2c0] sm:$0xff]
    %v2485 = vld [vmem:[#allocation6 + $0x2c8] sm:$0xff]
    %v2486 = vld [vmem:[#allocation6 + $0x2d0] sm:$0xff]
    %v2487 = vld [vmem:[#allocation6 + $0x2d8] sm:$0xff]
    %v2488 = vld [vmem:[#allocation6 + $0x2e0] sm:$0xff]
    %v2489 = vld [vmem:[#allocation6 + $0x2e8] sm:$0xff]
    %v2490 = vld [vmem:[#allocation6 + $0x2f0] sm:$0xff]
    %v2491 = vld [vmem:[#allocation6 + $0x2f8] sm:$0xff]
    %v2492 = vld [vmem:[#allocation6 + $0x300] sm:$0xff]
    %v2493 = vld [vmem:[#allocation6 + $0x308] sm:$0xff]
    %v2494 = vld [vmem:[#allocation6 + $0x310] sm:$0xff]
    %v2495 = vld [vmem:[#allocation6 + $0x318] sm:$0xff]
    %v2496 = vld [vmem:[#allocation6 + $0x320] sm:$0xff]
    %v2497 = vld [vmem:[#allocation6 + $0x328] sm:$0xff]
    %v2498 = vld [vmem:[#allocation6 + $0x330] sm:$0xff]
    %v2499 = vld [vmem:[#allocation6 + $0x338] sm:$0xff]
    %v2500 = vld [vmem:[#allocation6 + $0x340] sm:$0xff]
    %v2501 = vld [vmem:[#allocation6 + $0x348] sm:$0xff]
    %v2502 = vld [vmem:[#allocation6 + $0x350] sm:$0xff]
    %v2503 = vld [vmem:[#allocation6 + $0x358] sm:$0xff]
    %v2504 = vld [vmem:[#allocation6 + $0x360] sm:$0xff]
    %v2505 = vld [vmem:[#allocation6 + $0x368] sm:$0xff]
    %v2506 = vld [vmem:[#allocation6 + $0x370] sm:$0xff]
    %v2507 = vld [vmem:[#allocation6 + $0x378] sm:$0xff]
    %v2508 = vld [vmem:[#allocation6 + $0x380] sm:$0xff]
    %v2509 = vld [vmem:[#allocation6 + $0x388] sm:$0xff]
    %v2510 = vld [vmem:[#allocation6 + $0x390] sm:$0xff]
    %v2511 = vld [vmem:[#allocation6 + $0x398] sm:$0xff]
    %v2512 = vld [vmem:[#allocation6 + $0x3a0] sm:$0xff]
    %v2513 = vld [vmem:[#allocation6 + $0x3a8] sm:$0xff]
    %v2514 = vld [vmem:[#allocation6 + $0x3b0] sm:$0xff]
    %v2515 = vld [vmem:[#allocation6 + $0x3b8] sm:$0xff]
    %v2516 = vld [vmem:[#allocation6 + $0x3c0] sm:$0xff]
    %v2517 = vld [vmem:[#allocation6 + $0x3c8] sm:$0xff]
    %v2518 = vld [vmem:[#allocation6 + $0x3d0] sm:$0xff]
    %v2519 = vld [vmem:[#allocation6 + $0x3d8] sm:$0xff]
    %v2520 = vld [vmem:[#allocation6 + $0x3e0] sm:$0xff]
    %v2521 = vld [vmem:[#allocation6 + $0x3e8] sm:$0xff]
    %v2522 = vld [vmem:[#allocation6 + $0x3f0] sm:$0xff]
    %v2523 = vld [vmem:[#allocation6 + $0x3f8] sm:$0xff]
    %v2524 = vld [vmem:[#allocation6 + $0x400] sm:$0xff]
    %v2525 = vld [vmem:[#allocation6 + $0x408] sm:$0xff]
    %v2526 = vld [vmem:[#allocation6 + $0x410] sm:$0xff]
    %v2527 = vld [vmem:[#allocation6 + $0x418] sm:$0xff]
    %v2528 = vld [vmem:[#allocation6 + $0x420] sm:$0xff]
    %v2529 = vld [vmem:[#allocation6 + $0x428] sm:$0xff]
    %v2530 = vld [vmem:[#allocation6 + $0x430] sm:$0xff]
    %v2531 = vld [vmem:[#allocation6 + $0x438] sm:$0xff]
    %v2532 = vld [vmem:[#allocation6 + $0x440] sm:$0xff]
    %v2533 = vld [vmem:[#allocation6 + $0x448] sm:$0xff]
    %v2534 = vld [vmem:[#allocation6 + $0x450] sm:$0xff]
    %v2535 = vld [vmem:[#allocation6 + $0x458] sm:$0xff]
    %v2536 = vld [vmem:[#allocation6 + $0x460] sm:$0xff]
    %v2537 = vld [vmem:[#allocation6 + $0x468] sm:$0xff]
    %v2538 = vld [vmem:[#allocation6 + $0x470] sm:$0xff]
    %v2539 = vld [vmem:[#allocation6 + $0x478] sm:$0xff]
    %v2540 = vld [vmem:[#allocation6 + $0x480] sm:$0xff]
    %v2541 = vld [vmem:[#allocation6 + $0x488] sm:$0xff]
    %v2542 = vld [vmem:[#allocation6 + $0x490] sm:$0xff]
    %v2543 = vld [vmem:[#allocation6 + $0x498] sm:$0xff]
    %v2544 = vld [vmem:[#allocation6 + $0x4a0] sm:$0xff]
    %v2545 = vld [vmem:[#allocation6 + $0x4a8] sm:$0xff]
    %v2546 = vld [vmem:[#allocation6 + $0x4b0] sm:$0xff]
    %v2547 = vld [vmem:[#allocation6 + $0x4b8] sm:$0xff]
    %v2548 = vld [vmem:[#allocation6 + $0x4c0] sm:$0xff]
    %v2549 = vld [vmem:[#allocation6 + $0x4c8] sm:$0xff]
    %v2550 = vld [vmem:[#allocation6 + $0x4d0] sm:$0xff]
    %v2551 = vld [vmem:[#allocation6 + $0x4d8] sm:$0xff]
    %v2552 = vld [vmem:[#allocation6 + $0x4e0] sm:$0xff]
    %v2553 = vld [vmem:[#allocation6 + $0x4e8] sm:$0xff]
    %v2554 = vld [vmem:[#allocation6 + $0x4f0] sm:$0xff]
    %v2555 = vld [vmem:[#allocation6 + $0x4f8] sm:$0xff]
    %v2556 = vld [vmem:[#allocation6 + $0x500] sm:$0xff]
    %v2557 = vld [vmem:[#allocation6 + $0x508] sm:$0xff]
    %v2558 = vld [vmem:[#allocation6 + $0x510] sm:$0xff]
    %v2559 = vld [vmem:[#allocation6 + $0x518] sm:$0xff]
    %v2560 = vld [vmem:[#allocation6 + $0x520] sm:$0xff]
    %v2561 = vld [vmem:[#allocation6 + $0x528] sm:$0xff]
    %v2562 = vld [vmem:[#allocation6 + $0x530] sm:$0xff]
    %v2563 = vld [vmem:[#allocation6 + $0x538] sm:$0xff]
    %v2564 = vld [vmem:[#allocation6 + $0x540] sm:$0xff]
    %v2565 = vld [vmem:[#allocation6 + $0x548] sm:$0xff]
    %v2566 = vld [vmem:[#allocation6 + $0x550] sm:$0xff]
    %v2567 = vld [vmem:[#allocation6 + $0x558] sm:$0xff]
    %v2568 = vld [vmem:[#allocation6 + $0x560] sm:$0xff]
    %v2569 = vld [vmem:[#allocation6 + $0x568] sm:$0xff]
    %v2570 = vld [vmem:[#allocation6 + $0x570] sm:$0xff]
    %v2571 = vld [vmem:[#allocation6 + $0x578] sm:$0xff]
    %v2572 = vld [vmem:[#allocation6 + $0x580] sm:$0xff]
    %v2573 = vld [vmem:[#allocation6 + $0x588] sm:$0xff]
    %v2574 = vld [vmem:[#allocation6 + $0x590] sm:$0xff]
    %v2575 = vld [vmem:[#allocation6 + $0x598] sm:$0xff]
    %v2576 = vld [vmem:[#allocation6 + $0x5a0] sm:$0xff]
    %v2577 = vld [vmem:[#allocation6 + $0x5a8] sm:$0xff]
    %v2578 = vld [vmem:[#allocation6 + $0x5b0] sm:$0xff]
    %v2579 = vld [vmem:[#allocation6 + $0x5b8] sm:$0xff]
    %v2580 = vld [vmem:[#allocation6 + $0x5c0] sm:$0xff]
    %v2581 = vld [vmem:[#allocation6 + $0x5c8] sm:$0xff]
    %v2582 = vld [vmem:[#allocation6 + $0x5d0] sm:$0xff]
    %v2583 = vld [vmem:[#allocation6 + $0x5d8] sm:$0xff]
    %v2584 = vld [vmem:[#allocation6 + $0x5e0] sm:$0xff]
    %v2585 = vld [vmem:[#allocation6 + $0x5e8] sm:$0xff]
    %v2586 = vld [vmem:[#allocation6 + $0x5f0] sm:$0xff]
    %v2587 = vld [vmem:[#allocation6 + $0x5f8] sm:$0xff]
    %v2588 = vld [vmem:[#allocation7] sm:$0xf]
    %v2590 = vperm.slane %v2588, 0
    %v2591 = vperm.slane %v2588, 1
    %v2592 = vperm.slane %v2588, 2
    %v2593 = vperm.slane %v2588, 3
    %v2790 = vunpack.c.l.b16 %v2396
    %v2791 = vunpack.c.h.b16 %v2396
    %v2792 = vunpack.c.l.b16 %v2397
    %v2793 = vunpack.c.h.b16 %v2397
    %v2794 = vunpack.c.l.b16 %v2398
    %v2795 = vunpack.c.h.b16 %v2398
    %v2796 = vunpack.c.l.b16 %v2399
    %v2797 = vunpack.c.h.b16 %v2399
    %v2798 = vunpack.c.l.b16 %v2400
    %v2799 = vunpack.c.h.b16 %v2400
    %v2800 = vunpack.c.l.b16 %v2401
    %v2801 = vunpack.c.h.b16 %v2401
    %v2802 = vunpack.c.l.b16 %v2402
    %v2803 = vunpack.c.h.b16 %v2402
    %v2804 = vunpack.c.l.b16 %v2403
    %v2805 = vunpack.c.h.b16 %v2403
    %v2806 = vunpack.c.l.b16 %v2404
    %v2807 = vunpack.c.h.b16 %v2404
    %v2808 = vunpack.c.l.b16 %v2405
    %v2809 = vunpack.c.h.b16 %v2405
    %v2810 = vunpack.c.l.b16 %v2406
    %v2811 = vunpack.c.h.b16 %v2406
    %v2812 = vunpack.c.l.b16 %v2407
    %v2813 = vunpack.c.h.b16 %v2407
    %v2814 = vunpack.c.l.b16 %v2408
    %v2815 = vunpack.c.h.b16 %v2408
    %v2816 = vunpack.c.l.b16 %v2409
    %v2817 = vunpack.c.h.b16 %v2409
    %v2818 = vunpack.c.l.b16 %v2410
    %v2819 = vunpack.c.h.b16 %v2410
    %v2820 = vunpack.c.l.b16 %v2411
    %v2821 = vunpack.c.h.b16 %v2411
    %v2822 = vunpack.c.l.b16 %v2412
    %v2823 = vunpack.c.h.b16 %v2412
    %v2824 = vunpack.c.l.b16 %v2413
    %v2825 = vunpack.c.h.b16 %v2413
    %v2826 = vunpack.c.l.b16 %v2414
    %v2827 = vunpack.c.h.b16 %v2414
    %v2828 = vunpack.c.l.b16 %v2415
    %v2829 = vunpack.c.h.b16 %v2415
    %v2830 = vunpack.c.l.b16 %v2416
    %v2831 = vunpack.c.h.b16 %v2416
    %v2832 = vunpack.c.l.b16 %v2417
    %v2833 = vunpack.c.h.b16 %v2417
    %v2834 = vunpack.c.l.b16 %v2418
    %v2835 = vunpack.c.h.b16 %v2418
    %v2836 = vunpack.c.l.b16 %v2419
    %v2837 = vunpack.c.h.b16 %v2419
    %v2838 = vunpack.c.l.b16 %v2420
    %v2839 = vunpack.c.h.b16 %v2420
    %v2840 = vunpack.c.l.b16 %v2421
    %v2841 = vunpack.c.h.b16 %v2421
    %v2842 = vunpack.c.l.b16 %v2422
    %v2843 = vunpack.c.h.b16 %v2422
    %v2844 = vunpack.c.l.b16 %v2423
    %v2845 = vunpack.c.h.b16 %v2423
    %v2846 = vunpack.c.l.b16 %v2424
    %v2847 = vunpack.c.h.b16 %v2424
    %v2848 = vunpack.c.l.b16 %v2425
    %v2849 = vunpack.c.h.b16 %v2425
    %v2850 = vunpack.c.l.b16 %v2426
    %v2851 = vunpack.c.h.b16 %v2426
    %v2852 = vunpack.c.l.b16 %v2427
    %v2853 = vunpack.c.h.b16 %v2427
    %v2854 = vunpack.c.l.b16 %v2428
    %v2855 = vunpack.c.h.b16 %v2428
    %v2856 = vunpack.c.l.b16 %v2429
    %v2857 = vunpack.c.h.b16 %v2429
    %v2858 = vunpack.c.l.b16 %v2430
    %v2859 = vunpack.c.h.b16 %v2430
    %v2860 = vunpack.c.l.b16 %v2431
    %v2861 = vunpack.c.h.b16 %v2431
    %v2862 = vunpack.c.l.b16 %v2432
    %v2863 = vunpack.c.h.b16 %v2432
    %v2864 = vunpack.c.l.b16 %v2433
    %v2865 = vunpack.c.h.b16 %v2433
    %v2866 = vunpack.c.l.b16 %v2434
    %v2867 = vunpack.c.h.b16 %v2434
    %v2868 = vunpack.c.l.b16 %v2435
    %v2869 = vunpack.c.h.b16 %v2435
    %v2870 = vunpack.c.l.b16 %v2436
    %v2871 = vunpack.c.h.b16 %v2436
    %v2872 = vunpack.c.l.b16 %v2437
    %v2873 = vunpack.c.h.b16 %v2437
    %v2874 = vunpack.c.l.b16 %v2438
    %v2875 = vunpack.c.h.b16 %v2438
    %v2876 = vunpack.c.l.b16 %v2439
    %v2877 = vunpack.c.h.b16 %v2439
    %v2878 = vunpack.c.l.b16 %v2440
    %v2879 = vunpack.c.h.b16 %v2440
    %v2880 = vunpack.c.l.b16 %v2441
    %v2881 = vunpack.c.h.b16 %v2441
    %v2882 = vunpack.c.l.b16 %v2442
    %v2883 = vunpack.c.h.b16 %v2442
    %v2884 = vunpack.c.l.b16 %v2443
    %v2885 = vunpack.c.h.b16 %v2443
    %v2886 = vunpack.c.l.b16 %v2444
    %v2887 = vunpack.c.h.b16 %v2444
    %v2888 = vunpack.c.l.b16 %v2445
    %v2889 = vunpack.c.h.b16 %v2445
    %v2890 = vunpack.c.l.b16 %v2446
    %v2891 = vunpack.c.h.b16 %v2446
    %v2892 = vunpack.c.l.b16 %v2447
    %v2893 = vunpack.c.h.b16 %v2447
    %v2894 = vunpack.c.l.b16 %v2448
    %v2895 = vunpack.c.h.b16 %v2448
    %v2896 = vunpack.c.l.b16 %v2449
    %v2897 = vunpack.c.h.b16 %v2449
    %v2898 = vunpack.c.l.b16 %v2450
    %v2899 = vunpack.c.h.b16 %v2450
    %v2900 = vunpack.c.l.b16 %v2451
    %v2901 = vunpack.c.h.b16 %v2451
    %v2902 = vunpack.c.l.b16 %v2452
    %v2903 = vunpack.c.h.b16 %v2452
    %v2904 = vunpack.c.l.b16 %v2453
    %v2905 = vunpack.c.h.b16 %v2453
    %v2906 = vunpack.c.l.b16 %v2454
    %v2907 = vunpack.c.h.b16 %v2454
    %v2908 = vunpack.c.l.b16 %v2455
    %v2909 = vunpack.c.h.b16 %v2455
    %v2910 = vunpack.c.l.b16 %v2456
    %v2911 = vunpack.c.h.b16 %v2456
    %v2912 = vunpack.c.l.b16 %v2457
    %v2913 = vunpack.c.h.b16 %v2457
    %v2914 = vunpack.c.l.b16 %v2458
    %v2915 = vunpack.c.h.b16 %v2458
    %v2916 = vunpack.c.l.b16 %v2459
    %v2917 = vunpack.c.h.b16 %v2459
    %v2918 = vunpack.c.l.b16 %v2460
    %v2919 = vunpack.c.h.b16 %v2460
    %v2920 = vunpack.c.l.b16 %v2461
    %v2921 = vunpack.c.h.b16 %v2461
    %v2922 = vunpack.c.l.b16 %v2462
    %v2923 = vunpack.c.h.b16 %v2462
    %v2924 = vunpack.c.l.b16 %v2463
    %v2925 = vunpack.c.h.b16 %v2463
    %v2926 = vunpack.c.l.b16 %v2464
    %v2927 = vunpack.c.h.b16 %v2464
    %v2928 = vunpack.c.l.b16 %v2465
    %v2929 = vunpack.c.h.b16 %v2465
    %v2930 = vunpack.c.l.b16 %v2466
    %v2931 = vunpack.c.h.b16 %v2466
    %v2932 = vunpack.c.l.b16 %v2467
    %v2933 = vunpack.c.h.b16 %v2467
    %v2934 = vunpack.c.l.b16 %v2468
    %v2935 = vunpack.c.h.b16 %v2468
    %v2936 = vunpack.c.l.b16 %v2469
    %v2937 = vunpack.c.h.b16 %v2469
    %v2938 = vunpack.c.l.b16 %v2470
    %v2939 = vunpack.c.h.b16 %v2470
    %v2940 = vunpack.c.l.b16 %v2471
    %v2941 = vunpack.c.h.b16 %v2471
    %v2942 = vunpack.c.l.b16 %v2472
    %v2943 = vunpack.c.h.b16 %v2472
    %v2944 = vunpack.c.l.b16 %v2473
    %v2945 = vunpack.c.h.b16 %v2473
    %v2946 = vunpack.c.l.b16 %v2474
    %v2947 = vunpack.c.h.b16 %v2474
    %v2948 = vunpack.c.l.b16 %v2475
    %v2949 = vunpack.c.h.b16 %v2475
    %v2950 = vunpack.c.l.b16 %v2476
    %v2951 = vunpack.c.h.b16 %v2476
    %v2952 = vunpack.c.l.b16 %v2477
    %v2953 = vunpack.c.h.b16 %v2477
    %v2954 = vunpack.c.l.b16 %v2478
    %v2955 = vunpack.c.h.b16 %v2478
    %v2956 = vunpack.c.l.b16 %v2479
    %v2957 = vunpack.c.h.b16 %v2479
    %v2958 = vunpack.c.l.b16 %v2480
    %v2959 = vunpack.c.h.b16 %v2480
    %v2960 = vunpack.c.l.b16 %v2481
    %v2961 = vunpack.c.h.b16 %v2481
    %v2962 = vunpack.c.l.b16 %v2482
    %v2963 = vunpack.c.h.b16 %v2482
    %v2964 = vunpack.c.l.b16 %v2483
    %v2965 = vunpack.c.h.b16 %v2483
    %v2966 = vunpack.c.l.b16 %v2484
    %v2967 = vunpack.c.h.b16 %v2484
    %v2968 = vunpack.c.l.b16 %v2485
    %v2969 = vunpack.c.h.b16 %v2485
    %v2970 = vunpack.c.l.b16 %v2486
    %v2971 = vunpack.c.h.b16 %v2486
    %v2972 = vunpack.c.l.b16 %v2487
    %v2973 = vunpack.c.h.b16 %v2487
    %v2974 = vunpack.c.l.b16 %v2488
    %v2975 = vunpack.c.h.b16 %v2488
    %v2976 = vunpack.c.l.b16 %v2489
    %v2977 = vunpack.c.h.b16 %v2489
    %v2978 = vunpack.c.l.b16 %v2490
    %v2979 = vunpack.c.h.b16 %v2490
    %v2980 = vunpack.c.l.b16 %v2491
    %v2981 = vunpack.c.h.b16 %v2491
    %v2982 = vunpack.c.l.b16 %v2492
    %v2983 = vunpack.c.h.b16 %v2492
    %v2984 = vunpack.c.l.b16 %v2493
    %v2985 = vunpack.c.h.b16 %v2493
    %v2986 = vunpack.c.l.b16 %v2494
    %v2987 = vunpack.c.h.b16 %v2494
    %v2988 = vunpack.c.l.b16 %v2495
    %v2989 = vunpack.c.h.b16 %v2495
    %v2990 = vunpack.c.l.b16 %v2496
    %v2991 = vunpack.c.h.b16 %v2496
    %v2992 = vunpack.c.l.b16 %v2497
    %v2993 = vunpack.c.h.b16 %v2497
    %v2994 = vunpack.c.l.b16 %v2498
    %v2995 = vunpack.c.h.b16 %v2498
    %v2996 = vunpack.c.l.b16 %v2499
    %v2997 = vunpack.c.h.b16 %v2499
    %v2998 = vunpack.c.l.b16 %v2500
    %v2999 = vunpack.c.h.b16 %v2500
    %v3000 = vunpack.c.l.b16 %v2501
    %v3001 = vunpack.c.h.b16 %v2501
    %v3002 = vunpack.c.l.b16 %v2502
    %v3003 = vunpack.c.h.b16 %v2502
    %v3004 = vunpack.c.l.b16 %v2503
    %v3005 = vunpack.c.h.b16 %v2503
    %v3006 = vunpack.c.l.b16 %v2504
    %v3007 = vunpack.c.h.b16 %v2504
    %v3008 = vunpack.c.l.b16 %v2505
    %v3009 = vunpack.c.h.b16 %v2505
    %v3010 = vunpack.c.l.b16 %v2506
    %v3011 = vunpack.c.h.b16 %v2506
    %v3012 = vunpack.c.l.b16 %v2507
    %v3013 = vunpack.c.h.b16 %v2507
    %v3014 = vunpack.c.l.b16 %v2508
    %v3015 = vunpack.c.h.b16 %v2508
    %v3016 = vunpack.c.l.b16 %v2509
    %v3017 = vunpack.c.h.b16 %v2509
    %v3018 = vunpack.c.l.b16 %v2510
    %v3019 = vunpack.c.h.b16 %v2510
    %v3020 = vunpack.c.l.b16 %v2511
    %v3021 = vunpack.c.h.b16 %v2511
    %v3022 = vunpack.c.l.b16 %v2512
    %v3023 = vunpack.c.h.b16 %v2512
    %v3024 = vunpack.c.l.b16 %v2513
    %v3025 = vunpack.c.h.b16 %v2513
    %v3026 = vunpack.c.l.b16 %v2514
    %v3027 = vunpack.c.h.b16 %v2514
    %v3028 = vunpack.c.l.b16 %v2515
    %v3029 = vunpack.c.h.b16 %v2515
    %v3030 = vunpack.c.l.b16 %v2516
    %v3031 = vunpack.c.h.b16 %v2516
    %v3032 = vunpack.c.l.b16 %v2517
    %v3033 = vunpack.c.h.b16 %v2517
    %v3034 = vunpack.c.l.b16 %v2518
    %v3035 = vunpack.c.h.b16 %v2518
    %v3036 = vunpack.c.l.b16 %v2519
    %v3037 = vunpack.c.h.b16 %v2519
    %v3038 = vunpack.c.l.b16 %v2520
    %v3039 = vunpack.c.h.b16 %v2520
    %v3040 = vunpack.c.l.b16 %v2521
    %v3041 = vunpack.c.h.b16 %v2521
    %v3042 = vunpack.c.l.b16 %v2522
    %v3043 = vunpack.c.h.b16 %v2522
    %v3044 = vunpack.c.l.b16 %v2523
    %v3045 = vunpack.c.h.b16 %v2523
    %v3046 = vunpack.c.l.b16 %v2524
    %v3047 = vunpack.c.h.b16 %v2524
    %v3048 = vunpack.c.l.b16 %v2525
    %v3049 = vunpack.c.h.b16 %v2525
    %v3050 = vunpack.c.l.b16 %v2526
    %v3051 = vunpack.c.h.b16 %v2526
    %v3052 = vunpack.c.l.b16 %v2527
    %v3053 = vunpack.c.h.b16 %v2527
    %v3054 = vunpack.c.l.b16 %v2528
    %v3055 = vunpack.c.h.b16 %v2528
    %v3056 = vunpack.c.l.b16 %v2529
    %v3057 = vunpack.c.h.b16 %v2529
    %v3058 = vunpack.c.l.b16 %v2530
    %v3059 = vunpack.c.h.b16 %v2530
    %v3060 = vunpack.c.l.b16 %v2531
    %v3061 = vunpack.c.h.b16 %v2531
    %v3062 = vunpack.c.l.b16 %v2532
    %v3063 = vunpack.c.h.b16 %v2532
    %v3064 = vunpack.c.l.b16 %v2533
    %v3065 = vunpack.c.h.b16 %v2533
    %v3066 = vunpack.c.l.b16 %v2534
    %v3067 = vunpack.c.h.b16 %v2534
    %v3068 = vunpack.c.l.b16 %v2535
    %v3069 = vunpack.c.h.b16 %v2535
    %v3070 = vunpack.c.l.b16 %v2536
    %v3071 = vunpack.c.h.b16 %v2536
    %v3072 = vunpack.c.l.b16 %v2537
    %v3073 = vunpack.c.h.b16 %v2537
    %v3074 = vunpack.c.l.b16 %v2538
    %v3075 = vunpack.c.h.b16 %v2538
    %v3076 = vunpack.c.l.b16 %v2539
    %v3077 = vunpack.c.h.b16 %v2539
    %v3078 = vunpack.c.l.b16 %v2540
    %v3079 = vunpack.c.h.b16 %v2540
    %v3080 = vunpack.c.l.b16 %v2541
    %v3081 = vunpack.c.h.b16 %v2541
    %v3082 = vunpack.c.l.b16 %v2542
    %v3083 = vunpack.c.h.b16 %v2542
    %v3084 = vunpack.c.l.b16 %v2543
    %v3085 = vunpack.c.h.b16 %v2543
    %v3086 = vunpack.c.l.b16 %v2544
    %v3087 = vunpack.c.h.b16 %v2544
    %v3088 = vunpack.c.l.b16 %v2545
    %v3089 = vunpack.c.h.b16 %v2545
    %v3090 = vunpack.c.l.b16 %v2546
    %v3091 = vunpack.c.h.b16 %v2546
    %v3092 = vunpack.c.l.b16 %v2547
    %v3093 = vunpack.c.h.b16 %v2547
    %v3094 = vunpack.c.l.b16 %v2548
    %v3095 = vunpack.c.h.b16 %v2548
    %v3096 = vunpack.c.l.b16 %v2549
    %v3097 = vunpack.c.h.b16 %v2549
    %v3098 = vunpack.c.l.b16 %v2550
    %v3099 = vunpack.c.h.b16 %v2550
    %v3100 = vunpack.c.l.b16 %v2551
    %v3101 = vunpack.c.h.b16 %v2551
    %v3102 = vunpack.c.l.b16 %v2552
    %v3103 = vunpack.c.h.b16 %v2552
    %v3104 = vunpack.c.l.b16 %v2553
    %v3105 = vunpack.c.h.b16 %v2553
    %v3106 = vunpack.c.l.b16 %v2554
    %v3107 = vunpack.c.h.b16 %v2554
    %v3108 = vunpack.c.l.b16 %v2555
    %v3109 = vunpack.c.h.b16 %v2555
    %v3110 = vunpack.c.l.b16 %v2556
    %v3111 = vunpack.c.h.b16 %v2556
    %v3112 = vunpack.c.l.b16 %v2557
    %v3113 = vunpack.c.h.b16 %v2557
    %v3114 = vunpack.c.l.b16 %v2558
    %v3115 = vunpack.c.h.b16 %v2558
    %v3116 = vunpack.c.l.b16 %v2559
    %v3117 = vunpack.c.h.b16 %v2559
    %v3118 = vunpack.c.l.b16 %v2560
    %v3119 = vunpack.c.h.b16 %v2560
    %v3120 = vunpack.c.l.b16 %v2561
    %v3121 = vunpack.c.h.b16 %v2561
    %v3122 = vunpack.c.l.b16 %v2562
    %v3123 = vunpack.c.h.b16 %v2562
    %v3124 = vunpack.c.l.b16 %v2563
    %v3125 = vunpack.c.h.b16 %v2563
    %v3126 = vunpack.c.l.b16 %v2564
    %v3127 = vunpack.c.h.b16 %v2564
    %v3128 = vunpack.c.l.b16 %v2565
    %v3129 = vunpack.c.h.b16 %v2565
    %v3130 = vunpack.c.l.b16 %v2566
    %v3131 = vunpack.c.h.b16 %v2566
    %v3132 = vunpack.c.l.b16 %v2567
    %v3133 = vunpack.c.h.b16 %v2567
    %v3134 = vunpack.c.l.b16 %v2568
    %v3135 = vunpack.c.h.b16 %v2568
    %v3136 = vunpack.c.l.b16 %v2569
    %v3137 = vunpack.c.h.b16 %v2569
    %v3138 = vunpack.c.l.b16 %v2570
    %v3139 = vunpack.c.h.b16 %v2570
    %v3140 = vunpack.c.l.b16 %v2571
    %v3141 = vunpack.c.h.b16 %v2571
    %v3142 = vunpack.c.l.b16 %v2572
    %v3143 = vunpack.c.h.b16 %v2572
    %v3144 = vunpack.c.l.b16 %v2573
    %v3145 = vunpack.c.h.b16 %v2573
    %v3146 = vunpack.c.l.b16 %v2574
    %v3147 = vunpack.c.h.b16 %v2574
    %v3148 = vunpack.c.l.b16 %v2575
    %v3149 = vunpack.c.h.b16 %v2575
    %v3150 = vunpack.c.l.b16 %v2576
    %v3151 = vunpack.c.h.b16 %v2576
    %v3152 = vunpack.c.l.b16 %v2577
    %v3153 = vunpack.c.h.b16 %v2577
    %v3154 = vunpack.c.l.b16 %v2578
    %v3155 = vunpack.c.h.b16 %v2578
    %v3156 = vunpack.c.l.b16 %v2579
    %v3157 = vunpack.c.h.b16 %v2579
    %v3158 = vunpack.c.l.b16 %v2580
    %v3159 = vunpack.c.h.b16 %v2580
    %v3160 = vunpack.c.l.b16 %v2581
    %v3161 = vunpack.c.h.b16 %v2581
    %v3162 = vunpack.c.l.b16 %v2582
    %v3163 = vunpack.c.h.b16 %v2582
    %v3164 = vunpack.c.l.b16 %v2583
    %v3165 = vunpack.c.h.b16 %v2583
    %v3166 = vunpack.c.l.b16 %v2584
    %v3167 = vunpack.c.h.b16 %v2584
    %v3168 = vunpack.c.l.b16 %v2585
    %v3169 = vunpack.c.h.b16 %v2585
    %v3170 = vunpack.c.l.b16 %v2586
    %v3171 = vunpack.c.h.b16 %v2586
    %v3172 = vunpack.c.l.b16 %v2587
    %v3173 = vunpack.c.h.b16 %v2587
    %v3174 = vpack.c.b16 %v2794, %v2790
    %v3175 = vpack.c.b16 %v2795, %v2791
    %v3176 = vpack.c.b16 %v2796, %v2792
    %v3177 = vpack.c.b16 %v2797, %v2793
    %v3178 = vpack.c.b16 %v2802, %v2798
    %v3179 = vpack.c.b16 %v2803, %v2799
    %v3180 = vpack.c.b16 %v2804, %v2800
    %v3181 = vpack.c.b16 %v2805, %v2801
    %v3182 = vpack.c.b16 %v2810, %v2806
    %v3183 = vpack.c.b16 %v2811, %v2807
    %v3184 = vpack.c.b16 %v2812, %v2808
    %v3185 = vpack.c.b16 %v2813, %v2809
    %v3186 = vpack.c.b16 %v2818, %v2814
    %v3187 = vpack.c.b16 %v2819, %v2815
    %v3188 = vpack.c.b16 %v2820, %v2816
    %v3189 = vpack.c.b16 %v2821, %v2817
    %v3190 = vpack.c.b16 %v2826, %v2822
    %v3191 = vpack.c.b16 %v2827, %v2823
    %v3192 = vpack.c.b16 %v2828, %v2824
    %v3193 = vpack.c.b16 %v2829, %v2825
    %v3194 = vpack.c.b16 %v2834, %v2830
    %v3195 = vpack.c.b16 %v2835, %v2831
    %v3196 = vpack.c.b16 %v2836, %v2832
    %v3197 = vpack.c.b16 %v2837, %v2833
    %v3198 = vpack.c.b16 %v2842, %v2838
    %v3199 = vpack.c.b16 %v2843, %v2839
    %v3200 = vpack.c.b16 %v2844, %v2840
    %v3201 = vpack.c.b16 %v2845, %v2841
    %v3202 = vpack.c.b16 %v2850, %v2846
    %v3203 = vpack.c.b16 %v2851, %v2847
    %v3204 = vpack.c.b16 %v2852, %v2848
    %v3205 = vpack.c.b16 %v2853, %v2849
    %v3206 = vpack.c.b16 %v2858, %v2854
    %v3207 = vpack.c.b16 %v2859, %v2855
    %v3208 = vpack.c.b16 %v2860, %v2856
    %v3209 = vpack.c.b16 %v2861, %v2857
    %v3210 = vpack.c.b16 %v2866, %v2862
    %v3211 = vpack.c.b16 %v2867, %v2863
    %v3212 = vpack.c.b16 %v2868, %v2864
    %v3213 = vpack.c.b16 %v2869, %v2865
    %v3214 = vpack.c.b16 %v2874, %v2870
    %v3215 = vpack.c.b16 %v2875, %v2871
    %v3216 = vpack.c.b16 %v2876, %v2872
    %v3217 = vpack.c.b16 %v2877, %v2873
    %v3218 = vpack.c.b16 %v2882, %v2878
    %v3219 = vpack.c.b16 %v2883, %v2879
    %v3220 = vpack.c.b16 %v2884, %v2880
    %v3221 = vpack.c.b16 %v2885, %v2881
    %v3222 = vpack.c.b16 %v2890, %v2886
    %v3223 = vpack.c.b16 %v2891, %v2887
    %v3224 = vpack.c.b16 %v2892, %v2888
    %v3225 = vpack.c.b16 %v2893, %v2889
    %v3226 = vpack.c.b16 %v2898, %v2894
    %v3227 = vpack.c.b16 %v2899, %v2895
    %v3228 = vpack.c.b16 %v2900, %v2896
    %v3229 = vpack.c.b16 %v2901, %v2897
    %v3230 = vpack.c.b16 %v2906, %v2902
    %v3231 = vpack.c.b16 %v2907, %v2903
    %v3232 = vpack.c.b16 %v2908, %v2904
    %v3233 = vpack.c.b16 %v2909, %v2905
    %v3234 = vpack.c.b16 %v2914, %v2910
    %v3235 = vpack.c.b16 %v2915, %v2911
    %v3236 = vpack.c.b16 %v2916, %v2912
    %v3237 = vpack.c.b16 %v2917, %v2913
    %v3238 = vpack.c.b16 %v2922, %v2918
    %v3239 = vpack.c.b16 %v2923, %v2919
    %v3240 = vpack.c.b16 %v2924, %v2920
    %v3241 = vpack.c.b16 %v2925, %v2921
    %v3242 = vpack.c.b16 %v2930, %v2926
    %v3243 = vpack.c.b16 %v2931, %v2927
    %v3244 = vpack.c.b16 %v2932, %v2928
    %v3245 = vpack.c.b16 %v2933, %v2929
    %v3246 = vpack.c.b16 %v2938, %v2934
    %v3247 = vpack.c.b16 %v2939, %v2935
    %v3248 = vpack.c.b16 %v2940, %v2936
    %v3249 = vpack.c.b16 %v2941, %v2937
    %v3250 = vpack.c.b16 %v2946, %v2942
    %v3251 = vpack.c.b16 %v2947, %v2943
    %v3252 = vpack.c.b16 %v2948, %v2944
    %v3253 = vpack.c.b16 %v2949, %v2945
    %v3254 = vpack.c.b16 %v2954, %v2950
    %v3255 = vpack.c.b16 %v2955, %v2951
    %v3256 = vpack.c.b16 %v2956, %v2952
    %v3257 = vpack.c.b16 %v2957, %v2953
    %v3258 = vpack.c.b16 %v2962, %v2958
    %v3259 = vpack.c.b16 %v2963, %v2959
    %v3260 = vpack.c.b16 %v2964, %v2960
    %v3261 = vpack.c.b16 %v2965, %v2961
    %v3262 = vpack.c.b16 %v2970, %v2966
    %v3263 = vpack.c.b16 %v2971, %v2967
    %v3264 = vpack.c.b16 %v2972, %v2968
    %v3265 = vpack.c.b16 %v2973, %v2969
    %v3266 = vpack.c.b16 %v2978, %v2974
    %v3267 = vpack.c.b16 %v2979, %v2975
    %v3268 = vpack.c.b16 %v2980, %v2976
    %v3269 = vpack.c.b16 %v2981, %v2977
    %v3270 = vpack.c.b16 %v2986, %v2982
    %v3271 = vpack.c.b16 %v2987, %v2983
    %v3272 = vpack.c.b16 %v2988, %v2984
    %v3273 = vpack.c.b16 %v2989, %v2985
    %v3274 = vpack.c.b16 %v2994, %v2990
    %v3275 = vpack.c.b16 %v2995, %v2991
    %v3276 = vpack.c.b16 %v2996, %v2992
    %v3277 = vpack.c.b16 %v2997, %v2993
    %v3278 = vpack.c.b16 %v3002, %v2998
    %v3279 = vpack.c.b16 %v3003, %v2999
    %v3280 = vpack.c.b16 %v3004, %v3000
    %v3281 = vpack.c.b16 %v3005, %v3001
    %v3282 = vpack.c.b16 %v3010, %v3006
    %v3283 = vpack.c.b16 %v3011, %v3007
    %v3284 = vpack.c.b16 %v3012, %v3008
    %v3285 = vpack.c.b16 %v3013, %v3009
    %v3286 = vpack.c.b16 %v3018, %v3014
    %v3287 = vpack.c.b16 %v3019, %v3015
    %v3288 = vpack.c.b16 %v3020, %v3016
    %v3289 = vpack.c.b16 %v3021, %v3017
    %v3290 = vpack.c.b16 %v3026, %v3022
    %v3291 = vpack.c.b16 %v3027, %v3023
    %v3292 = vpack.c.b16 %v3028, %v3024
    %v3293 = vpack.c.b16 %v3029, %v3025
    %v3294 = vpack.c.b16 %v3034, %v3030
    %v3295 = vpack.c.b16 %v3035, %v3031
    %v3296 = vpack.c.b16 %v3036, %v3032
    %v3297 = vpack.c.b16 %v3037, %v3033
    %v3298 = vpack.c.b16 %v3042, %v3038
    %v3299 = vpack.c.b16 %v3043, %v3039
    %v3300 = vpack.c.b16 %v3044, %v3040
    %v3301 = vpack.c.b16 %v3045, %v3041
    %v3302 = vpack.c.b16 %v3050, %v3046
    %v3303 = vpack.c.b16 %v3051, %v3047
    %v3304 = vpack.c.b16 %v3052, %v3048
    %v3305 = vpack.c.b16 %v3053, %v3049
    %v3306 = vpack.c.b16 %v3058, %v3054
    %v3307 = vpack.c.b16 %v3059, %v3055
    %v3308 = vpack.c.b16 %v3060, %v3056
    %v3309 = vpack.c.b16 %v3061, %v3057
    %v3310 = vpack.c.b16 %v3066, %v3062
    %v3311 = vpack.c.b16 %v3067, %v3063
    %v3312 = vpack.c.b16 %v3068, %v3064
    %v3313 = vpack.c.b16 %v3069, %v3065
    %v3314 = vpack.c.b16 %v3074, %v3070
    %v3315 = vpack.c.b16 %v3075, %v3071
    %v3316 = vpack.c.b16 %v3076, %v3072
    %v3317 = vpack.c.b16 %v3077, %v3073
    %v3318 = vpack.c.b16 %v3082, %v3078
    %v3319 = vpack.c.b16 %v3083, %v3079
    %v3320 = vpack.c.b16 %v3084, %v3080
    %v3321 = vpack.c.b16 %v3085, %v3081
    %v3322 = vpack.c.b16 %v3090, %v3086
    %v3323 = vpack.c.b16 %v3091, %v3087
    %v3324 = vpack.c.b16 %v3092, %v3088
    %v3325 = vpack.c.b16 %v3093, %v3089
    %v3326 = vpack.c.b16 %v3098, %v3094
    %v3327 = vpack.c.b16 %v3099, %v3095
    %v3328 = vpack.c.b16 %v3100, %v3096
    %v3329 = vpack.c.b16 %v3101, %v3097
    %v3330 = vpack.c.b16 %v3106, %v3102
    %v3331 = vpack.c.b16 %v3107, %v3103
    %v3332 = vpack.c.b16 %v3108, %v3104
    %v3333 = vpack.c.b16 %v3109, %v3105
    %v3334 = vpack.c.b16 %v3114, %v3110
    %v3335 = vpack.c.b16 %v3115, %v3111
    %v3336 = vpack.c.b16 %v3116, %v3112
    %v3337 = vpack.c.b16 %v3117, %v3113
    %v3338 = vpack.c.b16 %v3122, %v3118
    %v3339 = vpack.c.b16 %v3123, %v3119
    %v3340 = vpack.c.b16 %v3124, %v3120
    %v3341 = vpack.c.b16 %v3125, %v3121
    %v3342 = vpack.c.b16 %v3130, %v3126
    %v3343 = vpack.c.b16 %v3131, %v3127
    %v3344 = vpack.c.b16 %v3132, %v3128
    %v3345 = vpack.c.b16 %v3133, %v3129
    %v3346 = vpack.c.b16 %v3138, %v3134
    %v3347 = vpack.c.b16 %v3139, %v3135
    %v3348 = vpack.c.b16 %v3140, %v3136
    %v3349 = vpack.c.b16 %v3141, %v3137
    %v3350 = vpack.c.b16 %v3146, %v3142
    %v3351 = vpack.c.b16 %v3147, %v3143
    %v3352 = vpack.c.b16 %v3148, %v3144
    %v3353 = vpack.c.b16 %v3149, %v3145
    %v3354 = vpack.c.b16 %v3154, %v3150
    %v3355 = vpack.c.b16 %v3155, %v3151
    %v3356 = vpack.c.b16 %v3156, %v3152
    %v3357 = vpack.c.b16 %v3157, %v3153
    %v3358 = vpack.c.b16 %v3162, %v3158
    %v3359 = vpack.c.b16 %v3163, %v3159
    %v3360 = vpack.c.b16 %v3164, %v3160
    %v3361 = vpack.c.b16 %v3165, %v3161
    %v3362 = vpack.c.b16 %v3170, %v3166
    %v3363 = vpack.c.b16 %v3171, %v3167
    %v3364 = vpack.c.b16 %v3172, %v3168
    %v3365 = vpack.c.b16 %v3173, %v3169
    %3558 = vmatpush.bf16.msra.mxu0 %v3202
    %3559 = vmatpush.bf16.msra.mxu0 %v3198
    %3560 = vmatpush.bf16.msra.mxu0 %v3194
    %3561 = vmatpush.bf16.msra.mxu0 %v3190
    %3562 = vmatpush.bf16.msra.mxu0 %v3186
    %3563 = vmatpush.bf16.msra.mxu0 %v3182
    %3564 = vmatpush.bf16.msra.mxu0 %v3178
    %3565 = vmatpush.bf16.msra.mxu0 %v3174
    %3566 = vmatmul.bf16.gmra.mxu0 %v2390
    %v3567 = vpop.f32.mrf.mxu0
    %v3568 = vadd.f32 %v2590, %v3567
    %v3569 = vpop.f32.mrf.mxu0
    %v3570 = vadd.f32 %v2590, %v3569
    %3571 = vdwg.mxu0
    %3572 = vmatpush.bf16.msra.mxu0 %v3234
    %3573 = vmatpush.bf16.msra.mxu0 %v3230
    %3574 = vmatpush.bf16.msra.mxu0 %v3226
    %3575 = vmatpush.bf16.msra.mxu0 %v3222
    %3576 = vmatpush.bf16.msra.mxu0 %v3218
    %3577 = vmatpush.bf16.msra.mxu0 %v3214
    %3578 = vmatpush.bf16.msra.mxu0 %v3210
    %3579 = vmatpush.bf16.msra.mxu0 %v3206
    %3580 = vmatmul.bf16.gmra.mxu0 %v2391
    %v3581 = vpop.f32.mrf.mxu0
    %v3582 = vadd.f32 %v3568, %v3581
    %v3583 = vpop.f32.mrf.mxu0
    %v3584 = vadd.f32 %v3570, %v3583
    %3585 = vdwg.mxu0
    %3586 = vmatpush.bf16.msra.mxu0 %v3266
    %3587 = vmatpush.bf16.msra.mxu0 %v3262
    %3588 = vmatpush.bf16.msra.mxu0 %v3258
    %3589 = vmatpush.bf16.msra.mxu0 %v3254
    %3590 = vmatpush.bf16.msra.mxu0 %v3250
    %3591 = vmatpush.bf16.msra.mxu0 %v3246
    %3592 = vmatpush.bf16.msra.mxu0 %v3242
    %3593 = vmatpush.bf16.msra.mxu0 %v3238
    %3594 = vmatmul.bf16.gmra.mxu0 %v2392
    %v3595 = vpop.f32.mrf.mxu0
    %v3596 = vadd.f32 %v3582, %v3595
    %v3597 = vpop.f32.mrf.mxu0
    %v3598 = vadd.f32 %v3584, %v3597
    %3599 = vdwg.mxu0
    %3600 = vmatpush.bf16.msra.mxu0 %v3298
    %3601 = vmatpush.bf16.msra.mxu0 %v3294
    %3602 = vmatpush.bf16.msra.mxu0 %v3290
    %3603 = vmatpush.bf16.msra.mxu0 %v3286
    %3604 = vmatpush.bf16.msra.mxu0 %v3282
    %3605 = vmatpush.bf16.msra.mxu0 %v3278
    %3606 = vmatpush.bf16.msra.mxu0 %v3274
    %3607 = vmatpush.bf16.msra.mxu0 %v3270
    %3608 = vmatmul.bf16.gmra.mxu0 %v2393
    %v3609 = vpop.f32.mrf.mxu0
    %v3610 = vadd.f32 %v3596, %v3609
    %v3611 = vpop.f32.mrf.mxu0
    %v3612 = vadd.f32 %v3598, %v3611
    %3613 = vdwg.mxu0
    %3614 = vmatpush.bf16.msra.mxu0 %v3330
    %3615 = vmatpush.bf16.msra.mxu0 %v3326
    %3616 = vmatpush.bf16.msra.mxu0 %v3322
    %3617 = vmatpush.bf16.msra.mxu0 %v3318
    %3618 = vmatpush.bf16.msra.mxu0 %v3314
    %3619 = vmatpush.bf16.msra.mxu0 %v3310
    %3620 = vmatpush.bf16.msra.mxu0 %v3306
    %3621 = vmatpush.bf16.msra.mxu0 %v3302
    %3622 = vmatmul.bf16.gmra.mxu0 %v2394
    %v3623 = vpop.f32.mrf.mxu0
    %v3624 = vadd.f32 %v3610, %v3623
    %v3625 = vpop.f32.mrf.mxu0
    %v3626 = vadd.f32 %v3612, %v3625
    %3627 = vdwg.mxu0
    %3628 = vmatpush.bf16.msra.mxu0 %v3362
    %3629 = vmatpush.bf16.msra.mxu0 %v3358
    %3630 = vmatpush.bf16.msra.mxu0 %v3354
    %3631 = vmatpush.bf16.msra.mxu0 %v3350
    %3632 = vmatpush.bf16.msra.mxu0 %v3346
    %3633 = vmatpush.bf16.msra.mxu0 %v3342
    %3634 = vmatpush.bf16.msra.mxu0 %v3338
    %3635 = vmatpush.bf16.msra.mxu0 %v3334
    %3636 = vmatmul.bf16.gmra.mxu0 %v2395
    %v3637 = vpop.f32.mrf.mxu0
    %v3638 = vadd.f32 %v3624, %v3637
    %v3639 = vpop.f32.mrf.mxu0
    %v3640 = vadd.f32 %v3626, %v3639
    %3641 = vdwg.mxu0
    %3642 = vmatpush.bf16.msra.mxu0 %v3203
    %3643 = vmatpush.bf16.msra.mxu0 %v3199
    %3644 = vmatpush.bf16.msra.mxu0 %v3195
    %3645 = vmatpush.bf16.msra.mxu0 %v3191
    %3646 = vmatpush.bf16.msra.mxu0 %v3187
    %3647 = vmatpush.bf16.msra.mxu0 %v3183
    %3648 = vmatpush.bf16.msra.mxu0 %v3179
    %3649 = vmatpush.bf16.msra.mxu0 %v3175
    %3650 = vmatmul.bf16.gmra.mxu0 %v2390
    %v3651 = vpop.f32.mrf.mxu0
    %v3652 = vadd.f32 %v2591, %v3651
    %v3653 = vpop.f32.mrf.mxu0
    %v3654 = vadd.f32 %v2591, %v3653
    %3655 = vdwg.mxu0
    %3656 = vmatpush.bf16.msra.mxu0 %v3235
    %3657 = vmatpush.bf16.msra.mxu0 %v3231
    %3658 = vmatpush.bf16.msra.mxu0 %v3227
    %3659 = vmatpush.bf16.msra.mxu0 %v3223
    %3660 = vmatpush.bf16.msra.mxu0 %v3219
    %3661 = vmatpush.bf16.msra.mxu0 %v3215
    %3662 = vmatpush.bf16.msra.mxu0 %v3211
    %3663 = vmatpush.bf16.msra.mxu0 %v3207
    %3664 = vmatmul.bf16.gmra.mxu0 %v2391
    %v3665 = vpop.f32.mrf.mxu0
    %v3666 = vadd.f32 %v3652, %v3665
    %v3667 = vpop.f32.mrf.mxu0
    %v3668 = vadd.f32 %v3654, %v3667
    %3669 = vdwg.mxu0
    %3670 = vmatpush.bf16.msra.mxu0 %v3267
    %3671 = vmatpush.bf16.msra.mxu0 %v3263
    %3672 = vmatpush.bf16.msra.mxu0 %v3259
    %3673 = vmatpush.bf16.msra.mxu0 %v3255
    %3674 = vmatpush.bf16.msra.mxu0 %v3251
    %3675 = vmatpush.bf16.msra.mxu0 %v3247
    %3676 = vmatpush.bf16.msra.mxu0 %v3243
    %3677 = vmatpush.bf16.msra.mxu0 %v3239
    %3678 = vmatmul.bf16.gmra.mxu0 %v2392
    %v3679 = vpop.f32.mrf.mxu0
    %v3680 = vadd.f32 %v3666, %v3679
    %v3681 = vpop.f32.mrf.mxu0
    %v3682 = vadd.f32 %v3668, %v3681
    %3683 = vdwg.mxu0
    %3684 = vmatpush.bf16.msra.mxu0 %v3299
    %3685 = vmatpush.bf16.msra.mxu0 %v3295
    %3686 = vmatpush.bf16.msra.mxu0 %v3291
    %3687 = vmatpush.bf16.msra.mxu0 %v3287
    %3688 = vmatpush.bf16.msra.mxu0 %v3283
    %3689 = vmatpush.bf16.msra.mxu0 %v3279
    %3690 = vmatpush.bf16.msra.mxu0 %v3275
    %3691 = vmatpush.bf16.msra.mxu0 %v3271
    %3692 = vmatmul.bf16.gmra.mxu0 %v2393
    %v3693 = vpop.f32.mrf.mxu0
    %v3694 = vadd.f32 %v3680, %v3693
    %v3695 = vpop.f32.mrf.mxu0
    %v3696 = vadd.f32 %v3682, %v3695
    %3697 = vdwg.mxu0
    %3698 = vmatpush.bf16.msra.mxu0 %v3331
    %3699 = vmatpush.bf16.msra.mxu0 %v3327
    %3700 = vmatpush.bf16.msra.mxu0 %v3323
    %3701 = vmatpush.bf16.msra.mxu0 %v3319
    %3702 = vmatpush.bf16.msra.mxu0 %v3315
    %3703 = vmatpush.bf16.msra.mxu0 %v3311
    %3704 = vmatpush.bf16.msra.mxu0 %v3307
    %3705 = vmatpush.bf16.msra.mxu0 %v3303
    %3706 = vmatmul.bf16.gmra.mxu0 %v2394
    %v3707 = vpop.f32.mrf.mxu0
    %v3708 = vadd.f32 %v3694, %v3707
    %v3709 = vpop.f32.mrf.mxu0
    %v3710 = vadd.f32 %v3696, %v3709
    %3711 = vdwg.mxu0
    %3712 = vmatpush.bf16.msra.mxu0 %v3363
    %3713 = vmatpush.bf16.msra.mxu0 %v3359
    %3714 = vmatpush.bf16.msra.mxu0 %v3355
    %3715 = vmatpush.bf16.msra.mxu0 %v3351
    %3716 = vmatpush.bf16.msra.mxu0 %v3347
    %3717 = vmatpush.bf16.msra.mxu0 %v3343
    %3718 = vmatpush.bf16.msra.mxu0 %v3339
    %3719 = vmatpush.bf16.msra.mxu0 %v3335
    %3720 = vmatmul.bf16.gmra.mxu0 %v2395
    %v3721 = vpop.f32.mrf.mxu0
    %v3722 = vadd.f32 %v3708, %v3721
    %v3723 = vpop.f32.mrf.mxu0
    %v3724 = vadd.f32 %v3710, %v3723
    %3725 = vdwg.mxu0
    %3726 = vmatpush.bf16.msra.mxu0 %v3204
    %3727 = vmatpush.bf16.msra.mxu0 %v3200
    %3728 = vmatpush.bf16.msra.mxu0 %v3196
    %3729 = vmatpush.bf16.msra.mxu0 %v3192
    %3730 = vmatpush.bf16.msra.mxu0 %v3188
    %3731 = vmatpush.bf16.msra.mxu0 %v3184
    %3732 = vmatpush.bf16.msra.mxu0 %v3180
    %3733 = vmatpush.bf16.msra.mxu0 %v3176
    %3734 = vmatmul.bf16.gmra.mxu0 %v2390
    %v3735 = vpop.f32.mrf.mxu0
    %v3736 = vadd.f32 %v2592, %v3735
    %v3737 = vpop.f32.mrf.mxu0
    %v3738 = vadd.f32 %v2592, %v3737
    %3739 = vdwg.mxu0
    %3740 = vmatpush.bf16.msra.mxu0 %v3236
    %3741 = vmatpush.bf16.msra.mxu0 %v3232
    %3742 = vmatpush.bf16.msra.mxu0 %v3228
    %3743 = vmatpush.bf16.msra.mxu0 %v3224
    %3744 = vmatpush.bf16.msra.mxu0 %v3220
    %3745 = vmatpush.bf16.msra.mxu0 %v3216
    %3746 = vmatpush.bf16.msra.mxu0 %v3212
    %3747 = vmatpush.bf16.msra.mxu0 %v3208
    %3748 = vmatmul.bf16.gmra.mxu0 %v2391
    %v3749 = vpop.f32.mrf.mxu0
    %v3750 = vadd.f32 %v3736, %v3749
    %v3751 = vpop.f32.mrf.mxu0
    %v3752 = vadd.f32 %v3738, %v3751
    %3753 = vdwg.mxu0
    %3754 = vmatpush.bf16.msra.mxu0 %v3268
    %3755 = vmatpush.bf16.msra.mxu0 %v3264
    %3756 = vmatpush.bf16.msra.mxu0 %v3260
    %3757 = vmatpush.bf16.msra.mxu0 %v3256
    %3758 = vmatpush.bf16.msra.mxu0 %v3252
    %3759 = vmatpush.bf16.msra.mxu0 %v3248
    %3760 = vmatpush.bf16.msra.mxu0 %v3244
    %3761 = vmatpush.bf16.msra.mxu0 %v3240
    %3762 = vmatmul.bf16.gmra.mxu0 %v2392
    %v3763 = vpop.f32.mrf.mxu0
    %v3764 = vadd.f32 %v3750, %v3763
    %v3765 = vpop.f32.mrf.mxu0
    %v3766 = vadd.f32 %v3752, %v3765
    %3767 = vdwg.mxu0
    %3768 = vmatpush.bf16.msra.mxu0 %v3300
    %3769 = vmatpush.bf16.msra.mxu0 %v3296
    %3770 = vmatpush.bf16.msra.mxu0 %v3292
    %3771 = vmatpush.bf16.msra.mxu0 %v3288
    %3772 = vmatpush.bf16.msra.mxu0 %v3284
    %3773 = vmatpush.bf16.msra.mxu0 %v3280
    %3774 = vmatpush.bf16.msra.mxu0 %v3276
    %3775 = vmatpush.bf16.msra.mxu0 %v3272
    %3776 = vmatmul.bf16.gmra.mxu0 %v2393
    %v3777 = vpop.f32.mrf.mxu0
    %v3778 = vadd.f32 %v3764, %v3777
    %v3779 = vpop.f32.mrf.mxu0
    %v3780 = vadd.f32 %v3766, %v3779
    %3781 = vdwg.mxu0
    %3782 = vmatpush.bf16.msra.mxu0 %v3332
    %3783 = vmatpush.bf16.msra.mxu0 %v3328
    %3784 = vmatpush.bf16.msra.mxu0 %v3324
    %3785 = vmatpush.bf16.msra.mxu0 %v3320
    %3786 = vmatpush.bf16.msra.mxu0 %v3316
    %3787 = vmatpush.bf16.msra.mxu0 %v3312
    %3788 = vmatpush.bf16.msra.mxu0 %v3308
    %3789 = vmatpush.bf16.msra.mxu0 %v3304
    %3790 = vmatmul.bf16.gmra.mxu0 %v2394
    %v3791 = vpop.f32.mrf.mxu0
    %v3792 = vadd.f32 %v3778, %v3791
    %v3793 = vpop.f32.mrf.mxu0
    %v3794 = vadd.f32 %v3780, %v3793
    %3795 = vdwg.mxu0
    %3796 = vmatpush.bf16.msra.mxu0 %v3364
    %3797 = vmatpush.bf16.msra.mxu0 %v3360
    %3798 = vmatpush.bf16.msra.mxu0 %v3356
    %3799 = vmatpush.bf16.msra.mxu0 %v3352
    %3800 = vmatpush.bf16.msra.mxu0 %v3348
    %3801 = vmatpush.bf16.msra.mxu0 %v3344
    %3802 = vmatpush.bf16.msra.mxu0 %v3340
    %3803 = vmatpush.bf16.msra.mxu0 %v3336
    %3804 = vmatmul.bf16.gmra.mxu0 %v2395
    %v3805 = vpop.f32.mrf.mxu0
    %v3806 = vadd.f32 %v3792, %v3805
    %v3807 = vpop.f32.mrf.mxu0
    %v3808 = vadd.f32 %v3794, %v3807
    %3809 = vdwg.mxu0
    %3810 = vmatpush.bf16.msra.mxu0 %v3205
    %3811 = vmatpush.bf16.msra.mxu0 %v3201
    %3812 = vmatpush.bf16.msra.mxu0 %v3197
    %3813 = vmatpush.bf16.msra.mxu0 %v3193
    %3814 = vmatpush.bf16.msra.mxu0 %v3189
    %3815 = vmatpush.bf16.msra.mxu0 %v3185
    %3816 = vmatpush.bf16.msra.mxu0 %v3181
    %3817 = vmatpush.bf16.msra.mxu0 %v3177
    %3818 = vmatmul.bf16.gmra.mxu0 %v2390
    %v3819 = vpop.f32.mrf.mxu0
    %v3820 = vadd.f32 %v2593, %v3819
    %v3821 = vpop.f32.mrf.mxu0
    %v3822 = vadd.f32 %v2593, %v3821
    %3823 = vdwg.mxu0
    %3824 = vmatpush.bf16.msra.mxu0 %v3237
    %3825 = vmatpush.bf16.msra.mxu0 %v3233
    %3826 = vmatpush.bf16.msra.mxu0 %v3229
    %3827 = vmatpush.bf16.msra.mxu0 %v3225
    %3828 = vmatpush.bf16.msra.mxu0 %v3221
    %3829 = vmatpush.bf16.msra.mxu0 %v3217
    %3830 = vmatpush.bf16.msra.mxu0 %v3213
    %3831 = vmatpush.bf16.msra.mxu0 %v3209
    %3832 = vmatmul.bf16.gmra.mxu0 %v2391
    %v3833 = vpop.f32.mrf.mxu0
    %v3834 = vadd.f32 %v3820, %v3833
    %v3835 = vpop.f32.mrf.mxu0
    %v3836 = vadd.f32 %v3822, %v3835
    %3837 = vdwg.mxu0
    %3838 = vmatpush.bf16.msra.mxu0 %v3269
    %3839 = vmatpush.bf16.msra.mxu0 %v3265
    %3840 = vmatpush.bf16.msra.mxu0 %v3261
    %3841 = vmatpush.bf16.msra.mxu0 %v3257
    %3842 = vmatpush.bf16.msra.mxu0 %v3253
    %3843 = vmatpush.bf16.msra.mxu0 %v3249
    %3844 = vmatpush.bf16.msra.mxu0 %v3245
    %3845 = vmatpush.bf16.msra.mxu0 %v3241
    %3846 = vmatmul.bf16.gmra.mxu0 %v2392
    %v3847 = vpop.f32.mrf.mxu0
    %v3848 = vadd.f32 %v3834, %v3847
    %v3849 = vpop.f32.mrf.mxu0
    %v3850 = vadd.f32 %v3836, %v3849
    %3851 = vdwg.mxu0
    %3852 = vmatpush.bf16.msra.mxu0 %v3301
    %3853 = vmatpush.bf16.msra.mxu0 %v3297
    %3854 = vmatpush.bf16.msra.mxu0 %v3293
    %3855 = vmatpush.bf16.msra.mxu0 %v3289
    %3856 = vmatpush.bf16.msra.mxu0 %v3285
    %3857 = vmatpush.bf16.msra.mxu0 %v3281
    %3858 = vmatpush.bf16.msra.mxu0 %v3277
    %3859 = vmatpush.bf16.msra.mxu0 %v3273
    %3860 = vmatmul.bf16.gmra.mxu0 %v2393
    %v3861 = vpop.f32.mrf.mxu0
    %v3862 = vadd.f32 %v3848, %v3861
    %v3863 = vpop.f32.mrf.mxu0
    %v3864 = vadd.f32 %v3850, %v3863
    %3865 = vdwg.mxu0
    %3866 = vmatpush.bf16.msra.mxu0 %v3333
    %3867 = vmatpush.bf16.msra.mxu0 %v3329
    %3868 = vmatpush.bf16.msra.mxu0 %v3325
    %3869 = vmatpush.bf16.msra.mxu0 %v3321
    %3870 = vmatpush.bf16.msra.mxu0 %v3317
    %3871 = vmatpush.bf16.msra.mxu0 %v3313
    %3872 = vmatpush.bf16.msra.mxu0 %v3309
    %3873 = vmatpush.bf16.msra.mxu0 %v3305
    %3874 = vmatmul.bf16.gmra.mxu0 %v2394
    %v3875 = vpop.f32.mrf.mxu0
    %v3876 = vadd.f32 %v3862, %v3875
    %v3877 = vpop.f32.mrf.mxu0
    %v3878 = vadd.f32 %v3864, %v3877
    %3879 = vdwg.mxu0
    %3880 = vmatpush.bf16.msra.mxu0 %v3365
    %3881 = vmatpush.bf16.msra.mxu0 %v3361
    %3882 = vmatpush.bf16.msra.mxu0 %v3357
    %3883 = vmatpush.bf16.msra.mxu0 %v3353
    %3884 = vmatpush.bf16.msra.mxu0 %v3349
    %3885 = vmatpush.bf16.msra.mxu0 %v3345
    %3886 = vmatpush.bf16.msra.mxu0 %v3341
    %3887 = vmatpush.bf16.msra.mxu0 %v3337
    %3888 = vmatmul.bf16.gmra.mxu0 %v2395
    %v3889 = vpop.f32.mrf.mxu0
    %v3890 = vadd.f32 %v3876, %v3889
    %v3891 = vpop.f32.mrf.mxu0
    %v3892 = vadd.f32 %v3878, %v3891
    %3893 = vdwg.mxu0
    %v3894 = vmax.f32 %v3638, 0.0
    %v3895 = vmax.f32 %v3722, 0.0
    %v3896 = vmax.f32 %v3806, 0.0
    %v3897 = vmax.f32 %v3890, 0.0
    %v3898 = vmax.f32 %v3640, 0.0
    %v3899 = vmax.f32 %v3724, 0.0
    %v3900 = vmax.f32 %v3808, 0.0
    %v3901 = vmax.f32 %v3892, 0.0
    %v3902 = vpack.c.bf16 %v3898, %v3894
    %v3903 = vpack.c.bf16 %v3899, %v3895
    %v3904 = vpack.c.bf16 %v3900, %v3896
    %v3905 = vpack.c.bf16 %v3901, %v3897
    %v3906 = vld [vmem:[#allocation9] sm:$0xf]
    %v3907 = vld [vmem:[#allocation9 + $0x4] sm:$0xf]
    %v3908 = vld [vmem:[#allocation9 + $0x8] sm:$0xf]
    %v3909 = vld [vmem:[#allocation9 + $0xc] sm:$0xf]
    %v3910 = vld [vmem:[#allocation9 + $0x10] sm:$0xf]
    %v3911 = vld [vmem:[#allocation9 + $0x14] sm:$0xf]
    %v3912 = vld [vmem:[#allocation9 + $0x18] sm:$0xf]
    %v3913 = vld [vmem:[#allocation9 + $0x1c] sm:$0xf]
    %v3914 = vld [vmem:[#allocation9 + $0x20] sm:$0xf]
    %v3915 = vld [vmem:[#allocation9 + $0x24] sm:$0xf]
    %v3916 = vld [vmem:[#allocation9 + $0x28] sm:$0xf]
    %v3917 = vld [vmem:[#allocation9 + $0x2c] sm:$0xf]
    %v3918 = vld [vmem:[#allocation9 + $0x30] sm:$0xf]
    %v3919 = vld [vmem:[#allocation9 + $0x34] sm:$0xf]
    %v3920 = vld [vmem:[#allocation9 + $0x38] sm:$0xf]
    %v3921 = vld [vmem:[#allocation9 + $0x3c] sm:$0xf]
    %v3922 = vld [vmem:[#allocation9 + $0x40] sm:$0xf]
    %v3923 = vld [vmem:[#allocation9 + $0x44] sm:$0xf]
    %v3924 = vld [vmem:[#allocation9 + $0x48] sm:$0xf]
    %v3925 = vld [vmem:[#allocation9 + $0x4c] sm:$0xf]
    %v3926 = vld [vmem:[#allocation9 + $0x50] sm:$0xf]
    %v3927 = vld [vmem:[#allocation9 + $0x54] sm:$0xf]
    %v3928 = vld [vmem:[#allocation9 + $0x58] sm:$0xf]
    %v3929 = vld [vmem:[#allocation9 + $0x5c] sm:$0xf]
    %v3930 = vld [vmem:[#allocation9 + $0x60] sm:$0xf]
    %v3931 = vld [vmem:[#allocation9 + $0x64] sm:$0xf]
    %v3932 = vld [vmem:[#allocation9 + $0x68] sm:$0xf]
    %v3933 = vld [vmem:[#allocation9 + $0x6c] sm:$0xf]
    %v3934 = vld [vmem:[#allocation9 + $0x70] sm:$0xf]
    %v3935 = vld [vmem:[#allocation9 + $0x74] sm:$0xf]
    %v3936 = vld [vmem:[#allocation9 + $0x78] sm:$0xf]
    %v3937 = vld [vmem:[#allocation9 + $0x7c] sm:$0xf]
    %v3938 = vld [vmem:[#allocation9 + $0x80] sm:$0xf]
    %v3939 = vld [vmem:[#allocation9 + $0x84] sm:$0xf]
    %v3940 = vld [vmem:[#allocation9 + $0x88] sm:$0xf]
    %v3941 = vld [vmem:[#allocation9 + $0x8c] sm:$0xf]
    %v3942 = vld [vmem:[#allocation9 + $0x90] sm:$0xf]
    %v3943 = vld [vmem:[#allocation9 + $0x94] sm:$0xf]
    %v3944 = vld [vmem:[#allocation9 + $0x98] sm:$0xf]
    %v3945 = vld [vmem:[#allocation9 + $0x9c] sm:$0xf]
    %v3946 = vld [vmem:[#allocation9 + $0xa0] sm:$0xf]
    %v3947 = vld [vmem:[#allocation9 + $0xa4] sm:$0xf]
    %v3948 = vld [vmem:[#allocation9 + $0xa8] sm:$0xf]
    %v3949 = vld [vmem:[#allocation9 + $0xac] sm:$0xf]
    %v3950 = vld [vmem:[#allocation9 + $0xb0] sm:$0xf]
    %v3951 = vld [vmem:[#allocation9 + $0xb4] sm:$0xf]
    %v3952 = vld [vmem:[#allocation9 + $0xb8] sm:$0xf]
    %v3953 = vld [vmem:[#allocation9 + $0xbc] sm:$0xf]
    %v3954 = vld [vmem:[#allocation9 + $0xc0] sm:$0xf]
    %v3955 = vld [vmem:[#allocation9 + $0xc4] sm:$0xf]
    %v3956 = vld [vmem:[#allocation9 + $0xc8] sm:$0xf]
    %v3957 = vld [vmem:[#allocation9 + $0xcc] sm:$0xf]
    %v3958 = vld [vmem:[#allocation9 + $0xd0] sm:$0xf]
    %v3959 = vld [vmem:[#allocation9 + $0xd4] sm:$0xf]
    %v3960 = vld [vmem:[#allocation9 + $0xd8] sm:$0xf]
    %v3961 = vld [vmem:[#allocation9 + $0xdc] sm:$0xf]
    %v3962 = vld [vmem:[#allocation9 + $0xe0] sm:$0xf]
    %v3963 = vld [vmem:[#allocation9 + $0xe4] sm:$0xf]
    %v3964 = vld [vmem:[#allocation9 + $0xe8] sm:$0xf]
    %v3965 = vld [vmem:[#allocation9 + $0xec] sm:$0xf]
    %v3966 = vld [vmem:[#allocation9 + $0xf0] sm:$0xf]
    %v3967 = vld [vmem:[#allocation9 + $0xf4] sm:$0xf]
    %v3968 = vld [vmem:[#allocation9 + $0xf8] sm:$0xf]
    %v3969 = vld [vmem:[#allocation9 + $0xfc] sm:$0xf]
    %v3970 = vld [vmem:[#allocation10] sm:$0x1]
    %v3972 = vperm.slane %v3970, 0
    %v4038 = vunpack.c.l.b16 %v3906
    %v4039 = vunpack.c.l.b16 %v3907
    %v4040 = vunpack.c.l.b16 %v3908
    %v4041 = vunpack.c.l.b16 %v3909
    %v4042 = vunpack.c.l.b16 %v3910
    %v4043 = vunpack.c.l.b16 %v3911
    %v4044 = vunpack.c.l.b16 %v3912
    %v4045 = vunpack.c.l.b16 %v3913
    %v4046 = vunpack.c.l.b16 %v3914
    %v4047 = vunpack.c.l.b16 %v3915
    %v4048 = vunpack.c.l.b16 %v3916
    %v4049 = vunpack.c.l.b16 %v3917
    %v4050 = vunpack.c.l.b16 %v3918
    %v4051 = vunpack.c.l.b16 %v3919
    %v4052 = vunpack.c.l.b16 %v3920
    %v4053 = vunpack.c.l.b16 %v3921
    %v4054 = vunpack.c.l.b16 %v3922
    %v4055 = vunpack.c.l.b16 %v3923
    %v4056 = vunpack.c.l.b16 %v3924
    %v4057 = vunpack.c.l.b16 %v3925
    %v4058 = vunpack.c.l.b16 %v3926
    %v4059 = vunpack.c.l.b16 %v3927
    %v4060 = vunpack.c.l.b16 %v3928
    %v4061 = vunpack.c.l.b16 %v3929
    %v4062 = vunpack.c.l.b16 %v3930
    %v4063 = vunpack.c.l.b16 %v3931
    %v4064 = vunpack.c.l.b16 %v3932
    %v4065 = vunpack.c.l.b16 %v3933
    %v4066 = vunpack.c.l.b16 %v3934
    %v4067 = vunpack.c.l.b16 %v3935
    %v4068 = vunpack.c.l.b16 %v3936
    %v4069 = vunpack.c.l.b16 %v3937
    %v4070 = vunpack.c.l.b16 %v3938
    %v4071 = vunpack.c.l.b16 %v3939
    %v4072 = vunpack.c.l.b16 %v3940
    %v4073 = vunpack.c.l.b16 %v3941
    %v4074 = vunpack.c.l.b16 %v3942
    %v4075 = vunpack.c.l.b16 %v3943
    %v4076 = vunpack.c.l.b16 %v3944
    %v4077 = vunpack.c.l.b16 %v3945
    %v4078 = vunpack.c.l.b16 %v3946
    %v4079 = vunpack.c.l.b16 %v3947
    %v4080 = vunpack.c.l.b16 %v3948
    %v4081 = vunpack.c.l.b16 %v3949
    %v4082 = vunpack.c.l.b16 %v3950
    %v4083 = vunpack.c.l.b16 %v3951
    %v4084 = vunpack.c.l.b16 %v3952
    %v4085 = vunpack.c.l.b16 %v3953
    %v4086 = vunpack.c.l.b16 %v3954
    %v4087 = vunpack.c.l.b16 %v3955
    %v4088 = vunpack.c.l.b16 %v3956
    %v4089 = vunpack.c.l.b16 %v3957
    %v4090 = vunpack.c.l.b16 %v3958
    %v4091 = vunpack.c.l.b16 %v3959
    %v4092 = vunpack.c.l.b16 %v3960
    %v4093 = vunpack.c.l.b16 %v3961
    %v4094 = vunpack.c.l.b16 %v3962
    %v4095 = vunpack.c.l.b16 %v3963
    %v4096 = vunpack.c.l.b16 %v3964
    %v4097 = vunpack.c.l.b16 %v3965
    %v4098 = vunpack.c.l.b16 %v3966
    %v4099 = vunpack.c.l.b16 %v3967
    %v4100 = vunpack.c.l.b16 %v3968
    %v4101 = vunpack.c.l.b16 %v3969
    %v4102 = vpack.c.b16 %v4039, %v4038
    %v4103 = vpack.c.b16 %v4041, %v4040
    %v4104 = vpack.c.b16 %v4043, %v4042
    %v4105 = vpack.c.b16 %v4045, %v4044
    %v4106 = vpack.c.b16 %v4047, %v4046
    %v4107 = vpack.c.b16 %v4049, %v4048
    %v4108 = vpack.c.b16 %v4051, %v4050
    %v4109 = vpack.c.b16 %v4053, %v4052
    %v4110 = vpack.c.b16 %v4055, %v4054
    %v4111 = vpack.c.b16 %v4057, %v4056
    %v4112 = vpack.c.b16 %v4059, %v4058
    %v4113 = vpack.c.b16 %v4061, %v4060
    %v4114 = vpack.c.b16 %v4063, %v4062
    %v4115 = vpack.c.b16 %v4065, %v4064
    %v4116 = vpack.c.b16 %v4067, %v4066
    %v4117 = vpack.c.b16 %v4069, %v4068
    %v4118 = vpack.c.b16 %v4071, %v4070
    %v4119 = vpack.c.b16 %v4073, %v4072
    %v4120 = vpack.c.b16 %v4075, %v4074
    %v4121 = vpack.c.b16 %v4077, %v4076
    %v4122 = vpack.c.b16 %v4079, %v4078
    %v4123 = vpack.c.b16 %v4081, %v4080
    %v4124 = vpack.c.b16 %v4083, %v4082
    %v4125 = vpack.c.b16 %v4085, %v4084
    %v4126 = vpack.c.b16 %v4087, %v4086
    %v4127 = vpack.c.b16 %v4089, %v4088
    %v4128 = vpack.c.b16 %v4091, %v4090
    %v4129 = vpack.c.b16 %v4093, %v4092
    %v4130 = vpack.c.b16 %v4095, %v4094
    %v4131 = vpack.c.b16 %v4097, %v4096
    %v4132 = vpack.c.b16 %v4099, %v4098
    %v4133 = vpack.c.b16 %v4101, %v4100
    %4166 = vmatpush.bf16.msra.mxu0 %v4109
    %4167 = vmatpush.bf16.msra.mxu0 %v4108
    %4168 = vmatpush.bf16.msra.mxu0 %v4107
    %4169 = vmatpush.bf16.msra.mxu0 %v4106
    %4170 = vmatpush.bf16.msra.mxu0 %v4105
    %4171 = vmatpush.bf16.msra.mxu0 %v4104
    %4172 = vmatpush.bf16.msra.mxu0 %v4103
    %4173 = vmatpush.bf16.msra.mxu0 %v4102
    %4174 = vmatmul.bf16.gmra.mxu0 %v3902
    %v4175 = vpop.f32.mrf.mxu0
    %v4176 = vadd.f32 %v3972, %v4175
    %v4177 = vpop.f32.mrf.mxu0
    %v4178 = vadd.f32 %v3972, %v4177
    %4179 = vdwg.mxu0
    %4180 = vmatpush.bf16.msra.mxu0 %v4117
    %4181 = vmatpush.bf16.msra.mxu0 %v4116
    %4182 = vmatpush.bf16.msra.mxu0 %v4115
    %4183 = vmatpush.bf16.msra.mxu0 %v4114
    %4184 = vmatpush.bf16.msra.mxu0 %v4113
    %4185 = vmatpush.bf16.msra.mxu0 %v4112
    %4186 = vmatpush.bf16.msra.mxu0 %v4111
    %4187 = vmatpush.bf16.msra.mxu0 %v4110
    %4188 = vmatmul.bf16.gmra.mxu0 %v3903
    %v4189 = vpop.f32.mrf.mxu0
    %v4190 = vadd.f32 %v4176, %v4189
    %v4191 = vpop.f32.mrf.mxu0
    %v4192 = vadd.f32 %v4178, %v4191
    %4193 = vdwg.mxu0
    %4194 = vmatpush.bf16.msra.mxu0 %v4125
    %4195 = vmatpush.bf16.msra.mxu0 %v4124
    %4196 = vmatpush.bf16.msra.mxu0 %v4123
    %4197 = vmatpush.bf16.msra.mxu0 %v4122
    %4198 = vmatpush.bf16.msra.mxu0 %v4121
    %4199 = vmatpush.bf16.msra.mxu0 %v4120
    %4200 = vmatpush.bf16.msra.mxu0 %v4119
    %4201 = vmatpush.bf16.msra.mxu0 %v4118
    %4202 = vmatmul.bf16.gmra.mxu0 %v3904
    %v4203 = vpop.f32.mrf.mxu0
    %v4204 = vadd.f32 %v4190, %v4203
    %v4205 = vpop.f32.mrf.mxu0
    %v4206 = vadd.f32 %v4192, %v4205
    %4207 = vdwg.mxu0
    %4208 = vmatpush.bf16.msra.mxu0 %v4133
    %4209 = vmatpush.bf16.msra.mxu0 %v4132
    %4210 = vmatpush.bf16.msra.mxu0 %v4131
    %4211 = vmatpush.bf16.msra.mxu0 %v4130
    %4212 = vmatpush.bf16.msra.mxu0 %v4129
    %4213 = vmatpush.bf16.msra.mxu0 %v4128
    %4214 = vmatpush.bf16.msra.mxu0 %v4127
    %4215 = vmatpush.bf16.msra.mxu0 %v4126
    %4216 = vmatmul.bf16.gmra.mxu0 %v3905
    %v4217 = vpop.f32.mrf.mxu0
    %v4218 = vadd.f32 %v4204, %v4217
    %v4219 = vpop.f32.mrf.mxu0
    %v4220 = vadd.f32 %v4206, %v4219
    %4221 = vdwg.mxu0
    %4222 = vmax.xlane.f32.xlu0 %v4218
    %v4223 = vpop.xlane.xlu0 %4222
    %4224 = vmax.xlane.f32.xlu0 %v4220
    %v4225 = vpop.xlane.xlu0 %4224
    %v4226 = vsub.f32 %v4218, %v4223
    %v4227 = vsub.f32 %v4220, %v4225
    %v4228 = vmul.f32 %v4226, 1.442695
    %v4229 = vpow.pop %v4228
    %v4230 = vmul.f32 %v4227, 1.442695
    %v4231 = vpow.pop %v4230
    %4232 = vadd.xlane.f32.xlu0 %v4229
    %v4233 = vpop.xlane.xlu0 %4232
    %4234 = vadd.xlane.f32.xlu0 %v4231
    %v4235 = vpop.xlane.xlu0 %4234
    %v4236 = vlog2.pop %v4233
    %v4237 = vmul.f32 %v4236, 0.6931472
    %v4238 = vlog2.pop %v4235
    %v4239 = vmul.f32 %v4238, 0.6931472
    %v4240 = vsub.f32 %v4226, %v4237
    %v4241 = vsub.f32 %v4227, %v4239
    %4242 = vst [vmem:[%s7] sm:$0xff] %v4240
    %4243 = vst [vmem:[%s7 + $0x8] sm:$0xff] %v4241
    // Predicated region
    $region54: #{bert_head_forward.1} parent=1 // pred_check
      _
    $region55: #{bert_head_forward.1} parent=1 // pred_check_branch
      %4245 = sbr.rel (0) target = $region57
    $region56: #{bert_head_forward.1} parent=1 // pred_region
      _
    $region57: #{bert_head_forward.1} parent=1 // pred_fallthru
      _
    // Predicated region
    $region58: #{bert_head_forward.1} parent=1 // pred_check
      _
    $region59: #{bert_head_forward.1} parent=1 // pred_check_branch
      %4247 = sbr.rel (0) target = $region61
    $region60: #{bert_head_forward.1} parent=1 // pred_region
      _
    $region61: #{bert_head_forward.1} parent=1 // pred_fallthru
      _
    %4248 = vsyncpa [#allocation3], 1
    %4249 = vsyncpa [#allocation5], 1
    %4250 = vsyncpa [#allocation8], 1
    %4251 = vsyncpa [#allocation11], 1

</llo_original>
